<compile_context>
chip_gen: v7x
topology: tpu7x:2x2x1
jax: 0.10.0
libtpu: 0.0.40
codegen_flags: <defaults>
</compile_context>

<pallas_src>
import jax
import jax.numpy as jnp
from jax import lax
from jax.experimental import pallas as pl
from jax.experimental.pallas import tpu as pltpu


_H_IN = 28            # input spatial size (MNIST)
_C1 = 20
_C2 = 50
_FC1 = 500
_OUT_PAD = 128        # lane-dense padded logits
_HIGH = lax.Precision.HIGHEST


# ---------------------------------------------------------------------------
# Fused forward kernel (B images per grid step)
# ---------------------------------------------------------------------------
def _net_kernel(x_ref, w1_ref, b1_ref, w2_ref, b2_ref,
                wf1_ref, bf1_ref, wf2_ref, bf2_ref, o_ref):
    B = x_ref.shape[1]
    x = x_ref[...]                                    # [28, B, 28]

    # ---- conv1: 5 banded matmuls (kh taps), fused with 2x2 max-pool -------
    # acc1 rows = (h, b); lanes 0..239 = conv1[h, 2v, c]  (index v*20+c),
    # lanes 256..495 = conv1[h, 2v+1, c].
    acc1 = None
    for kh in range(5):
        lhs = x[kh:kh + 24].reshape(24 * B, _H_IN)    # [24B, 28]
        term = jnp.dot(lhs, w1_ref[kh],
                       preferred_element_type=jnp.float32)      # [24B, 512]
        acc1 = term if acc1 is None else acc1 + term
    acc1 = acc1.reshape(24, B, 512)
    mw = jnp.maximum(acc1[:, :, 0:240], acc1[:, :, 256:496])    # max over w-pair
    mh = jnp.max(mw.reshape(12, 2, B, 240), axis=1)             # max over h-pair
    p1 = jnp.maximum(mh + b1_ref[...], 0.0)                     # [12, B, 240]
    # p1[h, b, w*20 + c] = pool1(relu(conv1 + bias))[b, c, h, w]

    # ---- conv2: 5 banded matmuls, fused with 2x2 max-pool ------------------
    acc2 = None
    for kh in range(5):
        lhs = p1[kh:kh + 8].reshape(8 * B, 240)                 # [8B, 240]
        term = jnp.dot(lhs, w2_ref[kh],
                       preferred_element_type=jnp.float32)      # [8B, 512]
        acc2 = term if acc2 is None else acc2 + term
    acc2 = acc2.reshape(8, B, 512)
    mw2 = jnp.maximum(acc2[:, :, 0:200], acc2[:, :, 256:456])
    mh2 = jnp.max(mw2.reshape(4, 2, B, 200), axis=1)
    p2 = jnp.maximum(mh2 + b2_ref[...], 0.0)                    # [4, B, 200]
    # p2[u, b, v*50 + co] = pool2(relu(conv2 + bias))[b, co, u, v]

    # ---- fc1: contraction over (u) x (v, co) --------------------------------
    accf = None
    for u in range(4):
        term = jnp.dot(p2[u], wf1_ref[u],
                       preferred_element_type=jnp.float32)      # [B, 500]
        accf = term if accf is None else accf + term
    a1 = jnp.maximum(accf + bf1_ref[...], 0.0)                  # [B, 500]

    # ---- fc2 (lane-dense padded logits) -------------------------------------
    logits = jnp.dot(a1, wf2_ref[...],
                     preferred_element_type=jnp.float32) + bf2_ref[...]
    o_ref[...] = logits.astype(o_ref.dtype)                     # [B, 128]


# ---------------------------------------------------------------------------
# Parameter preparation (PyTorch layouts -> banded / permuted kernel layouts)
# ---------------------------------------------------------------------------
def _prepare_params(params):
    f32 = jnp.float32
    nc = params["fc2_w"].shape[0]
    assert nc <= _OUT_PAD, "num_classes must be <= 128"

    kw = jnp.arange(5)[:, None, None]

    # conv1 banded weights: [5(kh), 28(w_in), 512]
    #   even block (lanes 0..239):   col v*20+c -> conv1 output at w = 2v
    #   odd  block (lanes 256..495): col v*20+c -> conv1 output at w = 2v+1
    wk1 = params["conv1_w"][:, 0].astype(f32)                 # [20, 5, 5]
    v1 = jnp.arange(12)[None, :, None]
    wi1 = jnp.arange(_H_IN)[None, None, :]
    p1e = (wi1 == 2 * v1 + kw).astype(f32)                    # [5, 12, 28]
    p1o = (wi1 == 2 * v1 + 1 + kw).astype(f32)
    w1e = jnp.einsum("qvw,cpq->pwvc", p1e, wk1,
                     precision=_HIGH).reshape(5, _H_IN, 240)
    w1o = jnp.einsum("qvw,cpq->pwvc", p1o, wk1,
                     precision=_HIGH).reshape(5, _H_IN, 240)
    z16 = jnp.zeros((5, _H_IN, 16), f32)
    w1band = jnp.concatenate([w1e, z16, w1o, z16], axis=-1)   # [5, 28, 512]
    b1t = jnp.tile(params["conv1_b"].astype(f32), 12).reshape(1, 240)

    # conv2 banded weights: [5(kh), 240(w_in*20+ci), 512]
    #   even block lanes 0..199, odd block lanes 256..455 (col = v*50+co)
    wk2 = params["conv2_w"].astype(f32)                       # [50, 20, 5, 5]
    v2 = jnp.arange(4)[None, :, None]
    wi2 = jnp.arange(12)[None, None, :]
    p2e = (wi2 == 2 * v2 + kw).astype(f32)                    # [5, 4, 12]
    p2o = (wi2 == 2 * v2 + 1 + kw).astype(f32)
    w2e = jnp.einsum("qvw,oipq->pwivo", p2e, wk2,
                     precision=_HIGH).reshape(5, 240, 200)
    w2o = jnp.einsum("qvw,oipq->pwivo", p2o, wk2,
                     precision=_HIGH).reshape(5, 240, 200)
    z56 = jnp.zeros((5, 240, 56), f32)
    w2band = jnp.concatenate([w2e, z56, w2o, z56], axis=-1)   # [5, 240, 512]
    b2t = jnp.tile(params["conv2_b"].astype(f32), 4).reshape(1, 200)

    # fc1: rows come from p2 layout (u, v*50+co); PyTorch flatten is (co,u,v).
    wf1 = (params["fc1_w"].astype(f32).reshape(_FC1, _C2, 4, 4)
           .transpose(2, 3, 1, 0).reshape(4, 200, _FC1))      # [4, 200, 500]
    bf1 = params["fc1_b"].astype(f32).reshape(1, _FC1)

    # fc2 padded to a lane-dense 128-wide output block.
    wf2 = jnp.zeros((_FC1, _OUT_PAD), f32).at[:, :nc].set(
        params["fc2_w"].astype(f32).T)
    bf2 = jnp.zeros((1, _OUT_PAD), f32).at[0, :nc].set(
        params["fc2_b"].astype(f32))
    return w1band, b1t, w2band, b2t, wf1, bf1, wf2, bf2


def _round_up(x, m):
    return (x + m - 1) // m * m


# ---------------------------------------------------------------------------
# Public forward pass
# ---------------------------------------------------------------------------
@jax.jit
def net_forward(x_nchw, params):
    """x_nchw: [N, 1, 28, 28] float32 -> logits [N, num_classes]."""
    n = x_nchw.shape[0]
    nc = params["fc2_w"].shape[0]
    kparams = _prepare_params(params)

    # Batch tile per grid step: large enough to amortise per-step overhead
    # and fill the MXU, small enough to stay well under v7x's 64 MiB VMEM.
    bt = 64 if n > 64 else _round_up(max(n, 1), 8)
    n_pad = _round_up(n, bt)

    img = x_nchw[:, 0, :, :].astype(jnp.float32)              # [N, 28, 28]
    if n_pad != n:
        img = jnp.pad(img, ((0, n_pad - n), (0, 0), (0, 0)))
    # Tiny XLA glue: put H leading and the batch on sublanes so every
    # in-kernel kh slice is a free leading-dim slice.  xk: [28, N_pad, 28]
    xk = jnp.transpose(img, (1, 0, 2))

    const3 = lambda i: (0, 0, 0)
    const2 = lambda i: (0, 0)
    in_specs = [
        pl.BlockSpec((_H_IN, bt, _H_IN), lambda i: (0, i, 0)),   # images
        pl.BlockSpec((5, _H_IN, 512), const3),                   # conv1 band
        pl.BlockSpec((1, 240), const2),                          # conv1 bias
        pl.BlockSpec((5, 240, 512), const3),                     # conv2 band
        pl.BlockSpec((1, 200), const2),                          # conv2 bias
        pl.BlockSpec((4, 200, _FC1), const3),                    # fc1 W
        pl.BlockSpec((1, _FC1), const2),                         # fc1 b
        pl.BlockSpec((_FC1, _OUT_PAD), const2),                  # fc2 W (padded)
        pl.BlockSpec((1, _OUT_PAD), const2),                     # fc2 b (padded)
    ]
    out = pl.pallas_call(
        _net_kernel,
        out_shape=jax.ShapeDtypeStruct((n_pad, _OUT_PAD), jnp.float32),
        grid=(n_pad // bt,),
        in_specs=in_specs,
        out_specs=pl.BlockSpec((bt, _OUT_PAD), lambda i: (i, 0)),
        compiler_params=pltpu.CompilerParams(
            dimension_semantics=("parallel",),
            vmem_limit_bytes=48 * 1024 * 1024),
    )(xk, *kparams)
    return out[:n, :nc]


# ---------------------------------------------------------------------------
# Parameter init (PyTorch-convention layouts) and pure-JAX reference
# ---------------------------------------------------------------------------
def init_params(key, num_classes=10):
    ks = jax.random.split(key, 8)

    def normal(k, shape, fan_in):
        return jax.random.normal(k, shape, jnp.float32) / jnp.sqrt(fan_in)

    return {
        "conv1_w": normal(ks[0], (_C1, 1, 5, 5), 25.0),
        "conv1_b": 0.01 * jax.random.normal(ks[1], (_C1,), jnp.float32),
        "conv2_w": normal(ks[2], (_C2, _C1, 5, 5), 25.0 * _C1),
        "conv2_b": 0.01 * jax.random.normal(ks[3], (_C2,), jnp.float32),
        "fc1_w": normal(ks[4], (_FC1, 4 * 4 * _C2), float(4 * 4 * _C2)),
        "fc1_b": 0.01 * jax.random.normal(ks[5], (_FC1,), jnp.float32),
        "fc2_w": normal(ks[6], (num_classes, _FC1), float(_FC1)),
        "fc2_b": 0.01 * jax.random.normal(ks[7], (num_classes,), jnp.float32),
    }


def reference_forward(x, params):
    """Pure-JAX (XLA) replica of the PyTorch Net forward (NCHW semantics)."""
    dn = ("NCHW", "OIHW", "NCHW")

    def conv(x, w, b):
        y = lax.conv_general_dilated(x, w, (1, 1), "VALID",
                                     dimension_numbers=dn, precision=_HIGH)
        return jax.nn.relu(y + b.reshape(1, -1, 1, 1))

    def pool(x):
        return lax.reduce_window(x, -jnp.inf, lax.max,
                                 (1, 1, 2, 2), (1, 1, 2, 2), "VALID")

    y = pool(conv(x, params["conv1_w"], params["conv1_b"]))
    y = pool(conv(y, params["conv2_w"], params["conv2_b"]))
    y = y.reshape(y.shape[0], -1)                      # PyTorch (C, H, W) flatten
    y = jax.nn.relu(
        jnp.dot(y, params["fc1_w"].T, precision=_HIGH) + params["fc1_b"])
    return jnp.dot(y, params["fc2_w"].T, precision=_HIGH) + params["fc2_b"]


if __name__ == "__main__":
    key = jax.random.PRNGKey(0)
    pkey, xkey = jax.random.split(key)
    params = init_params(pkey, num_classes=10)
    # MNIST-shaped input (28x28x1 is required by fc1 = 4*4*50); batch = 2.
    x = jax.random.normal(xkey, (2, 1, 28, 28), jnp.float32)

    out = net_forward(x, params)
    jax.block_until_ready(out)
    assert out.shape == (2, 10), out.shape

    ref = reference_forward(x, params)
    err = float(jnp.max(jnp.abs(out - ref)))
    # Loose enough to absorb XLA-vs-MXU f32 matmul pass-count differences
    # across TPU generations; accumulation-order error alone is ~1e-5.
    assert err < 2e-2, err

    print("KERNEL_OK")
</pallas_src>

<mosaic_0001>
module attributes {stable_mosaic.version = 11 : i64} {
  func.func @_net_kernel(%arg0: i32, %arg1: memref<28x8x28xf32, #tpu.memory_space<vmem>>, %arg2: memref<5x28x512xf32, #tpu.memory_space<vmem>>, %arg3: memref<1x240xf32, #tpu.memory_space<vmem>>, %arg4: memref<5x240x512xf32, #tpu.memory_space<vmem>>, %arg5: memref<1x200xf32, #tpu.memory_space<vmem>>, %arg6: memref<4x200x500xf32, #tpu.memory_space<vmem>>, %arg7: memref<1x500xf32, #tpu.memory_space<vmem>>, %arg8: memref<500x128xf32, #tpu.memory_space<vmem>>, %arg9: memref<1x128xf32, #tpu.memory_space<vmem>>, %arg10: memref<8x128xf32, #tpu.memory_space<vmem>>) attributes {dimension_semantics = [#tpu.dimension_semantics<parallel>], iteration_bounds = array<i64: 1>, scalar_prefetch = 0 : i64, scratch_operands = 0 : i64, tpu.core_type = #tpu.core_type<tc>, window_params = [{transform_indices = @transform_0, window_bounds = array<i64: 28, 8, 28>}, {pipeline_mode = #tpu.pipeline_mode<synchronous>, transform_indices = @transform_1, window_bounds = array<i64: 5, 28, 512>}, {pipeline_mode = #tpu.pipeline_mode<synchronous>, transform_indices = @transform_2, window_bounds = array<i64: 1, 240>}, {pipeline_mode = #tpu.pipeline_mode<synchronous>, transform_indices = @transform_3, window_bounds = array<i64: 5, 240, 512>}, {pipeline_mode = #tpu.pipeline_mode<synchronous>, transform_indices = @transform_4, window_bounds = array<i64: 1, 200>}, {pipeline_mode = #tpu.pipeline_mode<synchronous>, transform_indices = @transform_5, window_bounds = array<i64: 4, 200, 500>}, {pipeline_mode = #tpu.pipeline_mode<synchronous>, transform_indices = @transform_6, window_bounds = array<i64: 1, 500>}, {pipeline_mode = #tpu.pipeline_mode<synchronous>, transform_indices = @transform_7, window_bounds = array<i64: 500, 128>}, {pipeline_mode = #tpu.pipeline_mode<synchronous>, transform_indices = @transform_8, window_bounds = array<i64: 1, 128>}, {transform_indices = @transform_9, window_bounds = array<i64: 8, 128>}]} {
    %c0 = arith.constant 0 : index
    %c0_0 = arith.constant 0 : index
    %c0_1 = arith.constant 0 : index
    %0 = vector.load %arg1[%c0, %c0_0, %c0_1] : memref<28x8x28xf32, #tpu.memory_space<vmem>>, vector<28x8x28xf32>
    %1 = vector.extract_strided_slice %0 {offsets = [0, 0, 0], sizes = [24, 8, 28], strides = [1, 1, 1]} : vector<28x8x28xf32> to vector<24x8x28xf32>
    %2 = vector.shape_cast %1 : vector<24x8x28xf32> to vector<192x28xf32>
    %c0_2 = arith.constant 0 : index
    %c0_3 = arith.constant 0 : index
    %c0_4 = arith.constant 0 : index
    %3 = vector.load %arg2[%c0_2, %c0_3, %c0_4] : memref<5x28x512xf32, #tpu.memory_space<vmem>>, vector<1x28x512xf32>
    %4 = vector.shape_cast %3 : vector<1x28x512xf32> to vector<28x512xf32>
    %cst = arith.constant dense<0.000000e+00> : vector<192x512xf32>
    %5 = tpu.matmul %2, %4, %cst {dimension_numbers = #tpu.dot_dimension_numbers<[1], [0], [0], [1], [0, 0, 1, 1], [], []>} : vector<192x28xf32>, vector<28x512xf32>, vector<192x512xf32> -> vector<192x512xf32>
    %6 = vector.extract_strided_slice %0 {offsets = [1, 0, 0], sizes = [24, 8, 28], strides = [1, 1, 1]} : vector<28x8x28xf32> to vector<24x8x28xf32>
    %7 = vector.shape_cast %6 : vector<24x8x28xf32> to vector<192x28xf32>
    %c1 = arith.constant 1 : index
    %c0_5 = arith.constant 0 : index
    %c0_6 = arith.constant 0 : index
    %8 = vector.load %arg2[%c1, %c0_5, %c0_6] : memref<5x28x512xf32, #tpu.memory_space<vmem>>, vector<1x28x512xf32>
    %9 = vector.shape_cast %8 : vector<1x28x512xf32> to vector<28x512xf32>
    %cst_7 = arith.constant dense<0.000000e+00> : vector<192x512xf32>
    %10 = tpu.matmul %7, %9, %cst_7 {dimension_numbers = #tpu.dot_dimension_numbers<[1], [0], [0], [1], [0, 0, 1, 1], [], []>} : vector<192x28xf32>, vector<28x512xf32>, vector<192x512xf32> -> vector<192x512xf32>
    %11 = arith.addf %5, %10 : vector<192x512xf32>
    %12 = vector.extract_strided_slice %0 {offsets = [2, 0, 0], sizes = [24, 8, 28], strides = [1, 1, 1]} : vector<28x8x28xf32> to vector<24x8x28xf32>
    %13 = vector.shape_cast %12 : vector<24x8x28xf32> to vector<192x28xf32>
    %c2 = arith.constant 2 : index
    %c0_8 = arith.constant 0 : index
    %c0_9 = arith.constant 0 : index
    %14 = vector.load %arg2[%c2, %c0_8, %c0_9] : memref<5x28x512xf32, #tpu.memory_space<vmem>>, vector<1x28x512xf32>
    %15 = vector.shape_cast %14 : vector<1x28x512xf32> to vector<28x512xf32>
    %cst_10 = arith.constant dense<0.000000e+00> : vector<192x512xf32>
    %16 = tpu.matmul %13, %15, %cst_10 {dimension_numbers = #tpu.dot_dimension_numbers<[1], [0], [0], [1], [0, 0, 1, 1], [], []>} : vector<192x28xf32>, vector<28x512xf32>, vector<192x512xf32> -> vector<192x512xf32>
    %17 = arith.addf %11, %16 : vector<192x512xf32>
    %18 = vector.extract_strided_slice %0 {offsets = [3, 0, 0], sizes = [24, 8, 28], strides = [1, 1, 1]} : vector<28x8x28xf32> to vector<24x8x28xf32>
    %19 = vector.shape_cast %18 : vector<24x8x28xf32> to vector<192x28xf32>
    %c3 = arith.constant 3 : index
    %c0_11 = arith.constant 0 : index
    %c0_12 = arith.constant 0 : index
    %20 = vector.load %arg2[%c3, %c0_11, %c0_12] : memref<5x28x512xf32, #tpu.memory_space<vmem>>, vector<1x28x512xf32>
    %21 = vector.shape_cast %20 : vector<1x28x512xf32> to vector<28x512xf32>
    %cst_13 = arith.constant dense<0.000000e+00> : vector<192x512xf32>
    %22 = tpu.matmul %19, %21, %cst_13 {dimension_numbers = #tpu.dot_dimension_numbers<[1], [0], [0], [1], [0, 0, 1, 1], [], []>} : vector<192x28xf32>, vector<28x512xf32>, vector<192x512xf32> -> vector<192x512xf32>
    %23 = arith.addf %17, %22 : vector<192x512xf32>
    %24 = vector.extract_strided_slice %0 {offsets = [4, 0, 0], sizes = [24, 8, 28], strides = [1, 1, 1]} : vector<28x8x28xf32> to vector<24x8x28xf32>
    %25 = vector.shape_cast %24 : vector<24x8x28xf32> to vector<192x28xf32>
    %c4 = arith.constant 4 : index
    %c0_14 = arith.constant 0 : index
    %c0_15 = arith.constant 0 : index
    %26 = vector.load %arg2[%c4, %c0_14, %c0_15] : memref<5x28x512xf32, #tpu.memory_space<vmem>>, vector<1x28x512xf32>
    %27 = vector.shape_cast %26 : vector<1x28x512xf32> to vector<28x512xf32>
    %cst_16 = arith.constant dense<0.000000e+00> : vector<192x512xf32>
    %28 = tpu.matmul %25, %27, %cst_16 {dimension_numbers = #tpu.dot_dimension_numbers<[1], [0], [0], [1], [0, 0, 1, 1], [], []>} : vector<192x28xf32>, vector<28x512xf32>, vector<192x512xf32> -> vector<192x512xf32>
    %29 = arith.addf %23, %28 : vector<192x512xf32>
    %30 = vector.shape_cast %29 : vector<192x512xf32> to vector<24x8x512xf32>
    %31 = vector.extract_strided_slice %30 {offsets = [0, 0, 0], sizes = [24, 8, 240], strides = [1, 1, 1]} : vector<24x8x512xf32> to vector<24x8x240xf32>
    %32 = vector.extract_strided_slice %30 {offsets = [0, 0, 256], sizes = [24, 8, 240], strides = [1, 1, 1]} : vector<24x8x512xf32> to vector<24x8x240xf32>
    %33 = arith.maximumf %31, %32 : vector<24x8x240xf32>
    %34 = vector.shape_cast %33 : vector<24x8x240xf32> to vector<12x2x8x240xf32>
    %cst_17 = arith.constant dense<0xFF800000> : vector<12x8x240xf32>
    %35 = vector.multi_reduction <maximumf>, %34, %cst_17 [1] : vector<12x2x8x240xf32> to vector<12x8x240xf32>
    %c0_18 = arith.constant 0 : index
    %c0_19 = arith.constant 0 : index
    %36 = vector.load %arg3[%c0_18, %c0_19] : memref<1x240xf32, #tpu.memory_space<vmem>>, vector<1x240xf32>
    %37 = vector.shape_cast %36 : vector<1x240xf32> to vector<1x1x240xf32>
    %38 = vector.broadcast %37 : vector<1x1x240xf32> to vector<12x8x240xf32>
    %39 = arith.addf %35, %38 : vector<12x8x240xf32>
    %cst_20 = arith.constant 0.000000e+00 : f32
    %40 = vector.broadcast %cst_20 : f32 to vector<12x8x240xf32>
    %41 = arith.maximumf %39, %40 : vector<12x8x240xf32>
    %42 = vector.extract_strided_slice %41 {offsets = [0, 0, 0], sizes = [8, 8, 240], strides = [1, 1, 1]} : vector<12x8x240xf32> to vector<8x8x240xf32>
    %43 = vector.shape_cast %42 : vector<8x8x240xf32> to vector<64x240xf32>
    %c0_21 = arith.constant 0 : index
    %c0_22 = arith.constant 0 : index
    %c0_23 = arith.constant 0 : index
    %44 = vector.load %arg4[%c0_21, %c0_22, %c0_23] : memref<5x240x512xf32, #tpu.memory_space<vmem>>, vector<1x240x512xf32>
    %45 = vector.shape_cast %44 : vector<1x240x512xf32> to vector<240x512xf32>
    %cst_24 = arith.constant dense<0.000000e+00> : vector<64x512xf32>
    %46 = tpu.matmul %43, %45, %cst_24 {dimension_numbers = #tpu.dot_dimension_numbers<[1], [0], [0], [1], [0, 0, 1, 1], [], []>} : vector<64x240xf32>, vector<240x512xf32>, vector<64x512xf32> -> vector<64x512xf32>
    %47 = vector.extract_strided_slice %41 {offsets = [1, 0, 0], sizes = [8, 8, 240], strides = [1, 1, 1]} : vector<12x8x240xf32> to vector<8x8x240xf32>
    %48 = vector.shape_cast %47 : vector<8x8x240xf32> to vector<64x240xf32>
    %c1_25 = arith.constant 1 : index
    %c0_26 = arith.constant 0 : index
    %c0_27 = arith.constant 0 : index
    %49 = vector.load %arg4[%c1_25, %c0_26, %c0_27] : memref<5x240x512xf32, #tpu.memory_space<vmem>>, vector<1x240x512xf32>
    %50 = vector.shape_cast %49 : vector<1x240x512xf32> to vector<240x512xf32>
    %cst_28 = arith.constant dense<0.000000e+00> : vector<64x512xf32>
    %51 = tpu.matmul %48, %50, %cst_28 {dimension_numbers = #tpu.dot_dimension_numbers<[1], [0], [0], [1], [0, 0, 1, 1], [], []>} : vector<64x240xf32>, vector<240x512xf32>, vector<64x512xf32> -> vector<64x512xf32>
    %52 = arith.addf %46, %51 : vector<64x512xf32>
    %53 = vector.extract_strided_slice %41 {offsets = [2, 0, 0], sizes = [8, 8, 240], strides = [1, 1, 1]} : vector<12x8x240xf32> to vector<8x8x240xf32>
    %54 = vector.shape_cast %53 : vector<8x8x240xf32> to vector<64x240xf32>
    %c2_29 = arith.constant 2 : index
    %c0_30 = arith.constant 0 : index
    %c0_31 = arith.constant 0 : index
    %55 = vector.load %arg4[%c2_29, %c0_30, %c0_31] : memref<5x240x512xf32, #tpu.memory_space<vmem>>, vector<1x240x512xf32>
    %56 = vector.shape_cast %55 : vector<1x240x512xf32> to vector<240x512xf32>
    %cst_32 = arith.constant dense<0.000000e+00> : vector<64x512xf32>
    %57 = tpu.matmul %54, %56, %cst_32 {dimension_numbers = #tpu.dot_dimension_numbers<[1], [0], [0], [1], [0, 0, 1, 1], [], []>} : vector<64x240xf32>, vector<240x512xf32>, vector<64x512xf32> -> vector<64x512xf32>
    %58 = arith.addf %52, %57 : vector<64x512xf32>
    %59 = vector.extract_strided_slice %41 {offsets = [3, 0, 0], sizes = [8, 8, 240], strides = [1, 1, 1]} : vector<12x8x240xf32> to vector<8x8x240xf32>
    %60 = vector.shape_cast %59 : vector<8x8x240xf32> to vector<64x240xf32>
    %c3_33 = arith.constant 3 : index
    %c0_34 = arith.constant 0 : index
    %c0_35 = arith.constant 0 : index
    %61 = vector.load %arg4[%c3_33, %c0_34, %c0_35] : memref<5x240x512xf32, #tpu.memory_space<vmem>>, vector<1x240x512xf32>
    %62 = vector.shape_cast %61 : vector<1x240x512xf32> to vector<240x512xf32>
    %cst_36 = arith.constant dense<0.000000e+00> : vector<64x512xf32>
    %63 = tpu.matmul %60, %62, %cst_36 {dimension_numbers = #tpu.dot_dimension_numbers<[1], [0], [0], [1], [0, 0, 1, 1], [], []>} : vector<64x240xf32>, vector<240x512xf32>, vector<64x512xf32> -> vector<64x512xf32>
    %64 = arith.addf %58, %63 : vector<64x512xf32>
    %65 = vector.extract_strided_slice %41 {offsets = [4, 0, 0], sizes = [8, 8, 240], strides = [1, 1, 1]} : vector<12x8x240xf32> to vector<8x8x240xf32>
    %66 = vector.shape_cast %65 : vector<8x8x240xf32> to vector<64x240xf32>
    %c4_37 = arith.constant 4 : index
    %c0_38 = arith.constant 0 : index
    %c0_39 = arith.constant 0 : index
    %67 = vector.load %arg4[%c4_37, %c0_38, %c0_39] : memref<5x240x512xf32, #tpu.memory_space<vmem>>, vector<1x240x512xf32>
    %68 = vector.shape_cast %67 : vector<1x240x512xf32> to vector<240x512xf32>
    %cst_40 = arith.constant dense<0.000000e+00> : vector<64x512xf32>
    %69 = tpu.matmul %66, %68, %cst_40 {dimension_numbers = #tpu.dot_dimension_numbers<[1], [0], [0], [1], [0, 0, 1, 1], [], []>} : vector<64x240xf32>, vector<240x512xf32>, vector<64x512xf32> -> vector<64x512xf32>
    %70 = arith.addf %64, %69 : vector<64x512xf32>
    %71 = vector.shape_cast %70 : vector<64x512xf32> to vector<8x8x512xf32>
    %72 = vector.extract_strided_slice %71 {offsets = [0, 0, 0], sizes = [8, 8, 200], strides = [1, 1, 1]} : vector<8x8x512xf32> to vector<8x8x200xf32>
    %73 = vector.extract_strided_slice %71 {offsets = [0, 0, 256], sizes = [8, 8, 200], strides = [1, 1, 1]} : vector<8x8x512xf32> to vector<8x8x200xf32>
    %74 = arith.maximumf %72, %73 : vector<8x8x200xf32>
    %75 = vector.shape_cast %74 : vector<8x8x200xf32> to vector<4x2x8x200xf32>
    %cst_41 = arith.constant dense<0xFF800000> : vector<4x8x200xf32>
    %76 = vector.multi_reduction <maximumf>, %75, %cst_41 [1] : vector<4x2x8x200xf32> to vector<4x8x200xf32>
    %c0_42 = arith.constant 0 : index
    %c0_43 = arith.constant 0 : index
    %77 = vector.load %arg5[%c0_42, %c0_43] : memref<1x200xf32, #tpu.memory_space<vmem>>, vector<1x200xf32>
    %78 = vector.shape_cast %77 : vector<1x200xf32> to vector<1x1x200xf32>
    %79 = vector.broadcast %78 : vector<1x1x200xf32> to vector<4x8x200xf32>
    %80 = arith.addf %76, %79 : vector<4x8x200xf32>
    %cst_44 = arith.constant 0.000000e+00 : f32
    %81 = vector.broadcast %cst_44 : f32 to vector<4x8x200xf32>
    %82 = arith.maximumf %80, %81 : vector<4x8x200xf32>
    %83 = vector.extract_strided_slice %82 {offsets = [0, 0, 0], sizes = [1, 8, 200], strides = [1, 1, 1]} : vector<4x8x200xf32> to vector<1x8x200xf32>
    %84 = vector.shape_cast %83 : vector<1x8x200xf32> to vector<8x200xf32>
    %c0_45 = arith.constant 0 : index
    %c0_46 = arith.constant 0 : index
    %c0_47 = arith.constant 0 : index
    %85 = vector.load %arg6[%c0_45, %c0_46, %c0_47] : memref<4x200x500xf32, #tpu.memory_space<vmem>>, vector<1x200x500xf32>
    %86 = vector.shape_cast %85 : vector<1x200x500xf32> to vector<200x500xf32>
    %cst_48 = arith.constant dense<0.000000e+00> : vector<8x500xf32>
    %87 = tpu.matmul %84, %86, %cst_48 {dimension_numbers = #tpu.dot_dimension_numbers<[1], [0], [0], [1], [0, 0, 1, 1], [], []>} : vector<8x200xf32>, vector<200x500xf32>, vector<8x500xf32> -> vector<8x500xf32>
    %88 = vector.extract_strided_slice %82 {offsets = [1, 0, 0], sizes = [1, 8, 200], strides = [1, 1, 1]} : vector<4x8x200xf32> to vector<1x8x200xf32>
    %89 = vector.shape_cast %88 : vector<1x8x200xf32> to vector<8x200xf32>
    %c1_49 = arith.constant 1 : index
    %c0_50 = arith.constant 0 : index
    %c0_51 = arith.constant 0 : index
    %90 = vector.load %arg6[%c1_49, %c0_50, %c0_51] : memref<4x200x500xf32, #tpu.memory_space<vmem>>, vector<1x200x500xf32>
    %91 = vector.shape_cast %90 : vector<1x200x500xf32> to vector<200x500xf32>
    %cst_52 = arith.constant dense<0.000000e+00> : vector<8x500xf32>
    %92 = tpu.matmul %89, %91, %cst_52 {dimension_numbers = #tpu.dot_dimension_numbers<[1], [0], [0], [1], [0, 0, 1, 1], [], []>} : vector<8x200xf32>, vector<200x500xf32>, vector<8x500xf32> -> vector<8x500xf32>
    %93 = arith.addf %87, %92 : vector<8x500xf32>
    %94 = vector.extract_strided_slice %82 {offsets = [2, 0, 0], sizes = [1, 8, 200], strides = [1, 1, 1]} : vector<4x8x200xf32> to vector<1x8x200xf32>
    %95 = vector.shape_cast %94 : vector<1x8x200xf32> to vector<8x200xf32>
    %c2_53 = arith.constant 2 : index
    %c0_54 = arith.constant 0 : index
    %c0_55 = arith.constant 0 : index
    %96 = vector.load %arg6[%c2_53, %c0_54, %c0_55] : memref<4x200x500xf32, #tpu.memory_space<vmem>>, vector<1x200x500xf32>
    %97 = vector.shape_cast %96 : vector<1x200x500xf32> to vector<200x500xf32>
    %cst_56 = arith.constant dense<0.000000e+00> : vector<8x500xf32>
    %98 = tpu.matmul %95, %97, %cst_56 {dimension_numbers = #tpu.dot_dimension_numbers<[1], [0], [0], [1], [0, 0, 1, 1], [], []>} : vector<8x200xf32>, vector<200x500xf32>, vector<8x500xf32> -> vector<8x500xf32>
    %99 = arith.addf %93, %98 : vector<8x500xf32>
    %100 = vector.extract_strided_slice %82 {offsets = [3, 0, 0], sizes = [1, 8, 200], strides = [1, 1, 1]} : vector<4x8x200xf32> to vector<1x8x200xf32>
    %101 = vector.shape_cast %100 : vector<1x8x200xf32> to vector<8x200xf32>
    %c3_57 = arith.constant 3 : index
    %c0_58 = arith.constant 0 : index
    %c0_59 = arith.constant 0 : index
    %102 = vector.load %arg6[%c3_57, %c0_58, %c0_59] : memref<4x200x500xf32, #tpu.memory_space<vmem>>, vector<1x200x500xf32>
    %103 = vector.shape_cast %102 : vector<1x200x500xf32> to vector<200x500xf32>
    %cst_60 = arith.constant dense<0.000000e+00> : vector<8x500xf32>
    %104 = tpu.matmul %101, %103, %cst_60 {dimension_numbers = #tpu.dot_dimension_numbers<[1], [0], [0], [1], [0, 0, 1, 1], [], []>} : vector<8x200xf32>, vector<200x500xf32>, vector<8x500xf32> -> vector<8x500xf32>
    %105 = arith.addf %99, %104 : vector<8x500xf32>
    %c0_61 = arith.constant 0 : index
    %c0_62 = arith.constant 0 : index
    %106 = vector.load %arg7[%c0_61, %c0_62] : memref<1x500xf32, #tpu.memory_space<vmem>>, vector<1x500xf32>
    %107 = vector.broadcast %106 : vector<1x500xf32> to vector<8x500xf32>
    %108 = arith.addf %105, %107 : vector<8x500xf32>
    %cst_63 = arith.constant 0.000000e+00 : f32
    %109 = vector.broadcast %cst_63 : f32 to vector<8x500xf32>
    %110 = arith.maximumf %108, %109 : vector<8x500xf32>
    %c0_64 = arith.constant 0 : index
    %c0_65 = arith.constant 0 : index
    %111 = vector.load %arg8[%c0_64, %c0_65] : memref<500x128xf32, #tpu.memory_space<vmem>>, vector<500x128xf32>
    %cst_66 = arith.constant dense<0.000000e+00> : vector<8x128xf32>
    %112 = tpu.matmul %110, %111, %cst_66 {dimension_numbers = #tpu.dot_dimension_numbers<[1], [0], [0], [1], [0, 0, 1, 1], [], []>} : vector<8x500xf32>, vector<500x128xf32>, vector<8x128xf32> -> vector<8x128xf32>
    %c0_67 = arith.constant 0 : index
    %c0_68 = arith.constant 0 : index
    %113 = vector.load %arg9[%c0_67, %c0_68] : memref<1x128xf32, #tpu.memory_space<vmem>>, vector<1x128xf32>
    %114 = vector.broadcast %113 : vector<1x128xf32> to vector<8x128xf32>
    %115 = arith.addf %112, %114 : vector<8x128xf32>
    %c0_69 = arith.constant 0 : index
    %c0_70 = arith.constant 0 : index
    %116 = vector.load %arg10[%c0_69, %c0_70] : memref<8x128xf32, #tpu.memory_space<vmem>>, vector<8x128xf32>
    tpu.vector_store %arg10[%c0_69, %c0_70], %115 {strides = array<i32>} : memref<8x128xf32, #tpu.memory_space<vmem>>, vector<8x128xf32>,
    return
  }
  func.func @transform_0(%arg0: i32) -> (i32, i32, i32) {
    %c0_i32 = arith.constant 0 : i32
    %c0_i32_0 = arith.constant 0 : i32
    %c0_i32_1 = arith.constant 0 : i32
    return %c0_i32, %arg0, %c0_i32_0 : i32, i32, i32
  }
  func.func @transform_1(%arg0: i32) -> (i32, i32, i32) {
    %c0_i32 = arith.constant 0 : i32
    %c0_i32_0 = arith.constant 0 : i32
    %c0_i32_1 = arith.constant 0 : i32
    %c0_i32_2 = arith.constant 0 : i32
    return %c0_i32, %c0_i32_0, %c0_i32_1 : i32, i32, i32
  }
  func.func @transform_2(%arg0: i32) -> (i32, i32) {
    %c0_i32 = arith.constant 0 : i32
    %c0_i32_0 = arith.constant 0 : i32
    %c0_i32_1 = arith.constant 0 : i32
    return %c0_i32, %c0_i32_0 : i32, i32
  }
  func.func @transform_3(%arg0: i32) -> (i32, i32, i32) {
    %c0_i32 = arith.constant 0 : i32
    %c0_i32_0 = arith.constant 0 : i32
    %c0_i32_1 = arith.constant 0 : i32
    %c0_i32_2 = arith.constant 0 : i32
    return %c0_i32, %c0_i32_0, %c0_i32_1 : i32, i32, i32
  }
  func.func @transform_4(%arg0: i32) -> (i32, i32) {
    %c0_i32 = arith.constant 0 : i32
    %c0_i32_0 = arith.constant 0 : i32
    %c0_i32_1 = arith.constant 0 : i32
    return %c0_i32, %c0_i32_0 : i32, i32
  }
  func.func @transform_5(%arg0: i32) -> (i32, i32, i32) {
    %c0_i32 = arith.constant 0 : i32
    %c0_i32_0 = arith.constant 0 : i32
    %c0_i32_1 = arith.constant 0 : i32
    %c0_i32_2 = arith.constant 0 : i32
    return %c0_i32, %c0_i32_0, %c0_i32_1 : i32, i32, i32
  }
  func.func @transform_6(%arg0: i32) -> (i32, i32) {
    %c0_i32 = arith.constant 0 : i32
    %c0_i32_0 = arith.constant 0 : i32
    %c0_i32_1 = arith.constant 0 : i32
    return %c0_i32, %c0_i32_0 : i32, i32
  }
  func.func @transform_7(%arg0: i32) -> (i32, i32) {
    %c0_i32 = arith.constant 0 : i32
    %c0_i32_0 = arith.constant 0 : i32
    %c0_i32_1 = arith.constant 0 : i32
    return %c0_i32, %c0_i32_0 : i32, i32
  }
  func.func @transform_8(%arg0: i32) -> (i32, i32) {
    %c0_i32 = arith.constant 0 : i32
    %c0_i32_0 = arith.constant 0 : i32
    %c0_i32_1 = arith.constant 0 : i32
    return %c0_i32, %c0_i32_0 : i32, i32
  }
  func.func @transform_9(%arg0: i32) -> (i32, i32) {
    %c0_i32 = arith.constant 0 : i32
    %c0_i32_0 = arith.constant 0 : i32
    return %arg0, %c0_i32 : i32, i32
  }
}

</mosaic_0001>

<llo_original>
// kernel: tile.13
$region0: #{tile.13}
  #allocation0 [shape = 's32[1]{0}', space=sflag, size = 0x4, scoped, tag = 'scoped memory for tile.13']
  %s0 = inlined_call_operand.vmem [shape: f32[20], index: 0, kind: input, shape index: {}]
  %s1 = inlined_call_operand.vmem [shape: f32[12,20], index: 1, kind: output, shape index: {}]
  // Predicated region
  $region2: #{tile.13} parent=0 // pred_check
    _
  $region3: #{tile.13} parent=0 // pred_check_branch
    %3 = sbr.rel (0) target = $region5
  $region4: #{tile.13} parent=0 // pred_region
    _
  $region5: #{tile.13} parent=0 // pred_fallthru
    _
  %v4 = vld [vmem:[%s0] ss:$0 sm:$0xff]
  %5 = vst [vmem:[%s1] sm:$0xff] %v4
  %s6 = scalar_lea.vmem %s1, 8
  %7 = vst [vmem:[%s6] sm:$0xff] %v4

// kernel: tile.14
$region0: #{tile.14}
  %s0 = inlined_call_operand.vmem [shape: f32[12,20], index: 0, kind: input, shape index: {}]
  %s1 = inlined_call_operand.vmem [shape: f32[1,240], index: 1, kind: output, shape index: {}]
  $region1: #{tile.14} parent=0
    #allocation0 [shape = 'u8[8192]{0}', space=vmem, size = 0x2000, scoped, tag = 'scoped mem for output reshape']
    %v2 = vld [vmem:[%s0] sm:$0x1]
    %vm3 = vcmask 162816
    %4 = vst.msk [vmem:[#allocation0] sm:$0x1] %vm3, %v2
    %s5 = scalar_lea.vmem %s0, 6
    %v6 = vld [vmem:[%s5] sm:$0x1]
    %s7 = scalar_lea.vmem %s0, 6
    %v8 = vld [vmem:[%s7] sm:$0x1]
    %vm9 = vcmask 64512
    %v10 = vsel %vm9, %v8, %v6
    %11 = vrot.lane.b32.xlu0 %v10, 120
    %v12 = vpop.permute.xlu0 %11
    %vm13 = vcmask 97280
    %s14 = scalar_lea.vmem [#allocation0], 8
    %15 = vst.msk [vmem:[%s14] sm:$0x1] %vm13, %v12
    %vm16 = vcmask 1048512
    %17 = vst.msk [vmem:[#allocation0] sm:$0x1] %vm16, %v12
    %s18 = scalar_lea.vmem %s0, 5
    %v19 = vld [vmem:[%s18] sm:$0x1]
    %20 = vrot.lane.b32.xlu0 %v19, 100
    %v21 = vpop.permute.xlu0 %20
    %vm22 = vcmask 982816
    %23 = vst.msk [vmem:[#allocation0] sm:$0x1] %vm22, %v21
    %s24 = scalar_lea.vmem %s0, 11
    %v25 = vld [vmem:[%s24] sm:$0x1]
    %26 = vrot.lane.b32.xlu0 %v25, 92
    %v27 = vpop.permute.xlu0 %26
    %vm28 = vcmask 917216
    %s29 = scalar_lea.vmem [#allocation0], 8
    %30 = vst.msk [vmem:[%s29] sm:$0x1] %vm28, %v27
    %s31 = scalar_lea.vmem %s0, 4
    %v32 = vld [vmem:[%s31] sm:$0x1]
    %33 = vrot.lane.b32.xlu0 %v32, 80
    %v34 = vpop.permute.xlu0 %33
    %vm35 = vcmask 818816
    %36 = vst.msk [vmem:[#allocation0] sm:$0x1] %vm35, %v34
    %s37 = scalar_lea.vmem %s0, 10
    %v38 = vld [vmem:[%s37] sm:$0x1]
    %39 = vrot.lane.b32.xlu0 %v38, 72
    %v40 = vpop.permute.xlu0 %39
    %vm41 = vcmask 753216
    %s42 = scalar_lea.vmem [#allocation0], 8
    %43 = vst.msk [vmem:[%s42] sm:$0x1] %vm41, %v40
    %s44 = scalar_lea.vmem %s0, 3
    %v45 = vld [vmem:[%s44] sm:$0x1]
    %46 = vrot.lane.b32.xlu0 %v45, 60
    %v47 = vpop.permute.xlu0 %46
    %vm48 = vcmask 654816
    %49 = vst.msk [vmem:[#allocation0] sm:$0x1] %vm48, %v47
    %s50 = scalar_lea.vmem %s0, 9
    %v51 = vld [vmem:[%s50] sm:$0x1]
    %52 = vrot.lane.b32.xlu0 %v51, 52
    %v53 = vpop.permute.xlu0 %52
    %vm54 = vcmask 589216
    %s55 = scalar_lea.vmem [#allocation0], 8
    %56 = vst.msk [vmem:[%s55] sm:$0x1] %vm54, %v53
    %s57 = scalar_lea.vmem %s0, 2
    %v58 = vld [vmem:[%s57] sm:$0x1]
    %59 = vrot.lane.b32.xlu0 %v58, 40
    %v60 = vpop.permute.xlu0 %59
    %vm61 = vcmask 490816
    %62 = vst.msk [vmem:[#allocation0] sm:$0x1] %vm61, %v60
    %s63 = scalar_lea.vmem %s0, 8
    %v64 = vld [vmem:[%s63] sm:$0x1]
    %65 = vrot.lane.b32.xlu0 %v64, 32
    %v66 = vpop.permute.xlu0 %65
    %vm67 = vcmask 425216
    %s68 = scalar_lea.vmem [#allocation0], 8
    %69 = vst.msk [vmem:[%s68] sm:$0x1] %vm67, %v66
    %s70 = scalar_lea.vmem %s0, 1
    %v71 = vld [vmem:[%s70] sm:$0x1]
    %72 = vrot.lane.b32.xlu0 %v71, 20
    %v73 = vpop.permute.xlu0 %72
    %vm74 = vcmask 326816
    %75 = vst.msk [vmem:[#allocation0] sm:$0x1] %vm74, %v73
    %s76 = scalar_lea.vmem %s0, 7
    %v77 = vld [vmem:[%s76] sm:$0x1]
    %78 = vrot.lane.b32.xlu0 %v77, 12
    %v79 = vpop.permute.xlu0 %78
    %vm80 = vcmask 261216
    %s81 = scalar_lea.vmem [#allocation0], 8
    %82 = vst.msk [vmem:[%s81] sm:$0x1] %vm80, %v79
    %s84 = sshllo.u32 0, 1
    %v86 = vld [vmem:[#allocation0] sm:%s84]
    %s87 = sshllo.u32 0, 1
    %88 = vst [vmem:[%s1] sm:%s87] %v86
    %s89 = scalar_lea.vmem [#allocation0], 8
    %v90 = vld [vmem:[%s89] sm:%s84]
    %s91 = sshllo.u32 0, 1
    %s92 = scalar_lea.vmem %s1, 1
    %93 = vst [vmem:[%s92] sm:%s91] %v90

// kernel: tile.18
$region0: #{tile.18}
  #allocation0 [shape = 's32[1]{0}', space=sflag, size = 0x4, scoped, tag = 'scoped memory for tile.18']
  %s0 = inlined_call_operand.vmem [shape: f32[50], index: 0, kind: input, shape index: {}]
  %s1 = inlined_call_operand.vmem [shape: f32[4,50], index: 1, kind: output, shape index: {}]
  // Predicated region
  $region2: #{tile.18} parent=0 // pred_check
    _
  $region3: #{tile.18} parent=0 // pred_check_branch
    %3 = sbr.rel (0) target = $region5
  $region4: #{tile.18} parent=0 // pred_region
    _
  $region5: #{tile.18} parent=0 // pred_fallthru
    _
  %v4 = vld [vmem:[%s0] ss:$0 sm:$0xff]
  %5 = vst [vmem:[%s1] sm:$0xf] %v4

// kernel: tile.19
$region0: #{tile.19}
  %s0 = inlined_call_operand.vmem [shape: f32[4,50], index: 0, kind: input, shape index: {}]
  %s1 = inlined_call_operand.vmem [shape: f32[1,200], index: 1, kind: output, shape index: {}]
  $region1: #{tile.19} parent=0
    #allocation0 [shape = 'u8[8192]{0}', space=vmem, size = 0x2000, scoped, tag = 'scoped mem for output reshape']
    #allocation1 [shape = 'u8[4096]{0}', space=vmem, size = 0x1000, scoped, tag = 'scoped mem for input reshape']
    %s3 = sshllo.u32 0, 4
    %v4 = vld [vmem:[%s0] sm:%s3]
    %5 = vst [vmem:[#allocation1] sm:%s3] %v4
    %v6 = vld [vmem:[#allocation1] sm:$0x1]
    %vm7 = vcmask 408576
    %8 = vst.msk [vmem:[#allocation0] sm:$0x1] %vm7, %v6
    %s9 = scalar_lea.vmem [#allocation1], 2
    %v10 = vld [vmem:[%s9] sm:$0x1]
    %s11 = scalar_lea.vmem [#allocation1], 2
    %v12 = vld [vmem:[%s11] sm:$0x1]
    %vm13 = vcmask 228352
    %v14 = vsel %vm13, %v12, %v10
    %15 = vrot.lane.b32.xlu0 %v14, 100
    %v16 = vpop.permute.xlu0 %15
    %vm17 = vcmask 179200
    %s18 = scalar_lea.vmem [#allocation0], 8
    %19 = vst.msk [vmem:[%s18] sm:$0x1] %vm17, %v16
    %vm20 = vcmask 1048352
    %21 = vst.msk [vmem:[#allocation0] sm:$0x1] %vm20, %v16
    %s22 = scalar_lea.vmem [#allocation1], 1
    %v23 = vld [vmem:[%s22] sm:$0x1]
    %24 = vrot.lane.b32.xlu0 %v23, 50
    %v25 = vpop.permute.xlu0 %24
    %vm26 = vcmask 818576
    %27 = vst.msk [vmem:[#allocation0] sm:$0x1] %vm26, %v25
    %s28 = scalar_lea.vmem [#allocation1], 3
    %v29 = vld [vmem:[%s28] sm:$0x1]
    %30 = vrot.lane.b32.xlu0 %v29, 22
    %v31 = vpop.permute.xlu0 %30
    %vm32 = vcmask 588976
    %s33 = scalar_lea.vmem [#allocation0], 8
    %34 = vst.msk [vmem:[%s33] sm:$0x1] %vm32, %v31
    %s36 = sshllo.u32 0, 1
    %v38 = vld [vmem:[#allocation0] sm:%s36]
    %s39 = sshllo.u32 0, 1
    %40 = vst [vmem:[%s1] sm:%s39] %v38
    %s41 = scalar_lea.vmem [#allocation0], 8
    %v42 = vld [vmem:[%s41] sm:%s36]
    %s43 = sshllo.u32 0, 1
    %s44 = scalar_lea.vmem %s1, 1
    %45 = vst [vmem:[%s44] sm:%s43] %v42

// kernel: net_forward.1
$region0: #{net_forward.1}
  #allocation0 [shape = 'u32[]', space=smem, size = 0x4, offset = 0x4, fixed_abs, tag = 'smem constant byte address 0x4 - core index']
  #allocation1 [shape = 'u32[144,128]{1,0:T(1,128)}', space=vmem, size = 0x12000, scoped, tag = 'internal scratch']
  %s0 = inlined_call_operand.vmem [shape: f32[28,8,28], index: 0, kind: input, shape index: {}]
  %s1 = inlined_call_operand.vmem [shape: f32[5,28,512], index: 1, kind: input, shape index: {}]
  %s2 = inlined_call_operand.vmem [shape: f32[1,240], index: 2, kind: input, shape index: {}]
  %s3 = inlined_call_operand.vmem [shape: f32[5,240,512], index: 3, kind: input, shape index: {}]
  %s4 = inlined_call_operand.vmem [shape: f32[1,200], index: 4, kind: input, shape index: {}]
  %s5 = inlined_call_operand.vmem [shape: f32[4,200,500], index: 5, kind: input, shape index: {}]
  %s6 = inlined_call_operand.vmem [shape: f32[1,500], index: 6, kind: input, shape index: {}]
  %s7 = inlined_call_operand.vmem [shape: f32[500,128], index: 7, kind: input, shape index: {}]
  %s8 = inlined_call_operand.vmem [shape: f32[1,128], index: 8, kind: input, shape index: {}]
  %s9 = inlined_call_operand.vmem [shape: f32[8,128], index: 9, kind: output, shape index: {}]
  %s10 = sld [smem:[#allocation0]]
  $region46: #{net_forward.1} parent=0
    _
  %s12 = ssub.s32 1, %s10
  %s13 = scalar_select 0, %s12, %s10
  // Predicated region
  $region2: #{net_forward.1} parent=0 // pred_check
    _
  $region3: #{net_forward.1} parent=0 // pred_check_branch
    %15 = sbr.rel (0) target = $region5
  $region4: #{net_forward.1} parent=0 // pred_region
    _
  $region5: #{net_forward.1} parent=0 // pred_fallthru
    _
  // Predicated region
  $region6: #{net_forward.1} parent=0 // pred_check
    _
  $region7: #{net_forward.1} parent=0 // pred_check_branch
    %17 = sbr.rel (0) target = $region9
  $region8: #{net_forward.1} parent=0 // pred_region
    _
  $region9: #{net_forward.1} parent=0 // pred_fallthru
    _
  // Predicated region
  $region10: #{net_forward.1} parent=0 // pred_check
    _
  $region11: #{net_forward.1} parent=0 // pred_check_branch
    %19 = sbr.rel (0) target = $region13
  $region12: #{net_forward.1} parent=0 // pred_region
    _
  $region13: #{net_forward.1} parent=0 // pred_fallthru
    _
  // Predicated region
  $region14: #{net_forward.1} parent=0 // pred_check
    _
  $region15: #{net_forward.1} parent=0 // pred_check_branch
    %21 = sbr.rel (0) target = $region17
  $region16: #{net_forward.1} parent=0 // pred_region
    _
  $region17: #{net_forward.1} parent=0 // pred_fallthru
    _
  // Predicated region
  $region18: #{net_forward.1} parent=0 // pred_check
    _
  $region19: #{net_forward.1} parent=0 // pred_check_branch
    %23 = sbr.rel (0) target = $region21
  $region20: #{net_forward.1} parent=0 // pred_region
    _
  $region21: #{net_forward.1} parent=0 // pred_fallthru
    _
  // Predicated region
  $region22: #{net_forward.1} parent=0 // pred_check
    _
  $region23: #{net_forward.1} parent=0 // pred_check_branch
    %25 = sbr.rel (0) target = $region25
  $region24: #{net_forward.1} parent=0 // pred_region
    _
  $region25: #{net_forward.1} parent=0 // pred_fallthru
    _
  // Predicated region
  $region26: #{net_forward.1} parent=0 // pred_check
    _
  $region27: #{net_forward.1} parent=0 // pred_check_branch
    %27 = sbr.rel (0) target = $region29
  $region28: #{net_forward.1} parent=0 // pred_region
    _
  $region29: #{net_forward.1} parent=0 // pred_fallthru
    _
  // Predicated region
  $region30: #{net_forward.1} parent=0 // pred_check
    _
  $region31: #{net_forward.1} parent=0 // pred_check_branch
    %29 = sbr.rel (0) target = $region33
  $region32: #{net_forward.1} parent=0 // pred_region
    _
  $region33: #{net_forward.1} parent=0 // pred_fallthru
    _
  // Predicated region
  $region34: #{net_forward.1} parent=0 // pred_check
    _
  $region35: #{net_forward.1} parent=0 // pred_check_branch
    %31 = sbr.rel (0) target = $region37
  $region36: #{net_forward.1} parent=0 // pred_region
    _
  $region37: #{net_forward.1} parent=0 // pred_fallthru
    _
  %v32 = vld [vmem:[%s0] sm:$0xff]
  %v33 = vld [vmem:[%s0 + $0x8] sm:$0xff]
  %v34 = vld [vmem:[%s0 + $0x10] sm:$0xff]
  %v35 = vld [vmem:[%s0 + $0x18] sm:$0xff]
  %v36 = vld [vmem:[%s0 + $0x20] sm:$0xff]
  %v37 = vld [vmem:[%s0 + $0x28] sm:$0xff]
  %v38 = vld [vmem:[%s0 + $0x30] sm:$0xff]
  %v39 = vld [vmem:[%s0 + $0x38] sm:$0xff]
  %v40 = vld [vmem:[%s0 + $0x40] sm:$0xff]
  %v41 = vld [vmem:[%s0 + $0x48] sm:$0xff]
  %v42 = vld [vmem:[%s0 + $0x50] sm:$0xff]
  %v43 = vld [vmem:[%s0 + $0x58] sm:$0xff]
  %v44 = vld [vmem:[%s0 + $0x60] sm:$0xff]
  %v45 = vld [vmem:[%s0 + $0x68] sm:$0xff]
  %v46 = vld [vmem:[%s0 + $0x70] sm:$0xff]
  %v47 = vld [vmem:[%s0 + $0x78] sm:$0xff]
  %v48 = vld [vmem:[%s0 + $0x80] sm:$0xff]
  %v49 = vld [vmem:[%s0 + $0x88] sm:$0xff]
  %v50 = vld [vmem:[%s0 + $0x90] sm:$0xff]
  %v51 = vld [vmem:[%s0 + $0x98] sm:$0xff]
  %v52 = vld [vmem:[%s0 + $0xa0] sm:$0xff]
  %v53 = vld [vmem:[%s0 + $0xa8] sm:$0xff]
  %v54 = vld [vmem:[%s0 + $0xb0] sm:$0xff]
  %v55 = vld [vmem:[%s0 + $0xb8] sm:$0xff]
  %v56 = vld [vmem:[%s0 + $0xc0] sm:$0xff]
  %v57 = vld [vmem:[%s0 + $0xc8] sm:$0xff]
  %v58 = vld [vmem:[%s0 + $0xd0] sm:$0xff]
  %v59 = vld [vmem:[%s0 + $0xd8] sm:$0xff]
  %v60 = vld [vmem:[%s1] sm:$0xff]
  %v61 = vld [vmem:[%s1 + $0x8] sm:$0xff]
  %v62 = vld [vmem:[%s1 + $0x10] sm:$0xff]
  %v63 = vld [vmem:[%s1 + $0x18] sm:$0xff]
  %v64 = vld [vmem:[%s1 + $0x20] sm:$0xff]
  %v65 = vld [vmem:[%s1 + $0x28] sm:$0xff]
  %v66 = vld [vmem:[%s1 + $0x30] sm:$0xff]
  %v67 = vld [vmem:[%s1 + $0x38] sm:$0xff]
  %v68 = vld [vmem:[%s1 + $0x40] sm:$0xff]
  %v69 = vld [vmem:[%s1 + $0x48] sm:$0xff]
  %v70 = vld [vmem:[%s1 + $0x50] sm:$0xff]
  %v71 = vld [vmem:[%s1 + $0x58] sm:$0xff]
  %v72 = vld [vmem:[%s1 + $0x60] sm:$0xf]
  %v73 = vld [vmem:[%s1 + $0x68] sm:$0xf]
  %v74 = vld [vmem:[%s1 + $0x70] sm:$0xf]
  %v75 = vld [vmem:[%s1 + $0x78] sm:$0xf]
  %s76 = scalar_lea.vmem %s1, 128
  %v77 = vld [vmem:[%s76] sm:$0xff]
  %v78 = vld [vmem:[%s76 + $0x8] sm:$0xff]
  %v79 = vld [vmem:[%s76 + $0x10] sm:$0xff]
  %v80 = vld [vmem:[%s76 + $0x18] sm:$0xff]
  %v81 = vld [vmem:[%s76 + $0x20] sm:$0xff]
  %v82 = vld [vmem:[%s76 + $0x28] sm:$0xff]
  %v83 = vld [vmem:[%s76 + $0x30] sm:$0xff]
  %v84 = vld [vmem:[%s76 + $0x38] sm:$0xff]
  %v85 = vld [vmem:[%s76 + $0x40] sm:$0xff]
  %v86 = vld [vmem:[%s76 + $0x48] sm:$0xff]
  %v87 = vld [vmem:[%s76 + $0x50] sm:$0xff]
  %v88 = vld [vmem:[%s76 + $0x58] sm:$0xff]
  %v89 = vld [vmem:[%s76 + $0x60] sm:$0xf]
  %v90 = vld [vmem:[%s76 + $0x68] sm:$0xf]
  %v91 = vld [vmem:[%s76 + $0x70] sm:$0xf]
  %v92 = vld [vmem:[%s76 + $0x78] sm:$0xf]
  %vm93 = vcmask 228352
  %v95 = vsel %vm93, %v33, 0
  %v98 = vsel %vm93, %v34, 0
  %v101 = vsel %vm93, %v35, 0
  %v104 = vsel %vm93, %v36, 0
  %v107 = vsel %vm93, %v37, 0
  %v110 = vsel %vm93, %v38, 0
  %v113 = vsel %vm93, %v39, 0
  %v116 = vsel %vm93, %v40, 0
  %v119 = vsel %vm93, %v41, 0
  %v122 = vsel %vm93, %v42, 0
  %v125 = vsel %vm93, %v43, 0
  %v128 = vsel %vm93, %v44, 0
  %v131 = vsel %vm93, %v45, 0
  %v134 = vsel %vm93, %v46, 0
  %v137 = vsel %vm93, %v47, 0
  %v140 = vsel %vm93, %v48, 0
  %v143 = vsel %vm93, %v49, 0
  %v146 = vsel %vm93, %v50, 0
  %v149 = vsel %vm93, %v51, 0
  %v152 = vsel %vm93, %v52, 0
  %v155 = vsel %vm93, %v53, 0
  %v158 = vsel %vm93, %v54, 0
  %v161 = vsel %vm93, %v55, 0
  %v164 = vsel %vm93, %v56, 0
  %vm166 = vcmask 1043456
  %v168 = vsel %vm166, %v89, 0
  %v171 = vsel %vm166, %v90, 0
  %v174 = vsel %vm166, %v91, 0
  %v177 = vsel %vm166, %v92, 0
  %179 = vmatprep.subr.mxu0 %v78
  %180 = vmatpush1.msra.mxu0 %v77
  %181 = vmatprep.subr.mxu0 %v82
  %182 = vmatpush1.msra.mxu0 %v81
  %183 = vmatprep.subr.mxu0 %v86
  %184 = vmatpush1.msra.mxu0 %v85
  %185 = vmatprep.subr.mxu0 %v171
  %186 = vmatpush1.msra.mxu0 %v168
  %187 = vmatprep.subr.mxu0 0.0
  %188 = vmatpush1.msra.mxu0 0.0
  %189 = vmatprep.subr.mxu0 0.0
  %190 = vmatpush1.msra.mxu0 0.0
  %191 = vmatprep.subr.mxu0 0.0
  %192 = vmatpush1.msra.mxu0 0.0
  %193 = vmatprep.subr.mxu0 0.0
  %194 = vmatpush1.msra.mxu0 0.0
  %195 = vmatprep.subr.mxu0 0.0
  %196 = vmatpush1.msra.mxu0 0.0
  %197 = vmatprep.subr.mxu0 0.0
  %198 = vmatpush1.msra.mxu0 0.0
  %199 = vmatprep.subr.mxu0 0.0
  %200 = vmatpush1.msra.mxu0 0.0
  %201 = vmatprep.subr.mxu0 0.0
  %202 = vmatpush1.msra.mxu0 0.0
  %203 = vmatprep.subr.mxu0 0.0
  %204 = vmatpush1.msra.mxu0 0.0
  %205 = vmatprep.subr.mxu0 0.0
  %206 = vmatpush1.msra.mxu0 0.0
  %207 = vmatprep.subr.mxu0 0.0
  %208 = vmatpush1.msra.mxu0 0.0
  %209 = vmatprep.subr.mxu0 0.0
  %210 = vmatpush1.msra.mxu0 0.0
  %211 = vmatprep.subr.mxu0 0.0
  %212 = vmatpush1.msra.mxu0 0.0
  %213 = vmatprep.subr.mxu0 0.0
  %214 = vmatpush1.msra.mxu0 0.0
  %215 = vmatprep.subr.mxu0 0.0
  %216 = vmatpush1.msra.mxu0 0.0
  %217 = vmatprep.subr.mxu0 0.0
  %218 = vmatpush1.msra.mxu0 0.0
  %219 = vmatprep.subr.mxu0 0.0
  %220 = vmatpush1.msra.mxu0 0.0
  %221 = vmatprep.subr.mxu0 0.0
  %222 = vmatpush1.msra.mxu0 0.0
  %223 = vmatprep.subr.mxu0 0.0
  %224 = vmatpush1.msra.mxu0 0.0
  %225 = vmatprep.subr.mxu0 0.0
  %226 = vmatpush1.msra.mxu0 0.0
  %227 = vmatprep.subr.mxu0 0.0
  %228 = vmatpush1.msra.mxu0 0.0
  %229 = vmatprep.subr.mxu0 0.0
  %230 = vmatpush1.msra.mxu0 0.0
  %231 = vmatprep.subr.mxu0 0.0
  %232 = vmatpush1.msra.mxu0 0.0
  %233 = vmatprep.subr.mxu0 0.0
  %234 = vmatpush1.msra.mxu0 0.0
  %235 = vmatprep.subr.mxu0 0.0
  %236 = vmatpush1.msra.mxu0 0.0
  %237 = vmatprep.subr.mxu0 0.0
  %238 = vmatpush1.msra.mxu0 0.0
  %239 = vmatprep.subr.mxu0 0.0
  %240 = vmatpush1.msra.mxu0 0.0
  %241 = vmatprep.subr.mxu0 0.0
  %242 = vmatpush1.msra.mxu0 0.0
  %243 = vmatprep.mubr.f32.mxu0 0.0
  %244 = vmatmul.mubr.f32.gmra.mrb[0].mxu0 %v95
  %v245 = vpop.f32.mrb[0].mxu0
  %v246 = vadd.f32 0.0, %v245
  %v247 = vpop.f32.mrb[0].mxu0
  %v248 = vadd.f32 0.0, %v247
  %249 = vmatprep.mubr.f32.mxu0 0.0
  %250 = vmatmul.mubr.f32.gmra.mrb[0].mxu0 %v98
  %v251 = vpop.f32.mrb[0].mxu0
  %v252 = vadd.f32 0.0, %v251
  %v253 = vpop.f32.mrb[0].mxu0
  %v254 = vadd.f32 0.0, %v253
  %255 = vmatprep.mubr.f32.mxu0 0.0
  %256 = vmatmul.mubr.f32.gmra.mrb[0].mxu0 %v101
  %v257 = vpop.f32.mrb[0].mxu0
  %v258 = vadd.f32 0.0, %v257
  %v259 = vpop.f32.mrb[0].mxu0
  %v260 = vadd.f32 0.0, %v259
  %261 = vmatprep.mubr.f32.mxu0 0.0
  %262 = vmatmul.mubr.f32.gmra.mrb[0].mxu0 %v104
  %v263 = vpop.f32.mrb[0].mxu0
  %v264 = vadd.f32 0.0, %v263
  %v265 = vpop.f32.mrb[0].mxu0
  %v266 = vadd.f32 0.0, %v265
  %267 = vmatprep.mubr.f32.mxu0 0.0
  %268 = vmatmul.mubr.f32.gmra.mrb[0].mxu0 %v107
  %v269 = vpop.f32.mrb[0].mxu0
  %v270 = vadd.f32 0.0, %v269
  %v271 = vpop.f32.mrb[0].mxu0
  %v272 = vadd.f32 0.0, %v271
  %273 = vmatprep.mubr.f32.mxu0 0.0
  %274 = vmatmul.mubr.f32.gmra.mrb[0].mxu0 %v110
  %v275 = vpop.f32.mrb[0].mxu0
  %v276 = vadd.f32 0.0, %v275
  %v277 = vpop.f32.mrb[0].mxu0
  %v278 = vadd.f32 0.0, %v277
  %279 = vmatprep.mubr.f32.mxu0 0.0
  %280 = vmatmul.mubr.f32.gmra.mrb[0].mxu0 %v113
  %v281 = vpop.f32.mrb[0].mxu0
  %v282 = vadd.f32 0.0, %v281
  %v283 = vpop.f32.mrb[0].mxu0
  %v284 = vadd.f32 0.0, %v283
  %285 = vmatprep.mubr.f32.mxu0 0.0
  %286 = vmatmul.mubr.f32.gmra.mrb[0].mxu0 %v116
  %v287 = vpop.f32.mrb[0].mxu0
  %v288 = vadd.f32 0.0, %v287
  %v289 = vpop.f32.mrb[0].mxu0
  %v290 = vadd.f32 0.0, %v289
  %291 = vmatprep.mubr.f32.mxu0 0.0
  %292 = vmatmul.mubr.f32.gmra.mrb[0].mxu0 %v119
  %v293 = vpop.f32.mrb[0].mxu0
  %v294 = vadd.f32 0.0, %v293
  %v295 = vpop.f32.mrb[0].mxu0
  %v296 = vadd.f32 0.0, %v295
  %297 = vmatprep.mubr.f32.mxu0 0.0
  %298 = vmatmul.mubr.f32.gmra.mrb[0].mxu0 %v122
  %v299 = vpop.f32.mrb[0].mxu0
  %v300 = vadd.f32 0.0, %v299
  %v301 = vpop.f32.mrb[0].mxu0
  %v302 = vadd.f32 0.0, %v301
  %303 = vmatprep.mubr.f32.mxu0 0.0
  %304 = vmatmul.mubr.f32.gmra.mrb[0].mxu0 %v125
  %v305 = vpop.f32.mrb[0].mxu0
  %v306 = vadd.f32 0.0, %v305
  %v307 = vpop.f32.mrb[0].mxu0
  %v308 = vadd.f32 0.0, %v307
  %309 = vmatprep.mubr.f32.mxu0 0.0
  %310 = vmatmul.mubr.f32.gmra.mrb[0].mxu0 %v128
  %v311 = vpop.f32.mrb[0].mxu0
  %v312 = vadd.f32 0.0, %v311
  %v313 = vpop.f32.mrb[0].mxu0
  %v314 = vadd.f32 0.0, %v313
  %315 = vmatprep.mubr.f32.mxu0 0.0
  %316 = vmatmul.mubr.f32.gmra.mrb[0].mxu0 %v131
  %v317 = vpop.f32.mrb[0].mxu0
  %v318 = vadd.f32 0.0, %v317
  %v319 = vpop.f32.mrb[0].mxu0
  %v320 = vadd.f32 0.0, %v319
  %321 = vmatprep.mubr.f32.mxu0 0.0
  %322 = vmatmul.mubr.f32.gmra.mrb[0].mxu0 %v134
  %v323 = vpop.f32.mrb[0].mxu0
  %v324 = vadd.f32 0.0, %v323
  %v325 = vpop.f32.mrb[0].mxu0
  %v326 = vadd.f32 0.0, %v325
  %327 = vmatprep.mubr.f32.mxu0 0.0
  %328 = vmatmul.mubr.f32.gmra.mrb[0].mxu0 %v137
  %v329 = vpop.f32.mrb[0].mxu0
  %v330 = vadd.f32 0.0, %v329
  %v331 = vpop.f32.mrb[0].mxu0
  %v332 = vadd.f32 0.0, %v331
  %333 = vmatprep.mubr.f32.mxu0 0.0
  %334 = vmatmul.mubr.f32.gmra.mrb[0].mxu0 %v140
  %v335 = vpop.f32.mrb[0].mxu0
  %v336 = vadd.f32 0.0, %v335
  %v337 = vpop.f32.mrb[0].mxu0
  %v338 = vadd.f32 0.0, %v337
  %339 = vmatprep.mubr.f32.mxu0 0.0
  %340 = vmatmul.mubr.f32.gmra.mrb[0].mxu0 %v143
  %v341 = vpop.f32.mrb[0].mxu0
  %v342 = vadd.f32 0.0, %v341
  %v343 = vpop.f32.mrb[0].mxu0
  %v344 = vadd.f32 0.0, %v343
  %345 = vmatprep.mubr.f32.mxu0 0.0
  %346 = vmatmul.mubr.f32.gmra.mrb[0].mxu0 %v146
  %v347 = vpop.f32.mrb[0].mxu0
  %v348 = vadd.f32 0.0, %v347
  %v349 = vpop.f32.mrb[0].mxu0
  %v350 = vadd.f32 0.0, %v349
  %351 = vmatprep.mubr.f32.mxu0 0.0
  %352 = vmatmul.mubr.f32.gmra.mrb[0].mxu0 %v149
  %v353 = vpop.f32.mrb[0].mxu0
  %v354 = vadd.f32 0.0, %v353
  %v355 = vpop.f32.mrb[0].mxu0
  %v356 = vadd.f32 0.0, %v355
  %357 = vmatprep.mubr.f32.mxu0 0.0
  %358 = vmatmul.mubr.f32.gmra.mrb[0].mxu0 %v152
  %v359 = vpop.f32.mrb[0].mxu0
  %v360 = vadd.f32 0.0, %v359
  %v361 = vpop.f32.mrb[0].mxu0
  %v362 = vadd.f32 0.0, %v361
  %363 = vmatprep.mubr.f32.mxu0 0.0
  %364 = vmatmul.mubr.f32.gmra.mrb[0].mxu0 %v155
  %v365 = vpop.f32.mrb[0].mxu0
  %v366 = vadd.f32 0.0, %v365
  %v367 = vpop.f32.mrb[0].mxu0
  %v368 = vadd.f32 0.0, %v367
  %369 = vmatprep.mubr.f32.mxu0 0.0
  %370 = vmatmul.mubr.f32.gmra.mrb[0].mxu0 %v158
  %v371 = vpop.f32.mrb[0].mxu0
  %v372 = vadd.f32 0.0, %v371
  %v373 = vpop.f32.mrb[0].mxu0
  %v374 = vadd.f32 0.0, %v373
  %375 = vmatprep.mubr.f32.mxu0 0.0
  %376 = vmatmul.mubr.f32.gmra.mrb[0].mxu0 %v161
  %v377 = vpop.f32.mrb[0].mxu0
  %v378 = vadd.f32 0.0, %v377
  %v379 = vpop.f32.mrb[0].mxu0
  %v380 = vadd.f32 0.0, %v379
  %381 = vmatprep.mubr.f32.mxu0 0.0
  %382 = vmatmul.mubr.f32.gmra.mrb[0].mxu0 %v164
  %v383 = vpop.f32.mrb[0].mxu0
  %v384 = vadd.f32 0.0, %v383
  %v385 = vpop.f32.mrb[0].mxu0
  %v386 = vadd.f32 0.0, %v385
  %387 = vdwg.mxu0
  %388 = vmatprep.subr.mxu0 %v80
  %389 = vmatpush1.msra.mxu0 %v79
  %390 = vmatprep.subr.mxu0 %v84
  %391 = vmatpush1.msra.mxu0 %v83
  %392 = vmatprep.subr.mxu0 %v88
  %393 = vmatpush1.msra.mxu0 %v87
  %394 = vmatprep.subr.mxu0 %v177
  %395 = vmatpush1.msra.mxu0 %v174
  %396 = vmatprep.subr.mxu0 0.0
  %397 = vmatpush1.msra.mxu0 0.0
  %398 = vmatprep.subr.mxu0 0.0
  %399 = vmatpush1.msra.mxu0 0.0
  %400 = vmatprep.subr.mxu0 0.0
  %401 = vmatpush1.msra.mxu0 0.0
  %402 = vmatprep.subr.mxu0 0.0
  %403 = vmatpush1.msra.mxu0 0.0
  %404 = vmatprep.subr.mxu0 0.0
  %405 = vmatpush1.msra.mxu0 0.0
  %406 = vmatprep.subr.mxu0 0.0
  %407 = vmatpush1.msra.mxu0 0.0
  %408 = vmatprep.subr.mxu0 0.0
  %409 = vmatpush1.msra.mxu0 0.0
  %410 = vmatprep.subr.mxu0 0.0
  %411 = vmatpush1.msra.mxu0 0.0
  %412 = vmatprep.subr.mxu0 0.0
  %413 = vmatpush1.msra.mxu0 0.0
  %414 = vmatprep.subr.mxu0 0.0
  %415 = vmatpush1.msra.mxu0 0.0
  %416 = vmatprep.subr.mxu0 0.0
  %417 = vmatpush1.msra.mxu0 0.0
  %418 = vmatprep.subr.mxu0 0.0
  %419 = vmatpush1.msra.mxu0 0.0
  %420 = vmatprep.subr.mxu0 0.0
  %421 = vmatpush1.msra.mxu0 0.0
  %422 = vmatprep.subr.mxu0 0.0
  %423 = vmatpush1.msra.mxu0 0.0
  %424 = vmatprep.subr.mxu0 0.0
  %425 = vmatpush1.msra.mxu0 0.0
  %426 = vmatprep.subr.mxu0 0.0
  %427 = vmatpush1.msra.mxu0 0.0
  %428 = vmatprep.subr.mxu0 0.0
  %429 = vmatpush1.msra.mxu0 0.0
  %430 = vmatprep.subr.mxu0 0.0
  %431 = vmatpush1.msra.mxu0 0.0
  %432 = vmatprep.subr.mxu0 0.0
  %433 = vmatpush1.msra.mxu0 0.0
  %434 = vmatprep.subr.mxu0 0.0
  %435 = vmatpush1.msra.mxu0 0.0
  %436 = vmatprep.subr.mxu0 0.0
  %437 = vmatpush1.msra.mxu0 0.0
  %438 = vmatprep.subr.mxu0 0.0
  %439 = vmatpush1.msra.mxu0 0.0
  %440 = vmatprep.subr.mxu0 0.0
  %441 = vmatpush1.msra.mxu0 0.0
  %442 = vmatprep.subr.mxu0 0.0
  %443 = vmatpush1.msra.mxu0 0.0
  %444 = vmatprep.subr.mxu0 0.0
  %445 = vmatpush1.msra.mxu0 0.0
  %446 = vmatprep.subr.mxu0 0.0
  %447 = vmatpush1.msra.mxu0 0.0
  %448 = vmatprep.subr.mxu0 0.0
  %449 = vmatpush1.msra.mxu0 0.0
  %450 = vmatprep.subr.mxu0 0.0
  %451 = vmatpush1.msra.mxu0 0.0
  %452 = vmatprep.mubr.f32.mxu0 0.0
  %453 = vmatmul.mubr.f32.gmra.mrb[0].mxu0 %v95
  %v454 = vpop.f32.mrb[0].mxu0
  %v455 = vadd.f32 0.0, %v454
  %v456 = vpop.f32.mrb[0].mxu0
  %v457 = vadd.f32 0.0, %v456
  %458 = vmatprep.mubr.f32.mxu0 0.0
  %459 = vmatmul.mubr.f32.gmra.mrb[0].mxu0 %v98
  %v460 = vpop.f32.mrb[0].mxu0
  %v461 = vadd.f32 0.0, %v460
  %v462 = vpop.f32.mrb[0].mxu0
  %v463 = vadd.f32 0.0, %v462
  %464 = vmatprep.mubr.f32.mxu0 0.0
  %465 = vmatmul.mubr.f32.gmra.mrb[0].mxu0 %v101
  %v466 = vpop.f32.mrb[0].mxu0
  %v467 = vadd.f32 0.0, %v466
  %v468 = vpop.f32.mrb[0].mxu0
  %v469 = vadd.f32 0.0, %v468
  %470 = vmatprep.mubr.f32.mxu0 0.0
  %471 = vmatmul.mubr.f32.gmra.mrb[0].mxu0 %v104
  %v472 = vpop.f32.mrb[0].mxu0
  %v473 = vadd.f32 0.0, %v472
  %v474 = vpop.f32.mrb[0].mxu0
  %v475 = vadd.f32 0.0, %v474
  %476 = vmatprep.mubr.f32.mxu0 0.0
  %477 = vmatmul.mubr.f32.gmra.mrb[0].mxu0 %v107
  %v478 = vpop.f32.mrb[0].mxu0
  %v479 = vadd.f32 0.0, %v478
  %v480 = vpop.f32.mrb[0].mxu0
  %v481 = vadd.f32 0.0, %v480
  %482 = vmatprep.mubr.f32.mxu0 0.0
  %483 = vmatmul.mubr.f32.gmra.mrb[0].mxu0 %v110
  %v484 = vpop.f32.mrb[0].mxu0
  %v485 = vadd.f32 0.0, %v484
  %v486 = vpop.f32.mrb[0].mxu0
  %v487 = vadd.f32 0.0, %v486
  %488 = vmatprep.mubr.f32.mxu0 0.0
  %489 = vmatmul.mubr.f32.gmra.mrb[0].mxu0 %v113
  %v490 = vpop.f32.mrb[0].mxu0
  %v491 = vadd.f32 0.0, %v490
  %v492 = vpop.f32.mrb[0].mxu0
  %v493 = vadd.f32 0.0, %v492
  %494 = vmatprep.mubr.f32.mxu0 0.0
  %495 = vmatmul.mubr.f32.gmra.mrb[0].mxu0 %v116
  %v496 = vpop.f32.mrb[0].mxu0
  %v497 = vadd.f32 0.0, %v496
  %v498 = vpop.f32.mrb[0].mxu0
  %v499 = vadd.f32 0.0, %v498
  %500 = vmatprep.mubr.f32.mxu0 0.0
  %501 = vmatmul.mubr.f32.gmra.mrb[0].mxu0 %v119
  %v502 = vpop.f32.mrb[0].mxu0
  %v503 = vadd.f32 0.0, %v502
  %v504 = vpop.f32.mrb[0].mxu0
  %v505 = vadd.f32 0.0, %v504
  %506 = vmatprep.mubr.f32.mxu0 0.0
  %507 = vmatmul.mubr.f32.gmra.mrb[0].mxu0 %v122
  %v508 = vpop.f32.mrb[0].mxu0
  %v509 = vadd.f32 0.0, %v508
  %v510 = vpop.f32.mrb[0].mxu0
  %v511 = vadd.f32 0.0, %v510
  %512 = vmatprep.mubr.f32.mxu0 0.0
  %513 = vmatmul.mubr.f32.gmra.mrb[0].mxu0 %v125
  %v514 = vpop.f32.mrb[0].mxu0
  %v515 = vadd.f32 0.0, %v514
  %v516 = vpop.f32.mrb[0].mxu0
  %v517 = vadd.f32 0.0, %v516
  %518 = vmatprep.mubr.f32.mxu0 0.0
  %519 = vmatmul.mubr.f32.gmra.mrb[0].mxu0 %v128
  %v520 = vpop.f32.mrb[0].mxu0
  %v521 = vadd.f32 0.0, %v520
  %v522 = vpop.f32.mrb[0].mxu0
  %v523 = vadd.f32 0.0, %v522
  %524 = vmatprep.mubr.f32.mxu0 0.0
  %525 = vmatmul.mubr.f32.gmra.mrb[0].mxu0 %v131
  %v526 = vpop.f32.mrb[0].mxu0
  %v527 = vadd.f32 0.0, %v526
  %v528 = vpop.f32.mrb[0].mxu0
  %v529 = vadd.f32 0.0, %v528
  %530 = vmatprep.mubr.f32.mxu0 0.0
  %531 = vmatmul.mubr.f32.gmra.mrb[0].mxu0 %v134
  %v532 = vpop.f32.mrb[0].mxu0
  %v533 = vadd.f32 0.0, %v532
  %v534 = vpop.f32.mrb[0].mxu0
  %v535 = vadd.f32 0.0, %v534
  %536 = vmatprep.mubr.f32.mxu0 0.0
  %537 = vmatmul.mubr.f32.gmra.mrb[0].mxu0 %v137
  %v538 = vpop.f32.mrb[0].mxu0
  %v539 = vadd.f32 0.0, %v538
  %v540 = vpop.f32.mrb[0].mxu0
  %v541 = vadd.f32 0.0, %v540
  %542 = vmatprep.mubr.f32.mxu0 0.0
  %543 = vmatmul.mubr.f32.gmra.mrb[0].mxu0 %v140
  %v544 = vpop.f32.mrb[0].mxu0
  %v545 = vadd.f32 0.0, %v544
  %v546 = vpop.f32.mrb[0].mxu0
  %v547 = vadd.f32 0.0, %v546
  %548 = vmatprep.mubr.f32.mxu0 0.0
  %549 = vmatmul.mubr.f32.gmra.mrb[0].mxu0 %v143
  %v550 = vpop.f32.mrb[0].mxu0
  %v551 = vadd.f32 0.0, %v550
  %v552 = vpop.f32.mrb[0].mxu0
  %v553 = vadd.f32 0.0, %v552
  %554 = vmatprep.mubr.f32.mxu0 0.0
  %555 = vmatmul.mubr.f32.gmra.mrb[0].mxu0 %v146
  %v556 = vpop.f32.mrb[0].mxu0
  %v557 = vadd.f32 0.0, %v556
  %v558 = vpop.f32.mrb[0].mxu0
  %v559 = vadd.f32 0.0, %v558
  %560 = vmatprep.mubr.f32.mxu0 0.0
  %561 = vmatmul.mubr.f32.gmra.mrb[0].mxu0 %v149
  %v562 = vpop.f32.mrb[0].mxu0
  %v563 = vadd.f32 0.0, %v562
  %v564 = vpop.f32.mrb[0].mxu0
  %v565 = vadd.f32 0.0, %v564
  %566 = vmatprep.mubr.f32.mxu0 0.0
  %567 = vmatmul.mubr.f32.gmra.mrb[0].mxu0 %v152
  %v568 = vpop.f32.mrb[0].mxu0
  %v569 = vadd.f32 0.0, %v568
  %v570 = vpop.f32.mrb[0].mxu0
  %v571 = vadd.f32 0.0, %v570
  %572 = vmatprep.mubr.f32.mxu0 0.0
  %573 = vmatmul.mubr.f32.gmra.mrb[0].mxu0 %v155
  %v574 = vpop.f32.mrb[0].mxu0
  %v575 = vadd.f32 0.0, %v574
  %v576 = vpop.f32.mrb[0].mxu0
  %v577 = vadd.f32 0.0, %v576
  %578 = vmatprep.mubr.f32.mxu0 0.0
  %579 = vmatmul.mubr.f32.gmra.mrb[0].mxu0 %v158
  %v580 = vpop.f32.mrb[0].mxu0
  %v581 = vadd.f32 0.0, %v580
  %v582 = vpop.f32.mrb[0].mxu0
  %v583 = vadd.f32 0.0, %v582
  %584 = vmatprep.mubr.f32.mxu0 0.0
  %585 = vmatmul.mubr.f32.gmra.mrb[0].mxu0 %v161
  %v586 = vpop.f32.mrb[0].mxu0
  %v587 = vadd.f32 0.0, %v586
  %v588 = vpop.f32.mrb[0].mxu0
  %v589 = vadd.f32 0.0, %v588
  %590 = vmatprep.mubr.f32.mxu0 0.0
  %591 = vmatmul.mubr.f32.gmra.mrb[0].mxu0 %v164
  %v592 = vpop.f32.mrb[0].mxu0
  %v593 = vadd.f32 0.0, %v592
  %v594 = vpop.f32.mrb[0].mxu0
  %v595 = vadd.f32 0.0, %v594
  %596 = vdwg.mxu0
  %v598 = vsel %vm93, %v32, 0
  %v601 = vsel %vm166, %v72, 0
  %v604 = vsel %vm166, %v73, 0
  %v607 = vsel %vm166, %v74, 0
  %v610 = vsel %vm166, %v75, 0
  %612 = vmatprep.subr.mxu0 %v61
  %613 = vmatpush1.msra.mxu0 %v60
  %614 = vmatprep.subr.mxu0 %v65
  %615 = vmatpush1.msra.mxu0 %v64
  %616 = vmatprep.subr.mxu0 %v69
  %617 = vmatpush1.msra.mxu0 %v68
  %618 = vmatprep.subr.mxu0 %v604
  %619 = vmatpush1.msra.mxu0 %v601
  %620 = vmatprep.subr.mxu0 0.0
  %621 = vmatpush1.msra.mxu0 0.0
  %622 = vmatprep.subr.mxu0 0.0
  %623 = vmatpush1.msra.mxu0 0.0
  %624 = vmatprep.subr.mxu0 0.0
  %625 = vmatpush1.msra.mxu0 0.0
  %626 = vmatprep.subr.mxu0 0.0
  %627 = vmatpush1.msra.mxu0 0.0
  %628 = vmatprep.subr.mxu0 0.0
  %629 = vmatpush1.msra.mxu0 0.0
  %630 = vmatprep.subr.mxu0 0.0
  %631 = vmatpush1.msra.mxu0 0.0
  %632 = vmatprep.subr.mxu0 0.0
  %633 = vmatpush1.msra.mxu0 0.0
  %634 = vmatprep.subr.mxu0 0.0
  %635 = vmatpush1.msra.mxu0 0.0
  %636 = vmatprep.subr.mxu0 0.0
  %637 = vmatpush1.msra.mxu0 0.0
  %638 = vmatprep.subr.mxu0 0.0
  %639 = vmatpush1.msra.mxu0 0.0
  %640 = vmatprep.subr.mxu0 0.0
  %641 = vmatpush1.msra.mxu0 0.0
  %642 = vmatprep.subr.mxu0 0.0
  %643 = vmatpush1.msra.mxu0 0.0
  %644 = vmatprep.subr.mxu0 0.0
  %645 = vmatpush1.msra.mxu0 0.0
  %646 = vmatprep.subr.mxu0 0.0
  %647 = vmatpush1.msra.mxu0 0.0
  %648 = vmatprep.subr.mxu0 0.0
  %649 = vmatpush1.msra.mxu0 0.0
  %650 = vmatprep.subr.mxu0 0.0
  %651 = vmatpush1.msra.mxu0 0.0
  %652 = vmatprep.subr.mxu0 0.0
  %653 = vmatpush1.msra.mxu0 0.0
  %654 = vmatprep.subr.mxu0 0.0
  %655 = vmatpush1.msra.mxu0 0.0
  %656 = vmatprep.subr.mxu0 0.0
  %657 = vmatpush1.msra.mxu0 0.0
  %658 = vmatprep.subr.mxu0 0.0
  %659 = vmatpush1.msra.mxu0 0.0
  %660 = vmatprep.subr.mxu0 0.0
  %661 = vmatpush1.msra.mxu0 0.0
  %662 = vmatprep.subr.mxu0 0.0
  %663 = vmatpush1.msra.mxu0 0.0
  %664 = vmatprep.subr.mxu0 0.0
  %665 = vmatpush1.msra.mxu0 0.0
  %666 = vmatprep.subr.mxu0 0.0
  %667 = vmatpush1.msra.mxu0 0.0
  %668 = vmatprep.subr.mxu0 0.0
  %669 = vmatpush1.msra.mxu0 0.0
  %670 = vmatprep.subr.mxu0 0.0
  %671 = vmatpush1.msra.mxu0 0.0
  %672 = vmatprep.subr.mxu0 0.0
  %673 = vmatpush1.msra.mxu0 0.0
  %674 = vmatprep.subr.mxu0 0.0
  %675 = vmatpush1.msra.mxu0 0.0
  %676 = vmatprep.mubr.f32.mxu0 0.0
  %677 = vmatmul.mubr.f32.gmra.mrb[0].mxu0 %v598
  %v678 = vpop.f32.mrb[0].mxu0
  %v679 = vadd.f32 %v246, %v678
  %v680 = vpop.f32.mrb[0].mxu0
  %v681 = vadd.f32 %v248, %v680
  %682 = vmatprep.mubr.f32.mxu0 0.0
  %683 = vmatmul.mubr.f32.gmra.mrb[0].mxu0 %v95
  %v684 = vpop.f32.mrb[0].mxu0
  %v685 = vadd.f32 %v252, %v684
  %v686 = vpop.f32.mrb[0].mxu0
  %v687 = vadd.f32 %v254, %v686
  %688 = vmatprep.mubr.f32.mxu0 0.0
  %689 = vmatmul.mubr.f32.gmra.mrb[0].mxu0 %v98
  %v690 = vpop.f32.mrb[0].mxu0
  %v691 = vadd.f32 %v258, %v690
  %v692 = vpop.f32.mrb[0].mxu0
  %v693 = vadd.f32 %v260, %v692
  %694 = vmatprep.mubr.f32.mxu0 0.0
  %695 = vmatmul.mubr.f32.gmra.mrb[0].mxu0 %v101
  %v696 = vpop.f32.mrb[0].mxu0
  %v697 = vadd.f32 %v264, %v696
  %v698 = vpop.f32.mrb[0].mxu0
  %v699 = vadd.f32 %v266, %v698
  %700 = vmatprep.mubr.f32.mxu0 0.0
  %701 = vmatmul.mubr.f32.gmra.mrb[0].mxu0 %v104
  %v702 = vpop.f32.mrb[0].mxu0
  %v703 = vadd.f32 %v270, %v702
  %v704 = vpop.f32.mrb[0].mxu0
  %v705 = vadd.f32 %v272, %v704
  %706 = vmatprep.mubr.f32.mxu0 0.0
  %707 = vmatmul.mubr.f32.gmra.mrb[0].mxu0 %v107
  %v708 = vpop.f32.mrb[0].mxu0
  %v709 = vadd.f32 %v276, %v708
  %v710 = vpop.f32.mrb[0].mxu0
  %v711 = vadd.f32 %v278, %v710
  %712 = vmatprep.mubr.f32.mxu0 0.0
  %713 = vmatmul.mubr.f32.gmra.mrb[0].mxu0 %v110
  %v714 = vpop.f32.mrb[0].mxu0
  %v715 = vadd.f32 %v282, %v714
  %v716 = vpop.f32.mrb[0].mxu0
  %v717 = vadd.f32 %v284, %v716
  %718 = vmatprep.mubr.f32.mxu0 0.0
  %719 = vmatmul.mubr.f32.gmra.mrb[0].mxu0 %v113
  %v720 = vpop.f32.mrb[0].mxu0
  %v721 = vadd.f32 %v288, %v720
  %v722 = vpop.f32.mrb[0].mxu0
  %v723 = vadd.f32 %v290, %v722
  %724 = vmatprep.mubr.f32.mxu0 0.0
  %725 = vmatmul.mubr.f32.gmra.mrb[0].mxu0 %v116
  %v726 = vpop.f32.mrb[0].mxu0
  %v727 = vadd.f32 %v294, %v726
  %v728 = vpop.f32.mrb[0].mxu0
  %v729 = vadd.f32 %v296, %v728
  %730 = vmatprep.mubr.f32.mxu0 0.0
  %731 = vmatmul.mubr.f32.gmra.mrb[0].mxu0 %v119
  %v732 = vpop.f32.mrb[0].mxu0
  %v733 = vadd.f32 %v300, %v732
  %v734 = vpop.f32.mrb[0].mxu0
  %v735 = vadd.f32 %v302, %v734
  %736 = vmatprep.mubr.f32.mxu0 0.0
  %737 = vmatmul.mubr.f32.gmra.mrb[0].mxu0 %v122
  %v738 = vpop.f32.mrb[0].mxu0
  %v739 = vadd.f32 %v306, %v738
  %v740 = vpop.f32.mrb[0].mxu0
  %v741 = vadd.f32 %v308, %v740
  %742 = vmatprep.mubr.f32.mxu0 0.0
  %743 = vmatmul.mubr.f32.gmra.mrb[0].mxu0 %v125
  %v744 = vpop.f32.mrb[0].mxu0
  %v745 = vadd.f32 %v312, %v744
  %v746 = vpop.f32.mrb[0].mxu0
  %v747 = vadd.f32 %v314, %v746
  %748 = vmatprep.mubr.f32.mxu0 0.0
  %749 = vmatmul.mubr.f32.gmra.mrb[0].mxu0 %v128
  %v750 = vpop.f32.mrb[0].mxu0
  %v751 = vadd.f32 %v318, %v750
  %v752 = vpop.f32.mrb[0].mxu0
  %v753 = vadd.f32 %v320, %v752
  %754 = vmatprep.mubr.f32.mxu0 0.0
  %755 = vmatmul.mubr.f32.gmra.mrb[0].mxu0 %v131
  %v756 = vpop.f32.mrb[0].mxu0
  %v757 = vadd.f32 %v324, %v756
  %v758 = vpop.f32.mrb[0].mxu0
  %v759 = vadd.f32 %v326, %v758
  %760 = vmatprep.mubr.f32.mxu0 0.0
  %761 = vmatmul.mubr.f32.gmra.mrb[0].mxu0 %v134
  %v762 = vpop.f32.mrb[0].mxu0
  %v763 = vadd.f32 %v330, %v762
  %v764 = vpop.f32.mrb[0].mxu0
  %v765 = vadd.f32 %v332, %v764
  %766 = vmatprep.mubr.f32.mxu0 0.0
  %767 = vmatmul.mubr.f32.gmra.mrb[0].mxu0 %v137
  %v768 = vpop.f32.mrb[0].mxu0
  %v769 = vadd.f32 %v336, %v768
  %v770 = vpop.f32.mrb[0].mxu0
  %v771 = vadd.f32 %v338, %v770
  %772 = vmatprep.mubr.f32.mxu0 0.0
  %773 = vmatmul.mubr.f32.gmra.mrb[0].mxu0 %v140
  %v774 = vpop.f32.mrb[0].mxu0
  %v775 = vadd.f32 %v342, %v774
  %v776 = vpop.f32.mrb[0].mxu0
  %v777 = vadd.f32 %v344, %v776
  %778 = vmatprep.mubr.f32.mxu0 0.0
  %779 = vmatmul.mubr.f32.gmra.mrb[0].mxu0 %v143
  %v780 = vpop.f32.mrb[0].mxu0
  %v781 = vadd.f32 %v348, %v780
  %v782 = vpop.f32.mrb[0].mxu0
  %v783 = vadd.f32 %v350, %v782
  %784 = vmatprep.mubr.f32.mxu0 0.0
  %785 = vmatmul.mubr.f32.gmra.mrb[0].mxu0 %v146
  %v786 = vpop.f32.mrb[0].mxu0
  %v787 = vadd.f32 %v354, %v786
  %v788 = vpop.f32.mrb[0].mxu0
  %v789 = vadd.f32 %v356, %v788
  %790 = vmatprep.mubr.f32.mxu0 0.0
  %791 = vmatmul.mubr.f32.gmra.mrb[0].mxu0 %v149
  %v792 = vpop.f32.mrb[0].mxu0
  %v793 = vadd.f32 %v360, %v792
  %v794 = vpop.f32.mrb[0].mxu0
  %v795 = vadd.f32 %v362, %v794
  %796 = vmatprep.mubr.f32.mxu0 0.0
  %797 = vmatmul.mubr.f32.gmra.mrb[0].mxu0 %v152
  %v798 = vpop.f32.mrb[0].mxu0
  %v799 = vadd.f32 %v366, %v798
  %v800 = vpop.f32.mrb[0].mxu0
  %v801 = vadd.f32 %v368, %v800
  %802 = vmatprep.mubr.f32.mxu0 0.0
  %803 = vmatmul.mubr.f32.gmra.mrb[0].mxu0 %v155
  %v804 = vpop.f32.mrb[0].mxu0
  %v805 = vadd.f32 %v372, %v804
  %v806 = vpop.f32.mrb[0].mxu0
  %v807 = vadd.f32 %v374, %v806
  %808 = vmatprep.mubr.f32.mxu0 0.0
  %809 = vmatmul.mubr.f32.gmra.mrb[0].mxu0 %v158
  %v810 = vpop.f32.mrb[0].mxu0
  %v811 = vadd.f32 %v378, %v810
  %v812 = vpop.f32.mrb[0].mxu0
  %v813 = vadd.f32 %v380, %v812
  %814 = vmatprep.mubr.f32.mxu0 0.0
  %815 = vmatmul.mubr.f32.gmra.mrb[0].mxu0 %v161
  %v816 = vpop.f32.mrb[0].mxu0
  %v817 = vadd.f32 %v384, %v816
  %v818 = vpop.f32.mrb[0].mxu0
  %v819 = vadd.f32 %v386, %v818
  %820 = vdwg.mxu0
  %821 = vmatprep.subr.mxu0 %v63
  %822 = vmatpush1.msra.mxu0 %v62
  %823 = vmatprep.subr.mxu0 %v67
  %824 = vmatpush1.msra.mxu0 %v66
  %825 = vmatprep.subr.mxu0 %v71
  %826 = vmatpush1.msra.mxu0 %v70
  %827 = vmatprep.subr.mxu0 %v610
  %828 = vmatpush1.msra.mxu0 %v607
  %829 = vmatprep.subr.mxu0 0.0
  %830 = vmatpush1.msra.mxu0 0.0
  %831 = vmatprep.subr.mxu0 0.0
  %832 = vmatpush1.msra.mxu0 0.0
  %833 = vmatprep.subr.mxu0 0.0
  %834 = vmatpush1.msra.mxu0 0.0
  %835 = vmatprep.subr.mxu0 0.0
  %836 = vmatpush1.msra.mxu0 0.0
  %837 = vmatprep.subr.mxu0 0.0
  %838 = vmatpush1.msra.mxu0 0.0
  %839 = vmatprep.subr.mxu0 0.0
  %840 = vmatpush1.msra.mxu0 0.0
  %841 = vmatprep.subr.mxu0 0.0
  %842 = vmatpush1.msra.mxu0 0.0
  %843 = vmatprep.subr.mxu0 0.0
  %844 = vmatpush1.msra.mxu0 0.0
  %845 = vmatprep.subr.mxu0 0.0
  %846 = vmatpush1.msra.mxu0 0.0
  %847 = vmatprep.subr.mxu0 0.0
  %848 = vmatpush1.msra.mxu0 0.0
  %849 = vmatprep.subr.mxu0 0.0
  %850 = vmatpush1.msra.mxu0 0.0
  %851 = vmatprep.subr.mxu0 0.0
  %852 = vmatpush1.msra.mxu0 0.0
  %853 = vmatprep.subr.mxu0 0.0
  %854 = vmatpush1.msra.mxu0 0.0
  %855 = vmatprep.subr.mxu0 0.0
  %856 = vmatpush1.msra.mxu0 0.0
  %857 = vmatprep.subr.mxu0 0.0
  %858 = vmatpush1.msra.mxu0 0.0
  %859 = vmatprep.subr.mxu0 0.0
  %860 = vmatpush1.msra.mxu0 0.0
  %861 = vmatprep.subr.mxu0 0.0
  %862 = vmatpush1.msra.mxu0 0.0
  %863 = vmatprep.subr.mxu0 0.0
  %864 = vmatpush1.msra.mxu0 0.0
  %865 = vmatprep.subr.mxu0 0.0
  %866 = vmatpush1.msra.mxu0 0.0
  %867 = vmatprep.subr.mxu0 0.0
  %868 = vmatpush1.msra.mxu0 0.0
  %869 = vmatprep.subr.mxu0 0.0
  %870 = vmatpush1.msra.mxu0 0.0
  %871 = vmatprep.subr.mxu0 0.0
  %872 = vmatpush1.msra.mxu0 0.0
  %873 = vmatprep.subr.mxu0 0.0
  %874 = vmatpush1.msra.mxu0 0.0
  %875 = vmatprep.subr.mxu0 0.0
  %876 = vmatpush1.msra.mxu0 0.0
  %877 = vmatprep.subr.mxu0 0.0
  %878 = vmatpush1.msra.mxu0 0.0
  %879 = vmatprep.subr.mxu0 0.0
  %880 = vmatpush1.msra.mxu0 0.0
  %881 = vmatprep.subr.mxu0 0.0
  %882 = vmatpush1.msra.mxu0 0.0
  %883 = vmatprep.subr.mxu0 0.0
  %884 = vmatpush1.msra.mxu0 0.0
  %885 = vmatprep.mubr.f32.mxu0 0.0
  %886 = vmatmul.mubr.f32.gmra.mrb[0].mxu0 %v598
  %v887 = vpop.f32.mrb[0].mxu0
  %v888 = vadd.f32 %v455, %v887
  %v889 = vpop.f32.mrb[0].mxu0
  %v890 = vadd.f32 %v457, %v889
  %891 = vmatprep.mubr.f32.mxu0 0.0
  %892 = vmatmul.mubr.f32.gmra.mrb[0].mxu0 %v95
  %v893 = vpop.f32.mrb[0].mxu0
  %v894 = vadd.f32 %v461, %v893
  %v895 = vpop.f32.mrb[0].mxu0
  %v896 = vadd.f32 %v463, %v895
  %897 = vmatprep.mubr.f32.mxu0 0.0
  %898 = vmatmul.mubr.f32.gmra.mrb[0].mxu0 %v98
  %v899 = vpop.f32.mrb[0].mxu0
  %v900 = vadd.f32 %v467, %v899
  %v901 = vpop.f32.mrb[0].mxu0
  %v902 = vadd.f32 %v469, %v901
  %903 = vmatprep.mubr.f32.mxu0 0.0
  %904 = vmatmul.mubr.f32.gmra.mrb[0].mxu0 %v101
  %v905 = vpop.f32.mrb[0].mxu0
  %v906 = vadd.f32 %v473, %v905
  %v907 = vpop.f32.mrb[0].mxu0
  %v908 = vadd.f32 %v475, %v907
  %909 = vmatprep.mubr.f32.mxu0 0.0
  %910 = vmatmul.mubr.f32.gmra.mrb[0].mxu0 %v104
  %v911 = vpop.f32.mrb[0].mxu0
  %v912 = vadd.f32 %v479, %v911
  %v913 = vpop.f32.mrb[0].mxu0
  %v914 = vadd.f32 %v481, %v913
  %915 = vmatprep.mubr.f32.mxu0 0.0
  %916 = vmatmul.mubr.f32.gmra.mrb[0].mxu0 %v107
  %v917 = vpop.f32.mrb[0].mxu0
  %v918 = vadd.f32 %v485, %v917
  %v919 = vpop.f32.mrb[0].mxu0
  %v920 = vadd.f32 %v487, %v919
  %921 = vmatprep.mubr.f32.mxu0 0.0
  %922 = vmatmul.mubr.f32.gmra.mrb[0].mxu0 %v110
  %v923 = vpop.f32.mrb[0].mxu0
  %v924 = vadd.f32 %v491, %v923
  %v925 = vpop.f32.mrb[0].mxu0
  %v926 = vadd.f32 %v493, %v925
  %927 = vmatprep.mubr.f32.mxu0 0.0
  %928 = vmatmul.mubr.f32.gmra.mrb[0].mxu0 %v113
  %v929 = vpop.f32.mrb[0].mxu0
  %v930 = vadd.f32 %v497, %v929
  %v931 = vpop.f32.mrb[0].mxu0
  %v932 = vadd.f32 %v499, %v931
  %933 = vmatprep.mubr.f32.mxu0 0.0
  %934 = vmatmul.mubr.f32.gmra.mrb[0].mxu0 %v116
  %v935 = vpop.f32.mrb[0].mxu0
  %v936 = vadd.f32 %v503, %v935
  %v937 = vpop.f32.mrb[0].mxu0
  %v938 = vadd.f32 %v505, %v937
  %939 = vmatprep.mubr.f32.mxu0 0.0
  %940 = vmatmul.mubr.f32.gmra.mrb[0].mxu0 %v119
  %v941 = vpop.f32.mrb[0].mxu0
  %v942 = vadd.f32 %v509, %v941
  %v943 = vpop.f32.mrb[0].mxu0
  %v944 = vadd.f32 %v511, %v943
  %945 = vmatprep.mubr.f32.mxu0 0.0
  %946 = vmatmul.mubr.f32.gmra.mrb[0].mxu0 %v122
  %v947 = vpop.f32.mrb[0].mxu0
  %v948 = vadd.f32 %v515, %v947
  %v949 = vpop.f32.mrb[0].mxu0
  %v950 = vadd.f32 %v517, %v949
  %951 = vmatprep.mubr.f32.mxu0 0.0
  %952 = vmatmul.mubr.f32.gmra.mrb[0].mxu0 %v125
  %v953 = vpop.f32.mrb[0].mxu0
  %v954 = vadd.f32 %v521, %v953
  %v955 = vpop.f32.mrb[0].mxu0
  %v956 = vadd.f32 %v523, %v955
  %957 = vmatprep.mubr.f32.mxu0 0.0
  %958 = vmatmul.mubr.f32.gmra.mrb[0].mxu0 %v128
  %v959 = vpop.f32.mrb[0].mxu0
  %v960 = vadd.f32 %v527, %v959
  %v961 = vpop.f32.mrb[0].mxu0
  %v962 = vadd.f32 %v529, %v961
  %963 = vmatprep.mubr.f32.mxu0 0.0
  %964 = vmatmul.mubr.f32.gmra.mrb[0].mxu0 %v131
  %v965 = vpop.f32.mrb[0].mxu0
  %v966 = vadd.f32 %v533, %v965
  %v967 = vpop.f32.mrb[0].mxu0
  %v968 = vadd.f32 %v535, %v967
  %969 = vmatprep.mubr.f32.mxu0 0.0
  %970 = vmatmul.mubr.f32.gmra.mrb[0].mxu0 %v134
  %v971 = vpop.f32.mrb[0].mxu0
  %v972 = vadd.f32 %v539, %v971
  %v973 = vpop.f32.mrb[0].mxu0
  %v974 = vadd.f32 %v541, %v973
  %975 = vmatprep.mubr.f32.mxu0 0.0
  %976 = vmatmul.mubr.f32.gmra.mrb[0].mxu0 %v137
  %v977 = vpop.f32.mrb[0].mxu0
  %v978 = vadd.f32 %v545, %v977
  %v979 = vpop.f32.mrb[0].mxu0
  %v980 = vadd.f32 %v547, %v979
  %981 = vmatprep.mubr.f32.mxu0 0.0
  %982 = vmatmul.mubr.f32.gmra.mrb[0].mxu0 %v140
  %v983 = vpop.f32.mrb[0].mxu0
  %v984 = vadd.f32 %v551, %v983
  %v985 = vpop.f32.mrb[0].mxu0
  %v986 = vadd.f32 %v553, %v985
  %987 = vmatprep.mubr.f32.mxu0 0.0
  %988 = vmatmul.mubr.f32.gmra.mrb[0].mxu0 %v143
  %v989 = vpop.f32.mrb[0].mxu0
  %v990 = vadd.f32 %v557, %v989
  %v991 = vpop.f32.mrb[0].mxu0
  %v992 = vadd.f32 %v559, %v991
  %993 = vmatprep.mubr.f32.mxu0 0.0
  %994 = vmatmul.mubr.f32.gmra.mrb[0].mxu0 %v146
  %v995 = vpop.f32.mrb[0].mxu0
  %v996 = vadd.f32 %v563, %v995
  %v997 = vpop.f32.mrb[0].mxu0
  %v998 = vadd.f32 %v565, %v997
  %999 = vmatprep.mubr.f32.mxu0 0.0
  %1000 = vmatmul.mubr.f32.gmra.mrb[0].mxu0 %v149
  %v1001 = vpop.f32.mrb[0].mxu0
  %v1002 = vadd.f32 %v569, %v1001
  %v1003 = vpop.f32.mrb[0].mxu0
  %v1004 = vadd.f32 %v571, %v1003
  %1005 = vmatprep.mubr.f32.mxu0 0.0
  %1006 = vmatmul.mubr.f32.gmra.mrb[0].mxu0 %v152
  %v1007 = vpop.f32.mrb[0].mxu0
  %v1008 = vadd.f32 %v575, %v1007
  %v1009 = vpop.f32.mrb[0].mxu0
  %v1010 = vadd.f32 %v577, %v1009
  %1011 = vmatprep.mubr.f32.mxu0 0.0
  %1012 = vmatmul.mubr.f32.gmra.mrb[0].mxu0 %v155
  %v1013 = vpop.f32.mrb[0].mxu0
  %v1014 = vadd.f32 %v581, %v1013
  %v1015 = vpop.f32.mrb[0].mxu0
  %v1016 = vadd.f32 %v583, %v1015
  %1017 = vmatprep.mubr.f32.mxu0 0.0
  %1018 = vmatmul.mubr.f32.gmra.mrb[0].mxu0 %v158
  %v1019 = vpop.f32.mrb[0].mxu0
  %v1020 = vadd.f32 %v587, %v1019
  %v1021 = vpop.f32.mrb[0].mxu0
  %v1022 = vadd.f32 %v589, %v1021
  %1023 = vmatprep.mubr.f32.mxu0 0.0
  %1024 = vmatmul.mubr.f32.gmra.mrb[0].mxu0 %v161
  %v1025 = vpop.f32.mrb[0].mxu0
  %v1026 = vadd.f32 %v593, %v1025
  %v1027 = vpop.f32.mrb[0].mxu0
  %v1028 = vadd.f32 %v595, %v1027
  %1029 = vdwg.mxu0
  %s1030 = scalar_lea.vmem %s1, 256
  %v1031 = vld [vmem:[%s1030] sm:$0xff]
  %v1032 = vld [vmem:[%s1030 + $0x8] sm:$0xff]
  %v1033 = vld [vmem:[%s1030 + $0x10] sm:$0xff]
  %v1034 = vld [vmem:[%s1030 + $0x18] sm:$0xff]
  %v1035 = vld [vmem:[%s1030 + $0x20] sm:$0xff]
  %v1036 = vld [vmem:[%s1030 + $0x28] sm:$0xff]
  %v1037 = vld [vmem:[%s1030 + $0x30] sm:$0xff]
  %v1038 = vld [vmem:[%s1030 + $0x38] sm:$0xff]
  %v1039 = vld [vmem:[%s1030 + $0x40] sm:$0xff]
  %v1040 = vld [vmem:[%s1030 + $0x48] sm:$0xff]
  %v1041 = vld [vmem:[%s1030 + $0x50] sm:$0xff]
  %v1042 = vld [vmem:[%s1030 + $0x58] sm:$0xff]
  %v1043 = vld [vmem:[%s1030 + $0x60] sm:$0xf]
  %v1044 = vld [vmem:[%s1030 + $0x68] sm:$0xf]
  %v1045 = vld [vmem:[%s1030 + $0x70] sm:$0xf]
  %v1046 = vld [vmem:[%s1030 + $0x78] sm:$0xf]
  %v1048 = vsel %vm93, %v57, 0
  %v1051 = vsel %vm166, %v1043, 0
  %v1054 = vsel %vm166, %v1044, 0
  %v1057 = vsel %vm166, %v1045, 0
  %v1060 = vsel %vm166, %v1046, 0
  %1062 = vmatprep.subr.mxu0 %v1032
  %1063 = vmatpush1.msra.mxu0 %v1031
  %1064 = vmatprep.subr.mxu0 %v1036
  %1065 = vmatpush1.msra.mxu0 %v1035
  %1066 = vmatprep.subr.mxu0 %v1040
  %1067 = vmatpush1.msra.mxu0 %v1039
  %1068 = vmatprep.subr.mxu0 %v1054
  %1069 = vmatpush1.msra.mxu0 %v1051
  %1070 = vmatprep.subr.mxu0 0.0
  %1071 = vmatpush1.msra.mxu0 0.0
  %1072 = vmatprep.subr.mxu0 0.0
  %1073 = vmatpush1.msra.mxu0 0.0
  %1074 = vmatprep.subr.mxu0 0.0
  %1075 = vmatpush1.msra.mxu0 0.0
  %1076 = vmatprep.subr.mxu0 0.0
  %1077 = vmatpush1.msra.mxu0 0.0
  %1078 = vmatprep.subr.mxu0 0.0
  %1079 = vmatpush1.msra.mxu0 0.0
  %1080 = vmatprep.subr.mxu0 0.0
  %1081 = vmatpush1.msra.mxu0 0.0
  %1082 = vmatprep.subr.mxu0 0.0
  %1083 = vmatpush1.msra.mxu0 0.0
  %1084 = vmatprep.subr.mxu0 0.0
  %1085 = vmatpush1.msra.mxu0 0.0
  %1086 = vmatprep.subr.mxu0 0.0
  %1087 = vmatpush1.msra.mxu0 0.0
  %1088 = vmatprep.subr.mxu0 0.0
  %1089 = vmatpush1.msra.mxu0 0.0
  %1090 = vmatprep.subr.mxu0 0.0
  %1091 = vmatpush1.msra.mxu0 0.0
  %1092 = vmatprep.subr.mxu0 0.0
  %1093 = vmatpush1.msra.mxu0 0.0
  %1094 = vmatprep.subr.mxu0 0.0
  %1095 = vmatpush1.msra.mxu0 0.0
  %1096 = vmatprep.subr.mxu0 0.0
  %1097 = vmatpush1.msra.mxu0 0.0
  %1098 = vmatprep.subr.mxu0 0.0
  %1099 = vmatpush1.msra.mxu0 0.0
  %1100 = vmatprep.subr.mxu0 0.0
  %1101 = vmatpush1.msra.mxu0 0.0
  %1102 = vmatprep.subr.mxu0 0.0
  %1103 = vmatpush1.msra.mxu0 0.0
  %1104 = vmatprep.subr.mxu0 0.0
  %1105 = vmatpush1.msra.mxu0 0.0
  %1106 = vmatprep.subr.mxu0 0.0
  %1107 = vmatpush1.msra.mxu0 0.0
  %1108 = vmatprep.subr.mxu0 0.0
  %1109 = vmatpush1.msra.mxu0 0.0
  %1110 = vmatprep.subr.mxu0 0.0
  %1111 = vmatpush1.msra.mxu0 0.0
  %1112 = vmatprep.subr.mxu0 0.0
  %1113 = vmatpush1.msra.mxu0 0.0
  %1114 = vmatprep.subr.mxu0 0.0
  %1115 = vmatpush1.msra.mxu0 0.0
  %1116 = vmatprep.subr.mxu0 0.0
  %1117 = vmatpush1.msra.mxu0 0.0
  %1118 = vmatprep.subr.mxu0 0.0
  %1119 = vmatpush1.msra.mxu0 0.0
  %1120 = vmatprep.subr.mxu0 0.0
  %1121 = vmatpush1.msra.mxu0 0.0
  %1122 = vmatprep.subr.mxu0 0.0
  %1123 = vmatpush1.msra.mxu0 0.0
  %1124 = vmatprep.subr.mxu0 0.0
  %1125 = vmatpush1.msra.mxu0 0.0
  %1126 = vmatprep.mubr.f32.mxu0 0.0
  %1127 = vmatmul.mubr.f32.gmra.mrb[0].mxu0 %v98
  %v1128 = vpop.f32.mrb[0].mxu0
  %v1129 = vadd.f32 0.0, %v1128
  %v1130 = vpop.f32.mrb[0].mxu0
  %v1131 = vadd.f32 0.0, %v1130
  %1132 = vmatprep.mubr.f32.mxu0 0.0
  %1133 = vmatmul.mubr.f32.gmra.mrb[0].mxu0 %v101
  %v1134 = vpop.f32.mrb[0].mxu0
  %v1135 = vadd.f32 0.0, %v1134
  %v1136 = vpop.f32.mrb[0].mxu0
  %v1137 = vadd.f32 0.0, %v1136
  %1138 = vmatprep.mubr.f32.mxu0 0.0
  %1139 = vmatmul.mubr.f32.gmra.mrb[0].mxu0 %v104
  %v1140 = vpop.f32.mrb[0].mxu0
  %v1141 = vadd.f32 0.0, %v1140
  %v1142 = vpop.f32.mrb[0].mxu0
  %v1143 = vadd.f32 0.0, %v1142
  %1144 = vmatprep.mubr.f32.mxu0 0.0
  %1145 = vmatmul.mubr.f32.gmra.mrb[0].mxu0 %v107
  %v1146 = vpop.f32.mrb[0].mxu0
  %v1147 = vadd.f32 0.0, %v1146
  %v1148 = vpop.f32.mrb[0].mxu0
  %v1149 = vadd.f32 0.0, %v1148
  %1150 = vmatprep.mubr.f32.mxu0 0.0
  %1151 = vmatmul.mubr.f32.gmra.mrb[0].mxu0 %v110
  %v1152 = vpop.f32.mrb[0].mxu0
  %v1153 = vadd.f32 0.0, %v1152
  %v1154 = vpop.f32.mrb[0].mxu0
  %v1155 = vadd.f32 0.0, %v1154
  %1156 = vmatprep.mubr.f32.mxu0 0.0
  %1157 = vmatmul.mubr.f32.gmra.mrb[0].mxu0 %v113
  %v1158 = vpop.f32.mrb[0].mxu0
  %v1159 = vadd.f32 0.0, %v1158
  %v1160 = vpop.f32.mrb[0].mxu0
  %v1161 = vadd.f32 0.0, %v1160
  %1162 = vmatprep.mubr.f32.mxu0 0.0
  %1163 = vmatmul.mubr.f32.gmra.mrb[0].mxu0 %v116
  %v1164 = vpop.f32.mrb[0].mxu0
  %v1165 = vadd.f32 0.0, %v1164
  %v1166 = vpop.f32.mrb[0].mxu0
  %v1167 = vadd.f32 0.0, %v1166
  %1168 = vmatprep.mubr.f32.mxu0 0.0
  %1169 = vmatmul.mubr.f32.gmra.mrb[0].mxu0 %v119
  %v1170 = vpop.f32.mrb[0].mxu0
  %v1171 = vadd.f32 0.0, %v1170
  %v1172 = vpop.f32.mrb[0].mxu0
  %v1173 = vadd.f32 0.0, %v1172
  %1174 = vmatprep.mubr.f32.mxu0 0.0
  %1175 = vmatmul.mubr.f32.gmra.mrb[0].mxu0 %v122
  %v1176 = vpop.f32.mrb[0].mxu0
  %v1177 = vadd.f32 0.0, %v1176
  %v1178 = vpop.f32.mrb[0].mxu0
  %v1179 = vadd.f32 0.0, %v1178
  %1180 = vmatprep.mubr.f32.mxu0 0.0
  %1181 = vmatmul.mubr.f32.gmra.mrb[0].mxu0 %v125
  %v1182 = vpop.f32.mrb[0].mxu0
  %v1183 = vadd.f32 0.0, %v1182
  %v1184 = vpop.f32.mrb[0].mxu0
  %v1185 = vadd.f32 0.0, %v1184
  %1186 = vmatprep.mubr.f32.mxu0 0.0
  %1187 = vmatmul.mubr.f32.gmra.mrb[0].mxu0 %v128
  %v1188 = vpop.f32.mrb[0].mxu0
  %v1189 = vadd.f32 0.0, %v1188
  %v1190 = vpop.f32.mrb[0].mxu0
  %v1191 = vadd.f32 0.0, %v1190
  %1192 = vmatprep.mubr.f32.mxu0 0.0
  %1193 = vmatmul.mubr.f32.gmra.mrb[0].mxu0 %v131
  %v1194 = vpop.f32.mrb[0].mxu0
  %v1195 = vadd.f32 0.0, %v1194
  %v1196 = vpop.f32.mrb[0].mxu0
  %v1197 = vadd.f32 0.0, %v1196
  %1198 = vmatprep.mubr.f32.mxu0 0.0
  %1199 = vmatmul.mubr.f32.gmra.mrb[0].mxu0 %v134
  %v1200 = vpop.f32.mrb[0].mxu0
  %v1201 = vadd.f32 0.0, %v1200
  %v1202 = vpop.f32.mrb[0].mxu0
  %v1203 = vadd.f32 0.0, %v1202
  %1204 = vmatprep.mubr.f32.mxu0 0.0
  %1205 = vmatmul.mubr.f32.gmra.mrb[0].mxu0 %v137
  %v1206 = vpop.f32.mrb[0].mxu0
  %v1207 = vadd.f32 0.0, %v1206
  %v1208 = vpop.f32.mrb[0].mxu0
  %v1209 = vadd.f32 0.0, %v1208
  %1210 = vmatprep.mubr.f32.mxu0 0.0
  %1211 = vmatmul.mubr.f32.gmra.mrb[0].mxu0 %v140
  %v1212 = vpop.f32.mrb[0].mxu0
  %v1213 = vadd.f32 0.0, %v1212
  %v1214 = vpop.f32.mrb[0].mxu0
  %v1215 = vadd.f32 0.0, %v1214
  %1216 = vmatprep.mubr.f32.mxu0 0.0
  %1217 = vmatmul.mubr.f32.gmra.mrb[0].mxu0 %v143
  %v1218 = vpop.f32.mrb[0].mxu0
  %v1219 = vadd.f32 0.0, %v1218
  %v1220 = vpop.f32.mrb[0].mxu0
  %v1221 = vadd.f32 0.0, %v1220
  %1222 = vmatprep.mubr.f32.mxu0 0.0
  %1223 = vmatmul.mubr.f32.gmra.mrb[0].mxu0 %v146
  %v1224 = vpop.f32.mrb[0].mxu0
  %v1225 = vadd.f32 0.0, %v1224
  %v1226 = vpop.f32.mrb[0].mxu0
  %v1227 = vadd.f32 0.0, %v1226
  %1228 = vmatprep.mubr.f32.mxu0 0.0
  %1229 = vmatmul.mubr.f32.gmra.mrb[0].mxu0 %v149
  %v1230 = vpop.f32.mrb[0].mxu0
  %v1231 = vadd.f32 0.0, %v1230
  %v1232 = vpop.f32.mrb[0].mxu0
  %v1233 = vadd.f32 0.0, %v1232
  %1234 = vmatprep.mubr.f32.mxu0 0.0
  %1235 = vmatmul.mubr.f32.gmra.mrb[0].mxu0 %v152
  %v1236 = vpop.f32.mrb[0].mxu0
  %v1237 = vadd.f32 0.0, %v1236
  %v1238 = vpop.f32.mrb[0].mxu0
  %v1239 = vadd.f32 0.0, %v1238
  %1240 = vmatprep.mubr.f32.mxu0 0.0
  %1241 = vmatmul.mubr.f32.gmra.mrb[0].mxu0 %v155
  %v1242 = vpop.f32.mrb[0].mxu0
  %v1243 = vadd.f32 0.0, %v1242
  %v1244 = vpop.f32.mrb[0].mxu0
  %v1245 = vadd.f32 0.0, %v1244
  %1246 = vmatprep.mubr.f32.mxu0 0.0
  %1247 = vmatmul.mubr.f32.gmra.mrb[0].mxu0 %v158
  %v1248 = vpop.f32.mrb[0].mxu0
  %v1249 = vadd.f32 0.0, %v1248
  %v1250 = vpop.f32.mrb[0].mxu0
  %v1251 = vadd.f32 0.0, %v1250
  %1252 = vmatprep.mubr.f32.mxu0 0.0
  %1253 = vmatmul.mubr.f32.gmra.mrb[0].mxu0 %v161
  %v1254 = vpop.f32.mrb[0].mxu0
  %v1255 = vadd.f32 0.0, %v1254
  %v1256 = vpop.f32.mrb[0].mxu0
  %v1257 = vadd.f32 0.0, %v1256
  %1258 = vmatprep.mubr.f32.mxu0 0.0
  %1259 = vmatmul.mubr.f32.gmra.mrb[0].mxu0 %v164
  %v1260 = vpop.f32.mrb[0].mxu0
  %v1261 = vadd.f32 0.0, %v1260
  %v1262 = vpop.f32.mrb[0].mxu0
  %v1263 = vadd.f32 0.0, %v1262
  %1264 = vmatprep.mubr.f32.mxu0 0.0
  %1265 = vmatmul.mubr.f32.gmra.mrb[0].mxu0 %v1048
  %v1266 = vpop.f32.mrb[0].mxu0
  %v1267 = vadd.f32 0.0, %v1266
  %v1268 = vpop.f32.mrb[0].mxu0
  %v1269 = vadd.f32 0.0, %v1268
  %1270 = vdwg.mxu0
  %1271 = vmatprep.subr.mxu0 %v1034
  %1272 = vmatpush1.msra.mxu0 %v1033
  %1273 = vmatprep.subr.mxu0 %v1038
  %1274 = vmatpush1.msra.mxu0 %v1037
  %1275 = vmatprep.subr.mxu0 %v1042
  %1276 = vmatpush1.msra.mxu0 %v1041
  %1277 = vmatprep.subr.mxu0 %v1060
  %1278 = vmatpush1.msra.mxu0 %v1057
  %1279 = vmatprep.subr.mxu0 0.0
  %1280 = vmatpush1.msra.mxu0 0.0
  %1281 = vmatprep.subr.mxu0 0.0
  %1282 = vmatpush1.msra.mxu0 0.0
  %1283 = vmatprep.subr.mxu0 0.0
  %1284 = vmatpush1.msra.mxu0 0.0
  %1285 = vmatprep.subr.mxu0 0.0
  %1286 = vmatpush1.msra.mxu0 0.0
  %1287 = vmatprep.subr.mxu0 0.0
  %1288 = vmatpush1.msra.mxu0 0.0
  %1289 = vmatprep.subr.mxu0 0.0
  %1290 = vmatpush1.msra.mxu0 0.0
  %1291 = vmatprep.subr.mxu0 0.0
  %1292 = vmatpush1.msra.mxu0 0.0
  %1293 = vmatprep.subr.mxu0 0.0
  %1294 = vmatpush1.msra.mxu0 0.0
  %1295 = vmatprep.subr.mxu0 0.0
  %1296 = vmatpush1.msra.mxu0 0.0
  %1297 = vmatprep.subr.mxu0 0.0
  %1298 = vmatpush1.msra.mxu0 0.0
  %1299 = vmatprep.subr.mxu0 0.0
  %1300 = vmatpush1.msra.mxu0 0.0
  %1301 = vmatprep.subr.mxu0 0.0
  %1302 = vmatpush1.msra.mxu0 0.0
  %1303 = vmatprep.subr.mxu0 0.0
  %1304 = vmatpush1.msra.mxu0 0.0
  %1305 = vmatprep.subr.mxu0 0.0
  %1306 = vmatpush1.msra.mxu0 0.0
  %1307 = vmatprep.subr.mxu0 0.0
  %1308 = vmatpush1.msra.mxu0 0.0
  %1309 = vmatprep.subr.mxu0 0.0
  %1310 = vmatpush1.msra.mxu0 0.0
  %1311 = vmatprep.subr.mxu0 0.0
  %1312 = vmatpush1.msra.mxu0 0.0
  %1313 = vmatprep.subr.mxu0 0.0
  %1314 = vmatpush1.msra.mxu0 0.0
  %1315 = vmatprep.subr.mxu0 0.0
  %1316 = vmatpush1.msra.mxu0 0.0
  %1317 = vmatprep.subr.mxu0 0.0
  %1318 = vmatpush1.msra.mxu0 0.0
  %1319 = vmatprep.subr.mxu0 0.0
  %1320 = vmatpush1.msra.mxu0 0.0
  %1321 = vmatprep.subr.mxu0 0.0
  %1322 = vmatpush1.msra.mxu0 0.0
  %1323 = vmatprep.subr.mxu0 0.0
  %1324 = vmatpush1.msra.mxu0 0.0
  %1325 = vmatprep.subr.mxu0 0.0
  %1326 = vmatpush1.msra.mxu0 0.0
  %1327 = vmatprep.subr.mxu0 0.0
  %1328 = vmatpush1.msra.mxu0 0.0
  %1329 = vmatprep.subr.mxu0 0.0
  %1330 = vmatpush1.msra.mxu0 0.0
  %1331 = vmatprep.subr.mxu0 0.0
  %1332 = vmatpush1.msra.mxu0 0.0
  %1333 = vmatprep.subr.mxu0 0.0
  %1334 = vmatpush1.msra.mxu0 0.0
  %1335 = vmatprep.mubr.f32.mxu0 0.0
  %1336 = vmatmul.mubr.f32.gmra.mrb[0].mxu0 %v98
  %v1337 = vpop.f32.mrb[0].mxu0
  %v1338 = vadd.f32 0.0, %v1337
  %v1339 = vpop.f32.mrb[0].mxu0
  %v1340 = vadd.f32 0.0, %v1339
  %1341 = vmatprep.mubr.f32.mxu0 0.0
  %1342 = vmatmul.mubr.f32.gmra.mrb[0].mxu0 %v101
  %v1343 = vpop.f32.mrb[0].mxu0
  %v1344 = vadd.f32 0.0, %v1343
  %v1345 = vpop.f32.mrb[0].mxu0
  %v1346 = vadd.f32 0.0, %v1345
  %1347 = vmatprep.mubr.f32.mxu0 0.0
  %1348 = vmatmul.mubr.f32.gmra.mrb[0].mxu0 %v104
  %v1349 = vpop.f32.mrb[0].mxu0
  %v1350 = vadd.f32 0.0, %v1349
  %v1351 = vpop.f32.mrb[0].mxu0
  %v1352 = vadd.f32 0.0, %v1351
  %1353 = vmatprep.mubr.f32.mxu0 0.0
  %1354 = vmatmul.mubr.f32.gmra.mrb[0].mxu0 %v107
  %v1355 = vpop.f32.mrb[0].mxu0
  %v1356 = vadd.f32 0.0, %v1355
  %v1357 = vpop.f32.mrb[0].mxu0
  %v1358 = vadd.f32 0.0, %v1357
  %1359 = vmatprep.mubr.f32.mxu0 0.0
  %1360 = vmatmul.mubr.f32.gmra.mrb[0].mxu0 %v110
  %v1361 = vpop.f32.mrb[0].mxu0
  %v1362 = vadd.f32 0.0, %v1361
  %v1363 = vpop.f32.mrb[0].mxu0
  %v1364 = vadd.f32 0.0, %v1363
  %1365 = vmatprep.mubr.f32.mxu0 0.0
  %1366 = vmatmul.mubr.f32.gmra.mrb[0].mxu0 %v113
  %v1367 = vpop.f32.mrb[0].mxu0
  %v1368 = vadd.f32 0.0, %v1367
  %v1369 = vpop.f32.mrb[0].mxu0
  %v1370 = vadd.f32 0.0, %v1369
  %1371 = vmatprep.mubr.f32.mxu0 0.0
  %1372 = vmatmul.mubr.f32.gmra.mrb[0].mxu0 %v116
  %v1373 = vpop.f32.mrb[0].mxu0
  %v1374 = vadd.f32 0.0, %v1373
  %v1375 = vpop.f32.mrb[0].mxu0
  %v1376 = vadd.f32 0.0, %v1375
  %1377 = vmatprep.mubr.f32.mxu0 0.0
  %1378 = vmatmul.mubr.f32.gmra.mrb[0].mxu0 %v119
  %v1379 = vpop.f32.mrb[0].mxu0
  %v1380 = vadd.f32 0.0, %v1379
  %v1381 = vpop.f32.mrb[0].mxu0
  %v1382 = vadd.f32 0.0, %v1381
  %1383 = vmatprep.mubr.f32.mxu0 0.0
  %1384 = vmatmul.mubr.f32.gmra.mrb[0].mxu0 %v122
  %v1385 = vpop.f32.mrb[0].mxu0
  %v1386 = vadd.f32 0.0, %v1385
  %v1387 = vpop.f32.mrb[0].mxu0
  %v1388 = vadd.f32 0.0, %v1387
  %1389 = vmatprep.mubr.f32.mxu0 0.0
  %1390 = vmatmul.mubr.f32.gmra.mrb[0].mxu0 %v125
  %v1391 = vpop.f32.mrb[0].mxu0
  %v1392 = vadd.f32 0.0, %v1391
  %v1393 = vpop.f32.mrb[0].mxu0
  %v1394 = vadd.f32 0.0, %v1393
  %1395 = vmatprep.mubr.f32.mxu0 0.0
  %1396 = vmatmul.mubr.f32.gmra.mrb[0].mxu0 %v128
  %v1397 = vpop.f32.mrb[0].mxu0
  %v1398 = vadd.f32 0.0, %v1397
  %v1399 = vpop.f32.mrb[0].mxu0
  %v1400 = vadd.f32 0.0, %v1399
  %1401 = vmatprep.mubr.f32.mxu0 0.0
  %1402 = vmatmul.mubr.f32.gmra.mrb[0].mxu0 %v131
  %v1403 = vpop.f32.mrb[0].mxu0
  %v1404 = vadd.f32 0.0, %v1403
  %v1405 = vpop.f32.mrb[0].mxu0
  %v1406 = vadd.f32 0.0, %v1405
  %1407 = vmatprep.mubr.f32.mxu0 0.0
  %1408 = vmatmul.mubr.f32.gmra.mrb[0].mxu0 %v134
  %v1409 = vpop.f32.mrb[0].mxu0
  %v1410 = vadd.f32 0.0, %v1409
  %v1411 = vpop.f32.mrb[0].mxu0
  %v1412 = vadd.f32 0.0, %v1411
  %1413 = vmatprep.mubr.f32.mxu0 0.0
  %1414 = vmatmul.mubr.f32.gmra.mrb[0].mxu0 %v137
  %v1415 = vpop.f32.mrb[0].mxu0
  %v1416 = vadd.f32 0.0, %v1415
  %v1417 = vpop.f32.mrb[0].mxu0
  %v1418 = vadd.f32 0.0, %v1417
  %1419 = vmatprep.mubr.f32.mxu0 0.0
  %1420 = vmatmul.mubr.f32.gmra.mrb[0].mxu0 %v140
  %v1421 = vpop.f32.mrb[0].mxu0
  %v1422 = vadd.f32 0.0, %v1421
  %v1423 = vpop.f32.mrb[0].mxu0
  %v1424 = vadd.f32 0.0, %v1423
  %1425 = vmatprep.mubr.f32.mxu0 0.0
  %1426 = vmatmul.mubr.f32.gmra.mrb[0].mxu0 %v143
  %v1427 = vpop.f32.mrb[0].mxu0
  %v1428 = vadd.f32 0.0, %v1427
  %v1429 = vpop.f32.mrb[0].mxu0
  %v1430 = vadd.f32 0.0, %v1429
  %1431 = vmatprep.mubr.f32.mxu0 0.0
  %1432 = vmatmul.mubr.f32.gmra.mrb[0].mxu0 %v146
  %v1433 = vpop.f32.mrb[0].mxu0
  %v1434 = vadd.f32 0.0, %v1433
  %v1435 = vpop.f32.mrb[0].mxu0
  %v1436 = vadd.f32 0.0, %v1435
  %1437 = vmatprep.mubr.f32.mxu0 0.0
  %1438 = vmatmul.mubr.f32.gmra.mrb[0].mxu0 %v149
  %v1439 = vpop.f32.mrb[0].mxu0
  %v1440 = vadd.f32 0.0, %v1439
  %v1441 = vpop.f32.mrb[0].mxu0
  %v1442 = vadd.f32 0.0, %v1441
  %1443 = vmatprep.mubr.f32.mxu0 0.0
  %1444 = vmatmul.mubr.f32.gmra.mrb[0].mxu0 %v152
  %v1445 = vpop.f32.mrb[0].mxu0
  %v1446 = vadd.f32 0.0, %v1445
  %v1447 = vpop.f32.mrb[0].mxu0
  %v1448 = vadd.f32 0.0, %v1447
  %1449 = vmatprep.mubr.f32.mxu0 0.0
  %1450 = vmatmul.mubr.f32.gmra.mrb[0].mxu0 %v155
  %v1451 = vpop.f32.mrb[0].mxu0
  %v1452 = vadd.f32 0.0, %v1451
  %v1453 = vpop.f32.mrb[0].mxu0
  %v1454 = vadd.f32 0.0, %v1453
  %1455 = vmatprep.mubr.f32.mxu0 0.0
  %1456 = vmatmul.mubr.f32.gmra.mrb[0].mxu0 %v158
  %v1457 = vpop.f32.mrb[0].mxu0
  %v1458 = vadd.f32 0.0, %v1457
  %v1459 = vpop.f32.mrb[0].mxu0
  %v1460 = vadd.f32 0.0, %v1459
  %1461 = vmatprep.mubr.f32.mxu0 0.0
  %1462 = vmatmul.mubr.f32.gmra.mrb[0].mxu0 %v161
  %v1463 = vpop.f32.mrb[0].mxu0
  %v1464 = vadd.f32 0.0, %v1463
  %v1465 = vpop.f32.mrb[0].mxu0
  %v1466 = vadd.f32 0.0, %v1465
  %1467 = vmatprep.mubr.f32.mxu0 0.0
  %1468 = vmatmul.mubr.f32.gmra.mrb[0].mxu0 %v164
  %v1469 = vpop.f32.mrb[0].mxu0
  %v1470 = vadd.f32 0.0, %v1469
  %v1471 = vpop.f32.mrb[0].mxu0
  %v1472 = vadd.f32 0.0, %v1471
  %1473 = vmatprep.mubr.f32.mxu0 0.0
  %1474 = vmatmul.mubr.f32.gmra.mrb[0].mxu0 %v1048
  %v1475 = vpop.f32.mrb[0].mxu0
  %v1476 = vadd.f32 0.0, %v1475
  %v1477 = vpop.f32.mrb[0].mxu0
  %v1478 = vadd.f32 0.0, %v1477
  %1479 = vdwg.mxu0
  %v1480 = vadd.f32 %v679, %v1129
  %v1481 = vadd.f32 %v681, %v1131
  %v1482 = vadd.f32 %v888, %v1338
  %v1483 = vadd.f32 %v890, %v1340
  %v1484 = vadd.f32 %v685, %v1135
  %v1485 = vadd.f32 %v687, %v1137
  %v1486 = vadd.f32 %v894, %v1344
  %v1487 = vadd.f32 %v896, %v1346
  %v1488 = vadd.f32 %v691, %v1141
  %v1489 = vadd.f32 %v693, %v1143
  %v1490 = vadd.f32 %v900, %v1350
  %v1491 = vadd.f32 %v902, %v1352
  %v1492 = vadd.f32 %v697, %v1147
  %v1493 = vadd.f32 %v699, %v1149
  %v1494 = vadd.f32 %v906, %v1356
  %v1495 = vadd.f32 %v908, %v1358
  %v1496 = vadd.f32 %v703, %v1153
  %v1497 = vadd.f32 %v705, %v1155
  %v1498 = vadd.f32 %v912, %v1362
  %v1499 = vadd.f32 %v914, %v1364
  %v1500 = vadd.f32 %v709, %v1159
  %v1501 = vadd.f32 %v711, %v1161
  %v1502 = vadd.f32 %v918, %v1368
  %v1503 = vadd.f32 %v920, %v1370
  %v1504 = vadd.f32 %v715, %v1165
  %v1505 = vadd.f32 %v717, %v1167
  %v1506 = vadd.f32 %v924, %v1374
  %v1507 = vadd.f32 %v926, %v1376
  %v1508 = vadd.f32 %v721, %v1171
  %v1509 = vadd.f32 %v723, %v1173
  %v1510 = vadd.f32 %v930, %v1380
  %v1511 = vadd.f32 %v932, %v1382
  %v1512 = vadd.f32 %v727, %v1177
  %v1513 = vadd.f32 %v729, %v1179
  %v1514 = vadd.f32 %v936, %v1386
  %v1515 = vadd.f32 %v938, %v1388
  %v1516 = vadd.f32 %v733, %v1183
  %v1517 = vadd.f32 %v735, %v1185
  %v1518 = vadd.f32 %v942, %v1392
  %v1519 = vadd.f32 %v944, %v1394
  %v1520 = vadd.f32 %v739, %v1189
  %v1521 = vadd.f32 %v741, %v1191
  %v1522 = vadd.f32 %v948, %v1398
  %v1523 = vadd.f32 %v950, %v1400
  %v1524 = vadd.f32 %v745, %v1195
  %v1525 = vadd.f32 %v747, %v1197
  %v1526 = vadd.f32 %v954, %v1404
  %v1527 = vadd.f32 %v956, %v1406
  %v1528 = vadd.f32 %v751, %v1201
  %v1529 = vadd.f32 %v753, %v1203
  %v1530 = vadd.f32 %v960, %v1410
  %v1531 = vadd.f32 %v962, %v1412
  %v1532 = vadd.f32 %v757, %v1207
  %v1533 = vadd.f32 %v759, %v1209
  %v1534 = vadd.f32 %v966, %v1416
  %v1535 = vadd.f32 %v968, %v1418
  %v1536 = vadd.f32 %v763, %v1213
  %v1537 = vadd.f32 %v765, %v1215
  %v1538 = vadd.f32 %v972, %v1422
  %v1539 = vadd.f32 %v974, %v1424
  %v1540 = vadd.f32 %v769, %v1219
  %v1541 = vadd.f32 %v771, %v1221
  %v1542 = vadd.f32 %v978, %v1428
  %v1543 = vadd.f32 %v980, %v1430
  %v1544 = vadd.f32 %v775, %v1225
  %v1545 = vadd.f32 %v777, %v1227
  %v1546 = vadd.f32 %v984, %v1434
  %v1547 = vadd.f32 %v986, %v1436
  %v1548 = vadd.f32 %v781, %v1231
  %v1549 = vadd.f32 %v783, %v1233
  %v1550 = vadd.f32 %v990, %v1440
  %v1551 = vadd.f32 %v992, %v1442
  %v1552 = vadd.f32 %v787, %v1237
  %v1553 = vadd.f32 %v789, %v1239
  %v1554 = vadd.f32 %v996, %v1446
  %v1555 = vadd.f32 %v998, %v1448
  %v1556 = vadd.f32 %v793, %v1243
  %v1557 = vadd.f32 %v795, %v1245
  %v1558 = vadd.f32 %v1002, %v1452
  %v1559 = vadd.f32 %v1004, %v1454
  %v1560 = vadd.f32 %v799, %v1249
  %v1561 = vadd.f32 %v801, %v1251
  %v1562 = vadd.f32 %v1008, %v1458
  %v1563 = vadd.f32 %v1010, %v1460
  %v1564 = vadd.f32 %v805, %v1255
  %v1565 = vadd.f32 %v807, %v1257
  %v1566 = vadd.f32 %v1014, %v1464
  %v1567 = vadd.f32 %v1016, %v1466
  %v1568 = vadd.f32 %v811, %v1261
  %v1569 = vadd.f32 %v813, %v1263
  %v1570 = vadd.f32 %v1020, %v1470
  %v1571 = vadd.f32 %v1022, %v1472
  %v1572 = vadd.f32 %v817, %v1267
  %v1573 = vadd.f32 %v819, %v1269
  %v1574 = vadd.f32 %v1026, %v1476
  %v1575 = vadd.f32 %v1028, %v1478
  %s1576 = scalar_lea.vmem %s1, 384
  %v1577 = vld [vmem:[%s1576] sm:$0xff]
  %v1578 = vld [vmem:[%s1576 + $0x8] sm:$0xff]
  %v1579 = vld [vmem:[%s1576 + $0x10] sm:$0xff]
  %v1580 = vld [vmem:[%s1576 + $0x18] sm:$0xff]
  %v1581 = vld [vmem:[%s1576 + $0x20] sm:$0xff]
  %v1582 = vld [vmem:[%s1576 + $0x28] sm:$0xff]
  %v1583 = vld [vmem:[%s1576 + $0x30] sm:$0xff]
  %v1584 = vld [vmem:[%s1576 + $0x38] sm:$0xff]
  %v1585 = vld [vmem:[%s1576 + $0x40] sm:$0xff]
  %v1586 = vld [vmem:[%s1576 + $0x48] sm:$0xff]
  %v1587 = vld [vmem:[%s1576 + $0x50] sm:$0xff]
  %v1588 = vld [vmem:[%s1576 + $0x58] sm:$0xff]
  %v1589 = vld [vmem:[%s1576 + $0x60] sm:$0xf]
  %v1590 = vld [vmem:[%s1576 + $0x68] sm:$0xf]
  %v1591 = vld [vmem:[%s1576 + $0x70] sm:$0xf]
  %v1592 = vld [vmem:[%s1576 + $0x78] sm:$0xf]
  %v1594 = vsel %vm93, %v58, 0
  %v1597 = vsel %vm166, %v1589, 0
  %v1600 = vsel %vm166, %v1590, 0
  %v1603 = vsel %vm166, %v1591, 0
  %v1606 = vsel %vm166, %v1592, 0
  %1608 = vmatprep.subr.mxu0 %v1578
  %1609 = vmatpush1.msra.mxu0 %v1577
  %1610 = vmatprep.subr.mxu0 %v1582
  %1611 = vmatpush1.msra.mxu0 %v1581
  %1612 = vmatprep.subr.mxu0 %v1586
  %1613 = vmatpush1.msra.mxu0 %v1585
  %1614 = vmatprep.subr.mxu0 %v1600
  %1615 = vmatpush1.msra.mxu0 %v1597
  %1616 = vmatprep.subr.mxu0 0.0
  %1617 = vmatpush1.msra.mxu0 0.0
  %1618 = vmatprep.subr.mxu0 0.0
  %1619 = vmatpush1.msra.mxu0 0.0
  %1620 = vmatprep.subr.mxu0 0.0
  %1621 = vmatpush1.msra.mxu0 0.0
  %1622 = vmatprep.subr.mxu0 0.0
  %1623 = vmatpush1.msra.mxu0 0.0
  %1624 = vmatprep.subr.mxu0 0.0
  %1625 = vmatpush1.msra.mxu0 0.0
  %1626 = vmatprep.subr.mxu0 0.0
  %1627 = vmatpush1.msra.mxu0 0.0
  %1628 = vmatprep.subr.mxu0 0.0
  %1629 = vmatpush1.msra.mxu0 0.0
  %1630 = vmatprep.subr.mxu0 0.0
  %1631 = vmatpush1.msra.mxu0 0.0
  %1632 = vmatprep.subr.mxu0 0.0
  %1633 = vmatpush1.msra.mxu0 0.0
  %1634 = vmatprep.subr.mxu0 0.0
  %1635 = vmatpush1.msra.mxu0 0.0
  %1636 = vmatprep.subr.mxu0 0.0
  %1637 = vmatpush1.msra.mxu0 0.0
  %1638 = vmatprep.subr.mxu0 0.0
  %1639 = vmatpush1.msra.mxu0 0.0
  %1640 = vmatprep.subr.mxu0 0.0
  %1641 = vmatpush1.msra.mxu0 0.0
  %1642 = vmatprep.subr.mxu0 0.0
  %1643 = vmatpush1.msra.mxu0 0.0
  %1644 = vmatprep.subr.mxu0 0.0
  %1645 = vmatpush1.msra.mxu0 0.0
  %1646 = vmatprep.subr.mxu0 0.0
  %1647 = vmatpush1.msra.mxu0 0.0
  %1648 = vmatprep.subr.mxu0 0.0
  %1649 = vmatpush1.msra.mxu0 0.0
  %1650 = vmatprep.subr.mxu0 0.0
  %1651 = vmatpush1.msra.mxu0 0.0
  %1652 = vmatprep.subr.mxu0 0.0
  %1653 = vmatpush1.msra.mxu0 0.0
  %1654 = vmatprep.subr.mxu0 0.0
  %1655 = vmatpush1.msra.mxu0 0.0
  %1656 = vmatprep.subr.mxu0 0.0
  %1657 = vmatpush1.msra.mxu0 0.0
  %1658 = vmatprep.subr.mxu0 0.0
  %1659 = vmatpush1.msra.mxu0 0.0
  %1660 = vmatprep.subr.mxu0 0.0
  %1661 = vmatpush1.msra.mxu0 0.0
  %1662 = vmatprep.subr.mxu0 0.0
  %1663 = vmatpush1.msra.mxu0 0.0
  %1664 = vmatprep.subr.mxu0 0.0
  %1665 = vmatpush1.msra.mxu0 0.0
  %1666 = vmatprep.subr.mxu0 0.0
  %1667 = vmatpush1.msra.mxu0 0.0
  %1668 = vmatprep.subr.mxu0 0.0
  %1669 = vmatpush1.msra.mxu0 0.0
  %1670 = vmatprep.subr.mxu0 0.0
  %1671 = vmatpush1.msra.mxu0 0.0
  %1672 = vmatprep.mubr.f32.mxu0 0.0
  %1673 = vmatmul.mubr.f32.gmra.mrb[0].mxu0 %v101
  %v1674 = vpop.f32.mrb[0].mxu0
  %v1675 = vadd.f32 0.0, %v1674
  %v1676 = vpop.f32.mrb[0].mxu0
  %v1677 = vadd.f32 0.0, %v1676
  %1678 = vmatprep.mubr.f32.mxu0 0.0
  %1679 = vmatmul.mubr.f32.gmra.mrb[0].mxu0 %v104
  %v1680 = vpop.f32.mrb[0].mxu0
  %v1681 = vadd.f32 0.0, %v1680
  %v1682 = vpop.f32.mrb[0].mxu0
  %v1683 = vadd.f32 0.0, %v1682
  %1684 = vmatprep.mubr.f32.mxu0 0.0
  %1685 = vmatmul.mubr.f32.gmra.mrb[0].mxu0 %v107
  %v1686 = vpop.f32.mrb[0].mxu0
  %v1687 = vadd.f32 0.0, %v1686
  %v1688 = vpop.f32.mrb[0].mxu0
  %v1689 = vadd.f32 0.0, %v1688
  %1690 = vmatprep.mubr.f32.mxu0 0.0
  %1691 = vmatmul.mubr.f32.gmra.mrb[0].mxu0 %v110
  %v1692 = vpop.f32.mrb[0].mxu0
  %v1693 = vadd.f32 0.0, %v1692
  %v1694 = vpop.f32.mrb[0].mxu0
  %v1695 = vadd.f32 0.0, %v1694
  %1696 = vmatprep.mubr.f32.mxu0 0.0
  %1697 = vmatmul.mubr.f32.gmra.mrb[0].mxu0 %v113
  %v1698 = vpop.f32.mrb[0].mxu0
  %v1699 = vadd.f32 0.0, %v1698
  %v1700 = vpop.f32.mrb[0].mxu0
  %v1701 = vadd.f32 0.0, %v1700
  %1702 = vmatprep.mubr.f32.mxu0 0.0
  %1703 = vmatmul.mubr.f32.gmra.mrb[0].mxu0 %v116
  %v1704 = vpop.f32.mrb[0].mxu0
  %v1705 = vadd.f32 0.0, %v1704
  %v1706 = vpop.f32.mrb[0].mxu0
  %v1707 = vadd.f32 0.0, %v1706
  %1708 = vmatprep.mubr.f32.mxu0 0.0
  %1709 = vmatmul.mubr.f32.gmra.mrb[0].mxu0 %v119
  %v1710 = vpop.f32.mrb[0].mxu0
  %v1711 = vadd.f32 0.0, %v1710
  %v1712 = vpop.f32.mrb[0].mxu0
  %v1713 = vadd.f32 0.0, %v1712
  %1714 = vmatprep.mubr.f32.mxu0 0.0
  %1715 = vmatmul.mubr.f32.gmra.mrb[0].mxu0 %v122
  %v1716 = vpop.f32.mrb[0].mxu0
  %v1717 = vadd.f32 0.0, %v1716
  %v1718 = vpop.f32.mrb[0].mxu0
  %v1719 = vadd.f32 0.0, %v1718
  %1720 = vmatprep.mubr.f32.mxu0 0.0
  %1721 = vmatmul.mubr.f32.gmra.mrb[0].mxu0 %v125
  %v1722 = vpop.f32.mrb[0].mxu0
  %v1723 = vadd.f32 0.0, %v1722
  %v1724 = vpop.f32.mrb[0].mxu0
  %v1725 = vadd.f32 0.0, %v1724
  %1726 = vmatprep.mubr.f32.mxu0 0.0
  %1727 = vmatmul.mubr.f32.gmra.mrb[0].mxu0 %v128
  %v1728 = vpop.f32.mrb[0].mxu0
  %v1729 = vadd.f32 0.0, %v1728
  %v1730 = vpop.f32.mrb[0].mxu0
  %v1731 = vadd.f32 0.0, %v1730
  %1732 = vmatprep.mubr.f32.mxu0 0.0
  %1733 = vmatmul.mubr.f32.gmra.mrb[0].mxu0 %v131
  %v1734 = vpop.f32.mrb[0].mxu0
  %v1735 = vadd.f32 0.0, %v1734
  %v1736 = vpop.f32.mrb[0].mxu0
  %v1737 = vadd.f32 0.0, %v1736
  %1738 = vmatprep.mubr.f32.mxu0 0.0
  %1739 = vmatmul.mubr.f32.gmra.mrb[0].mxu0 %v134
  %v1740 = vpop.f32.mrb[0].mxu0
  %v1741 = vadd.f32 0.0, %v1740
  %v1742 = vpop.f32.mrb[0].mxu0
  %v1743 = vadd.f32 0.0, %v1742
  %1744 = vmatprep.mubr.f32.mxu0 0.0
  %1745 = vmatmul.mubr.f32.gmra.mrb[0].mxu0 %v137
  %v1746 = vpop.f32.mrb[0].mxu0
  %v1747 = vadd.f32 0.0, %v1746
  %v1748 = vpop.f32.mrb[0].mxu0
  %v1749 = vadd.f32 0.0, %v1748
  %1750 = vmatprep.mubr.f32.mxu0 0.0
  %1751 = vmatmul.mubr.f32.gmra.mrb[0].mxu0 %v140
  %v1752 = vpop.f32.mrb[0].mxu0
  %v1753 = vadd.f32 0.0, %v1752
  %v1754 = vpop.f32.mrb[0].mxu0
  %v1755 = vadd.f32 0.0, %v1754
  %1756 = vmatprep.mubr.f32.mxu0 0.0
  %1757 = vmatmul.mubr.f32.gmra.mrb[0].mxu0 %v143
  %v1758 = vpop.f32.mrb[0].mxu0
  %v1759 = vadd.f32 0.0, %v1758
  %v1760 = vpop.f32.mrb[0].mxu0
  %v1761 = vadd.f32 0.0, %v1760
  %1762 = vmatprep.mubr.f32.mxu0 0.0
  %1763 = vmatmul.mubr.f32.gmra.mrb[0].mxu0 %v146
  %v1764 = vpop.f32.mrb[0].mxu0
  %v1765 = vadd.f32 0.0, %v1764
  %v1766 = vpop.f32.mrb[0].mxu0
  %v1767 = vadd.f32 0.0, %v1766
  %1768 = vmatprep.mubr.f32.mxu0 0.0
  %1769 = vmatmul.mubr.f32.gmra.mrb[0].mxu0 %v149
  %v1770 = vpop.f32.mrb[0].mxu0
  %v1771 = vadd.f32 0.0, %v1770
  %v1772 = vpop.f32.mrb[0].mxu0
  %v1773 = vadd.f32 0.0, %v1772
  %1774 = vmatprep.mubr.f32.mxu0 0.0
  %1775 = vmatmul.mubr.f32.gmra.mrb[0].mxu0 %v152
  %v1776 = vpop.f32.mrb[0].mxu0
  %v1777 = vadd.f32 0.0, %v1776
  %v1778 = vpop.f32.mrb[0].mxu0
  %v1779 = vadd.f32 0.0, %v1778
  %1780 = vmatprep.mubr.f32.mxu0 0.0
  %1781 = vmatmul.mubr.f32.gmra.mrb[0].mxu0 %v155
  %v1782 = vpop.f32.mrb[0].mxu0
  %v1783 = vadd.f32 0.0, %v1782
  %v1784 = vpop.f32.mrb[0].mxu0
  %v1785 = vadd.f32 0.0, %v1784
  %1786 = vmatprep.mubr.f32.mxu0 0.0
  %1787 = vmatmul.mubr.f32.gmra.mrb[0].mxu0 %v158
  %v1788 = vpop.f32.mrb[0].mxu0
  %v1789 = vadd.f32 0.0, %v1788
  %v1790 = vpop.f32.mrb[0].mxu0
  %v1791 = vadd.f32 0.0, %v1790
  %1792 = vmatprep.mubr.f32.mxu0 0.0
  %1793 = vmatmul.mubr.f32.gmra.mrb[0].mxu0 %v161
  %v1794 = vpop.f32.mrb[0].mxu0
  %v1795 = vadd.f32 0.0, %v1794
  %v1796 = vpop.f32.mrb[0].mxu0
  %v1797 = vadd.f32 0.0, %v1796
  %1798 = vmatprep.mubr.f32.mxu0 0.0
  %1799 = vmatmul.mubr.f32.gmra.mrb[0].mxu0 %v164
  %v1800 = vpop.f32.mrb[0].mxu0
  %v1801 = vadd.f32 0.0, %v1800
  %v1802 = vpop.f32.mrb[0].mxu0
  %v1803 = vadd.f32 0.0, %v1802
  %1804 = vmatprep.mubr.f32.mxu0 0.0
  %1805 = vmatmul.mubr.f32.gmra.mrb[0].mxu0 %v1048
  %v1806 = vpop.f32.mrb[0].mxu0
  %v1807 = vadd.f32 0.0, %v1806
  %v1808 = vpop.f32.mrb[0].mxu0
  %v1809 = vadd.f32 0.0, %v1808
  %1810 = vmatprep.mubr.f32.mxu0 0.0
  %1811 = vmatmul.mubr.f32.gmra.mrb[0].mxu0 %v1594
  %v1812 = vpop.f32.mrb[0].mxu0
  %v1813 = vadd.f32 0.0, %v1812
  %v1814 = vpop.f32.mrb[0].mxu0
  %v1815 = vadd.f32 0.0, %v1814
  %1816 = vdwg.mxu0
  %1817 = vmatprep.subr.mxu0 %v1580
  %1818 = vmatpush1.msra.mxu0 %v1579
  %1819 = vmatprep.subr.mxu0 %v1584
  %1820 = vmatpush1.msra.mxu0 %v1583
  %1821 = vmatprep.subr.mxu0 %v1588
  %1822 = vmatpush1.msra.mxu0 %v1587
  %1823 = vmatprep.subr.mxu0 %v1606
  %1824 = vmatpush1.msra.mxu0 %v1603
  %1825 = vmatprep.subr.mxu0 0.0
  %1826 = vmatpush1.msra.mxu0 0.0
  %1827 = vmatprep.subr.mxu0 0.0
  %1828 = vmatpush1.msra.mxu0 0.0
  %1829 = vmatprep.subr.mxu0 0.0
  %1830 = vmatpush1.msra.mxu0 0.0
  %1831 = vmatprep.subr.mxu0 0.0
  %1832 = vmatpush1.msra.mxu0 0.0
  %1833 = vmatprep.subr.mxu0 0.0
  %1834 = vmatpush1.msra.mxu0 0.0
  %1835 = vmatprep.subr.mxu0 0.0
  %1836 = vmatpush1.msra.mxu0 0.0
  %1837 = vmatprep.subr.mxu0 0.0
  %1838 = vmatpush1.msra.mxu0 0.0
  %1839 = vmatprep.subr.mxu0 0.0
  %1840 = vmatpush1.msra.mxu0 0.0
  %1841 = vmatprep.subr.mxu0 0.0
  %1842 = vmatpush1.msra.mxu0 0.0
  %1843 = vmatprep.subr.mxu0 0.0
  %1844 = vmatpush1.msra.mxu0 0.0
  %1845 = vmatprep.subr.mxu0 0.0
  %1846 = vmatpush1.msra.mxu0 0.0
  %1847 = vmatprep.subr.mxu0 0.0
  %1848 = vmatpush1.msra.mxu0 0.0
  %1849 = vmatprep.subr.mxu0 0.0
  %1850 = vmatpush1.msra.mxu0 0.0
  %1851 = vmatprep.subr.mxu0 0.0
  %1852 = vmatpush1.msra.mxu0 0.0
  %1853 = vmatprep.subr.mxu0 0.0
  %1854 = vmatpush1.msra.mxu0 0.0
  %1855 = vmatprep.subr.mxu0 0.0
  %1856 = vmatpush1.msra.mxu0 0.0
  %1857 = vmatprep.subr.mxu0 0.0
  %1858 = vmatpush1.msra.mxu0 0.0
  %1859 = vmatprep.subr.mxu0 0.0
  %1860 = vmatpush1.msra.mxu0 0.0
  %1861 = vmatprep.subr.mxu0 0.0
  %1862 = vmatpush1.msra.mxu0 0.0
  %1863 = vmatprep.subr.mxu0 0.0
  %1864 = vmatpush1.msra.mxu0 0.0
  %1865 = vmatprep.subr.mxu0 0.0
  %1866 = vmatpush1.msra.mxu0 0.0
  %1867 = vmatprep.subr.mxu0 0.0
  %1868 = vmatpush1.msra.mxu0 0.0
  %1869 = vmatprep.subr.mxu0 0.0
  %1870 = vmatpush1.msra.mxu0 0.0
  %1871 = vmatprep.subr.mxu0 0.0
  %1872 = vmatpush1.msra.mxu0 0.0
  %1873 = vmatprep.subr.mxu0 0.0
  %1874 = vmatpush1.msra.mxu0 0.0
  %1875 = vmatprep.subr.mxu0 0.0
  %1876 = vmatpush1.msra.mxu0 0.0
  %1877 = vmatprep.subr.mxu0 0.0
  %1878 = vmatpush1.msra.mxu0 0.0
  %1879 = vmatprep.subr.mxu0 0.0
  %1880 = vmatpush1.msra.mxu0 0.0
  %1881 = vmatprep.mubr.f32.mxu0 0.0
  %1882 = vmatmul.mubr.f32.gmra.mrb[0].mxu0 %v101
  %v1883 = vpop.f32.mrb[0].mxu0
  %v1884 = vadd.f32 0.0, %v1883
  %v1885 = vpop.f32.mrb[0].mxu0
  %v1886 = vadd.f32 0.0, %v1885
  %1887 = vmatprep.mubr.f32.mxu0 0.0
  %1888 = vmatmul.mubr.f32.gmra.mrb[0].mxu0 %v104
  %v1889 = vpop.f32.mrb[0].mxu0
  %v1890 = vadd.f32 0.0, %v1889
  %v1891 = vpop.f32.mrb[0].mxu0
  %v1892 = vadd.f32 0.0, %v1891
  %1893 = vmatprep.mubr.f32.mxu0 0.0
  %1894 = vmatmul.mubr.f32.gmra.mrb[0].mxu0 %v107
  %v1895 = vpop.f32.mrb[0].mxu0
  %v1896 = vadd.f32 0.0, %v1895
  %v1897 = vpop.f32.mrb[0].mxu0
  %v1898 = vadd.f32 0.0, %v1897
  %1899 = vmatprep.mubr.f32.mxu0 0.0
  %1900 = vmatmul.mubr.f32.gmra.mrb[0].mxu0 %v110
  %v1901 = vpop.f32.mrb[0].mxu0
  %v1902 = vadd.f32 0.0, %v1901
  %v1903 = vpop.f32.mrb[0].mxu0
  %v1904 = vadd.f32 0.0, %v1903
  %1905 = vmatprep.mubr.f32.mxu0 0.0
  %1906 = vmatmul.mubr.f32.gmra.mrb[0].mxu0 %v113
  %v1907 = vpop.f32.mrb[0].mxu0
  %v1908 = vadd.f32 0.0, %v1907
  %v1909 = vpop.f32.mrb[0].mxu0
  %v1910 = vadd.f32 0.0, %v1909
  %1911 = vmatprep.mubr.f32.mxu0 0.0
  %1912 = vmatmul.mubr.f32.gmra.mrb[0].mxu0 %v116
  %v1913 = vpop.f32.mrb[0].mxu0
  %v1914 = vadd.f32 0.0, %v1913
  %v1915 = vpop.f32.mrb[0].mxu0
  %v1916 = vadd.f32 0.0, %v1915
  %1917 = vmatprep.mubr.f32.mxu0 0.0
  %1918 = vmatmul.mubr.f32.gmra.mrb[0].mxu0 %v119
  %v1919 = vpop.f32.mrb[0].mxu0
  %v1920 = vadd.f32 0.0, %v1919
  %v1921 = vpop.f32.mrb[0].mxu0
  %v1922 = vadd.f32 0.0, %v1921
  %1923 = vmatprep.mubr.f32.mxu0 0.0
  %1924 = vmatmul.mubr.f32.gmra.mrb[0].mxu0 %v122
  %v1925 = vpop.f32.mrb[0].mxu0
  %v1926 = vadd.f32 0.0, %v1925
  %v1927 = vpop.f32.mrb[0].mxu0
  %v1928 = vadd.f32 0.0, %v1927
  %1929 = vmatprep.mubr.f32.mxu0 0.0
  %1930 = vmatmul.mubr.f32.gmra.mrb[0].mxu0 %v125
  %v1931 = vpop.f32.mrb[0].mxu0
  %v1932 = vadd.f32 0.0, %v1931
  %v1933 = vpop.f32.mrb[0].mxu0
  %v1934 = vadd.f32 0.0, %v1933
  %1935 = vmatprep.mubr.f32.mxu0 0.0
  %1936 = vmatmul.mubr.f32.gmra.mrb[0].mxu0 %v128
  %v1937 = vpop.f32.mrb[0].mxu0
  %v1938 = vadd.f32 0.0, %v1937
  %v1939 = vpop.f32.mrb[0].mxu0
  %v1940 = vadd.f32 0.0, %v1939
  %1941 = vmatprep.mubr.f32.mxu0 0.0
  %1942 = vmatmul.mubr.f32.gmra.mrb[0].mxu0 %v131
  %v1943 = vpop.f32.mrb[0].mxu0
  %v1944 = vadd.f32 0.0, %v1943
  %v1945 = vpop.f32.mrb[0].mxu0
  %v1946 = vadd.f32 0.0, %v1945
  %1947 = vmatprep.mubr.f32.mxu0 0.0
  %1948 = vmatmul.mubr.f32.gmra.mrb[0].mxu0 %v134
  %v1949 = vpop.f32.mrb[0].mxu0
  %v1950 = vadd.f32 0.0, %v1949
  %v1951 = vpop.f32.mrb[0].mxu0
  %v1952 = vadd.f32 0.0, %v1951
  %1953 = vmatprep.mubr.f32.mxu0 0.0
  %1954 = vmatmul.mubr.f32.gmra.mrb[0].mxu0 %v137
  %v1955 = vpop.f32.mrb[0].mxu0
  %v1956 = vadd.f32 0.0, %v1955
  %v1957 = vpop.f32.mrb[0].mxu0
  %v1958 = vadd.f32 0.0, %v1957
  %1959 = vmatprep.mubr.f32.mxu0 0.0
  %1960 = vmatmul.mubr.f32.gmra.mrb[0].mxu0 %v140
  %v1961 = vpop.f32.mrb[0].mxu0
  %v1962 = vadd.f32 0.0, %v1961
  %v1963 = vpop.f32.mrb[0].mxu0
  %v1964 = vadd.f32 0.0, %v1963
  %1965 = vmatprep.mubr.f32.mxu0 0.0
  %1966 = vmatmul.mubr.f32.gmra.mrb[0].mxu0 %v143
  %v1967 = vpop.f32.mrb[0].mxu0
  %v1968 = vadd.f32 0.0, %v1967
  %v1969 = vpop.f32.mrb[0].mxu0
  %v1970 = vadd.f32 0.0, %v1969
  %1971 = vmatprep.mubr.f32.mxu0 0.0
  %1972 = vmatmul.mubr.f32.gmra.mrb[0].mxu0 %v146
  %v1973 = vpop.f32.mrb[0].mxu0
  %v1974 = vadd.f32 0.0, %v1973
  %v1975 = vpop.f32.mrb[0].mxu0
  %v1976 = vadd.f32 0.0, %v1975
  %1977 = vmatprep.mubr.f32.mxu0 0.0
  %1978 = vmatmul.mubr.f32.gmra.mrb[0].mxu0 %v149
  %v1979 = vpop.f32.mrb[0].mxu0
  %v1980 = vadd.f32 0.0, %v1979
  %v1981 = vpop.f32.mrb[0].mxu0
  %v1982 = vadd.f32 0.0, %v1981
  %1983 = vmatprep.mubr.f32.mxu0 0.0
  %1984 = vmatmul.mubr.f32.gmra.mrb[0].mxu0 %v152
  %v1985 = vpop.f32.mrb[0].mxu0
  %v1986 = vadd.f32 0.0, %v1985
  %v1987 = vpop.f32.mrb[0].mxu0
  %v1988 = vadd.f32 0.0, %v1987
  %1989 = vmatprep.mubr.f32.mxu0 0.0
  %1990 = vmatmul.mubr.f32.gmra.mrb[0].mxu0 %v155
  %v1991 = vpop.f32.mrb[0].mxu0
  %v1992 = vadd.f32 0.0, %v1991
  %v1993 = vpop.f32.mrb[0].mxu0
  %v1994 = vadd.f32 0.0, %v1993
  %1995 = vmatprep.mubr.f32.mxu0 0.0
  %1996 = vmatmul.mubr.f32.gmra.mrb[0].mxu0 %v158
  %v1997 = vpop.f32.mrb[0].mxu0
  %v1998 = vadd.f32 0.0, %v1997
  %v1999 = vpop.f32.mrb[0].mxu0
  %v2000 = vadd.f32 0.0, %v1999
  %2001 = vmatprep.mubr.f32.mxu0 0.0
  %2002 = vmatmul.mubr.f32.gmra.mrb[0].mxu0 %v161
  %v2003 = vpop.f32.mrb[0].mxu0
  %v2004 = vadd.f32 0.0, %v2003
  %v2005 = vpop.f32.mrb[0].mxu0
  %v2006 = vadd.f32 0.0, %v2005
  %2007 = vmatprep.mubr.f32.mxu0 0.0
  %2008 = vmatmul.mubr.f32.gmra.mrb[0].mxu0 %v164
  %v2009 = vpop.f32.mrb[0].mxu0
  %v2010 = vadd.f32 0.0, %v2009
  %v2011 = vpop.f32.mrb[0].mxu0
  %v2012 = vadd.f32 0.0, %v2011
  %2013 = vmatprep.mubr.f32.mxu0 0.0
  %2014 = vmatmul.mubr.f32.gmra.mrb[0].mxu0 %v1048
  %v2015 = vpop.f32.mrb[0].mxu0
  %v2016 = vadd.f32 0.0, %v2015
  %v2017 = vpop.f32.mrb[0].mxu0
  %v2018 = vadd.f32 0.0, %v2017
  %2019 = vmatprep.mubr.f32.mxu0 0.0
  %2020 = vmatmul.mubr.f32.gmra.mrb[0].mxu0 %v1594
  %v2021 = vpop.f32.mrb[0].mxu0
  %v2022 = vadd.f32 0.0, %v2021
  %v2023 = vpop.f32.mrb[0].mxu0
  %v2024 = vadd.f32 0.0, %v2023
  %2025 = vdwg.mxu0
  %v2026 = vadd.f32 %v1480, %v1675
  %v2027 = vadd.f32 %v1481, %v1677
  %v2028 = vadd.f32 %v1482, %v1884
  %v2029 = vadd.f32 %v1483, %v1886
  %v2030 = vadd.f32 %v1484, %v1681
  %v2031 = vadd.f32 %v1485, %v1683
  %v2032 = vadd.f32 %v1486, %v1890
  %v2033 = vadd.f32 %v1487, %v1892
  %v2034 = vadd.f32 %v1488, %v1687
  %v2035 = vadd.f32 %v1489, %v1689
  %v2036 = vadd.f32 %v1490, %v1896
  %v2037 = vadd.f32 %v1491, %v1898
  %v2038 = vadd.f32 %v1492, %v1693
  %v2039 = vadd.f32 %v1493, %v1695
  %v2040 = vadd.f32 %v1494, %v1902
  %v2041 = vadd.f32 %v1495, %v1904
  %v2042 = vadd.f32 %v1496, %v1699
  %v2043 = vadd.f32 %v1497, %v1701
  %v2044 = vadd.f32 %v1498, %v1908
  %v2045 = vadd.f32 %v1499, %v1910
  %v2046 = vadd.f32 %v1500, %v1705
  %v2047 = vadd.f32 %v1501, %v1707
  %v2048 = vadd.f32 %v1502, %v1914
  %v2049 = vadd.f32 %v1503, %v1916
  %v2050 = vadd.f32 %v1504, %v1711
  %v2051 = vadd.f32 %v1505, %v1713
  %v2052 = vadd.f32 %v1506, %v1920
  %v2053 = vadd.f32 %v1507, %v1922
  %v2054 = vadd.f32 %v1508, %v1717
  %v2055 = vadd.f32 %v1509, %v1719
  %v2056 = vadd.f32 %v1510, %v1926
  %v2057 = vadd.f32 %v1511, %v1928
  %v2058 = vadd.f32 %v1512, %v1723
  %v2059 = vadd.f32 %v1513, %v1725
  %v2060 = vadd.f32 %v1514, %v1932
  %v2061 = vadd.f32 %v1515, %v1934
  %v2062 = vadd.f32 %v1516, %v1729
  %v2063 = vadd.f32 %v1517, %v1731
  %v2064 = vadd.f32 %v1518, %v1938
  %v2065 = vadd.f32 %v1519, %v1940
  %v2066 = vadd.f32 %v1520, %v1735
  %v2067 = vadd.f32 %v1521, %v1737
  %v2068 = vadd.f32 %v1522, %v1944
  %v2069 = vadd.f32 %v1523, %v1946
  %v2070 = vadd.f32 %v1524, %v1741
  %v2071 = vadd.f32 %v1525, %v1743
  %v2072 = vadd.f32 %v1526, %v1950
  %v2073 = vadd.f32 %v1527, %v1952
  %v2074 = vadd.f32 %v1528, %v1747
  %v2075 = vadd.f32 %v1529, %v1749
  %v2076 = vadd.f32 %v1530, %v1956
  %v2077 = vadd.f32 %v1531, %v1958
  %v2078 = vadd.f32 %v1532, %v1753
  %v2079 = vadd.f32 %v1533, %v1755
  %v2080 = vadd.f32 %v1534, %v1962
  %v2081 = vadd.f32 %v1535, %v1964
  %v2082 = vadd.f32 %v1536, %v1759
  %v2083 = vadd.f32 %v1537, %v1761
  %v2084 = vadd.f32 %v1538, %v1968
  %v2085 = vadd.f32 %v1539, %v1970
  %v2086 = vadd.f32 %v1540, %v1765
  %v2087 = vadd.f32 %v1541, %v1767
  %v2088 = vadd.f32 %v1542, %v1974
  %v2089 = vadd.f32 %v1543, %v1976
  %v2090 = vadd.f32 %v1544, %v1771
  %v2091 = vadd.f32 %v1545, %v1773
  %v2092 = vadd.f32 %v1546, %v1980
  %v2093 = vadd.f32 %v1547, %v1982
  %v2094 = vadd.f32 %v1548, %v1777
  %v2095 = vadd.f32 %v1549, %v1779
  %v2096 = vadd.f32 %v1550, %v1986
  %v2097 = vadd.f32 %v1551, %v1988
  %v2098 = vadd.f32 %v1552, %v1783
  %v2099 = vadd.f32 %v1553, %v1785
  %v2100 = vadd.f32 %v1554, %v1992
  %v2101 = vadd.f32 %v1555, %v1994
  %v2102 = vadd.f32 %v1556, %v1789
  %v2103 = vadd.f32 %v1557, %v1791
  %v2104 = vadd.f32 %v1558, %v1998
  %v2105 = vadd.f32 %v1559, %v2000
  %v2106 = vadd.f32 %v1560, %v1795
  %v2107 = vadd.f32 %v1561, %v1797
  %v2108 = vadd.f32 %v1562, %v2004
  %v2109 = vadd.f32 %v1563, %v2006
  %v2110 = vadd.f32 %v1564, %v1801
  %v2111 = vadd.f32 %v1565, %v1803
  %v2112 = vadd.f32 %v1566, %v2010
  %v2113 = vadd.f32 %v1567, %v2012
  %v2114 = vadd.f32 %v1568, %v1807
  %v2115 = vadd.f32 %v1569, %v1809
  %v2116 = vadd.f32 %v1570, %v2016
  %v2117 = vadd.f32 %v1571, %v2018
  %v2118 = vadd.f32 %v1572, %v1813
  %v2119 = vadd.f32 %v1573, %v1815
  %v2120 = vadd.f32 %v1574, %v2022
  %v2121 = vadd.f32 %v1575, %v2024
  %s2122 = scalar_lea.vmem %s1, 512
  %v2123 = vld [vmem:[%s2122] sm:$0xff]
  %v2124 = vld [vmem:[%s2122 + $0x8] sm:$0xff]
  %v2125 = vld [vmem:[%s2122 + $0x10] sm:$0xff]
  %v2126 = vld [vmem:[%s2122 + $0x18] sm:$0xff]
  %v2127 = vld [vmem:[%s2122 + $0x20] sm:$0xff]
  %v2128 = vld [vmem:[%s2122 + $0x28] sm:$0xff]
  %v2129 = vld [vmem:[%s2122 + $0x30] sm:$0xff]
  %v2130 = vld [vmem:[%s2122 + $0x38] sm:$0xff]
  %v2131 = vld [vmem:[%s2122 + $0x40] sm:$0xff]
  %v2132 = vld [vmem:[%s2122 + $0x48] sm:$0xff]
  %v2133 = vld [vmem:[%s2122 + $0x50] sm:$0xff]
  %v2134 = vld [vmem:[%s2122 + $0x58] sm:$0xff]
  %v2135 = vld [vmem:[%s2122 + $0x60] sm:$0xf]
  %v2136 = vld [vmem:[%s2122 + $0x68] sm:$0xf]
  %v2137 = vld [vmem:[%s2122 + $0x70] sm:$0xf]
  %v2138 = vld [vmem:[%s2122 + $0x78] sm:$0xf]
  %v2140 = vsel %vm93, %v59, 0
  %v2143 = vsel %vm166, %v2135, 0
  %v2146 = vsel %vm166, %v2136, 0
  %v2149 = vsel %vm166, %v2137, 0
  %v2152 = vsel %vm166, %v2138, 0
  %2154 = vmatprep.subr.mxu0 %v2124
  %2155 = vmatpush1.msra.mxu0 %v2123
  %2156 = vmatprep.subr.mxu0 %v2128
  %2157 = vmatpush1.msra.mxu0 %v2127
  %2158 = vmatprep.subr.mxu0 %v2132
  %2159 = vmatpush1.msra.mxu0 %v2131
  %2160 = vmatprep.subr.mxu0 %v2146
  %2161 = vmatpush1.msra.mxu0 %v2143
  %2162 = vmatprep.subr.mxu0 0.0
  %2163 = vmatpush1.msra.mxu0 0.0
  %2164 = vmatprep.subr.mxu0 0.0
  %2165 = vmatpush1.msra.mxu0 0.0
  %2166 = vmatprep.subr.mxu0 0.0
  %2167 = vmatpush1.msra.mxu0 0.0
  %2168 = vmatprep.subr.mxu0 0.0
  %2169 = vmatpush1.msra.mxu0 0.0
  %2170 = vmatprep.subr.mxu0 0.0
  %2171 = vmatpush1.msra.mxu0 0.0
  %2172 = vmatprep.subr.mxu0 0.0
  %2173 = vmatpush1.msra.mxu0 0.0
  %2174 = vmatprep.subr.mxu0 0.0
  %2175 = vmatpush1.msra.mxu0 0.0
  %2176 = vmatprep.subr.mxu0 0.0
  %2177 = vmatpush1.msra.mxu0 0.0
  %2178 = vmatprep.subr.mxu0 0.0
  %2179 = vmatpush1.msra.mxu0 0.0
  %2180 = vmatprep.subr.mxu0 0.0
  %2181 = vmatpush1.msra.mxu0 0.0
  %2182 = vmatprep.subr.mxu0 0.0
  %2183 = vmatpush1.msra.mxu0 0.0
  %2184 = vmatprep.subr.mxu0 0.0
  %2185 = vmatpush1.msra.mxu0 0.0
  %2186 = vmatprep.subr.mxu0 0.0
  %2187 = vmatpush1.msra.mxu0 0.0
  %2188 = vmatprep.subr.mxu0 0.0
  %2189 = vmatpush1.msra.mxu0 0.0
  %2190 = vmatprep.subr.mxu0 0.0
  %2191 = vmatpush1.msra.mxu0 0.0
  %2192 = vmatprep.subr.mxu0 0.0
  %2193 = vmatpush1.msra.mxu0 0.0
  %2194 = vmatprep.subr.mxu0 0.0
  %2195 = vmatpush1.msra.mxu0 0.0
  %2196 = vmatprep.subr.mxu0 0.0
  %2197 = vmatpush1.msra.mxu0 0.0
  %2198 = vmatprep.subr.mxu0 0.0
  %2199 = vmatpush1.msra.mxu0 0.0
  %2200 = vmatprep.subr.mxu0 0.0
  %2201 = vmatpush1.msra.mxu0 0.0
  %2202 = vmatprep.subr.mxu0 0.0
  %2203 = vmatpush1.msra.mxu0 0.0
  %2204 = vmatprep.subr.mxu0 0.0
  %2205 = vmatpush1.msra.mxu0 0.0
  %2206 = vmatprep.subr.mxu0 0.0
  %2207 = vmatpush1.msra.mxu0 0.0
  %2208 = vmatprep.subr.mxu0 0.0
  %2209 = vmatpush1.msra.mxu0 0.0
  %2210 = vmatprep.subr.mxu0 0.0
  %2211 = vmatpush1.msra.mxu0 0.0
  %2212 = vmatprep.subr.mxu0 0.0
  %2213 = vmatpush1.msra.mxu0 0.0
  %2214 = vmatprep.subr.mxu0 0.0
  %2215 = vmatpush1.msra.mxu0 0.0
  %2216 = vmatprep.subr.mxu0 0.0
  %2217 = vmatpush1.msra.mxu0 0.0
  %2218 = vmatprep.mubr.f32.mxu0 0.0
  %2219 = vmatmul.mubr.f32.gmra.mrb[0].mxu0 %v104
  %v2220 = vpop.f32.mrb[0].mxu0
  %v2221 = vadd.f32 0.0, %v2220
  %v2222 = vpop.f32.mrb[0].mxu0
  %v2223 = vadd.f32 0.0, %v2222
  %2224 = vmatprep.mubr.f32.mxu0 0.0
  %2225 = vmatmul.mubr.f32.gmra.mrb[0].mxu0 %v107
  %v2226 = vpop.f32.mrb[0].mxu0
  %v2227 = vadd.f32 0.0, %v2226
  %v2228 = vpop.f32.mrb[0].mxu0
  %v2229 = vadd.f32 0.0, %v2228
  %2230 = vmatprep.mubr.f32.mxu0 0.0
  %2231 = vmatmul.mubr.f32.gmra.mrb[0].mxu0 %v110
  %v2232 = vpop.f32.mrb[0].mxu0
  %v2233 = vadd.f32 0.0, %v2232
  %v2234 = vpop.f32.mrb[0].mxu0
  %v2235 = vadd.f32 0.0, %v2234
  %2236 = vmatprep.mubr.f32.mxu0 0.0
  %2237 = vmatmul.mubr.f32.gmra.mrb[0].mxu0 %v113
  %v2238 = vpop.f32.mrb[0].mxu0
  %v2239 = vadd.f32 0.0, %v2238
  %v2240 = vpop.f32.mrb[0].mxu0
  %v2241 = vadd.f32 0.0, %v2240
  %2242 = vmatprep.mubr.f32.mxu0 0.0
  %2243 = vmatmul.mubr.f32.gmra.mrb[0].mxu0 %v116
  %v2244 = vpop.f32.mrb[0].mxu0
  %v2245 = vadd.f32 0.0, %v2244
  %v2246 = vpop.f32.mrb[0].mxu0
  %v2247 = vadd.f32 0.0, %v2246
  %2248 = vmatprep.mubr.f32.mxu0 0.0
  %2249 = vmatmul.mubr.f32.gmra.mrb[0].mxu0 %v119
  %v2250 = vpop.f32.mrb[0].mxu0
  %v2251 = vadd.f32 0.0, %v2250
  %v2252 = vpop.f32.mrb[0].mxu0
  %v2253 = vadd.f32 0.0, %v2252
  %2254 = vmatprep.mubr.f32.mxu0 0.0
  %2255 = vmatmul.mubr.f32.gmra.mrb[0].mxu0 %v122
  %v2256 = vpop.f32.mrb[0].mxu0
  %v2257 = vadd.f32 0.0, %v2256
  %v2258 = vpop.f32.mrb[0].mxu0
  %v2259 = vadd.f32 0.0, %v2258
  %2260 = vmatprep.mubr.f32.mxu0 0.0
  %2261 = vmatmul.mubr.f32.gmra.mrb[0].mxu0 %v125
  %v2262 = vpop.f32.mrb[0].mxu0
  %v2263 = vadd.f32 0.0, %v2262
  %v2264 = vpop.f32.mrb[0].mxu0
  %v2265 = vadd.f32 0.0, %v2264
  %2266 = vmatprep.mubr.f32.mxu0 0.0
  %2267 = vmatmul.mubr.f32.gmra.mrb[0].mxu0 %v128
  %v2268 = vpop.f32.mrb[0].mxu0
  %v2269 = vadd.f32 0.0, %v2268
  %v2270 = vpop.f32.mrb[0].mxu0
  %v2271 = vadd.f32 0.0, %v2270
  %2272 = vmatprep.mubr.f32.mxu0 0.0
  %2273 = vmatmul.mubr.f32.gmra.mrb[0].mxu0 %v131
  %v2274 = vpop.f32.mrb[0].mxu0
  %v2275 = vadd.f32 0.0, %v2274
  %v2276 = vpop.f32.mrb[0].mxu0
  %v2277 = vadd.f32 0.0, %v2276
  %2278 = vmatprep.mubr.f32.mxu0 0.0
  %2279 = vmatmul.mubr.f32.gmra.mrb[0].mxu0 %v134
  %v2280 = vpop.f32.mrb[0].mxu0
  %v2281 = vadd.f32 0.0, %v2280
  %v2282 = vpop.f32.mrb[0].mxu0
  %v2283 = vadd.f32 0.0, %v2282
  %2284 = vmatprep.mubr.f32.mxu0 0.0
  %2285 = vmatmul.mubr.f32.gmra.mrb[0].mxu0 %v137
  %v2286 = vpop.f32.mrb[0].mxu0
  %v2287 = vadd.f32 0.0, %v2286
  %v2288 = vpop.f32.mrb[0].mxu0
  %v2289 = vadd.f32 0.0, %v2288
  %2290 = vmatprep.mubr.f32.mxu0 0.0
  %2291 = vmatmul.mubr.f32.gmra.mrb[0].mxu0 %v140
  %v2292 = vpop.f32.mrb[0].mxu0
  %v2293 = vadd.f32 0.0, %v2292
  %v2294 = vpop.f32.mrb[0].mxu0
  %v2295 = vadd.f32 0.0, %v2294
  %2296 = vmatprep.mubr.f32.mxu0 0.0
  %2297 = vmatmul.mubr.f32.gmra.mrb[0].mxu0 %v143
  %v2298 = vpop.f32.mrb[0].mxu0
  %v2299 = vadd.f32 0.0, %v2298
  %v2300 = vpop.f32.mrb[0].mxu0
  %v2301 = vadd.f32 0.0, %v2300
  %2302 = vmatprep.mubr.f32.mxu0 0.0
  %2303 = vmatmul.mubr.f32.gmra.mrb[0].mxu0 %v146
  %v2304 = vpop.f32.mrb[0].mxu0
  %v2305 = vadd.f32 0.0, %v2304
  %v2306 = vpop.f32.mrb[0].mxu0
  %v2307 = vadd.f32 0.0, %v2306
  %2308 = vmatprep.mubr.f32.mxu0 0.0
  %2309 = vmatmul.mubr.f32.gmra.mrb[0].mxu0 %v149
  %v2310 = vpop.f32.mrb[0].mxu0
  %v2311 = vadd.f32 0.0, %v2310
  %v2312 = vpop.f32.mrb[0].mxu0
  %v2313 = vadd.f32 0.0, %v2312
  %2314 = vmatprep.mubr.f32.mxu0 0.0
  %2315 = vmatmul.mubr.f32.gmra.mrb[0].mxu0 %v152
  %v2316 = vpop.f32.mrb[0].mxu0
  %v2317 = vadd.f32 0.0, %v2316
  %v2318 = vpop.f32.mrb[0].mxu0
  %v2319 = vadd.f32 0.0, %v2318
  %2320 = vmatprep.mubr.f32.mxu0 0.0
  %2321 = vmatmul.mubr.f32.gmra.mrb[0].mxu0 %v155
  %v2322 = vpop.f32.mrb[0].mxu0
  %v2323 = vadd.f32 0.0, %v2322
  %v2324 = vpop.f32.mrb[0].mxu0
  %v2325 = vadd.f32 0.0, %v2324
  %2326 = vmatprep.mubr.f32.mxu0 0.0
  %2327 = vmatmul.mubr.f32.gmra.mrb[0].mxu0 %v158
  %v2328 = vpop.f32.mrb[0].mxu0
  %v2329 = vadd.f32 0.0, %v2328
  %v2330 = vpop.f32.mrb[0].mxu0
  %v2331 = vadd.f32 0.0, %v2330
  %2332 = vmatprep.mubr.f32.mxu0 0.0
  %2333 = vmatmul.mubr.f32.gmra.mrb[0].mxu0 %v161
  %v2334 = vpop.f32.mrb[0].mxu0
  %v2335 = vadd.f32 0.0, %v2334
  %v2336 = vpop.f32.mrb[0].mxu0
  %v2337 = vadd.f32 0.0, %v2336
  %2338 = vmatprep.mubr.f32.mxu0 0.0
  %2339 = vmatmul.mubr.f32.gmra.mrb[0].mxu0 %v164
  %v2340 = vpop.f32.mrb[0].mxu0
  %v2341 = vadd.f32 0.0, %v2340
  %v2342 = vpop.f32.mrb[0].mxu0
  %v2343 = vadd.f32 0.0, %v2342
  %2344 = vmatprep.mubr.f32.mxu0 0.0
  %2345 = vmatmul.mubr.f32.gmra.mrb[0].mxu0 %v1048
  %v2346 = vpop.f32.mrb[0].mxu0
  %v2347 = vadd.f32 0.0, %v2346
  %v2348 = vpop.f32.mrb[0].mxu0
  %v2349 = vadd.f32 0.0, %v2348
  %2350 = vmatprep.mubr.f32.mxu0 0.0
  %2351 = vmatmul.mubr.f32.gmra.mrb[0].mxu0 %v1594
  %v2352 = vpop.f32.mrb[0].mxu0
  %v2353 = vadd.f32 0.0, %v2352
  %v2354 = vpop.f32.mrb[0].mxu0
  %v2355 = vadd.f32 0.0, %v2354
  %2356 = vmatprep.mubr.f32.mxu0 0.0
  %2357 = vmatmul.mubr.f32.gmra.mrb[0].mxu0 %v2140
  %v2358 = vpop.f32.mrb[0].mxu0
  %v2359 = vadd.f32 0.0, %v2358
  %v2360 = vpop.f32.mrb[0].mxu0
  %v2361 = vadd.f32 0.0, %v2360
  %2362 = vdwg.mxu0
  %2363 = vmatprep.subr.mxu0 %v2126
  %2364 = vmatpush1.msra.mxu0 %v2125
  %2365 = vmatprep.subr.mxu0 %v2130
  %2366 = vmatpush1.msra.mxu0 %v2129
  %2367 = vmatprep.subr.mxu0 %v2134
  %2368 = vmatpush1.msra.mxu0 %v2133
  %2369 = vmatprep.subr.mxu0 %v2152
  %2370 = vmatpush1.msra.mxu0 %v2149
  %2371 = vmatprep.subr.mxu0 0.0
  %2372 = vmatpush1.msra.mxu0 0.0
  %2373 = vmatprep.subr.mxu0 0.0
  %2374 = vmatpush1.msra.mxu0 0.0
  %2375 = vmatprep.subr.mxu0 0.0
  %2376 = vmatpush1.msra.mxu0 0.0
  %2377 = vmatprep.subr.mxu0 0.0
  %2378 = vmatpush1.msra.mxu0 0.0
  %2379 = vmatprep.subr.mxu0 0.0
  %2380 = vmatpush1.msra.mxu0 0.0
  %2381 = vmatprep.subr.mxu0 0.0
  %2382 = vmatpush1.msra.mxu0 0.0
  %2383 = vmatprep.subr.mxu0 0.0
  %2384 = vmatpush1.msra.mxu0 0.0
  %2385 = vmatprep.subr.mxu0 0.0
  %2386 = vmatpush1.msra.mxu0 0.0
  %2387 = vmatprep.subr.mxu0 0.0
  %2388 = vmatpush1.msra.mxu0 0.0
  %2389 = vmatprep.subr.mxu0 0.0
  %2390 = vmatpush1.msra.mxu0 0.0
  %2391 = vmatprep.subr.mxu0 0.0
  %2392 = vmatpush1.msra.mxu0 0.0
  %2393 = vmatprep.subr.mxu0 0.0
  %2394 = vmatpush1.msra.mxu0 0.0
  %2395 = vmatprep.subr.mxu0 0.0
  %2396 = vmatpush1.msra.mxu0 0.0
  %2397 = vmatprep.subr.mxu0 0.0
  %2398 = vmatpush1.msra.mxu0 0.0
  %2399 = vmatprep.subr.mxu0 0.0
  %2400 = vmatpush1.msra.mxu0 0.0
  %2401 = vmatprep.subr.mxu0 0.0
  %2402 = vmatpush1.msra.mxu0 0.0
  %2403 = vmatprep.subr.mxu0 0.0
  %2404 = vmatpush1.msra.mxu0 0.0
  %2405 = vmatprep.subr.mxu0 0.0
  %2406 = vmatpush1.msra.mxu0 0.0
  %2407 = vmatprep.subr.mxu0 0.0
  %2408 = vmatpush1.msra.mxu0 0.0
  %2409 = vmatprep.subr.mxu0 0.0
  %2410 = vmatpush1.msra.mxu0 0.0
  %2411 = vmatprep.subr.mxu0 0.0
  %2412 = vmatpush1.msra.mxu0 0.0
  %2413 = vmatprep.subr.mxu0 0.0
  %2414 = vmatpush1.msra.mxu0 0.0
  %2415 = vmatprep.subr.mxu0 0.0
  %2416 = vmatpush1.msra.mxu0 0.0
  %2417 = vmatprep.subr.mxu0 0.0
  %2418 = vmatpush1.msra.mxu0 0.0
  %2419 = vmatprep.subr.mxu0 0.0
  %2420 = vmatpush1.msra.mxu0 0.0
  %2421 = vmatprep.subr.mxu0 0.0
  %2422 = vmatpush1.msra.mxu0 0.0
  %2423 = vmatprep.subr.mxu0 0.0
  %2424 = vmatpush1.msra.mxu0 0.0
  %2425 = vmatprep.subr.mxu0 0.0
  %2426 = vmatpush1.msra.mxu0 0.0
  %2427 = vmatprep.mubr.f32.mxu0 0.0
  %2428 = vmatmul.mubr.f32.gmra.mrb[0].mxu0 %v104
  %v2429 = vpop.f32.mrb[0].mxu0
  %v2430 = vadd.f32 0.0, %v2429
  %v2431 = vpop.f32.mrb[0].mxu0
  %v2432 = vadd.f32 0.0, %v2431
  %2433 = vmatprep.mubr.f32.mxu0 0.0
  %2434 = vmatmul.mubr.f32.gmra.mrb[0].mxu0 %v107
  %v2435 = vpop.f32.mrb[0].mxu0
  %v2436 = vadd.f32 0.0, %v2435
  %v2437 = vpop.f32.mrb[0].mxu0
  %v2438 = vadd.f32 0.0, %v2437
  %2439 = vmatprep.mubr.f32.mxu0 0.0
  %2440 = vmatmul.mubr.f32.gmra.mrb[0].mxu0 %v110
  %v2441 = vpop.f32.mrb[0].mxu0
  %v2442 = vadd.f32 0.0, %v2441
  %v2443 = vpop.f32.mrb[0].mxu0
  %v2444 = vadd.f32 0.0, %v2443
  %2445 = vmatprep.mubr.f32.mxu0 0.0
  %2446 = vmatmul.mubr.f32.gmra.mrb[0].mxu0 %v113
  %v2447 = vpop.f32.mrb[0].mxu0
  %v2448 = vadd.f32 0.0, %v2447
  %v2449 = vpop.f32.mrb[0].mxu0
  %v2450 = vadd.f32 0.0, %v2449
  %2451 = vmatprep.mubr.f32.mxu0 0.0
  %2452 = vmatmul.mubr.f32.gmra.mrb[0].mxu0 %v116
  %v2453 = vpop.f32.mrb[0].mxu0
  %v2454 = vadd.f32 0.0, %v2453
  %v2455 = vpop.f32.mrb[0].mxu0
  %v2456 = vadd.f32 0.0, %v2455
  %2457 = vmatprep.mubr.f32.mxu0 0.0
  %2458 = vmatmul.mubr.f32.gmra.mrb[0].mxu0 %v119
  %v2459 = vpop.f32.mrb[0].mxu0
  %v2460 = vadd.f32 0.0, %v2459
  %v2461 = vpop.f32.mrb[0].mxu0
  %v2462 = vadd.f32 0.0, %v2461
  %2463 = vmatprep.mubr.f32.mxu0 0.0
  %2464 = vmatmul.mubr.f32.gmra.mrb[0].mxu0 %v122
  %v2465 = vpop.f32.mrb[0].mxu0
  %v2466 = vadd.f32 0.0, %v2465
  %v2467 = vpop.f32.mrb[0].mxu0
  %v2468 = vadd.f32 0.0, %v2467
  %2469 = vmatprep.mubr.f32.mxu0 0.0
  %2470 = vmatmul.mubr.f32.gmra.mrb[0].mxu0 %v125
  %v2471 = vpop.f32.mrb[0].mxu0
  %v2472 = vadd.f32 0.0, %v2471
  %v2473 = vpop.f32.mrb[0].mxu0
  %v2474 = vadd.f32 0.0, %v2473
  %2475 = vmatprep.mubr.f32.mxu0 0.0
  %2476 = vmatmul.mubr.f32.gmra.mrb[0].mxu0 %v128
  %v2477 = vpop.f32.mrb[0].mxu0
  %v2478 = vadd.f32 0.0, %v2477
  %v2479 = vpop.f32.mrb[0].mxu0
  %v2480 = vadd.f32 0.0, %v2479
  %2481 = vmatprep.mubr.f32.mxu0 0.0
  %2482 = vmatmul.mubr.f32.gmra.mrb[0].mxu0 %v131
  %v2483 = vpop.f32.mrb[0].mxu0
  %v2484 = vadd.f32 0.0, %v2483
  %v2485 = vpop.f32.mrb[0].mxu0
  %v2486 = vadd.f32 0.0, %v2485
  %2487 = vmatprep.mubr.f32.mxu0 0.0
  %2488 = vmatmul.mubr.f32.gmra.mrb[0].mxu0 %v134
  %v2489 = vpop.f32.mrb[0].mxu0
  %v2490 = vadd.f32 0.0, %v2489
  %v2491 = vpop.f32.mrb[0].mxu0
  %v2492 = vadd.f32 0.0, %v2491
  %2493 = vmatprep.mubr.f32.mxu0 0.0
  %2494 = vmatmul.mubr.f32.gmra.mrb[0].mxu0 %v137
  %v2495 = vpop.f32.mrb[0].mxu0
  %v2496 = vadd.f32 0.0, %v2495
  %v2497 = vpop.f32.mrb[0].mxu0
  %v2498 = vadd.f32 0.0, %v2497
  %2499 = vmatprep.mubr.f32.mxu0 0.0
  %2500 = vmatmul.mubr.f32.gmra.mrb[0].mxu0 %v140
  %v2501 = vpop.f32.mrb[0].mxu0
  %v2502 = vadd.f32 0.0, %v2501
  %v2503 = vpop.f32.mrb[0].mxu0
  %v2504 = vadd.f32 0.0, %v2503
  %2505 = vmatprep.mubr.f32.mxu0 0.0
  %2506 = vmatmul.mubr.f32.gmra.mrb[0].mxu0 %v143
  %v2507 = vpop.f32.mrb[0].mxu0
  %v2508 = vadd.f32 0.0, %v2507
  %v2509 = vpop.f32.mrb[0].mxu0
  %v2510 = vadd.f32 0.0, %v2509
  %2511 = vmatprep.mubr.f32.mxu0 0.0
  %2512 = vmatmul.mubr.f32.gmra.mrb[0].mxu0 %v146
  %v2513 = vpop.f32.mrb[0].mxu0
  %v2514 = vadd.f32 0.0, %v2513
  %v2515 = vpop.f32.mrb[0].mxu0
  %v2516 = vadd.f32 0.0, %v2515
  %2517 = vmatprep.mubr.f32.mxu0 0.0
  %2518 = vmatmul.mubr.f32.gmra.mrb[0].mxu0 %v149
  %v2519 = vpop.f32.mrb[0].mxu0
  %v2520 = vadd.f32 0.0, %v2519
  %v2521 = vpop.f32.mrb[0].mxu0
  %v2522 = vadd.f32 0.0, %v2521
  %2523 = vmatprep.mubr.f32.mxu0 0.0
  %2524 = vmatmul.mubr.f32.gmra.mrb[0].mxu0 %v152
  %v2525 = vpop.f32.mrb[0].mxu0
  %v2526 = vadd.f32 0.0, %v2525
  %v2527 = vpop.f32.mrb[0].mxu0
  %v2528 = vadd.f32 0.0, %v2527
  %2529 = vmatprep.mubr.f32.mxu0 0.0
  %2530 = vmatmul.mubr.f32.gmra.mrb[0].mxu0 %v155
  %v2531 = vpop.f32.mrb[0].mxu0
  %v2532 = vadd.f32 0.0, %v2531
  %v2533 = vpop.f32.mrb[0].mxu0
  %v2534 = vadd.f32 0.0, %v2533
  %2535 = vmatprep.mubr.f32.mxu0 0.0
  %2536 = vmatmul.mubr.f32.gmra.mrb[0].mxu0 %v158
  %v2537 = vpop.f32.mrb[0].mxu0
  %v2538 = vadd.f32 0.0, %v2537
  %v2539 = vpop.f32.mrb[0].mxu0
  %v2540 = vadd.f32 0.0, %v2539
  %2541 = vmatprep.mubr.f32.mxu0 0.0
  %2542 = vmatmul.mubr.f32.gmra.mrb[0].mxu0 %v161
  %v2543 = vpop.f32.mrb[0].mxu0
  %v2544 = vadd.f32 0.0, %v2543
  %v2545 = vpop.f32.mrb[0].mxu0
  %v2546 = vadd.f32 0.0, %v2545
  %2547 = vmatprep.mubr.f32.mxu0 0.0
  %2548 = vmatmul.mubr.f32.gmra.mrb[0].mxu0 %v164
  %v2549 = vpop.f32.mrb[0].mxu0
  %v2550 = vadd.f32 0.0, %v2549
  %v2551 = vpop.f32.mrb[0].mxu0
  %v2552 = vadd.f32 0.0, %v2551
  %2553 = vmatprep.mubr.f32.mxu0 0.0
  %2554 = vmatmul.mubr.f32.gmra.mrb[0].mxu0 %v1048
  %v2555 = vpop.f32.mrb[0].mxu0
  %v2556 = vadd.f32 0.0, %v2555
  %v2557 = vpop.f32.mrb[0].mxu0
  %v2558 = vadd.f32 0.0, %v2557
  %2559 = vmatprep.mubr.f32.mxu0 0.0
  %2560 = vmatmul.mubr.f32.gmra.mrb[0].mxu0 %v1594
  %v2561 = vpop.f32.mrb[0].mxu0
  %v2562 = vadd.f32 0.0, %v2561
  %v2563 = vpop.f32.mrb[0].mxu0
  %v2564 = vadd.f32 0.0, %v2563
  %2565 = vmatprep.mubr.f32.mxu0 0.0
  %2566 = vmatmul.mubr.f32.gmra.mrb[0].mxu0 %v2140
  %v2567 = vpop.f32.mrb[0].mxu0
  %v2568 = vadd.f32 0.0, %v2567
  %v2569 = vpop.f32.mrb[0].mxu0
  %v2570 = vadd.f32 0.0, %v2569
  %2571 = vdwg.mxu0
  %v2572 = vadd.f32 %v2026, %v2221
  %v2573 = vadd.f32 %v2027, %v2223
  %v2574 = vadd.f32 %v2028, %v2430
  %v2575 = vadd.f32 %v2029, %v2432
  %v2576 = vadd.f32 %v2030, %v2227
  %v2577 = vadd.f32 %v2031, %v2229
  %v2578 = vadd.f32 %v2032, %v2436
  %v2579 = vadd.f32 %v2033, %v2438
  %v2580 = vadd.f32 %v2034, %v2233
  %v2581 = vadd.f32 %v2035, %v2235
  %v2582 = vadd.f32 %v2036, %v2442
  %v2583 = vadd.f32 %v2037, %v2444
  %v2584 = vadd.f32 %v2038, %v2239
  %v2585 = vadd.f32 %v2039, %v2241
  %v2586 = vadd.f32 %v2040, %v2448
  %v2587 = vadd.f32 %v2041, %v2450
  %v2588 = vadd.f32 %v2042, %v2245
  %v2589 = vadd.f32 %v2043, %v2247
  %v2590 = vadd.f32 %v2044, %v2454
  %v2591 = vadd.f32 %v2045, %v2456
  %v2592 = vadd.f32 %v2046, %v2251
  %v2593 = vadd.f32 %v2047, %v2253
  %v2594 = vadd.f32 %v2048, %v2460
  %v2595 = vadd.f32 %v2049, %v2462
  %v2596 = vadd.f32 %v2050, %v2257
  %v2597 = vadd.f32 %v2051, %v2259
  %v2598 = vadd.f32 %v2052, %v2466
  %v2599 = vadd.f32 %v2053, %v2468
  %v2600 = vadd.f32 %v2054, %v2263
  %v2601 = vadd.f32 %v2055, %v2265
  %v2602 = vadd.f32 %v2056, %v2472
  %v2603 = vadd.f32 %v2057, %v2474
  %v2604 = vadd.f32 %v2058, %v2269
  %v2605 = vadd.f32 %v2059, %v2271
  %v2606 = vadd.f32 %v2060, %v2478
  %v2607 = vadd.f32 %v2061, %v2480
  %v2608 = vadd.f32 %v2062, %v2275
  %v2609 = vadd.f32 %v2063, %v2277
  %v2610 = vadd.f32 %v2064, %v2484
  %v2611 = vadd.f32 %v2065, %v2486
  %v2612 = vadd.f32 %v2066, %v2281
  %v2613 = vadd.f32 %v2067, %v2283
  %v2614 = vadd.f32 %v2068, %v2490
  %v2615 = vadd.f32 %v2069, %v2492
  %v2616 = vadd.f32 %v2070, %v2287
  %v2617 = vadd.f32 %v2071, %v2289
  %v2618 = vadd.f32 %v2072, %v2496
  %v2619 = vadd.f32 %v2073, %v2498
  %v2620 = vadd.f32 %v2074, %v2293
  %v2621 = vadd.f32 %v2075, %v2295
  %v2622 = vadd.f32 %v2076, %v2502
  %v2623 = vadd.f32 %v2077, %v2504
  %v2624 = vadd.f32 %v2078, %v2299
  %v2625 = vadd.f32 %v2079, %v2301
  %v2626 = vadd.f32 %v2080, %v2508
  %v2627 = vadd.f32 %v2081, %v2510
  %v2628 = vadd.f32 %v2082, %v2305
  %v2629 = vadd.f32 %v2083, %v2307
  %v2630 = vadd.f32 %v2084, %v2514
  %v2631 = vadd.f32 %v2085, %v2516
  %v2632 = vadd.f32 %v2086, %v2311
  %v2633 = vadd.f32 %v2087, %v2313
  %v2634 = vadd.f32 %v2088, %v2520
  %v2635 = vadd.f32 %v2089, %v2522
  %v2636 = vadd.f32 %v2090, %v2317
  %v2637 = vadd.f32 %v2091, %v2319
  %v2638 = vadd.f32 %v2092, %v2526
  %v2639 = vadd.f32 %v2093, %v2528
  %v2640 = vadd.f32 %v2094, %v2323
  %v2641 = vadd.f32 %v2095, %v2325
  %v2642 = vadd.f32 %v2096, %v2532
  %v2643 = vadd.f32 %v2097, %v2534
  %v2644 = vadd.f32 %v2098, %v2329
  %v2645 = vadd.f32 %v2099, %v2331
  %v2646 = vadd.f32 %v2100, %v2538
  %v2647 = vadd.f32 %v2101, %v2540
  %v2648 = vadd.f32 %v2102, %v2335
  %v2649 = vadd.f32 %v2103, %v2337
  %v2650 = vadd.f32 %v2104, %v2544
  %v2651 = vadd.f32 %v2105, %v2546
  %v2652 = vadd.f32 %v2106, %v2341
  %v2653 = vadd.f32 %v2107, %v2343
  %v2654 = vadd.f32 %v2108, %v2550
  %v2655 = vadd.f32 %v2109, %v2552
  %v2656 = vadd.f32 %v2110, %v2347
  %v2657 = vadd.f32 %v2111, %v2349
  %v2658 = vadd.f32 %v2112, %v2556
  %v2659 = vadd.f32 %v2113, %v2558
  %v2660 = vadd.f32 %v2114, %v2353
  %v2661 = vadd.f32 %v2115, %v2355
  %v2662 = vadd.f32 %v2116, %v2562
  %v2663 = vadd.f32 %v2117, %v2564
  %v2664 = vadd.f32 %v2118, %v2359
  %v2665 = vadd.f32 %v2119, %v2361
  %v2666 = vadd.f32 %v2120, %v2568
  %v2667 = vadd.f32 %v2121, %v2570
  %v2668 = vmax.f32 %v2572, %v2574
  %v2669 = vmax.f32 %v2573, %v2575
  %v2670 = vmax.f32 %v2576, %v2578
  %v2671 = vmax.f32 %v2577, %v2579
  %v2672 = vmax.f32 %v2580, %v2582
  %v2673 = vmax.f32 %v2581, %v2583
  %v2674 = vmax.f32 %v2584, %v2586
  %v2675 = vmax.f32 %v2585, %v2587
  %v2676 = vmax.f32 %v2588, %v2590
  %v2677 = vmax.f32 %v2589, %v2591
  %v2678 = vmax.f32 %v2592, %v2594
  %v2679 = vmax.f32 %v2593, %v2595
  %v2680 = vmax.f32 %v2596, %v2598
  %v2681 = vmax.f32 %v2597, %v2599
  %v2682 = vmax.f32 %v2600, %v2602
  %v2683 = vmax.f32 %v2601, %v2603
  %v2684 = vmax.f32 %v2604, %v2606
  %v2685 = vmax.f32 %v2605, %v2607
  %v2686 = vmax.f32 %v2608, %v2610
  %v2687 = vmax.f32 %v2609, %v2611
  %v2688 = vmax.f32 %v2612, %v2614
  %v2689 = vmax.f32 %v2613, %v2615
  %v2690 = vmax.f32 %v2616, %v2618
  %v2691 = vmax.f32 %v2617, %v2619
  %v2692 = vmax.f32 %v2620, %v2622
  %v2693 = vmax.f32 %v2621, %v2623
  %v2694 = vmax.f32 %v2624, %v2626
  %v2695 = vmax.f32 %v2625, %v2627
  %v2696 = vmax.f32 %v2628, %v2630
  %v2697 = vmax.f32 %v2629, %v2631
  %v2698 = vmax.f32 %v2632, %v2634
  %v2699 = vmax.f32 %v2633, %v2635
  %v2700 = vmax.f32 %v2636, %v2638
  %v2701 = vmax.f32 %v2637, %v2639
  %v2702 = vmax.f32 %v2640, %v2642
  %v2703 = vmax.f32 %v2641, %v2643
  %v2704 = vmax.f32 %v2644, %v2646
  %v2705 = vmax.f32 %v2645, %v2647
  %v2706 = vmax.f32 %v2648, %v2650
  %v2707 = vmax.f32 %v2649, %v2651
  %v2708 = vmax.f32 %v2652, %v2654
  %v2709 = vmax.f32 %v2653, %v2655
  %v2710 = vmax.f32 %v2656, %v2658
  %v2711 = vmax.f32 %v2657, %v2659
  %v2712 = vmax.f32 %v2660, %v2662
  %v2713 = vmax.f32 %v2661, %v2663
  %v2714 = vmax.f32 %v2664, %v2666
  %v2715 = vmax.f32 %v2665, %v2667
  %v2716 = vmax.f32 %v2668, %v2670
  %vm2717 = vcmask 916480
  %v2718 = vsel %vm2717, %v2669, -inf
  %v2719 = vsel %vm2717, %v2671, -inf
  %v2720 = vmax.f32 %v2718, %v2719
  %v2721 = vmax.f32 %v2672, %v2674
  %v2722 = vsel %vm2717, %v2673, -inf
  %v2723 = vsel %vm2717, %v2675, -inf
  %v2724 = vmax.f32 %v2722, %v2723
  %v2725 = vmax.f32 %v2676, %v2678
  %v2726 = vsel %vm2717, %v2677, -inf
  %v2727 = vsel %vm2717, %v2679, -inf
  %v2728 = vmax.f32 %v2726, %v2727
  %v2729 = vmax.f32 %v2680, %v2682
  %v2730 = vsel %vm2717, %v2681, -inf
  %v2731 = vsel %vm2717, %v2683, -inf
  %v2732 = vmax.f32 %v2730, %v2731
  %v2733 = vmax.f32 %v2684, %v2686
  %v2734 = vsel %vm2717, %v2685, -inf
  %v2735 = vsel %vm2717, %v2687, -inf
  %v2736 = vmax.f32 %v2734, %v2735
  %v2737 = vmax.f32 %v2688, %v2690
  %v2738 = vsel %vm2717, %v2689, -inf
  %v2739 = vsel %vm2717, %v2691, -inf
  %v2740 = vmax.f32 %v2738, %v2739
  %v2741 = vmax.f32 %v2692, %v2694
  %v2742 = vsel %vm2717, %v2693, -inf
  %v2743 = vsel %vm2717, %v2695, -inf
  %v2744 = vmax.f32 %v2742, %v2743
  %v2745 = vmax.f32 %v2696, %v2698
  %v2746 = vsel %vm2717, %v2697, -inf
  %v2747 = vsel %vm2717, %v2699, -inf
  %v2748 = vmax.f32 %v2746, %v2747
  %v2749 = vmax.f32 %v2700, %v2702
  %v2750 = vsel %vm2717, %v2701, -inf
  %v2751 = vsel %vm2717, %v2703, -inf
  %v2752 = vmax.f32 %v2750, %v2751
  %v2753 = vmax.f32 %v2704, %v2706
  %v2754 = vsel %vm2717, %v2705, -inf
  %v2755 = vsel %vm2717, %v2707, -inf
  %v2756 = vmax.f32 %v2754, %v2755
  %v2757 = vmax.f32 %v2708, %v2710
  %v2758 = vsel %vm2717, %v2709, -inf
  %v2759 = vsel %vm2717, %v2711, -inf
  %v2760 = vmax.f32 %v2758, %v2759
  %v2761 = vmax.f32 %v2712, %v2714
  %v2762 = vsel %vm2717, %v2713, -inf
  %v2763 = vsel %vm2717, %v2715, -inf
  %v2764 = vmax.f32 %v2762, %v2763
  %v2765 = vld [vmem:[%s2] sm:$0x3]
  %v2767 = vlaneseq
  %v2768 = vshrl.u32 %v2767, 7
  %v2769 = vsub.s32 0, %v2768
  %v2770 = vrot.slane %v2765, %v2769
  %v2771 = vlaneseq
  %v2772 = vshrl.u32 %v2771, 7
  %v2773 = vsub.s32 1, %v2772
  %v2774 = vrot.slane %v2765, %v2773
  %v2777 = vadd.f32 %v2716, %v2770
  %v2778 = vadd.f32 %v2720, %v2774
  %v2779 = vadd.f32 %v2721, %v2770
  %v2780 = vadd.f32 %v2724, %v2774
  %v2781 = vadd.f32 %v2725, %v2770
  %v2782 = vadd.f32 %v2728, %v2774
  %v2783 = vadd.f32 %v2729, %v2770
  %v2784 = vadd.f32 %v2732, %v2774
  %v2785 = vadd.f32 %v2733, %v2770
  %v2786 = vadd.f32 %v2736, %v2774
  %v2787 = vadd.f32 %v2737, %v2770
  %v2788 = vadd.f32 %v2740, %v2774
  %v2789 = vadd.f32 %v2741, %v2770
  %v2790 = vadd.f32 %v2744, %v2774
  %v2791 = vadd.f32 %v2745, %v2770
  %v2792 = vadd.f32 %v2748, %v2774
  %v2793 = vadd.f32 %v2749, %v2770
  %v2794 = vadd.f32 %v2752, %v2774
  %v2795 = vadd.f32 %v2753, %v2770
  %v2796 = vadd.f32 %v2756, %v2774
  %v2797 = vadd.f32 %v2757, %v2770
  %v2798 = vadd.f32 %v2760, %v2774
  %v2799 = vadd.f32 %v2761, %v2770
  %v2800 = vadd.f32 %v2764, %v2774
  %v2801 = vmax.f32 %v2777, 0.0
  %v2802 = vmax.f32 %v2778, 0.0
  %v2803 = vmax.f32 %v2779, 0.0
  %v2804 = vmax.f32 %v2780, 0.0
  %v2805 = vmax.f32 %v2781, 0.0
  %v2806 = vmax.f32 %v2782, 0.0
  %v2807 = vmax.f32 %v2783, 0.0
  %v2808 = vmax.f32 %v2784, 0.0
  %v2809 = vmax.f32 %v2785, 0.0
  %v2810 = vmax.f32 %v2786, 0.0
  %v2811 = vmax.f32 %v2787, 0.0
  %v2812 = vmax.f32 %v2788, 0.0
  %v2813 = vmax.f32 %v2789, 0.0
  %v2814 = vmax.f32 %v2790, 0.0
  %v2815 = vmax.f32 %v2791, 0.0
  %v2816 = vmax.f32 %v2792, 0.0
  %v2817 = vmax.f32 %v2793, 0.0
  %v2818 = vmax.f32 %v2794, 0.0
  %v2819 = vmax.f32 %v2795, 0.0
  %v2820 = vmax.f32 %v2796, 0.0
  %v2821 = vmax.f32 %v2797, 0.0
  %v2822 = vmax.f32 %v2798, 0.0
  %v2823 = vmax.f32 %v2799, 0.0
  %v2824 = vmax.f32 %v2800, 0.0
  %v2825 = vld [vmem:[%s3] sm:$0xff]
  %v2826 = vld [vmem:[%s3 + $0x8] sm:$0xff]
  %v2827 = vld [vmem:[%s3 + $0x10] sm:$0xff]
  %v2828 = vld [vmem:[%s3 + $0x18] sm:$0xff]
  %v2829 = vld [vmem:[%s3 + $0x20] sm:$0xff]
  %v2830 = vld [vmem:[%s3 + $0x28] sm:$0xff]
  %v2831 = vld [vmem:[%s3 + $0x30] sm:$0xff]
  %v2832 = vld [vmem:[%s3 + $0x38] sm:$0xff]
  %v2833 = vld [vmem:[%s3 + $0x40] sm:$0xff]
  %v2834 = vld [vmem:[%s3 + $0x48] sm:$0xff]
  %v2835 = vld [vmem:[%s3 + $0x50] sm:$0xff]
  %v2836 = vld [vmem:[%s3 + $0x58] sm:$0xff]
  %v2837 = vld [vmem:[%s3 + $0x60] sm:$0xff]
  %v2838 = vld [vmem:[%s3 + $0x68] sm:$0xff]
  %v2839 = vld [vmem:[%s3 + $0x70] sm:$0xff]
  %v2840 = vld [vmem:[%s3 + $0x78] sm:$0xff]
  %v2841 = vld [vmem:[%s3 + $0x80] sm:$0xff]
  %v2842 = vld [vmem:[%s3 + $0x88] sm:$0xff]
  %v2843 = vld [vmem:[%s3 + $0x90] sm:$0xff]
  %v2844 = vld [vmem:[%s3 + $0x98] sm:$0xff]
  %v2845 = vld [vmem:[%s3 + $0xa0] sm:$0xff]
  %v2846 = vld [vmem:[%s3 + $0xa8] sm:$0xff]
  %v2847 = vld [vmem:[%s3 + $0xb0] sm:$0xff]
  %v2848 = vld [vmem:[%s3 + $0xb8] sm:$0xff]
  %v2849 = vld [vmem:[%s3 + $0xc0] sm:$0xff]
  %v2850 = vld [vmem:[%s3 + $0xc8] sm:$0xff]
  %v2851 = vld [vmem:[%s3 + $0xd0] sm:$0xff]
  %v2852 = vld [vmem:[%s3 + $0xd8] sm:$0xff]
  %v2853 = vld [vmem:[%s3 + $0xe0] sm:$0xff]
  %v2854 = vld [vmem:[%s3 + $0xe8] sm:$0xff]
  %v2855 = vld [vmem:[%s3 + $0xf0] sm:$0xff]
  %v2856 = vld [vmem:[%s3 + $0xf8] sm:$0xff]
  %v2857 = vld [vmem:[%s3 + $0x100] sm:$0xff]
  %v2858 = vld [vmem:[%s3 + $0x108] sm:$0xff]
  %v2859 = vld [vmem:[%s3 + $0x110] sm:$0xff]
  %v2860 = vld [vmem:[%s3 + $0x118] sm:$0xff]
  %v2861 = vld [vmem:[%s3 + $0x120] sm:$0xff]
  %v2862 = vld [vmem:[%s3 + $0x128] sm:$0xff]
  %v2863 = vld [vmem:[%s3 + $0x130] sm:$0xff]
  %v2864 = vld [vmem:[%s3 + $0x138] sm:$0xff]
  %v2865 = vld [vmem:[%s3 + $0x140] sm:$0xff]
  %v2866 = vld [vmem:[%s3 + $0x148] sm:$0xff]
  %v2867 = vld [vmem:[%s3 + $0x150] sm:$0xff]
  %v2868 = vld [vmem:[%s3 + $0x158] sm:$0xff]
  %v2869 = vld [vmem:[%s3 + $0x160] sm:$0xff]
  %v2870 = vld [vmem:[%s3 + $0x168] sm:$0xff]
  %v2871 = vld [vmem:[%s3 + $0x170] sm:$0xff]
  %v2872 = vld [vmem:[%s3 + $0x178] sm:$0xff]
  %v2873 = vld [vmem:[%s3 + $0x180] sm:$0xff]
  %v2874 = vld [vmem:[%s3 + $0x188] sm:$0xff]
  %v2875 = vld [vmem:[%s3 + $0x190] sm:$0xff]
  %v2876 = vld [vmem:[%s3 + $0x198] sm:$0xff]
  %v2877 = vld [vmem:[%s3 + $0x1a0] sm:$0xff]
  %v2878 = vld [vmem:[%s3 + $0x1a8] sm:$0xff]
  %v2879 = vld [vmem:[%s3 + $0x1b0] sm:$0xff]
  %v2880 = vld [vmem:[%s3 + $0x1b8] sm:$0xff]
  %v2881 = vld [vmem:[%s3 + $0x1c0] sm:$0xff]
  %v2882 = vld [vmem:[%s3 + $0x1c8] sm:$0xff]
  %v2883 = vld [vmem:[%s3 + $0x1d0] sm:$0xff]
  %v2884 = vld [vmem:[%s3 + $0x1d8] sm:$0xff]
  %v2885 = vld [vmem:[%s3 + $0x1e0] sm:$0xff]
  %v2886 = vld [vmem:[%s3 + $0x1e8] sm:$0xff]
  %v2887 = vld [vmem:[%s3 + $0x1f0] sm:$0xff]
  %v2888 = vld [vmem:[%s3 + $0x1f8] sm:$0xff]
  %v2889 = vld [vmem:[%s3 + $0x200] sm:$0xff]
  %v2890 = vld [vmem:[%s3 + $0x208] sm:$0xff]
  %v2891 = vld [vmem:[%s3 + $0x210] sm:$0xff]
  %v2892 = vld [vmem:[%s3 + $0x218] sm:$0xff]
  %v2893 = vld [vmem:[%s3 + $0x220] sm:$0xff]
  %v2894 = vld [vmem:[%s3 + $0x228] sm:$0xff]
  %v2895 = vld [vmem:[%s3 + $0x230] sm:$0xff]
  %v2896 = vld [vmem:[%s3 + $0x238] sm:$0xff]
  %v2897 = vld [vmem:[%s3 + $0x240] sm:$0xff]
  %v2898 = vld [vmem:[%s3 + $0x248] sm:$0xff]
  %v2899 = vld [vmem:[%s3 + $0x250] sm:$0xff]
  %v2900 = vld [vmem:[%s3 + $0x258] sm:$0xff]
  %v2901 = vld [vmem:[%s3 + $0x260] sm:$0xff]
  %v2902 = vld [vmem:[%s3 + $0x268] sm:$0xff]
  %v2903 = vld [vmem:[%s3 + $0x270] sm:$0xff]
  %v2904 = vld [vmem:[%s3 + $0x278] sm:$0xff]
  %v2905 = vld [vmem:[%s3 + $0x280] sm:$0xff]
  %v2906 = vld [vmem:[%s3 + $0x288] sm:$0xff]
  %v2907 = vld [vmem:[%s3 + $0x290] sm:$0xff]
  %v2908 = vld [vmem:[%s3 + $0x298] sm:$0xff]
  %v2909 = vld [vmem:[%s3 + $0x2a0] sm:$0xff]
  %v2910 = vld [vmem:[%s3 + $0x2a8] sm:$0xff]
  %v2911 = vld [vmem:[%s3 + $0x2b0] sm:$0xff]
  %v2912 = vld [vmem:[%s3 + $0x2b8] sm:$0xff]
  %v2913 = vld [vmem:[%s3 + $0x2c0] sm:$0xff]
  %v2914 = vld [vmem:[%s3 + $0x2c8] sm:$0xff]
  %v2915 = vld [vmem:[%s3 + $0x2d0] sm:$0xff]
  %v2916 = vld [vmem:[%s3 + $0x2d8] sm:$0xff]
  %v2917 = vld [vmem:[%s3 + $0x2e0] sm:$0xff]
  %v2918 = vld [vmem:[%s3 + $0x2e8] sm:$0xff]
  %v2919 = vld [vmem:[%s3 + $0x2f0] sm:$0xff]
  %v2920 = vld [vmem:[%s3 + $0x2f8] sm:$0xff]
  %v2921 = vld [vmem:[%s3 + $0x300] sm:$0xff]
  %v2922 = vld [vmem:[%s3 + $0x308] sm:$0xff]
  %v2923 = vld [vmem:[%s3 + $0x310] sm:$0xff]
  %v2924 = vld [vmem:[%s3 + $0x318] sm:$0xff]
  %v2925 = vld [vmem:[%s3 + $0x320] sm:$0xff]
  %v2926 = vld [vmem:[%s3 + $0x328] sm:$0xff]
  %v2927 = vld [vmem:[%s3 + $0x330] sm:$0xff]
  %v2928 = vld [vmem:[%s3 + $0x338] sm:$0xff]
  %v2929 = vld [vmem:[%s3 + $0x340] sm:$0xff]
  %v2930 = vld [vmem:[%s3 + $0x348] sm:$0xff]
  %v2931 = vld [vmem:[%s3 + $0x350] sm:$0xff]
  %v2932 = vld [vmem:[%s3 + $0x358] sm:$0xff]
  %v2933 = vld [vmem:[%s3 + $0x360] sm:$0xff]
  %v2934 = vld [vmem:[%s3 + $0x368] sm:$0xff]
  %v2935 = vld [vmem:[%s3 + $0x370] sm:$0xff]
  %v2936 = vld [vmem:[%s3 + $0x378] sm:$0xff]
  %v2937 = vld [vmem:[%s3 + $0x380] sm:$0xff]
  %v2938 = vld [vmem:[%s3 + $0x388] sm:$0xff]
  %v2939 = vld [vmem:[%s3 + $0x390] sm:$0xff]
  %v2940 = vld [vmem:[%s3 + $0x398] sm:$0xff]
  %v2941 = vld [vmem:[%s3 + $0x3a0] sm:$0xff]
  %v2942 = vld [vmem:[%s3 + $0x3a8] sm:$0xff]
  %v2943 = vld [vmem:[%s3 + $0x3b0] sm:$0xff]
  %v2944 = vld [vmem:[%s3 + $0x3b8] sm:$0xff]
  %s2945 = scalar_lea.vmem %s3, 960
  %v2946 = vld [vmem:[%s2945] sm:$0xff]
  %v2947 = vld [vmem:[%s2945 + $0x8] sm:$0xff]
  %v2948 = vld [vmem:[%s2945 + $0x10] sm:$0xff]
  %v2949 = vld [vmem:[%s2945 + $0x18] sm:$0xff]
  %v2950 = vld [vmem:[%s2945 + $0x20] sm:$0xff]
  %v2951 = vld [vmem:[%s2945 + $0x28] sm:$0xff]
  %v2952 = vld [vmem:[%s2945 + $0x30] sm:$0xff]
  %v2953 = vld [vmem:[%s2945 + $0x38] sm:$0xff]
  %v2954 = vld [vmem:[%s2945 + $0x40] sm:$0xff]
  %v2955 = vld [vmem:[%s2945 + $0x48] sm:$0xff]
  %v2956 = vld [vmem:[%s2945 + $0x50] sm:$0xff]
  %v2957 = vld [vmem:[%s2945 + $0x58] sm:$0xff]
  %v2958 = vld [vmem:[%s2945 + $0x60] sm:$0xff]
  %v2959 = vld [vmem:[%s2945 + $0x68] sm:$0xff]
  %v2960 = vld [vmem:[%s2945 + $0x70] sm:$0xff]
  %v2961 = vld [vmem:[%s2945 + $0x78] sm:$0xff]
  %v2962 = vld [vmem:[%s2945 + $0x80] sm:$0xff]
  %v2963 = vld [vmem:[%s2945 + $0x88] sm:$0xff]
  %v2964 = vld [vmem:[%s2945 + $0x90] sm:$0xff]
  %v2965 = vld [vmem:[%s2945 + $0x98] sm:$0xff]
  %v2966 = vld [vmem:[%s2945 + $0xa0] sm:$0xff]
  %v2967 = vld [vmem:[%s2945 + $0xa8] sm:$0xff]
  %v2968 = vld [vmem:[%s2945 + $0xb0] sm:$0xff]
  %v2969 = vld [vmem:[%s2945 + $0xb8] sm:$0xff]
  %v2970 = vld [vmem:[%s2945 + $0xc0] sm:$0xff]
  %v2971 = vld [vmem:[%s2945 + $0xc8] sm:$0xff]
  %v2972 = vld [vmem:[%s2945 + $0xd0] sm:$0xff]
  %v2973 = vld [vmem:[%s2945 + $0xd8] sm:$0xff]
  %v2974 = vld [vmem:[%s2945 + $0xe0] sm:$0xff]
  %v2975 = vld [vmem:[%s2945 + $0xe8] sm:$0xff]
  %v2976 = vld [vmem:[%s2945 + $0xf0] sm:$0xff]
  %v2977 = vld [vmem:[%s2945 + $0xf8] sm:$0xff]
  %v2978 = vld [vmem:[%s2945 + $0x100] sm:$0xff]
  %v2979 = vld [vmem:[%s2945 + $0x108] sm:$0xff]
  %v2980 = vld [vmem:[%s2945 + $0x110] sm:$0xff]
  %v2981 = vld [vmem:[%s2945 + $0x118] sm:$0xff]
  %v2982 = vld [vmem:[%s2945 + $0x120] sm:$0xff]
  %v2983 = vld [vmem:[%s2945 + $0x128] sm:$0xff]
  %v2984 = vld [vmem:[%s2945 + $0x130] sm:$0xff]
  %v2985 = vld [vmem:[%s2945 + $0x138] sm:$0xff]
  %v2986 = vld [vmem:[%s2945 + $0x140] sm:$0xff]
  %v2987 = vld [vmem:[%s2945 + $0x148] sm:$0xff]
  %v2988 = vld [vmem:[%s2945 + $0x150] sm:$0xff]
  %v2989 = vld [vmem:[%s2945 + $0x158] sm:$0xff]
  %v2990 = vld [vmem:[%s2945 + $0x160] sm:$0xff]
  %v2991 = vld [vmem:[%s2945 + $0x168] sm:$0xff]
  %v2992 = vld [vmem:[%s2945 + $0x170] sm:$0xff]
  %v2993 = vld [vmem:[%s2945 + $0x178] sm:$0xff]
  %v2994 = vld [vmem:[%s2945 + $0x180] sm:$0xff]
  %v2995 = vld [vmem:[%s2945 + $0x188] sm:$0xff]
  %v2996 = vld [vmem:[%s2945 + $0x190] sm:$0xff]
  %v2997 = vld [vmem:[%s2945 + $0x198] sm:$0xff]
  %v2998 = vld [vmem:[%s2945 + $0x1a0] sm:$0xff]
  %v2999 = vld [vmem:[%s2945 + $0x1a8] sm:$0xff]
  %v3000 = vld [vmem:[%s2945 + $0x1b0] sm:$0xff]
  %v3001 = vld [vmem:[%s2945 + $0x1b8] sm:$0xff]
  %v3002 = vld [vmem:[%s2945 + $0x1c0] sm:$0xff]
  %v3003 = vld [vmem:[%s2945 + $0x1c8] sm:$0xff]
  %v3004 = vld [vmem:[%s2945 + $0x1d0] sm:$0xff]
  %v3005 = vld [vmem:[%s2945 + $0x1d8] sm:$0xff]
  %v3006 = vld [vmem:[%s2945 + $0x1e0] sm:$0xff]
  %v3007 = vld [vmem:[%s2945 + $0x1e8] sm:$0xff]
  %v3008 = vld [vmem:[%s2945 + $0x1f0] sm:$0xff]
  %v3009 = vld [vmem:[%s2945 + $0x1f8] sm:$0xff]
  %v3010 = vld [vmem:[%s2945 + $0x200] sm:$0xff]
  %v3011 = vld [vmem:[%s2945 + $0x208] sm:$0xff]
  %v3012 = vld [vmem:[%s2945 + $0x210] sm:$0xff]
  %v3013 = vld [vmem:[%s2945 + $0x218] sm:$0xff]
  %v3014 = vld [vmem:[%s2945 + $0x220] sm:$0xff]
  %v3015 = vld [vmem:[%s2945 + $0x228] sm:$0xff]
  %v3016 = vld [vmem:[%s2945 + $0x230] sm:$0xff]
  %v3017 = vld [vmem:[%s2945 + $0x238] sm:$0xff]
  %v3018 = vld [vmem:[%s2945 + $0x240] sm:$0xff]
  %v3019 = vld [vmem:[%s2945 + $0x248] sm:$0xff]
  %v3020 = vld [vmem:[%s2945 + $0x250] sm:$0xff]
  %v3021 = vld [vmem:[%s2945 + $0x258] sm:$0xff]
  %v3022 = vld [vmem:[%s2945 + $0x260] sm:$0xff]
  %v3023 = vld [vmem:[%s2945 + $0x268] sm:$0xff]
  %v3024 = vld [vmem:[%s2945 + $0x270] sm:$0xff]
  %v3025 = vld [vmem:[%s2945 + $0x278] sm:$0xff]
  %v3026 = vld [vmem:[%s2945 + $0x280] sm:$0xff]
  %v3027 = vld [vmem:[%s2945 + $0x288] sm:$0xff]
  %v3028 = vld [vmem:[%s2945 + $0x290] sm:$0xff]
  %v3029 = vld [vmem:[%s2945 + $0x298] sm:$0xff]
  %v3030 = vld [vmem:[%s2945 + $0x2a0] sm:$0xff]
  %v3031 = vld [vmem:[%s2945 + $0x2a8] sm:$0xff]
  %v3032 = vld [vmem:[%s2945 + $0x2b0] sm:$0xff]
  %v3033 = vld [vmem:[%s2945 + $0x2b8] sm:$0xff]
  %v3034 = vld [vmem:[%s2945 + $0x2c0] sm:$0xff]
  %v3035 = vld [vmem:[%s2945 + $0x2c8] sm:$0xff]
  %v3036 = vld [vmem:[%s2945 + $0x2d0] sm:$0xff]
  %v3037 = vld [vmem:[%s2945 + $0x2d8] sm:$0xff]
  %v3038 = vld [vmem:[%s2945 + $0x2e0] sm:$0xff]
  %v3039 = vld [vmem:[%s2945 + $0x2e8] sm:$0xff]
  %v3040 = vld [vmem:[%s2945 + $0x2f0] sm:$0xff]
  %v3041 = vld [vmem:[%s2945 + $0x2f8] sm:$0xff]
  %v3042 = vld [vmem:[%s2945 + $0x300] sm:$0xff]
  %v3043 = vld [vmem:[%s2945 + $0x308] sm:$0xff]
  %v3044 = vld [vmem:[%s2945 + $0x310] sm:$0xff]
  %v3045 = vld [vmem:[%s2945 + $0x318] sm:$0xff]
  %v3046 = vld [vmem:[%s2945 + $0x320] sm:$0xff]
  %v3047 = vld [vmem:[%s2945 + $0x328] sm:$0xff]
  %v3048 = vld [vmem:[%s2945 + $0x330] sm:$0xff]
  %v3049 = vld [vmem:[%s2945 + $0x338] sm:$0xff]
  %v3050 = vld [vmem:[%s2945 + $0x340] sm:$0xff]
  %v3051 = vld [vmem:[%s2945 + $0x348] sm:$0xff]
  %v3052 = vld [vmem:[%s2945 + $0x350] sm:$0xff]
  %v3053 = vld [vmem:[%s2945 + $0x358] sm:$0xff]
  %v3054 = vld [vmem:[%s2945 + $0x360] sm:$0xff]
  %v3055 = vld [vmem:[%s2945 + $0x368] sm:$0xff]
  %v3056 = vld [vmem:[%s2945 + $0x370] sm:$0xff]
  %v3057 = vld [vmem:[%s2945 + $0x378] sm:$0xff]
  %v3058 = vld [vmem:[%s2945 + $0x380] sm:$0xff]
  %v3059 = vld [vmem:[%s2945 + $0x388] sm:$0xff]
  %v3060 = vld [vmem:[%s2945 + $0x390] sm:$0xff]
  %v3061 = vld [vmem:[%s2945 + $0x398] sm:$0xff]
  %v3062 = vld [vmem:[%s2945 + $0x3a0] sm:$0xff]
  %v3063 = vld [vmem:[%s2945 + $0x3a8] sm:$0xff]
  %v3064 = vld [vmem:[%s2945 + $0x3b0] sm:$0xff]
  %v3065 = vld [vmem:[%s2945 + $0x3b8] sm:$0xff]
  %v3067 = vsel %vm2717, %v2804, 0
  %v3070 = vsel %vm2717, %v2806, 0
  %v3073 = vsel %vm2717, %v2808, 0
  %v3076 = vsel %vm2717, %v2810, 0
  %v3079 = vsel %vm2717, %v2812, 0
  %v3082 = vsel %vm2717, %v2814, 0
  %v3085 = vsel %vm2717, %v2816, 0
  %v3088 = vsel %vm2717, %v2818, 0
  %3090 = vmatprep.subr.mxu0 %v2947
  %3091 = vmatpush1.msra.mxu0 %v2946
  %3092 = vmatprep.subr.mxu0 %v2951
  %3093 = vmatpush1.msra.mxu0 %v2950
  %3094 = vmatprep.subr.mxu0 %v2955
  %3095 = vmatpush1.msra.mxu0 %v2954
  %3096 = vmatprep.subr.mxu0 %v2959
  %3097 = vmatpush1.msra.mxu0 %v2958
  %3098 = vmatprep.subr.mxu0 %v2963
  %3099 = vmatpush1.msra.mxu0 %v2962
  %3100 = vmatprep.subr.mxu0 %v2967
  %3101 = vmatpush1.msra.mxu0 %v2966
  %3102 = vmatprep.subr.mxu0 %v2971
  %3103 = vmatpush1.msra.mxu0 %v2970
  %3104 = vmatprep.subr.mxu0 %v2975
  %3105 = vmatpush1.msra.mxu0 %v2974
  %3106 = vmatprep.subr.mxu0 %v2979
  %3107 = vmatpush1.msra.mxu0 %v2978
  %3108 = vmatprep.subr.mxu0 %v2983
  %3109 = vmatpush1.msra.mxu0 %v2982
  %3110 = vmatprep.subr.mxu0 %v2987
  %3111 = vmatpush1.msra.mxu0 %v2986
  %3112 = vmatprep.subr.mxu0 %v2991
  %3113 = vmatpush1.msra.mxu0 %v2990
  %3114 = vmatprep.subr.mxu0 %v2995
  %3115 = vmatpush1.msra.mxu0 %v2994
  %3116 = vmatprep.subr.mxu0 %v2999
  %3117 = vmatpush1.msra.mxu0 %v2998
  %3118 = vmatprep.subr.mxu0 %v3003
  %3119 = vmatpush1.msra.mxu0 %v3002
  %3120 = vmatprep.subr.mxu0 %v3007
  %3121 = vmatpush1.msra.mxu0 %v3006
  %3122 = vmatprep.subr.mxu0 %v3011
  %3123 = vmatpush1.msra.mxu0 %v3010
  %3124 = vmatprep.subr.mxu0 %v3015
  %3125 = vmatpush1.msra.mxu0 %v3014
  %3126 = vmatprep.subr.mxu0 %v3019
  %3127 = vmatpush1.msra.mxu0 %v3018
  %3128 = vmatprep.subr.mxu0 %v3023
  %3129 = vmatpush1.msra.mxu0 %v3022
  %3130 = vmatprep.subr.mxu0 %v3027
  %3131 = vmatpush1.msra.mxu0 %v3026
  %3132 = vmatprep.subr.mxu0 %v3031
  %3133 = vmatpush1.msra.mxu0 %v3030
  %3134 = vmatprep.subr.mxu0 %v3035
  %3135 = vmatpush1.msra.mxu0 %v3034
  %3136 = vmatprep.subr.mxu0 %v3039
  %3137 = vmatpush1.msra.mxu0 %v3038
  %3138 = vmatprep.subr.mxu0 %v3043
  %3139 = vmatpush1.msra.mxu0 %v3042
  %3140 = vmatprep.subr.mxu0 %v3047
  %3141 = vmatpush1.msra.mxu0 %v3046
  %3142 = vmatprep.subr.mxu0 %v3051
  %3143 = vmatpush1.msra.mxu0 %v3050
  %3144 = vmatprep.subr.mxu0 %v3055
  %3145 = vmatpush1.msra.mxu0 %v3054
  %3146 = vmatprep.subr.mxu0 %v3059
  %3147 = vmatpush1.msra.mxu0 %v3058
  %3148 = vmatprep.subr.mxu0 %v3063
  %3149 = vmatpush1.msra.mxu0 %v3062
  %3150 = vmatprep.subr.mxu0 0.0
  %3151 = vmatpush1.msra.mxu0 0.0
  %3152 = vmatprep.subr.mxu0 0.0
  %3153 = vmatpush1.msra.mxu0 0.0
  %3154 = vmatprep.mubr.f32.mxu0 %v3067
  %3155 = vmatmul.mubr.f32.gmra.mrb[0].mxu0 %v2803
  %v3156 = vpop.f32.mrb[0].mxu0
  %v3157 = vadd.f32 0.0, %v3156
  %v3158 = vpop.f32.mrb[0].mxu0
  %v3159 = vadd.f32 0.0, %v3158
  %3160 = vmatprep.mubr.f32.mxu0 %v3070
  %3161 = vmatmul.mubr.f32.gmra.mrb[0].mxu0 %v2805
  %v3162 = vpop.f32.mrb[0].mxu0
  %v3163 = vadd.f32 0.0, %v3162
  %v3164 = vpop.f32.mrb[0].mxu0
  %v3165 = vadd.f32 0.0, %v3164
  %3166 = vmatprep.mubr.f32.mxu0 %v3073
  %3167 = vmatmul.mubr.f32.gmra.mrb[0].mxu0 %v2807
  %v3168 = vpop.f32.mrb[0].mxu0
  %v3169 = vadd.f32 0.0, %v3168
  %v3170 = vpop.f32.mrb[0].mxu0
  %v3171 = vadd.f32 0.0, %v3170
  %3172 = vmatprep.mubr.f32.mxu0 %v3076
  %3173 = vmatmul.mubr.f32.gmra.mrb[0].mxu0 %v2809
  %v3174 = vpop.f32.mrb[0].mxu0
  %v3175 = vadd.f32 0.0, %v3174
  %v3176 = vpop.f32.mrb[0].mxu0
  %v3177 = vadd.f32 0.0, %v3176
  %3178 = vmatprep.mubr.f32.mxu0 %v3079
  %3179 = vmatmul.mubr.f32.gmra.mrb[0].mxu0 %v2811
  %v3180 = vpop.f32.mrb[0].mxu0
  %v3181 = vadd.f32 0.0, %v3180
  %v3182 = vpop.f32.mrb[0].mxu0
  %v3183 = vadd.f32 0.0, %v3182
  %3184 = vmatprep.mubr.f32.mxu0 %v3082
  %3185 = vmatmul.mubr.f32.gmra.mrb[0].mxu0 %v2813
  %v3186 = vpop.f32.mrb[0].mxu0
  %v3187 = vadd.f32 0.0, %v3186
  %v3188 = vpop.f32.mrb[0].mxu0
  %v3189 = vadd.f32 0.0, %v3188
  %3190 = vmatprep.mubr.f32.mxu0 %v3085
  %3191 = vmatmul.mubr.f32.gmra.mrb[0].mxu0 %v2815
  %v3192 = vpop.f32.mrb[0].mxu0
  %v3193 = vadd.f32 0.0, %v3192
  %v3194 = vpop.f32.mrb[0].mxu0
  %v3195 = vadd.f32 0.0, %v3194
  %3196 = vmatprep.mubr.f32.mxu0 %v3088
  %3197 = vmatmul.mubr.f32.gmra.mrb[0].mxu0 %v2817
  %v3198 = vpop.f32.mrb[0].mxu0
  %v3199 = vadd.f32 0.0, %v3198
  %v3200 = vpop.f32.mrb[0].mxu0
  %v3201 = vadd.f32 0.0, %v3200
  %3202 = vdwg.mxu0
  %3203 = vmatprep.subr.mxu0 %v2949
  %3204 = vmatpush1.msra.mxu0 %v2948
  %3205 = vmatprep.subr.mxu0 %v2953
  %3206 = vmatpush1.msra.mxu0 %v2952
  %3207 = vmatprep.subr.mxu0 %v2957
  %3208 = vmatpush1.msra.mxu0 %v2956
  %3209 = vmatprep.subr.mxu0 %v2961
  %3210 = vmatpush1.msra.mxu0 %v2960
  %3211 = vmatprep.subr.mxu0 %v2965
  %3212 = vmatpush1.msra.mxu0 %v2964
  %3213 = vmatprep.subr.mxu0 %v2969
  %3214 = vmatpush1.msra.mxu0 %v2968
  %3215 = vmatprep.subr.mxu0 %v2973
  %3216 = vmatpush1.msra.mxu0 %v2972
  %3217 = vmatprep.subr.mxu0 %v2977
  %3218 = vmatpush1.msra.mxu0 %v2976
  %3219 = vmatprep.subr.mxu0 %v2981
  %3220 = vmatpush1.msra.mxu0 %v2980
  %3221 = vmatprep.subr.mxu0 %v2985
  %3222 = vmatpush1.msra.mxu0 %v2984
  %3223 = vmatprep.subr.mxu0 %v2989
  %3224 = vmatpush1.msra.mxu0 %v2988
  %3225 = vmatprep.subr.mxu0 %v2993
  %3226 = vmatpush1.msra.mxu0 %v2992
  %3227 = vmatprep.subr.mxu0 %v2997
  %3228 = vmatpush1.msra.mxu0 %v2996
  %3229 = vmatprep.subr.mxu0 %v3001
  %3230 = vmatpush1.msra.mxu0 %v3000
  %3231 = vmatprep.subr.mxu0 %v3005
  %3232 = vmatpush1.msra.mxu0 %v3004
  %3233 = vmatprep.subr.mxu0 %v3009
  %3234 = vmatpush1.msra.mxu0 %v3008
  %3235 = vmatprep.subr.mxu0 %v3013
  %3236 = vmatpush1.msra.mxu0 %v3012
  %3237 = vmatprep.subr.mxu0 %v3017
  %3238 = vmatpush1.msra.mxu0 %v3016
  %3239 = vmatprep.subr.mxu0 %v3021
  %3240 = vmatpush1.msra.mxu0 %v3020
  %3241 = vmatprep.subr.mxu0 %v3025
  %3242 = vmatpush1.msra.mxu0 %v3024
  %3243 = vmatprep.subr.mxu0 %v3029
  %3244 = vmatpush1.msra.mxu0 %v3028
  %3245 = vmatprep.subr.mxu0 %v3033
  %3246 = vmatpush1.msra.mxu0 %v3032
  %3247 = vmatprep.subr.mxu0 %v3037
  %3248 = vmatpush1.msra.mxu0 %v3036
  %3249 = vmatprep.subr.mxu0 %v3041
  %3250 = vmatpush1.msra.mxu0 %v3040
  %3251 = vmatprep.subr.mxu0 %v3045
  %3252 = vmatpush1.msra.mxu0 %v3044
  %3253 = vmatprep.subr.mxu0 %v3049
  %3254 = vmatpush1.msra.mxu0 %v3048
  %3255 = vmatprep.subr.mxu0 %v3053
  %3256 = vmatpush1.msra.mxu0 %v3052
  %3257 = vmatprep.subr.mxu0 %v3057
  %3258 = vmatpush1.msra.mxu0 %v3056
  %3259 = vmatprep.subr.mxu0 %v3061
  %3260 = vmatpush1.msra.mxu0 %v3060
  %3261 = vmatprep.subr.mxu0 %v3065
  %3262 = vmatpush1.msra.mxu0 %v3064
  %3263 = vmatprep.subr.mxu0 0.0
  %3264 = vmatpush1.msra.mxu0 0.0
  %3265 = vmatprep.subr.mxu0 0.0
  %3266 = vmatpush1.msra.mxu0 0.0
  %3267 = vmatprep.mubr.f32.mxu0 %v3067
  %3268 = vmatmul.mubr.f32.gmra.mrb[0].mxu0 %v2803
  %v3269 = vpop.f32.mrb[0].mxu0
  %v3270 = vadd.f32 0.0, %v3269
  %v3271 = vpop.f32.mrb[0].mxu0
  %v3272 = vadd.f32 0.0, %v3271
  %3273 = vmatprep.mubr.f32.mxu0 %v3070
  %3274 = vmatmul.mubr.f32.gmra.mrb[0].mxu0 %v2805
  %v3275 = vpop.f32.mrb[0].mxu0
  %v3276 = vadd.f32 0.0, %v3275
  %v3277 = vpop.f32.mrb[0].mxu0
  %v3278 = vadd.f32 0.0, %v3277
  %3279 = vmatprep.mubr.f32.mxu0 %v3073
  %3280 = vmatmul.mubr.f32.gmra.mrb[0].mxu0 %v2807
  %v3281 = vpop.f32.mrb[0].mxu0
  %v3282 = vadd.f32 0.0, %v3281
  %v3283 = vpop.f32.mrb[0].mxu0
  %v3284 = vadd.f32 0.0, %v3283
  %3285 = vmatprep.mubr.f32.mxu0 %v3076
  %3286 = vmatmul.mubr.f32.gmra.mrb[0].mxu0 %v2809
  %v3287 = vpop.f32.mrb[0].mxu0
  %v3288 = vadd.f32 0.0, %v3287
  %v3289 = vpop.f32.mrb[0].mxu0
  %v3290 = vadd.f32 0.0, %v3289
  %3291 = vmatprep.mubr.f32.mxu0 %v3079
  %3292 = vmatmul.mubr.f32.gmra.mrb[0].mxu0 %v2811
  %v3293 = vpop.f32.mrb[0].mxu0
  %v3294 = vadd.f32 0.0, %v3293
  %v3295 = vpop.f32.mrb[0].mxu0
  %v3296 = vadd.f32 0.0, %v3295
  %3297 = vmatprep.mubr.f32.mxu0 %v3082
  %3298 = vmatmul.mubr.f32.gmra.mrb[0].mxu0 %v2813
  %v3299 = vpop.f32.mrb[0].mxu0
  %v3300 = vadd.f32 0.0, %v3299
  %v3301 = vpop.f32.mrb[0].mxu0
  %v3302 = vadd.f32 0.0, %v3301
  %3303 = vmatprep.mubr.f32.mxu0 %v3085
  %3304 = vmatmul.mubr.f32.gmra.mrb[0].mxu0 %v2815
  %v3305 = vpop.f32.mrb[0].mxu0
  %v3306 = vadd.f32 0.0, %v3305
  %v3307 = vpop.f32.mrb[0].mxu0
  %v3308 = vadd.f32 0.0, %v3307
  %3309 = vmatprep.mubr.f32.mxu0 %v3088
  %3310 = vmatmul.mubr.f32.gmra.mrb[0].mxu0 %v2817
  %v3311 = vpop.f32.mrb[0].mxu0
  %v3312 = vadd.f32 0.0, %v3311
  %v3313 = vpop.f32.mrb[0].mxu0
  %v3314 = vadd.f32 0.0, %v3313
  %3315 = vdwg.mxu0
  %v3317 = vsel %vm2717, %v2802, 0
  %3319 = vmatprep.subr.mxu0 %v2826
  %3320 = vmatpush1.msra.mxu0 %v2825
  %3321 = vmatprep.subr.mxu0 %v2830
  %3322 = vmatpush1.msra.mxu0 %v2829
  %3323 = vmatprep.subr.mxu0 %v2834
  %3324 = vmatpush1.msra.mxu0 %v2833
  %3325 = vmatprep.subr.mxu0 %v2838
  %3326 = vmatpush1.msra.mxu0 %v2837
  %3327 = vmatprep.subr.mxu0 %v2842
  %3328 = vmatpush1.msra.mxu0 %v2841
  %3329 = vmatprep.subr.mxu0 %v2846
  %3330 = vmatpush1.msra.mxu0 %v2845
  %3331 = vmatprep.subr.mxu0 %v2850
  %3332 = vmatpush1.msra.mxu0 %v2849
  %3333 = vmatprep.subr.mxu0 %v2854
  %3334 = vmatpush1.msra.mxu0 %v2853
  %3335 = vmatprep.subr.mxu0 %v2858
  %3336 = vmatpush1.msra.mxu0 %v2857
  %3337 = vmatprep.subr.mxu0 %v2862
  %3338 = vmatpush1.msra.mxu0 %v2861
  %3339 = vmatprep.subr.mxu0 %v2866
  %3340 = vmatpush1.msra.mxu0 %v2865
  %3341 = vmatprep.subr.mxu0 %v2870
  %3342 = vmatpush1.msra.mxu0 %v2869
  %3343 = vmatprep.subr.mxu0 %v2874
  %3344 = vmatpush1.msra.mxu0 %v2873
  %3345 = vmatprep.subr.mxu0 %v2878
  %3346 = vmatpush1.msra.mxu0 %v2877
  %3347 = vmatprep.subr.mxu0 %v2882
  %3348 = vmatpush1.msra.mxu0 %v2881
  %3349 = vmatprep.subr.mxu0 %v2886
  %3350 = vmatpush1.msra.mxu0 %v2885
  %3351 = vmatprep.subr.mxu0 %v2890
  %3352 = vmatpush1.msra.mxu0 %v2889
  %3353 = vmatprep.subr.mxu0 %v2894
  %3354 = vmatpush1.msra.mxu0 %v2893
  %3355 = vmatprep.subr.mxu0 %v2898
  %3356 = vmatpush1.msra.mxu0 %v2897
  %3357 = vmatprep.subr.mxu0 %v2902
  %3358 = vmatpush1.msra.mxu0 %v2901
  %3359 = vmatprep.subr.mxu0 %v2906
  %3360 = vmatpush1.msra.mxu0 %v2905
  %3361 = vmatprep.subr.mxu0 %v2910
  %3362 = vmatpush1.msra.mxu0 %v2909
  %3363 = vmatprep.subr.mxu0 %v2914
  %3364 = vmatpush1.msra.mxu0 %v2913
  %3365 = vmatprep.subr.mxu0 %v2918
  %3366 = vmatpush1.msra.mxu0 %v2917
  %3367 = vmatprep.subr.mxu0 %v2922
  %3368 = vmatpush1.msra.mxu0 %v2921
  %3369 = vmatprep.subr.mxu0 %v2926
  %3370 = vmatpush1.msra.mxu0 %v2925
  %3371 = vmatprep.subr.mxu0 %v2930
  %3372 = vmatpush1.msra.mxu0 %v2929
  %3373 = vmatprep.subr.mxu0 %v2934
  %3374 = vmatpush1.msra.mxu0 %v2933
  %3375 = vmatprep.subr.mxu0 %v2938
  %3376 = vmatpush1.msra.mxu0 %v2937
  %3377 = vmatprep.subr.mxu0 %v2942
  %3378 = vmatpush1.msra.mxu0 %v2941
  %3379 = vmatprep.subr.mxu0 0.0
  %3380 = vmatpush1.msra.mxu0 0.0
  %3381 = vmatprep.subr.mxu0 0.0
  %3382 = vmatpush1.msra.mxu0 0.0
  %3383 = vmatprep.mubr.f32.mxu0 %v3317
  %3384 = vmatmul.mubr.f32.gmra.mrb[0].mxu0 %v2801
  %v3385 = vpop.f32.mrb[0].mxu0
  %v3386 = vadd.f32 %v3157, %v3385
  %v3387 = vpop.f32.mrb[0].mxu0
  %v3388 = vadd.f32 %v3159, %v3387
  %3389 = vmatprep.mubr.f32.mxu0 %v3067
  %3390 = vmatmul.mubr.f32.gmra.mrb[0].mxu0 %v2803
  %v3391 = vpop.f32.mrb[0].mxu0
  %v3392 = vadd.f32 %v3163, %v3391
  %v3393 = vpop.f32.mrb[0].mxu0
  %v3394 = vadd.f32 %v3165, %v3393
  %3395 = vmatprep.mubr.f32.mxu0 %v3070
  %3396 = vmatmul.mubr.f32.gmra.mrb[0].mxu0 %v2805
  %v3397 = vpop.f32.mrb[0].mxu0
  %v3398 = vadd.f32 %v3169, %v3397
  %v3399 = vpop.f32.mrb[0].mxu0
  %v3400 = vadd.f32 %v3171, %v3399
  %3401 = vmatprep.mubr.f32.mxu0 %v3073
  %3402 = vmatmul.mubr.f32.gmra.mrb[0].mxu0 %v2807
  %v3403 = vpop.f32.mrb[0].mxu0
  %v3404 = vadd.f32 %v3175, %v3403
  %v3405 = vpop.f32.mrb[0].mxu0
  %v3406 = vadd.f32 %v3177, %v3405
  %3407 = vmatprep.mubr.f32.mxu0 %v3076
  %3408 = vmatmul.mubr.f32.gmra.mrb[0].mxu0 %v2809
  %v3409 = vpop.f32.mrb[0].mxu0
  %v3410 = vadd.f32 %v3181, %v3409
  %v3411 = vpop.f32.mrb[0].mxu0
  %v3412 = vadd.f32 %v3183, %v3411
  %3413 = vmatprep.mubr.f32.mxu0 %v3079
  %3414 = vmatmul.mubr.f32.gmra.mrb[0].mxu0 %v2811
  %v3415 = vpop.f32.mrb[0].mxu0
  %v3416 = vadd.f32 %v3187, %v3415
  %v3417 = vpop.f32.mrb[0].mxu0
  %v3418 = vadd.f32 %v3189, %v3417
  %3419 = vmatprep.mubr.f32.mxu0 %v3082
  %3420 = vmatmul.mubr.f32.gmra.mrb[0].mxu0 %v2813
  %v3421 = vpop.f32.mrb[0].mxu0
  %v3422 = vadd.f32 %v3193, %v3421
  %v3423 = vpop.f32.mrb[0].mxu0
  %v3424 = vadd.f32 %v3195, %v3423
  %3425 = vmatprep.mubr.f32.mxu0 %v3085
  %3426 = vmatmul.mubr.f32.gmra.mrb[0].mxu0 %v2815
  %v3427 = vpop.f32.mrb[0].mxu0
  %v3428 = vadd.f32 %v3199, %v3427
  %v3429 = vpop.f32.mrb[0].mxu0
  %v3430 = vadd.f32 %v3201, %v3429
  %3431 = vdwg.mxu0
  %3432 = vmatprep.subr.mxu0 %v2828
  %3433 = vmatpush1.msra.mxu0 %v2827
  %3434 = vmatprep.subr.mxu0 %v2832
  %3435 = vmatpush1.msra.mxu0 %v2831
  %3436 = vmatprep.subr.mxu0 %v2836
  %3437 = vmatpush1.msra.mxu0 %v2835
  %3438 = vmatprep.subr.mxu0 %v2840
  %3439 = vmatpush1.msra.mxu0 %v2839
  %3440 = vmatprep.subr.mxu0 %v2844
  %3441 = vmatpush1.msra.mxu0 %v2843
  %3442 = vmatprep.subr.mxu0 %v2848
  %3443 = vmatpush1.msra.mxu0 %v2847
  %3444 = vmatprep.subr.mxu0 %v2852
  %3445 = vmatpush1.msra.mxu0 %v2851
  %3446 = vmatprep.subr.mxu0 %v2856
  %3447 = vmatpush1.msra.mxu0 %v2855
  %3448 = vmatprep.subr.mxu0 %v2860
  %3449 = vmatpush1.msra.mxu0 %v2859
  %3450 = vmatprep.subr.mxu0 %v2864
  %3451 = vmatpush1.msra.mxu0 %v2863
  %3452 = vmatprep.subr.mxu0 %v2868
  %3453 = vmatpush1.msra.mxu0 %v2867
  %3454 = vmatprep.subr.mxu0 %v2872
  %3455 = vmatpush1.msra.mxu0 %v2871
  %3456 = vmatprep.subr.mxu0 %v2876
  %3457 = vmatpush1.msra.mxu0 %v2875
  %3458 = vmatprep.subr.mxu0 %v2880
  %3459 = vmatpush1.msra.mxu0 %v2879
  %3460 = vmatprep.subr.mxu0 %v2884
  %3461 = vmatpush1.msra.mxu0 %v2883
  %3462 = vmatprep.subr.mxu0 %v2888
  %3463 = vmatpush1.msra.mxu0 %v2887
  %3464 = vmatprep.subr.mxu0 %v2892
  %3465 = vmatpush1.msra.mxu0 %v2891
  %3466 = vmatprep.subr.mxu0 %v2896
  %3467 = vmatpush1.msra.mxu0 %v2895
  %3468 = vmatprep.subr.mxu0 %v2900
  %3469 = vmatpush1.msra.mxu0 %v2899
  %3470 = vmatprep.subr.mxu0 %v2904
  %3471 = vmatpush1.msra.mxu0 %v2903
  %3472 = vmatprep.subr.mxu0 %v2908
  %3473 = vmatpush1.msra.mxu0 %v2907
  %3474 = vmatprep.subr.mxu0 %v2912
  %3475 = vmatpush1.msra.mxu0 %v2911
  %3476 = vmatprep.subr.mxu0 %v2916
  %3477 = vmatpush1.msra.mxu0 %v2915
  %3478 = vmatprep.subr.mxu0 %v2920
  %3479 = vmatpush1.msra.mxu0 %v2919
  %3480 = vmatprep.subr.mxu0 %v2924
  %3481 = vmatpush1.msra.mxu0 %v2923
  %3482 = vmatprep.subr.mxu0 %v2928
  %3483 = vmatpush1.msra.mxu0 %v2927
  %3484 = vmatprep.subr.mxu0 %v2932
  %3485 = vmatpush1.msra.mxu0 %v2931
  %3486 = vmatprep.subr.mxu0 %v2936
  %3487 = vmatpush1.msra.mxu0 %v2935
  %3488 = vmatprep.subr.mxu0 %v2940
  %3489 = vmatpush1.msra.mxu0 %v2939
  %3490 = vmatprep.subr.mxu0 %v2944
  %3491 = vmatpush1.msra.mxu0 %v2943
  %3492 = vmatprep.subr.mxu0 0.0
  %3493 = vmatpush1.msra.mxu0 0.0
  %3494 = vmatprep.subr.mxu0 0.0
  %3495 = vmatpush1.msra.mxu0 0.0
  %3496 = vmatprep.mubr.f32.mxu0 %v3317
  %3497 = vmatmul.mubr.f32.gmra.mrb[0].mxu0 %v2801
  %v3498 = vpop.f32.mrb[0].mxu0
  %v3499 = vadd.f32 %v3270, %v3498
  %v3500 = vpop.f32.mrb[0].mxu0
  %v3501 = vadd.f32 %v3272, %v3500
  %3502 = vmatprep.mubr.f32.mxu0 %v3067
  %3503 = vmatmul.mubr.f32.gmra.mrb[0].mxu0 %v2803
  %v3504 = vpop.f32.mrb[0].mxu0
  %v3505 = vadd.f32 %v3276, %v3504
  %v3506 = vpop.f32.mrb[0].mxu0
  %v3507 = vadd.f32 %v3278, %v3506
  %3508 = vmatprep.mubr.f32.mxu0 %v3070
  %3509 = vmatmul.mubr.f32.gmra.mrb[0].mxu0 %v2805
  %v3510 = vpop.f32.mrb[0].mxu0
  %v3511 = vadd.f32 %v3282, %v3510
  %v3512 = vpop.f32.mrb[0].mxu0
  %v3513 = vadd.f32 %v3284, %v3512
  %3514 = vmatprep.mubr.f32.mxu0 %v3073
  %3515 = vmatmul.mubr.f32.gmra.mrb[0].mxu0 %v2807
  %v3516 = vpop.f32.mrb[0].mxu0
  %v3517 = vadd.f32 %v3288, %v3516
  %v3518 = vpop.f32.mrb[0].mxu0
  %v3519 = vadd.f32 %v3290, %v3518
  %3520 = vmatprep.mubr.f32.mxu0 %v3076
  %3521 = vmatmul.mubr.f32.gmra.mrb[0].mxu0 %v2809
  %v3522 = vpop.f32.mrb[0].mxu0
  %v3523 = vadd.f32 %v3294, %v3522
  %v3524 = vpop.f32.mrb[0].mxu0
  %v3525 = vadd.f32 %v3296, %v3524
  %3526 = vmatprep.mubr.f32.mxu0 %v3079
  %3527 = vmatmul.mubr.f32.gmra.mrb[0].mxu0 %v2811
  %v3528 = vpop.f32.mrb[0].mxu0
  %v3529 = vadd.f32 %v3300, %v3528
  %v3530 = vpop.f32.mrb[0].mxu0
  %v3531 = vadd.f32 %v3302, %v3530
  %3532 = vmatprep.mubr.f32.mxu0 %v3082
  %3533 = vmatmul.mubr.f32.gmra.mrb[0].mxu0 %v2813
  %v3534 = vpop.f32.mrb[0].mxu0
  %v3535 = vadd.f32 %v3306, %v3534
  %v3536 = vpop.f32.mrb[0].mxu0
  %v3537 = vadd.f32 %v3308, %v3536
  %3538 = vmatprep.mubr.f32.mxu0 %v3085
  %3539 = vmatmul.mubr.f32.gmra.mrb[0].mxu0 %v2815
  %v3540 = vpop.f32.mrb[0].mxu0
  %v3541 = vadd.f32 %v3312, %v3540
  %v3542 = vpop.f32.mrb[0].mxu0
  %v3543 = vadd.f32 %v3314, %v3542
  %3544 = vdwg.mxu0
  %s3545 = scalar_lea.vmem %s3, 1920
  %v3546 = vld [vmem:[%s3545] sm:$0xff]
  %v3547 = vld [vmem:[%s3545 + $0x8] sm:$0xff]
  %v3548 = vld [vmem:[%s3545 + $0x10] sm:$0xff]
  %v3549 = vld [vmem:[%s3545 + $0x18] sm:$0xff]
  %v3550 = vld [vmem:[%s3545 + $0x20] sm:$0xff]
  %v3551 = vld [vmem:[%s3545 + $0x28] sm:$0xff]
  %v3552 = vld [vmem:[%s3545 + $0x30] sm:$0xff]
  %v3553 = vld [vmem:[%s3545 + $0x38] sm:$0xff]
  %v3554 = vld [vmem:[%s3545 + $0x40] sm:$0xff]
  %v3555 = vld [vmem:[%s3545 + $0x48] sm:$0xff]
  %v3556 = vld [vmem:[%s3545 + $0x50] sm:$0xff]
  %v3557 = vld [vmem:[%s3545 + $0x58] sm:$0xff]
  %v3558 = vld [vmem:[%s3545 + $0x60] sm:$0xff]
  %v3559 = vld [vmem:[%s3545 + $0x68] sm:$0xff]
  %v3560 = vld [vmem:[%s3545 + $0x70] sm:$0xff]
  %v3561 = vld [vmem:[%s3545 + $0x78] sm:$0xff]
  %v3562 = vld [vmem:[%s3545 + $0x80] sm:$0xff]
  %v3563 = vld [vmem:[%s3545 + $0x88] sm:$0xff]
  %v3564 = vld [vmem:[%s3545 + $0x90] sm:$0xff]
  %v3565 = vld [vmem:[%s3545 + $0x98] sm:$0xff]
  %v3566 = vld [vmem:[%s3545 + $0xa0] sm:$0xff]
  %v3567 = vld [vmem:[%s3545 + $0xa8] sm:$0xff]
  %v3568 = vld [vmem:[%s3545 + $0xb0] sm:$0xff]
  %v3569 = vld [vmem:[%s3545 + $0xb8] sm:$0xff]
  %v3570 = vld [vmem:[%s3545 + $0xc0] sm:$0xff]
  %v3571 = vld [vmem:[%s3545 + $0xc8] sm:$0xff]
  %v3572 = vld [vmem:[%s3545 + $0xd0] sm:$0xff]
  %v3573 = vld [vmem:[%s3545 + $0xd8] sm:$0xff]
  %v3574 = vld [vmem:[%s3545 + $0xe0] sm:$0xff]
  %v3575 = vld [vmem:[%s3545 + $0xe8] sm:$0xff]
  %v3576 = vld [vmem:[%s3545 + $0xf0] sm:$0xff]
  %v3577 = vld [vmem:[%s3545 + $0xf8] sm:$0xff]
  %v3578 = vld [vmem:[%s3545 + $0x100] sm:$0xff]
  %v3579 = vld [vmem:[%s3545 + $0x108] sm:$0xff]
  %v3580 = vld [vmem:[%s3545 + $0x110] sm:$0xff]
  %v3581 = vld [vmem:[%s3545 + $0x118] sm:$0xff]
  %v3582 = vld [vmem:[%s3545 + $0x120] sm:$0xff]
  %v3583 = vld [vmem:[%s3545 + $0x128] sm:$0xff]
  %v3584 = vld [vmem:[%s3545 + $0x130] sm:$0xff]
  %v3585 = vld [vmem:[%s3545 + $0x138] sm:$0xff]
  %v3586 = vld [vmem:[%s3545 + $0x140] sm:$0xff]
  %v3587 = vld [vmem:[%s3545 + $0x148] sm:$0xff]
  %v3588 = vld [vmem:[%s3545 + $0x150] sm:$0xff]
  %v3589 = vld [vmem:[%s3545 + $0x158] sm:$0xff]
  %v3590 = vld [vmem:[%s3545 + $0x160] sm:$0xff]
  %v3591 = vld [vmem:[%s3545 + $0x168] sm:$0xff]
  %v3592 = vld [vmem:[%s3545 + $0x170] sm:$0xff]
  %v3593 = vld [vmem:[%s3545 + $0x178] sm:$0xff]
  %v3594 = vld [vmem:[%s3545 + $0x180] sm:$0xff]
  %v3595 = vld [vmem:[%s3545 + $0x188] sm:$0xff]
  %v3596 = vld [vmem:[%s3545 + $0x190] sm:$0xff]
  %v3597 = vld [vmem:[%s3545 + $0x198] sm:$0xff]
  %v3598 = vld [vmem:[%s3545 + $0x1a0] sm:$0xff]
  %v3599 = vld [vmem:[%s3545 + $0x1a8] sm:$0xff]
  %v3600 = vld [vmem:[%s3545 + $0x1b0] sm:$0xff]
  %v3601 = vld [vmem:[%s3545 + $0x1b8] sm:$0xff]
  %v3602 = vld [vmem:[%s3545 + $0x1c0] sm:$0xff]
  %v3603 = vld [vmem:[%s3545 + $0x1c8] sm:$0xff]
  %v3604 = vld [vmem:[%s3545 + $0x1d0] sm:$0xff]
  %v3605 = vld [vmem:[%s3545 + $0x1d8] sm:$0xff]
  %v3606 = vld [vmem:[%s3545 + $0x1e0] sm:$0xff]
  %v3607 = vld [vmem:[%s3545 + $0x1e8] sm:$0xff]
  %v3608 = vld [vmem:[%s3545 + $0x1f0] sm:$0xff]
  %v3609 = vld [vmem:[%s3545 + $0x1f8] sm:$0xff]
  %v3610 = vld [vmem:[%s3545 + $0x200] sm:$0xff]
  %v3611 = vld [vmem:[%s3545 + $0x208] sm:$0xff]
  %v3612 = vld [vmem:[%s3545 + $0x210] sm:$0xff]
  %v3613 = vld [vmem:[%s3545 + $0x218] sm:$0xff]
  %v3614 = vld [vmem:[%s3545 + $0x220] sm:$0xff]
  %v3615 = vld [vmem:[%s3545 + $0x228] sm:$0xff]
  %v3616 = vld [vmem:[%s3545 + $0x230] sm:$0xff]
  %v3617 = vld [vmem:[%s3545 + $0x238] sm:$0xff]
  %v3618 = vld [vmem:[%s3545 + $0x240] sm:$0xff]
  %v3619 = vld [vmem:[%s3545 + $0x248] sm:$0xff]
  %v3620 = vld [vmem:[%s3545 + $0x250] sm:$0xff]
  %v3621 = vld [vmem:[%s3545 + $0x258] sm:$0xff]
  %v3622 = vld [vmem:[%s3545 + $0x260] sm:$0xff]
  %v3623 = vld [vmem:[%s3545 + $0x268] sm:$0xff]
  %v3624 = vld [vmem:[%s3545 + $0x270] sm:$0xff]
  %v3625 = vld [vmem:[%s3545 + $0x278] sm:$0xff]
  %v3626 = vld [vmem:[%s3545 + $0x280] sm:$0xff]
  %v3627 = vld [vmem:[%s3545 + $0x288] sm:$0xff]
  %v3628 = vld [vmem:[%s3545 + $0x290] sm:$0xff]
  %v3629 = vld [vmem:[%s3545 + $0x298] sm:$0xff]
  %v3630 = vld [vmem:[%s3545 + $0x2a0] sm:$0xff]
  %v3631 = vld [vmem:[%s3545 + $0x2a8] sm:$0xff]
  %v3632 = vld [vmem:[%s3545 + $0x2b0] sm:$0xff]
  %v3633 = vld [vmem:[%s3545 + $0x2b8] sm:$0xff]
  %v3634 = vld [vmem:[%s3545 + $0x2c0] sm:$0xff]
  %v3635 = vld [vmem:[%s3545 + $0x2c8] sm:$0xff]
  %v3636 = vld [vmem:[%s3545 + $0x2d0] sm:$0xff]
  %v3637 = vld [vmem:[%s3545 + $0x2d8] sm:$0xff]
  %v3638 = vld [vmem:[%s3545 + $0x2e0] sm:$0xff]
  %v3639 = vld [vmem:[%s3545 + $0x2e8] sm:$0xff]
  %v3640 = vld [vmem:[%s3545 + $0x2f0] sm:$0xff]
  %v3641 = vld [vmem:[%s3545 + $0x2f8] sm:$0xff]
  %v3642 = vld [vmem:[%s3545 + $0x300] sm:$0xff]
  %v3643 = vld [vmem:[%s3545 + $0x308] sm:$0xff]
  %v3644 = vld [vmem:[%s3545 + $0x310] sm:$0xff]
  %v3645 = vld [vmem:[%s3545 + $0x318] sm:$0xff]
  %v3646 = vld [vmem:[%s3545 + $0x320] sm:$0xff]
  %v3647 = vld [vmem:[%s3545 + $0x328] sm:$0xff]
  %v3648 = vld [vmem:[%s3545 + $0x330] sm:$0xff]
  %v3649 = vld [vmem:[%s3545 + $0x338] sm:$0xff]
  %v3650 = vld [vmem:[%s3545 + $0x340] sm:$0xff]
  %v3651 = vld [vmem:[%s3545 + $0x348] sm:$0xff]
  %v3652 = vld [vmem:[%s3545 + $0x350] sm:$0xff]
  %v3653 = vld [vmem:[%s3545 + $0x358] sm:$0xff]
  %v3654 = vld [vmem:[%s3545 + $0x360] sm:$0xff]
  %v3655 = vld [vmem:[%s3545 + $0x368] sm:$0xff]
  %v3656 = vld [vmem:[%s3545 + $0x370] sm:$0xff]
  %v3657 = vld [vmem:[%s3545 + $0x378] sm:$0xff]
  %v3658 = vld [vmem:[%s3545 + $0x380] sm:$0xff]
  %v3659 = vld [vmem:[%s3545 + $0x388] sm:$0xff]
  %v3660 = vld [vmem:[%s3545 + $0x390] sm:$0xff]
  %v3661 = vld [vmem:[%s3545 + $0x398] sm:$0xff]
  %v3662 = vld [vmem:[%s3545 + $0x3a0] sm:$0xff]
  %v3663 = vld [vmem:[%s3545 + $0x3a8] sm:$0xff]
  %v3664 = vld [vmem:[%s3545 + $0x3b0] sm:$0xff]
  %v3665 = vld [vmem:[%s3545 + $0x3b8] sm:$0xff]
  %v3667 = vsel %vm2717, %v2820, 0
  %3669 = vmatprep.subr.mxu0 %v3547
  %3670 = vmatpush1.msra.mxu0 %v3546
  %3671 = vmatprep.subr.mxu0 %v3551
  %3672 = vmatpush1.msra.mxu0 %v3550
  %3673 = vmatprep.subr.mxu0 %v3555
  %3674 = vmatpush1.msra.mxu0 %v3554
  %3675 = vmatprep.subr.mxu0 %v3559
  %3676 = vmatpush1.msra.mxu0 %v3558
  %3677 = vmatprep.subr.mxu0 %v3563
  %3678 = vmatpush1.msra.mxu0 %v3562
  %3679 = vmatprep.subr.mxu0 %v3567
  %3680 = vmatpush1.msra.mxu0 %v3566
  %3681 = vmatprep.subr.mxu0 %v3571
  %3682 = vmatpush1.msra.mxu0 %v3570
  %3683 = vmatprep.subr.mxu0 %v3575
  %3684 = vmatpush1.msra.mxu0 %v3574
  %3685 = vmatprep.subr.mxu0 %v3579
  %3686 = vmatpush1.msra.mxu0 %v3578
  %3687 = vmatprep.subr.mxu0 %v3583
  %3688 = vmatpush1.msra.mxu0 %v3582
  %3689 = vmatprep.subr.mxu0 %v3587
  %3690 = vmatpush1.msra.mxu0 %v3586
  %3691 = vmatprep.subr.mxu0 %v3591
  %3692 = vmatpush1.msra.mxu0 %v3590
  %3693 = vmatprep.subr.mxu0 %v3595
  %3694 = vmatpush1.msra.mxu0 %v3594
  %3695 = vmatprep.subr.mxu0 %v3599
  %3696 = vmatpush1.msra.mxu0 %v3598
  %3697 = vmatprep.subr.mxu0 %v3603
  %3698 = vmatpush1.msra.mxu0 %v3602
  %3699 = vmatprep.subr.mxu0 %v3607
  %3700 = vmatpush1.msra.mxu0 %v3606
  %3701 = vmatprep.subr.mxu0 %v3611
  %3702 = vmatpush1.msra.mxu0 %v3610
  %3703 = vmatprep.subr.mxu0 %v3615
  %3704 = vmatpush1.msra.mxu0 %v3614
  %3705 = vmatprep.subr.mxu0 %v3619
  %3706 = vmatpush1.msra.mxu0 %v3618
  %3707 = vmatprep.subr.mxu0 %v3623
  %3708 = vmatpush1.msra.mxu0 %v3622
  %3709 = vmatprep.subr.mxu0 %v3627
  %3710 = vmatpush1.msra.mxu0 %v3626
  %3711 = vmatprep.subr.mxu0 %v3631
  %3712 = vmatpush1.msra.mxu0 %v3630
  %3713 = vmatprep.subr.mxu0 %v3635
  %3714 = vmatpush1.msra.mxu0 %v3634
  %3715 = vmatprep.subr.mxu0 %v3639
  %3716 = vmatpush1.msra.mxu0 %v3638
  %3717 = vmatprep.subr.mxu0 %v3643
  %3718 = vmatpush1.msra.mxu0 %v3642
  %3719 = vmatprep.subr.mxu0 %v3647
  %3720 = vmatpush1.msra.mxu0 %v3646
  %3721 = vmatprep.subr.mxu0 %v3651
  %3722 = vmatpush1.msra.mxu0 %v3650
  %3723 = vmatprep.subr.mxu0 %v3655
  %3724 = vmatpush1.msra.mxu0 %v3654
  %3725 = vmatprep.subr.mxu0 %v3659
  %3726 = vmatpush1.msra.mxu0 %v3658
  %3727 = vmatprep.subr.mxu0 %v3663
  %3728 = vmatpush1.msra.mxu0 %v3662
  %3729 = vmatprep.subr.mxu0 0.0
  %3730 = vmatpush1.msra.mxu0 0.0
  %3731 = vmatprep.subr.mxu0 0.0
  %3732 = vmatpush1.msra.mxu0 0.0
  %3733 = vmatprep.mubr.f32.mxu0 %v3070
  %3734 = vmatmul.mubr.f32.gmra.mrb[0].mxu0 %v2805
  %v3735 = vpop.f32.mrb[0].mxu0
  %v3736 = vadd.f32 0.0, %v3735
  %v3737 = vpop.f32.mrb[0].mxu0
  %v3738 = vadd.f32 0.0, %v3737
  %3739 = vmatprep.mubr.f32.mxu0 %v3073
  %3740 = vmatmul.mubr.f32.gmra.mrb[0].mxu0 %v2807
  %v3741 = vpop.f32.mrb[0].mxu0
  %v3742 = vadd.f32 0.0, %v3741
  %v3743 = vpop.f32.mrb[0].mxu0
  %v3744 = vadd.f32 0.0, %v3743
  %3745 = vmatprep.mubr.f32.mxu0 %v3076
  %3746 = vmatmul.mubr.f32.gmra.mrb[0].mxu0 %v2809
  %v3747 = vpop.f32.mrb[0].mxu0
  %v3748 = vadd.f32 0.0, %v3747
  %v3749 = vpop.f32.mrb[0].mxu0
  %v3750 = vadd.f32 0.0, %v3749
  %3751 = vmatprep.mubr.f32.mxu0 %v3079
  %3752 = vmatmul.mubr.f32.gmra.mrb[0].mxu0 %v2811
  %v3753 = vpop.f32.mrb[0].mxu0
  %v3754 = vadd.f32 0.0, %v3753
  %v3755 = vpop.f32.mrb[0].mxu0
  %v3756 = vadd.f32 0.0, %v3755
  %3757 = vmatprep.mubr.f32.mxu0 %v3082
  %3758 = vmatmul.mubr.f32.gmra.mrb[0].mxu0 %v2813
  %v3759 = vpop.f32.mrb[0].mxu0
  %v3760 = vadd.f32 0.0, %v3759
  %v3761 = vpop.f32.mrb[0].mxu0
  %v3762 = vadd.f32 0.0, %v3761
  %3763 = vmatprep.mubr.f32.mxu0 %v3085
  %3764 = vmatmul.mubr.f32.gmra.mrb[0].mxu0 %v2815
  %v3765 = vpop.f32.mrb[0].mxu0
  %v3766 = vadd.f32 0.0, %v3765
  %v3767 = vpop.f32.mrb[0].mxu0
  %v3768 = vadd.f32 0.0, %v3767
  %3769 = vmatprep.mubr.f32.mxu0 %v3088
  %3770 = vmatmul.mubr.f32.gmra.mrb[0].mxu0 %v2817
  %v3771 = vpop.f32.mrb[0].mxu0
  %v3772 = vadd.f32 0.0, %v3771
  %v3773 = vpop.f32.mrb[0].mxu0
  %v3774 = vadd.f32 0.0, %v3773
  %3775 = vmatprep.mubr.f32.mxu0 %v3667
  %3776 = vmatmul.mubr.f32.gmra.mrb[0].mxu0 %v2819
  %v3777 = vpop.f32.mrb[0].mxu0
  %v3778 = vadd.f32 0.0, %v3777
  %v3779 = vpop.f32.mrb[0].mxu0
  %v3780 = vadd.f32 0.0, %v3779
  %3781 = vdwg.mxu0
  %3782 = vmatprep.subr.mxu0 %v3549
  %3783 = vmatpush1.msra.mxu0 %v3548
  %3784 = vmatprep.subr.mxu0 %v3553
  %3785 = vmatpush1.msra.mxu0 %v3552
  %3786 = vmatprep.subr.mxu0 %v3557
  %3787 = vmatpush1.msra.mxu0 %v3556
  %3788 = vmatprep.subr.mxu0 %v3561
  %3789 = vmatpush1.msra.mxu0 %v3560
  %3790 = vmatprep.subr.mxu0 %v3565
  %3791 = vmatpush1.msra.mxu0 %v3564
  %3792 = vmatprep.subr.mxu0 %v3569
  %3793 = vmatpush1.msra.mxu0 %v3568
  %3794 = vmatprep.subr.mxu0 %v3573
  %3795 = vmatpush1.msra.mxu0 %v3572
  %3796 = vmatprep.subr.mxu0 %v3577
  %3797 = vmatpush1.msra.mxu0 %v3576
  %3798 = vmatprep.subr.mxu0 %v3581
  %3799 = vmatpush1.msra.mxu0 %v3580
  %3800 = vmatprep.subr.mxu0 %v3585
  %3801 = vmatpush1.msra.mxu0 %v3584
  %3802 = vmatprep.subr.mxu0 %v3589
  %3803 = vmatpush1.msra.mxu0 %v3588
  %3804 = vmatprep.subr.mxu0 %v3593
  %3805 = vmatpush1.msra.mxu0 %v3592
  %3806 = vmatprep.subr.mxu0 %v3597
  %3807 = vmatpush1.msra.mxu0 %v3596
  %3808 = vmatprep.subr.mxu0 %v3601
  %3809 = vmatpush1.msra.mxu0 %v3600
  %3810 = vmatprep.subr.mxu0 %v3605
  %3811 = vmatpush1.msra.mxu0 %v3604
  %3812 = vmatprep.subr.mxu0 %v3609
  %3813 = vmatpush1.msra.mxu0 %v3608
  %3814 = vmatprep.subr.mxu0 %v3613
  %3815 = vmatpush1.msra.mxu0 %v3612
  %3816 = vmatprep.subr.mxu0 %v3617
  %3817 = vmatpush1.msra.mxu0 %v3616
  %3818 = vmatprep.subr.mxu0 %v3621
  %3819 = vmatpush1.msra.mxu0 %v3620
  %3820 = vmatprep.subr.mxu0 %v3625
  %3821 = vmatpush1.msra.mxu0 %v3624
  %3822 = vmatprep.subr.mxu0 %v3629
  %3823 = vmatpush1.msra.mxu0 %v3628
  %3824 = vmatprep.subr.mxu0 %v3633
  %3825 = vmatpush1.msra.mxu0 %v3632
  %3826 = vmatprep.subr.mxu0 %v3637
  %3827 = vmatpush1.msra.mxu0 %v3636
  %3828 = vmatprep.subr.mxu0 %v3641
  %3829 = vmatpush1.msra.mxu0 %v3640
  %3830 = vmatprep.subr.mxu0 %v3645
  %3831 = vmatpush1.msra.mxu0 %v3644
  %3832 = vmatprep.subr.mxu0 %v3649
  %3833 = vmatpush1.msra.mxu0 %v3648
  %3834 = vmatprep.subr.mxu0 %v3653
  %3835 = vmatpush1.msra.mxu0 %v3652
  %3836 = vmatprep.subr.mxu0 %v3657
  %3837 = vmatpush1.msra.mxu0 %v3656
  %3838 = vmatprep.subr.mxu0 %v3661
  %3839 = vmatpush1.msra.mxu0 %v3660
  %3840 = vmatprep.subr.mxu0 %v3665
  %3841 = vmatpush1.msra.mxu0 %v3664
  %3842 = vmatprep.subr.mxu0 0.0
  %3843 = vmatpush1.msra.mxu0 0.0
  %3844 = vmatprep.subr.mxu0 0.0
  %3845 = vmatpush1.msra.mxu0 0.0
  %3846 = vmatprep.mubr.f32.mxu0 %v3070
  %3847 = vmatmul.mubr.f32.gmra.mrb[0].mxu0 %v2805
  %v3848 = vpop.f32.mrb[0].mxu0
  %v3849 = vadd.f32 0.0, %v3848
  %v3850 = vpop.f32.mrb[0].mxu0
  %v3851 = vadd.f32 0.0, %v3850
  %3852 = vmatprep.mubr.f32.mxu0 %v3073
  %3853 = vmatmul.mubr.f32.gmra.mrb[0].mxu0 %v2807
  %v3854 = vpop.f32.mrb[0].mxu0
  %v3855 = vadd.f32 0.0, %v3854
  %v3856 = vpop.f32.mrb[0].mxu0
  %v3857 = vadd.f32 0.0, %v3856
  %3858 = vmatprep.mubr.f32.mxu0 %v3076
  %3859 = vmatmul.mubr.f32.gmra.mrb[0].mxu0 %v2809
  %v3860 = vpop.f32.mrb[0].mxu0
  %v3861 = vadd.f32 0.0, %v3860
  %v3862 = vpop.f32.mrb[0].mxu0
  %v3863 = vadd.f32 0.0, %v3862
  %3864 = vmatprep.mubr.f32.mxu0 %v3079
  %3865 = vmatmul.mubr.f32.gmra.mrb[0].mxu0 %v2811
  %v3866 = vpop.f32.mrb[0].mxu0
  %v3867 = vadd.f32 0.0, %v3866
  %v3868 = vpop.f32.mrb[0].mxu0
  %v3869 = vadd.f32 0.0, %v3868
  %3870 = vmatprep.mubr.f32.mxu0 %v3082
  %3871 = vmatmul.mubr.f32.gmra.mrb[0].mxu0 %v2813
  %v3872 = vpop.f32.mrb[0].mxu0
  %v3873 = vadd.f32 0.0, %v3872
  %v3874 = vpop.f32.mrb[0].mxu0
  %v3875 = vadd.f32 0.0, %v3874
  %3876 = vmatprep.mubr.f32.mxu0 %v3085
  %3877 = vmatmul.mubr.f32.gmra.mrb[0].mxu0 %v2815
  %v3878 = vpop.f32.mrb[0].mxu0
  %v3879 = vadd.f32 0.0, %v3878
  %v3880 = vpop.f32.mrb[0].mxu0
  %v3881 = vadd.f32 0.0, %v3880
  %3882 = vmatprep.mubr.f32.mxu0 %v3088
  %3883 = vmatmul.mubr.f32.gmra.mrb[0].mxu0 %v2817
  %v3884 = vpop.f32.mrb[0].mxu0
  %v3885 = vadd.f32 0.0, %v3884
  %v3886 = vpop.f32.mrb[0].mxu0
  %v3887 = vadd.f32 0.0, %v3886
  %3888 = vmatprep.mubr.f32.mxu0 %v3667
  %3889 = vmatmul.mubr.f32.gmra.mrb[0].mxu0 %v2819
  %v3890 = vpop.f32.mrb[0].mxu0
  %v3891 = vadd.f32 0.0, %v3890
  %v3892 = vpop.f32.mrb[0].mxu0
  %v3893 = vadd.f32 0.0, %v3892
  %3894 = vdwg.mxu0
  %v3895 = vadd.f32 %v3386, %v3736
  %v3896 = vadd.f32 %v3388, %v3738
  %v3897 = vadd.f32 %v3499, %v3849
  %v3898 = vadd.f32 %v3501, %v3851
  %v3899 = vadd.f32 %v3392, %v3742
  %v3900 = vadd.f32 %v3394, %v3744
  %v3901 = vadd.f32 %v3505, %v3855
  %v3902 = vadd.f32 %v3507, %v3857
  %v3903 = vadd.f32 %v3398, %v3748
  %v3904 = vadd.f32 %v3400, %v3750
  %v3905 = vadd.f32 %v3511, %v3861
  %v3906 = vadd.f32 %v3513, %v3863
  %v3907 = vadd.f32 %v3404, %v3754
  %v3908 = vadd.f32 %v3406, %v3756
  %v3909 = vadd.f32 %v3517, %v3867
  %v3910 = vadd.f32 %v3519, %v3869
  %v3911 = vadd.f32 %v3410, %v3760
  %v3912 = vadd.f32 %v3412, %v3762
  %v3913 = vadd.f32 %v3523, %v3873
  %v3914 = vadd.f32 %v3525, %v3875
  %v3915 = vadd.f32 %v3416, %v3766
  %v3916 = vadd.f32 %v3418, %v3768
  %v3917 = vadd.f32 %v3529, %v3879
  %v3918 = vadd.f32 %v3531, %v3881
  %v3919 = vadd.f32 %v3422, %v3772
  %v3920 = vadd.f32 %v3424, %v3774
  %v3921 = vadd.f32 %v3535, %v3885
  %v3922 = vadd.f32 %v3537, %v3887
  %v3923 = vadd.f32 %v3428, %v3778
  %v3924 = vadd.f32 %v3430, %v3780
  %v3925 = vadd.f32 %v3541, %v3891
  %v3926 = vadd.f32 %v3543, %v3893
  %s3927 = scalar_lea.vmem %s3, 2880
  %v3928 = vld [vmem:[%s3927] sm:$0xff]
  %v3929 = vld [vmem:[%s3927 + $0x8] sm:$0xff]
  %v3930 = vld [vmem:[%s3927 + $0x10] sm:$0xff]
  %v3931 = vld [vmem:[%s3927 + $0x18] sm:$0xff]
  %v3932 = vld [vmem:[%s3927 + $0x20] sm:$0xff]
  %v3933 = vld [vmem:[%s3927 + $0x28] sm:$0xff]
  %v3934 = vld [vmem:[%s3927 + $0x30] sm:$0xff]
  %v3935 = vld [vmem:[%s3927 + $0x38] sm:$0xff]
  %v3936 = vld [vmem:[%s3927 + $0x40] sm:$0xff]
  %v3937 = vld [vmem:[%s3927 + $0x48] sm:$0xff]
  %v3938 = vld [vmem:[%s3927 + $0x50] sm:$0xff]
  %v3939 = vld [vmem:[%s3927 + $0x58] sm:$0xff]
  %v3940 = vld [vmem:[%s3927 + $0x60] sm:$0xff]
  %v3941 = vld [vmem:[%s3927 + $0x68] sm:$0xff]
  %v3942 = vld [vmem:[%s3927 + $0x70] sm:$0xff]
  %v3943 = vld [vmem:[%s3927 + $0x78] sm:$0xff]
  %v3944 = vld [vmem:[%s3927 + $0x80] sm:$0xff]
  %v3945 = vld [vmem:[%s3927 + $0x88] sm:$0xff]
  %v3946 = vld [vmem:[%s3927 + $0x90] sm:$0xff]
  %v3947 = vld [vmem:[%s3927 + $0x98] sm:$0xff]
  %v3948 = vld [vmem:[%s3927 + $0xa0] sm:$0xff]
  %v3949 = vld [vmem:[%s3927 + $0xa8] sm:$0xff]
  %v3950 = vld [vmem:[%s3927 + $0xb0] sm:$0xff]
  %v3951 = vld [vmem:[%s3927 + $0xb8] sm:$0xff]
  %v3952 = vld [vmem:[%s3927 + $0xc0] sm:$0xff]
  %v3953 = vld [vmem:[%s3927 + $0xc8] sm:$0xff]
  %v3954 = vld [vmem:[%s3927 + $0xd0] sm:$0xff]
  %v3955 = vld [vmem:[%s3927 + $0xd8] sm:$0xff]
  %v3956 = vld [vmem:[%s3927 + $0xe0] sm:$0xff]
  %v3957 = vld [vmem:[%s3927 + $0xe8] sm:$0xff]
  %v3958 = vld [vmem:[%s3927 + $0xf0] sm:$0xff]
  %v3959 = vld [vmem:[%s3927 + $0xf8] sm:$0xff]
  %v3960 = vld [vmem:[%s3927 + $0x100] sm:$0xff]
  %v3961 = vld [vmem:[%s3927 + $0x108] sm:$0xff]
  %v3962 = vld [vmem:[%s3927 + $0x110] sm:$0xff]
  %v3963 = vld [vmem:[%s3927 + $0x118] sm:$0xff]
  %v3964 = vld [vmem:[%s3927 + $0x120] sm:$0xff]
  %v3965 = vld [vmem:[%s3927 + $0x128] sm:$0xff]
  %v3966 = vld [vmem:[%s3927 + $0x130] sm:$0xff]
  %v3967 = vld [vmem:[%s3927 + $0x138] sm:$0xff]
  %v3968 = vld [vmem:[%s3927 + $0x140] sm:$0xff]
  %v3969 = vld [vmem:[%s3927 + $0x148] sm:$0xff]
  %v3970 = vld [vmem:[%s3927 + $0x150] sm:$0xff]
  %v3971 = vld [vmem:[%s3927 + $0x158] sm:$0xff]
  %v3972 = vld [vmem:[%s3927 + $0x160] sm:$0xff]
  %v3973 = vld [vmem:[%s3927 + $0x168] sm:$0xff]
  %v3974 = vld [vmem:[%s3927 + $0x170] sm:$0xff]
  %v3975 = vld [vmem:[%s3927 + $0x178] sm:$0xff]
  %v3976 = vld [vmem:[%s3927 + $0x180] sm:$0xff]
  %v3977 = vld [vmem:[%s3927 + $0x188] sm:$0xff]
  %v3978 = vld [vmem:[%s3927 + $0x190] sm:$0xff]
  %v3979 = vld [vmem:[%s3927 + $0x198] sm:$0xff]
  %v3980 = vld [vmem:[%s3927 + $0x1a0] sm:$0xff]
  %v3981 = vld [vmem:[%s3927 + $0x1a8] sm:$0xff]
  %v3982 = vld [vmem:[%s3927 + $0x1b0] sm:$0xff]
  %v3983 = vld [vmem:[%s3927 + $0x1b8] sm:$0xff]
  %v3984 = vld [vmem:[%s3927 + $0x1c0] sm:$0xff]
  %v3985 = vld [vmem:[%s3927 + $0x1c8] sm:$0xff]
  %v3986 = vld [vmem:[%s3927 + $0x1d0] sm:$0xff]
  %v3987 = vld [vmem:[%s3927 + $0x1d8] sm:$0xff]
  %v3988 = vld [vmem:[%s3927 + $0x1e0] sm:$0xff]
  %v3989 = vld [vmem:[%s3927 + $0x1e8] sm:$0xff]
  %v3990 = vld [vmem:[%s3927 + $0x1f0] sm:$0xff]
  %v3991 = vld [vmem:[%s3927 + $0x1f8] sm:$0xff]
  %v3992 = vld [vmem:[%s3927 + $0x200] sm:$0xff]
  %v3993 = vld [vmem:[%s3927 + $0x208] sm:$0xff]
  %v3994 = vld [vmem:[%s3927 + $0x210] sm:$0xff]
  %v3995 = vld [vmem:[%s3927 + $0x218] sm:$0xff]
  %v3996 = vld [vmem:[%s3927 + $0x220] sm:$0xff]
  %v3997 = vld [vmem:[%s3927 + $0x228] sm:$0xff]
  %v3998 = vld [vmem:[%s3927 + $0x230] sm:$0xff]
  %v3999 = vld [vmem:[%s3927 + $0x238] sm:$0xff]
  %v4000 = vld [vmem:[%s3927 + $0x240] sm:$0xff]
  %v4001 = vld [vmem:[%s3927 + $0x248] sm:$0xff]
  %v4002 = vld [vmem:[%s3927 + $0x250] sm:$0xff]
  %v4003 = vld [vmem:[%s3927 + $0x258] sm:$0xff]
  %v4004 = vld [vmem:[%s3927 + $0x260] sm:$0xff]
  %v4005 = vld [vmem:[%s3927 + $0x268] sm:$0xff]
  %v4006 = vld [vmem:[%s3927 + $0x270] sm:$0xff]
  %v4007 = vld [vmem:[%s3927 + $0x278] sm:$0xff]
  %v4008 = vld [vmem:[%s3927 + $0x280] sm:$0xff]
  %v4009 = vld [vmem:[%s3927 + $0x288] sm:$0xff]
  %v4010 = vld [vmem:[%s3927 + $0x290] sm:$0xff]
  %v4011 = vld [vmem:[%s3927 + $0x298] sm:$0xff]
  %v4012 = vld [vmem:[%s3927 + $0x2a0] sm:$0xff]
  %v4013 = vld [vmem:[%s3927 + $0x2a8] sm:$0xff]
  %v4014 = vld [vmem:[%s3927 + $0x2b0] sm:$0xff]
  %v4015 = vld [vmem:[%s3927 + $0x2b8] sm:$0xff]
  %v4016 = vld [vmem:[%s3927 + $0x2c0] sm:$0xff]
  %v4017 = vld [vmem:[%s3927 + $0x2c8] sm:$0xff]
  %v4018 = vld [vmem:[%s3927 + $0x2d0] sm:$0xff]
  %v4019 = vld [vmem:[%s3927 + $0x2d8] sm:$0xff]
  %v4020 = vld [vmem:[%s3927 + $0x2e0] sm:$0xff]
  %v4021 = vld [vmem:[%s3927 + $0x2e8] sm:$0xff]
  %v4022 = vld [vmem:[%s3927 + $0x2f0] sm:$0xff]
  %v4023 = vld [vmem:[%s3927 + $0x2f8] sm:$0xff]
  %v4024 = vld [vmem:[%s3927 + $0x300] sm:$0xff]
  %v4025 = vld [vmem:[%s3927 + $0x308] sm:$0xff]
  %v4026 = vld [vmem:[%s3927 + $0x310] sm:$0xff]
  %v4027 = vld [vmem:[%s3927 + $0x318] sm:$0xff]
  %v4028 = vld [vmem:[%s3927 + $0x320] sm:$0xff]
  %v4029 = vld [vmem:[%s3927 + $0x328] sm:$0xff]
  %v4030 = vld [vmem:[%s3927 + $0x330] sm:$0xff]
  %v4031 = vld [vmem:[%s3927 + $0x338] sm:$0xff]
  %v4032 = vld [vmem:[%s3927 + $0x340] sm:$0xff]
  %v4033 = vld [vmem:[%s3927 + $0x348] sm:$0xff]
  %v4034 = vld [vmem:[%s3927 + $0x350] sm:$0xff]
  %v4035 = vld [vmem:[%s3927 + $0x358] sm:$0xff]
  %v4036 = vld [vmem:[%s3927 + $0x360] sm:$0xff]
  %v4037 = vld [vmem:[%s3927 + $0x368] sm:$0xff]
  %v4038 = vld [vmem:[%s3927 + $0x370] sm:$0xff]
  %v4039 = vld [vmem:[%s3927 + $0x378] sm:$0xff]
  %v4040 = vld [vmem:[%s3927 + $0x380] sm:$0xff]
  %v4041 = vld [vmem:[%s3927 + $0x388] sm:$0xff]
  %v4042 = vld [vmem:[%s3927 + $0x390] sm:$0xff]
  %v4043 = vld [vmem:[%s3927 + $0x398] sm:$0xff]
  %v4044 = vld [vmem:[%s3927 + $0x3a0] sm:$0xff]
  %v4045 = vld [vmem:[%s3927 + $0x3a8] sm:$0xff]
  %v4046 = vld [vmem:[%s3927 + $0x3b0] sm:$0xff]
  %v4047 = vld [vmem:[%s3927 + $0x3b8] sm:$0xff]
  %v4049 = vsel %vm2717, %v2822, 0
  %4051 = vmatprep.subr.mxu0 %v3929
  %4052 = vmatpush1.msra.mxu0 %v3928
  %4053 = vmatprep.subr.mxu0 %v3933
  %4054 = vmatpush1.msra.mxu0 %v3932
  %4055 = vmatprep.subr.mxu0 %v3937
  %4056 = vmatpush1.msra.mxu0 %v3936
  %4057 = vmatprep.subr.mxu0 %v3941
  %4058 = vmatpush1.msra.mxu0 %v3940
  %4059 = vmatprep.subr.mxu0 %v3945
  %4060 = vmatpush1.msra.mxu0 %v3944
  %4061 = vmatprep.subr.mxu0 %v3949
  %4062 = vmatpush1.msra.mxu0 %v3948
  %4063 = vmatprep.subr.mxu0 %v3953
  %4064 = vmatpush1.msra.mxu0 %v3952
  %4065 = vmatprep.subr.mxu0 %v3957
  %4066 = vmatpush1.msra.mxu0 %v3956
  %4067 = vmatprep.subr.mxu0 %v3961
  %4068 = vmatpush1.msra.mxu0 %v3960
  %4069 = vmatprep.subr.mxu0 %v3965
  %4070 = vmatpush1.msra.mxu0 %v3964
  %4071 = vmatprep.subr.mxu0 %v3969
  %4072 = vmatpush1.msra.mxu0 %v3968
  %4073 = vmatprep.subr.mxu0 %v3973
  %4074 = vmatpush1.msra.mxu0 %v3972
  %4075 = vmatprep.subr.mxu0 %v3977
  %4076 = vmatpush1.msra.mxu0 %v3976
  %4077 = vmatprep.subr.mxu0 %v3981
  %4078 = vmatpush1.msra.mxu0 %v3980
  %4079 = vmatprep.subr.mxu0 %v3985
  %4080 = vmatpush1.msra.mxu0 %v3984
  %4081 = vmatprep.subr.mxu0 %v3989
  %4082 = vmatpush1.msra.mxu0 %v3988
  %4083 = vmatprep.subr.mxu0 %v3993
  %4084 = vmatpush1.msra.mxu0 %v3992
  %4085 = vmatprep.subr.mxu0 %v3997
  %4086 = vmatpush1.msra.mxu0 %v3996
  %4087 = vmatprep.subr.mxu0 %v4001
  %4088 = vmatpush1.msra.mxu0 %v4000
  %4089 = vmatprep.subr.mxu0 %v4005
  %4090 = vmatpush1.msra.mxu0 %v4004
  %4091 = vmatprep.subr.mxu0 %v4009
  %4092 = vmatpush1.msra.mxu0 %v4008
  %4093 = vmatprep.subr.mxu0 %v4013
  %4094 = vmatpush1.msra.mxu0 %v4012
  %4095 = vmatprep.subr.mxu0 %v4017
  %4096 = vmatpush1.msra.mxu0 %v4016
  %4097 = vmatprep.subr.mxu0 %v4021
  %4098 = vmatpush1.msra.mxu0 %v4020
  %4099 = vmatprep.subr.mxu0 %v4025
  %4100 = vmatpush1.msra.mxu0 %v4024
  %4101 = vmatprep.subr.mxu0 %v4029
  %4102 = vmatpush1.msra.mxu0 %v4028
  %4103 = vmatprep.subr.mxu0 %v4033
  %4104 = vmatpush1.msra.mxu0 %v4032
  %4105 = vmatprep.subr.mxu0 %v4037
  %4106 = vmatpush1.msra.mxu0 %v4036
  %4107 = vmatprep.subr.mxu0 %v4041
  %4108 = vmatpush1.msra.mxu0 %v4040
  %4109 = vmatprep.subr.mxu0 %v4045
  %4110 = vmatpush1.msra.mxu0 %v4044
  %4111 = vmatprep.subr.mxu0 0.0
  %4112 = vmatpush1.msra.mxu0 0.0
  %4113 = vmatprep.subr.mxu0 0.0
  %4114 = vmatpush1.msra.mxu0 0.0
  %4115 = vmatprep.mubr.f32.mxu0 %v3073
  %4116 = vmatmul.mubr.f32.gmra.mrb[0].mxu0 %v2807
  %v4117 = vpop.f32.mrb[0].mxu0
  %v4118 = vadd.f32 0.0, %v4117
  %v4119 = vpop.f32.mrb[0].mxu0
  %v4120 = vadd.f32 0.0, %v4119
  %4121 = vmatprep.mubr.f32.mxu0 %v3076
  %4122 = vmatmul.mubr.f32.gmra.mrb[0].mxu0 %v2809
  %v4123 = vpop.f32.mrb[0].mxu0
  %v4124 = vadd.f32 0.0, %v4123
  %v4125 = vpop.f32.mrb[0].mxu0
  %v4126 = vadd.f32 0.0, %v4125
  %4127 = vmatprep.mubr.f32.mxu0 %v3079
  %4128 = vmatmul.mubr.f32.gmra.mrb[0].mxu0 %v2811
  %v4129 = vpop.f32.mrb[0].mxu0
  %v4130 = vadd.f32 0.0, %v4129
  %v4131 = vpop.f32.mrb[0].mxu0
  %v4132 = vadd.f32 0.0, %v4131
  %4133 = vmatprep.mubr.f32.mxu0 %v3082
  %4134 = vmatmul.mubr.f32.gmra.mrb[0].mxu0 %v2813
  %v4135 = vpop.f32.mrb[0].mxu0
  %v4136 = vadd.f32 0.0, %v4135
  %v4137 = vpop.f32.mrb[0].mxu0
  %v4138 = vadd.f32 0.0, %v4137
  %4139 = vmatprep.mubr.f32.mxu0 %v3085
  %4140 = vmatmul.mubr.f32.gmra.mrb[0].mxu0 %v2815
  %v4141 = vpop.f32.mrb[0].mxu0
  %v4142 = vadd.f32 0.0, %v4141
  %v4143 = vpop.f32.mrb[0].mxu0
  %v4144 = vadd.f32 0.0, %v4143
  %4145 = vmatprep.mubr.f32.mxu0 %v3088
  %4146 = vmatmul.mubr.f32.gmra.mrb[0].mxu0 %v2817
  %v4147 = vpop.f32.mrb[0].mxu0
  %v4148 = vadd.f32 0.0, %v4147
  %v4149 = vpop.f32.mrb[0].mxu0
  %v4150 = vadd.f32 0.0, %v4149
  %4151 = vmatprep.mubr.f32.mxu0 %v3667
  %4152 = vmatmul.mubr.f32.gmra.mrb[0].mxu0 %v2819
  %v4153 = vpop.f32.mrb[0].mxu0
  %v4154 = vadd.f32 0.0, %v4153
  %v4155 = vpop.f32.mrb[0].mxu0
  %v4156 = vadd.f32 0.0, %v4155
  %4157 = vmatprep.mubr.f32.mxu0 %v4049
  %4158 = vmatmul.mubr.f32.gmra.mrb[0].mxu0 %v2821
  %v4159 = vpop.f32.mrb[0].mxu0
  %v4160 = vadd.f32 0.0, %v4159
  %v4161 = vpop.f32.mrb[0].mxu0
  %v4162 = vadd.f32 0.0, %v4161
  %4163 = vdwg.mxu0
  %4164 = vmatprep.subr.mxu0 %v3931
  %4165 = vmatpush1.msra.mxu0 %v3930
  %4166 = vmatprep.subr.mxu0 %v3935
  %4167 = vmatpush1.msra.mxu0 %v3934
  %4168 = vmatprep.subr.mxu0 %v3939
  %4169 = vmatpush1.msra.mxu0 %v3938
  %4170 = vmatprep.subr.mxu0 %v3943
  %4171 = vmatpush1.msra.mxu0 %v3942
  %4172 = vmatprep.subr.mxu0 %v3947
  %4173 = vmatpush1.msra.mxu0 %v3946
  %4174 = vmatprep.subr.mxu0 %v3951
  %4175 = vmatpush1.msra.mxu0 %v3950
  %4176 = vmatprep.subr.mxu0 %v3955
  %4177 = vmatpush1.msra.mxu0 %v3954
  %4178 = vmatprep.subr.mxu0 %v3959
  %4179 = vmatpush1.msra.mxu0 %v3958
  %4180 = vmatprep.subr.mxu0 %v3963
  %4181 = vmatpush1.msra.mxu0 %v3962
  %4182 = vmatprep.subr.mxu0 %v3967
  %4183 = vmatpush1.msra.mxu0 %v3966
  %4184 = vmatprep.subr.mxu0 %v3971
  %4185 = vmatpush1.msra.mxu0 %v3970
  %4186 = vmatprep.subr.mxu0 %v3975
  %4187 = vmatpush1.msra.mxu0 %v3974
  %4188 = vmatprep.subr.mxu0 %v3979
  %4189 = vmatpush1.msra.mxu0 %v3978
  %4190 = vmatprep.subr.mxu0 %v3983
  %4191 = vmatpush1.msra.mxu0 %v3982
  %4192 = vmatprep.subr.mxu0 %v3987
  %4193 = vmatpush1.msra.mxu0 %v3986
  %4194 = vmatprep.subr.mxu0 %v3991
  %4195 = vmatpush1.msra.mxu0 %v3990
  %4196 = vmatprep.subr.mxu0 %v3995
  %4197 = vmatpush1.msra.mxu0 %v3994
  %4198 = vmatprep.subr.mxu0 %v3999
  %4199 = vmatpush1.msra.mxu0 %v3998
  %4200 = vmatprep.subr.mxu0 %v4003
  %4201 = vmatpush1.msra.mxu0 %v4002
  %4202 = vmatprep.subr.mxu0 %v4007
  %4203 = vmatpush1.msra.mxu0 %v4006
  %4204 = vmatprep.subr.mxu0 %v4011
  %4205 = vmatpush1.msra.mxu0 %v4010
  %4206 = vmatprep.subr.mxu0 %v4015
  %4207 = vmatpush1.msra.mxu0 %v4014
  %4208 = vmatprep.subr.mxu0 %v4019
  %4209 = vmatpush1.msra.mxu0 %v4018
  %4210 = vmatprep.subr.mxu0 %v4023
  %4211 = vmatpush1.msra.mxu0 %v4022
  %4212 = vmatprep.subr.mxu0 %v4027
  %4213 = vmatpush1.msra.mxu0 %v4026
  %4214 = vmatprep.subr.mxu0 %v4031
  %4215 = vmatpush1.msra.mxu0 %v4030
  %4216 = vmatprep.subr.mxu0 %v4035
  %4217 = vmatpush1.msra.mxu0 %v4034
  %4218 = vmatprep.subr.mxu0 %v4039
  %4219 = vmatpush1.msra.mxu0 %v4038
  %4220 = vmatprep.subr.mxu0 %v4043
  %4221 = vmatpush1.msra.mxu0 %v4042
  %4222 = vmatprep.subr.mxu0 %v4047
  %4223 = vmatpush1.msra.mxu0 %v4046
  %4224 = vmatprep.subr.mxu0 0.0
  %4225 = vmatpush1.msra.mxu0 0.0
  %4226 = vmatprep.subr.mxu0 0.0
  %4227 = vmatpush1.msra.mxu0 0.0
  %4228 = vmatprep.mubr.f32.mxu0 %v3073
  %4229 = vmatmul.mubr.f32.gmra.mrb[0].mxu0 %v2807
  %v4230 = vpop.f32.mrb[0].mxu0
  %v4231 = vadd.f32 0.0, %v4230
  %v4232 = vpop.f32.mrb[0].mxu0
  %v4233 = vadd.f32 0.0, %v4232
  %4234 = vmatprep.mubr.f32.mxu0 %v3076
  %4235 = vmatmul.mubr.f32.gmra.mrb[0].mxu0 %v2809
  %v4236 = vpop.f32.mrb[0].mxu0
  %v4237 = vadd.f32 0.0, %v4236
  %v4238 = vpop.f32.mrb[0].mxu0
  %v4239 = vadd.f32 0.0, %v4238
  %4240 = vmatprep.mubr.f32.mxu0 %v3079
  %4241 = vmatmul.mubr.f32.gmra.mrb[0].mxu0 %v2811
  %v4242 = vpop.f32.mrb[0].mxu0
  %v4243 = vadd.f32 0.0, %v4242
  %v4244 = vpop.f32.mrb[0].mxu0
  %v4245 = vadd.f32 0.0, %v4244
  %4246 = vmatprep.mubr.f32.mxu0 %v3082
  %4247 = vmatmul.mubr.f32.gmra.mrb[0].mxu0 %v2813
  %v4248 = vpop.f32.mrb[0].mxu0
  %v4249 = vadd.f32 0.0, %v4248
  %v4250 = vpop.f32.mrb[0].mxu0
  %v4251 = vadd.f32 0.0, %v4250
  %4252 = vmatprep.mubr.f32.mxu0 %v3085
  %4253 = vmatmul.mubr.f32.gmra.mrb[0].mxu0 %v2815
  %v4254 = vpop.f32.mrb[0].mxu0
  %v4255 = vadd.f32 0.0, %v4254
  %v4256 = vpop.f32.mrb[0].mxu0
  %v4257 = vadd.f32 0.0, %v4256
  %4258 = vmatprep.mubr.f32.mxu0 %v3088
  %4259 = vmatmul.mubr.f32.gmra.mrb[0].mxu0 %v2817
  %v4260 = vpop.f32.mrb[0].mxu0
  %v4261 = vadd.f32 0.0, %v4260
  %v4262 = vpop.f32.mrb[0].mxu0
  %v4263 = vadd.f32 0.0, %v4262
  %4264 = vmatprep.mubr.f32.mxu0 %v3667
  %4265 = vmatmul.mubr.f32.gmra.mrb[0].mxu0 %v2819
  %v4266 = vpop.f32.mrb[0].mxu0
  %v4267 = vadd.f32 0.0, %v4266
  %v4268 = vpop.f32.mrb[0].mxu0
  %v4269 = vadd.f32 0.0, %v4268
  %4270 = vmatprep.mubr.f32.mxu0 %v4049
  %4271 = vmatmul.mubr.f32.gmra.mrb[0].mxu0 %v2821
  %v4272 = vpop.f32.mrb[0].mxu0
  %v4273 = vadd.f32 0.0, %v4272
  %v4274 = vpop.f32.mrb[0].mxu0
  %v4275 = vadd.f32 0.0, %v4274
  %4276 = vdwg.mxu0
  %v4277 = vadd.f32 %v3895, %v4118
  %v4278 = vadd.f32 %v3896, %v4120
  %v4279 = vadd.f32 %v3897, %v4231
  %v4280 = vadd.f32 %v3898, %v4233
  %v4281 = vadd.f32 %v3899, %v4124
  %v4282 = vadd.f32 %v3900, %v4126
  %v4283 = vadd.f32 %v3901, %v4237
  %v4284 = vadd.f32 %v3902, %v4239
  %v4285 = vadd.f32 %v3903, %v4130
  %v4286 = vadd.f32 %v3904, %v4132
  %v4287 = vadd.f32 %v3905, %v4243
  %v4288 = vadd.f32 %v3906, %v4245
  %v4289 = vadd.f32 %v3907, %v4136
  %v4290 = vadd.f32 %v3908, %v4138
  %v4291 = vadd.f32 %v3909, %v4249
  %v4292 = vadd.f32 %v3910, %v4251
  %v4293 = vadd.f32 %v3911, %v4142
  %v4294 = vadd.f32 %v3912, %v4144
  %v4295 = vadd.f32 %v3913, %v4255
  %v4296 = vadd.f32 %v3914, %v4257
  %v4297 = vadd.f32 %v3915, %v4148
  %v4298 = vadd.f32 %v3916, %v4150
  %v4299 = vadd.f32 %v3917, %v4261
  %v4300 = vadd.f32 %v3918, %v4263
  %v4301 = vadd.f32 %v3919, %v4154
  %v4302 = vadd.f32 %v3920, %v4156
  %v4303 = vadd.f32 %v3921, %v4267
  %v4304 = vadd.f32 %v3922, %v4269
  %v4305 = vadd.f32 %v3923, %v4160
  %v4306 = vadd.f32 %v3924, %v4162
  %v4307 = vadd.f32 %v3925, %v4273
  %v4308 = vadd.f32 %v3926, %v4275
  %s4309 = scalar_lea.vmem %s3, 3840
  %v4310 = vld [vmem:[%s4309] sm:$0xff]
  %v4311 = vld [vmem:[%s4309 + $0x8] sm:$0xff]
  %v4312 = vld [vmem:[%s4309 + $0x10] sm:$0xff]
  %v4313 = vld [vmem:[%s4309 + $0x18] sm:$0xff]
  %v4314 = vld [vmem:[%s4309 + $0x20] sm:$0xff]
  %v4315 = vld [vmem:[%s4309 + $0x28] sm:$0xff]
  %v4316 = vld [vmem:[%s4309 + $0x30] sm:$0xff]
  %v4317 = vld [vmem:[%s4309 + $0x38] sm:$0xff]
  %v4318 = vld [vmem:[%s4309 + $0x40] sm:$0xff]
  %v4319 = vld [vmem:[%s4309 + $0x48] sm:$0xff]
  %v4320 = vld [vmem:[%s4309 + $0x50] sm:$0xff]
  %v4321 = vld [vmem:[%s4309 + $0x58] sm:$0xff]
  %v4322 = vld [vmem:[%s4309 + $0x60] sm:$0xff]
  %v4323 = vld [vmem:[%s4309 + $0x68] sm:$0xff]
  %v4324 = vld [vmem:[%s4309 + $0x70] sm:$0xff]
  %v4325 = vld [vmem:[%s4309 + $0x78] sm:$0xff]
  %v4326 = vld [vmem:[%s4309 + $0x80] sm:$0xff]
  %v4327 = vld [vmem:[%s4309 + $0x88] sm:$0xff]
  %v4328 = vld [vmem:[%s4309 + $0x90] sm:$0xff]
  %v4329 = vld [vmem:[%s4309 + $0x98] sm:$0xff]
  %v4330 = vld [vmem:[%s4309 + $0xa0] sm:$0xff]
  %v4331 = vld [vmem:[%s4309 + $0xa8] sm:$0xff]
  %v4332 = vld [vmem:[%s4309 + $0xb0] sm:$0xff]
  %v4333 = vld [vmem:[%s4309 + $0xb8] sm:$0xff]
  %v4334 = vld [vmem:[%s4309 + $0xc0] sm:$0xff]
  %v4335 = vld [vmem:[%s4309 + $0xc8] sm:$0xff]
  %v4336 = vld [vmem:[%s4309 + $0xd0] sm:$0xff]
  %v4337 = vld [vmem:[%s4309 + $0xd8] sm:$0xff]
  %v4338 = vld [vmem:[%s4309 + $0xe0] sm:$0xff]
  %v4339 = vld [vmem:[%s4309 + $0xe8] sm:$0xff]
  %v4340 = vld [vmem:[%s4309 + $0xf0] sm:$0xff]
  %v4341 = vld [vmem:[%s4309 + $0xf8] sm:$0xff]
  %v4342 = vld [vmem:[%s4309 + $0x100] sm:$0xff]
  %v4343 = vld [vmem:[%s4309 + $0x108] sm:$0xff]
  %v4344 = vld [vmem:[%s4309 + $0x110] sm:$0xff]
  %v4345 = vld [vmem:[%s4309 + $0x118] sm:$0xff]
  %v4346 = vld [vmem:[%s4309 + $0x120] sm:$0xff]
  %v4347 = vld [vmem:[%s4309 + $0x128] sm:$0xff]
  %v4348 = vld [vmem:[%s4309 + $0x130] sm:$0xff]
  %v4349 = vld [vmem:[%s4309 + $0x138] sm:$0xff]
  %v4350 = vld [vmem:[%s4309 + $0x140] sm:$0xff]
  %v4351 = vld [vmem:[%s4309 + $0x148] sm:$0xff]
  %v4352 = vld [vmem:[%s4309 + $0x150] sm:$0xff]
  %v4353 = vld [vmem:[%s4309 + $0x158] sm:$0xff]
  %v4354 = vld [vmem:[%s4309 + $0x160] sm:$0xff]
  %v4355 = vld [vmem:[%s4309 + $0x168] sm:$0xff]
  %v4356 = vld [vmem:[%s4309 + $0x170] sm:$0xff]
  %v4357 = vld [vmem:[%s4309 + $0x178] sm:$0xff]
  %v4358 = vld [vmem:[%s4309 + $0x180] sm:$0xff]
  %v4359 = vld [vmem:[%s4309 + $0x188] sm:$0xff]
  %v4360 = vld [vmem:[%s4309 + $0x190] sm:$0xff]
  %v4361 = vld [vmem:[%s4309 + $0x198] sm:$0xff]
  %v4362 = vld [vmem:[%s4309 + $0x1a0] sm:$0xff]
  %v4363 = vld [vmem:[%s4309 + $0x1a8] sm:$0xff]
  %v4364 = vld [vmem:[%s4309 + $0x1b0] sm:$0xff]
  %v4365 = vld [vmem:[%s4309 + $0x1b8] sm:$0xff]
  %v4366 = vld [vmem:[%s4309 + $0x1c0] sm:$0xff]
  %v4367 = vld [vmem:[%s4309 + $0x1c8] sm:$0xff]
  %v4368 = vld [vmem:[%s4309 + $0x1d0] sm:$0xff]
  %v4369 = vld [vmem:[%s4309 + $0x1d8] sm:$0xff]
  %v4370 = vld [vmem:[%s4309 + $0x1e0] sm:$0xff]
  %v4371 = vld [vmem:[%s4309 + $0x1e8] sm:$0xff]
  %v4372 = vld [vmem:[%s4309 + $0x1f0] sm:$0xff]
  %v4373 = vld [vmem:[%s4309 + $0x1f8] sm:$0xff]
  %v4374 = vld [vmem:[%s4309 + $0x200] sm:$0xff]
  %v4375 = vld [vmem:[%s4309 + $0x208] sm:$0xff]
  %v4376 = vld [vmem:[%s4309 + $0x210] sm:$0xff]
  %v4377 = vld [vmem:[%s4309 + $0x218] sm:$0xff]
  %v4378 = vld [vmem:[%s4309 + $0x220] sm:$0xff]
  %v4379 = vld [vmem:[%s4309 + $0x228] sm:$0xff]
  %v4380 = vld [vmem:[%s4309 + $0x230] sm:$0xff]
  %v4381 = vld [vmem:[%s4309 + $0x238] sm:$0xff]
  %v4382 = vld [vmem:[%s4309 + $0x240] sm:$0xff]
  %v4383 = vld [vmem:[%s4309 + $0x248] sm:$0xff]
  %v4384 = vld [vmem:[%s4309 + $0x250] sm:$0xff]
  %v4385 = vld [vmem:[%s4309 + $0x258] sm:$0xff]
  %v4386 = vld [vmem:[%s4309 + $0x260] sm:$0xff]
  %v4387 = vld [vmem:[%s4309 + $0x268] sm:$0xff]
  %v4388 = vld [vmem:[%s4309 + $0x270] sm:$0xff]
  %v4389 = vld [vmem:[%s4309 + $0x278] sm:$0xff]
  %v4390 = vld [vmem:[%s4309 + $0x280] sm:$0xff]
  %v4391 = vld [vmem:[%s4309 + $0x288] sm:$0xff]
  %v4392 = vld [vmem:[%s4309 + $0x290] sm:$0xff]
  %v4393 = vld [vmem:[%s4309 + $0x298] sm:$0xff]
  %v4394 = vld [vmem:[%s4309 + $0x2a0] sm:$0xff]
  %v4395 = vld [vmem:[%s4309 + $0x2a8] sm:$0xff]
  %v4396 = vld [vmem:[%s4309 + $0x2b0] sm:$0xff]
  %v4397 = vld [vmem:[%s4309 + $0x2b8] sm:$0xff]
  %v4398 = vld [vmem:[%s4309 + $0x2c0] sm:$0xff]
  %v4399 = vld [vmem:[%s4309 + $0x2c8] sm:$0xff]
  %v4400 = vld [vmem:[%s4309 + $0x2d0] sm:$0xff]
  %v4401 = vld [vmem:[%s4309 + $0x2d8] sm:$0xff]
  %v4402 = vld [vmem:[%s4309 + $0x2e0] sm:$0xff]
  %v4403 = vld [vmem:[%s4309 + $0x2e8] sm:$0xff]
  %v4404 = vld [vmem:[%s4309 + $0x2f0] sm:$0xff]
  %v4405 = vld [vmem:[%s4309 + $0x2f8] sm:$0xff]
  %v4406 = vld [vmem:[%s4309 + $0x300] sm:$0xff]
  %v4407 = vld [vmem:[%s4309 + $0x308] sm:$0xff]
  %v4408 = vld [vmem:[%s4309 + $0x310] sm:$0xff]
  %v4409 = vld [vmem:[%s4309 + $0x318] sm:$0xff]
  %v4410 = vld [vmem:[%s4309 + $0x320] sm:$0xff]
  %v4411 = vld [vmem:[%s4309 + $0x328] sm:$0xff]
  %v4412 = vld [vmem:[%s4309 + $0x330] sm:$0xff]
  %v4413 = vld [vmem:[%s4309 + $0x338] sm:$0xff]
  %v4414 = vld [vmem:[%s4309 + $0x340] sm:$0xff]
  %v4415 = vld [vmem:[%s4309 + $0x348] sm:$0xff]
  %v4416 = vld [vmem:[%s4309 + $0x350] sm:$0xff]
  %v4417 = vld [vmem:[%s4309 + $0x358] sm:$0xff]
  %v4418 = vld [vmem:[%s4309 + $0x360] sm:$0xff]
  %v4419 = vld [vmem:[%s4309 + $0x368] sm:$0xff]
  %v4420 = vld [vmem:[%s4309 + $0x370] sm:$0xff]
  %v4421 = vld [vmem:[%s4309 + $0x378] sm:$0xff]
  %v4422 = vld [vmem:[%s4309 + $0x380] sm:$0xff]
  %v4423 = vld [vmem:[%s4309 + $0x388] sm:$0xff]
  %v4424 = vld [vmem:[%s4309 + $0x390] sm:$0xff]
  %v4425 = vld [vmem:[%s4309 + $0x398] sm:$0xff]
  %v4426 = vld [vmem:[%s4309 + $0x3a0] sm:$0xff]
  %v4427 = vld [vmem:[%s4309 + $0x3a8] sm:$0xff]
  %v4428 = vld [vmem:[%s4309 + $0x3b0] sm:$0xff]
  %v4429 = vld [vmem:[%s4309 + $0x3b8] sm:$0xff]
  %v4431 = vsel %vm2717, %v2824, 0
  %4433 = vmatprep.subr.mxu0 %v4311
  %4434 = vmatpush1.msra.mxu0 %v4310
  %4435 = vmatprep.subr.mxu0 %v4315
  %4436 = vmatpush1.msra.mxu0 %v4314
  %4437 = vmatprep.subr.mxu0 %v4319
  %4438 = vmatpush1.msra.mxu0 %v4318
  %4439 = vmatprep.subr.mxu0 %v4323
  %4440 = vmatpush1.msra.mxu0 %v4322
  %4441 = vmatprep.subr.mxu0 %v4327
  %4442 = vmatpush1.msra.mxu0 %v4326
  %4443 = vmatprep.subr.mxu0 %v4331
  %4444 = vmatpush1.msra.mxu0 %v4330
  %4445 = vmatprep.subr.mxu0 %v4335
  %4446 = vmatpush1.msra.mxu0 %v4334
  %4447 = vmatprep.subr.mxu0 %v4339
  %4448 = vmatpush1.msra.mxu0 %v4338
  %4449 = vmatprep.subr.mxu0 %v4343
  %4450 = vmatpush1.msra.mxu0 %v4342
  %4451 = vmatprep.subr.mxu0 %v4347
  %4452 = vmatpush1.msra.mxu0 %v4346
  %4453 = vmatprep.subr.mxu0 %v4351
  %4454 = vmatpush1.msra.mxu0 %v4350
  %4455 = vmatprep.subr.mxu0 %v4355
  %4456 = vmatpush1.msra.mxu0 %v4354
  %4457 = vmatprep.subr.mxu0 %v4359
  %4458 = vmatpush1.msra.mxu0 %v4358
  %4459 = vmatprep.subr.mxu0 %v4363
  %4460 = vmatpush1.msra.mxu0 %v4362
  %4461 = vmatprep.subr.mxu0 %v4367
  %4462 = vmatpush1.msra.mxu0 %v4366
  %4463 = vmatprep.subr.mxu0 %v4371
  %4464 = vmatpush1.msra.mxu0 %v4370
  %4465 = vmatprep.subr.mxu0 %v4375
  %4466 = vmatpush1.msra.mxu0 %v4374
  %4467 = vmatprep.subr.mxu0 %v4379
  %4468 = vmatpush1.msra.mxu0 %v4378
  %4469 = vmatprep.subr.mxu0 %v4383
  %4470 = vmatpush1.msra.mxu0 %v4382
  %4471 = vmatprep.subr.mxu0 %v4387
  %4472 = vmatpush1.msra.mxu0 %v4386
  %4473 = vmatprep.subr.mxu0 %v4391
  %4474 = vmatpush1.msra.mxu0 %v4390
  %4475 = vmatprep.subr.mxu0 %v4395
  %4476 = vmatpush1.msra.mxu0 %v4394
  %4477 = vmatprep.subr.mxu0 %v4399
  %4478 = vmatpush1.msra.mxu0 %v4398
  %4479 = vmatprep.subr.mxu0 %v4403
  %4480 = vmatpush1.msra.mxu0 %v4402
  %4481 = vmatprep.subr.mxu0 %v4407
  %4482 = vmatpush1.msra.mxu0 %v4406
  %4483 = vmatprep.subr.mxu0 %v4411
  %4484 = vmatpush1.msra.mxu0 %v4410
  %4485 = vmatprep.subr.mxu0 %v4415
  %4486 = vmatpush1.msra.mxu0 %v4414
  %4487 = vmatprep.subr.mxu0 %v4419
  %4488 = vmatpush1.msra.mxu0 %v4418
  %4489 = vmatprep.subr.mxu0 %v4423
  %4490 = vmatpush1.msra.mxu0 %v4422
  %4491 = vmatprep.subr.mxu0 %v4427
  %4492 = vmatpush1.msra.mxu0 %v4426
  %4493 = vmatprep.subr.mxu0 0.0
  %4494 = vmatpush1.msra.mxu0 0.0
  %4495 = vmatprep.subr.mxu0 0.0
  %4496 = vmatpush1.msra.mxu0 0.0
  %4497 = vmatprep.mubr.f32.mxu0 %v3076
  %4498 = vmatmul.mubr.f32.gmra.mrb[0].mxu0 %v2809
  %v4499 = vpop.f32.mrb[0].mxu0
  %v4500 = vadd.f32 0.0, %v4499
  %v4501 = vpop.f32.mrb[0].mxu0
  %v4502 = vadd.f32 0.0, %v4501
  %4503 = vmatprep.mubr.f32.mxu0 %v3079
  %4504 = vmatmul.mubr.f32.gmra.mrb[0].mxu0 %v2811
  %v4505 = vpop.f32.mrb[0].mxu0
  %v4506 = vadd.f32 0.0, %v4505
  %v4507 = vpop.f32.mrb[0].mxu0
  %v4508 = vadd.f32 0.0, %v4507
  %4509 = vmatprep.mubr.f32.mxu0 %v3082
  %4510 = vmatmul.mubr.f32.gmra.mrb[0].mxu0 %v2813
  %v4511 = vpop.f32.mrb[0].mxu0
  %v4512 = vadd.f32 0.0, %v4511
  %v4513 = vpop.f32.mrb[0].mxu0
  %v4514 = vadd.f32 0.0, %v4513
  %4515 = vmatprep.mubr.f32.mxu0 %v3085
  %4516 = vmatmul.mubr.f32.gmra.mrb[0].mxu0 %v2815
  %v4517 = vpop.f32.mrb[0].mxu0
  %v4518 = vadd.f32 0.0, %v4517
  %v4519 = vpop.f32.mrb[0].mxu0
  %v4520 = vadd.f32 0.0, %v4519
  %4521 = vmatprep.mubr.f32.mxu0 %v3088
  %4522 = vmatmul.mubr.f32.gmra.mrb[0].mxu0 %v2817
  %v4523 = vpop.f32.mrb[0].mxu0
  %v4524 = vadd.f32 0.0, %v4523
  %v4525 = vpop.f32.mrb[0].mxu0
  %v4526 = vadd.f32 0.0, %v4525
  %4527 = vmatprep.mubr.f32.mxu0 %v3667
  %4528 = vmatmul.mubr.f32.gmra.mrb[0].mxu0 %v2819
  %v4529 = vpop.f32.mrb[0].mxu0
  %v4530 = vadd.f32 0.0, %v4529
  %v4531 = vpop.f32.mrb[0].mxu0
  %v4532 = vadd.f32 0.0, %v4531
  %4533 = vmatprep.mubr.f32.mxu0 %v4049
  %4534 = vmatmul.mubr.f32.gmra.mrb[0].mxu0 %v2821
  %v4535 = vpop.f32.mrb[0].mxu0
  %v4536 = vadd.f32 0.0, %v4535
  %v4537 = vpop.f32.mrb[0].mxu0
  %v4538 = vadd.f32 0.0, %v4537
  %4539 = vmatprep.mubr.f32.mxu0 %v4431
  %4540 = vmatmul.mubr.f32.gmra.mrb[0].mxu0 %v2823
  %v4541 = vpop.f32.mrb[0].mxu0
  %v4542 = vadd.f32 0.0, %v4541
  %v4543 = vpop.f32.mrb[0].mxu0
  %v4544 = vadd.f32 0.0, %v4543
  %4545 = vdwg.mxu0
  %4546 = vmatprep.subr.mxu0 %v4313
  %4547 = vmatpush1.msra.mxu0 %v4312
  %4548 = vmatprep.subr.mxu0 %v4317
  %4549 = vmatpush1.msra.mxu0 %v4316
  %4550 = vmatprep.subr.mxu0 %v4321
  %4551 = vmatpush1.msra.mxu0 %v4320
  %4552 = vmatprep.subr.mxu0 %v4325
  %4553 = vmatpush1.msra.mxu0 %v4324
  %4554 = vmatprep.subr.mxu0 %v4329
  %4555 = vmatpush1.msra.mxu0 %v4328
  %4556 = vmatprep.subr.mxu0 %v4333
  %4557 = vmatpush1.msra.mxu0 %v4332
  %4558 = vmatprep.subr.mxu0 %v4337
  %4559 = vmatpush1.msra.mxu0 %v4336
  %4560 = vmatprep.subr.mxu0 %v4341
  %4561 = vmatpush1.msra.mxu0 %v4340
  %4562 = vmatprep.subr.mxu0 %v4345
  %4563 = vmatpush1.msra.mxu0 %v4344
  %4564 = vmatprep.subr.mxu0 %v4349
  %4565 = vmatpush1.msra.mxu0 %v4348
  %4566 = vmatprep.subr.mxu0 %v4353
  %4567 = vmatpush1.msra.mxu0 %v4352
  %4568 = vmatprep.subr.mxu0 %v4357
  %4569 = vmatpush1.msra.mxu0 %v4356
  %4570 = vmatprep.subr.mxu0 %v4361
  %4571 = vmatpush1.msra.mxu0 %v4360
  %4572 = vmatprep.subr.mxu0 %v4365
  %4573 = vmatpush1.msra.mxu0 %v4364
  %4574 = vmatprep.subr.mxu0 %v4369
  %4575 = vmatpush1.msra.mxu0 %v4368
  %4576 = vmatprep.subr.mxu0 %v4373
  %4577 = vmatpush1.msra.mxu0 %v4372
  %4578 = vmatprep.subr.mxu0 %v4377
  %4579 = vmatpush1.msra.mxu0 %v4376
  %4580 = vmatprep.subr.mxu0 %v4381
  %4581 = vmatpush1.msra.mxu0 %v4380
  %4582 = vmatprep.subr.mxu0 %v4385
  %4583 = vmatpush1.msra.mxu0 %v4384
  %4584 = vmatprep.subr.mxu0 %v4389
  %4585 = vmatpush1.msra.mxu0 %v4388
  %4586 = vmatprep.subr.mxu0 %v4393
  %4587 = vmatpush1.msra.mxu0 %v4392
  %4588 = vmatprep.subr.mxu0 %v4397
  %4589 = vmatpush1.msra.mxu0 %v4396
  %4590 = vmatprep.subr.mxu0 %v4401
  %4591 = vmatpush1.msra.mxu0 %v4400
  %4592 = vmatprep.subr.mxu0 %v4405
  %4593 = vmatpush1.msra.mxu0 %v4404
  %4594 = vmatprep.subr.mxu0 %v4409
  %4595 = vmatpush1.msra.mxu0 %v4408
  %4596 = vmatprep.subr.mxu0 %v4413
  %4597 = vmatpush1.msra.mxu0 %v4412
  %4598 = vmatprep.subr.mxu0 %v4417
  %4599 = vmatpush1.msra.mxu0 %v4416
  %4600 = vmatprep.subr.mxu0 %v4421
  %4601 = vmatpush1.msra.mxu0 %v4420
  %4602 = vmatprep.subr.mxu0 %v4425
  %4603 = vmatpush1.msra.mxu0 %v4424
  %4604 = vmatprep.subr.mxu0 %v4429
  %4605 = vmatpush1.msra.mxu0 %v4428
  %4606 = vmatprep.subr.mxu0 0.0
  %4607 = vmatpush1.msra.mxu0 0.0
  %4608 = vmatprep.subr.mxu0 0.0
  %4609 = vmatpush1.msra.mxu0 0.0
  %4610 = vmatprep.mubr.f32.mxu0 %v3076
  %4611 = vmatmul.mubr.f32.gmra.mrb[0].mxu0 %v2809
  %v4612 = vpop.f32.mrb[0].mxu0
  %v4613 = vadd.f32 0.0, %v4612
  %v4614 = vpop.f32.mrb[0].mxu0
  %v4615 = vadd.f32 0.0, %v4614
  %4616 = vmatprep.mubr.f32.mxu0 %v3079
  %4617 = vmatmul.mubr.f32.gmra.mrb[0].mxu0 %v2811
  %v4618 = vpop.f32.mrb[0].mxu0
  %v4619 = vadd.f32 0.0, %v4618
  %v4620 = vpop.f32.mrb[0].mxu0
  %v4621 = vadd.f32 0.0, %v4620
  %4622 = vmatprep.mubr.f32.mxu0 %v3082
  %4623 = vmatmul.mubr.f32.gmra.mrb[0].mxu0 %v2813
  %v4624 = vpop.f32.mrb[0].mxu0
  %v4625 = vadd.f32 0.0, %v4624
  %v4626 = vpop.f32.mrb[0].mxu0
  %v4627 = vadd.f32 0.0, %v4626
  %4628 = vmatprep.mubr.f32.mxu0 %v3085
  %4629 = vmatmul.mubr.f32.gmra.mrb[0].mxu0 %v2815
  %v4630 = vpop.f32.mrb[0].mxu0
  %v4631 = vadd.f32 0.0, %v4630
  %v4632 = vpop.f32.mrb[0].mxu0
  %v4633 = vadd.f32 0.0, %v4632
  %4634 = vmatprep.mubr.f32.mxu0 %v3088
  %4635 = vmatmul.mubr.f32.gmra.mrb[0].mxu0 %v2817
  %v4636 = vpop.f32.mrb[0].mxu0
  %v4637 = vadd.f32 0.0, %v4636
  %v4638 = vpop.f32.mrb[0].mxu0
  %v4639 = vadd.f32 0.0, %v4638
  %4640 = vmatprep.mubr.f32.mxu0 %v3667
  %4641 = vmatmul.mubr.f32.gmra.mrb[0].mxu0 %v2819
  %v4642 = vpop.f32.mrb[0].mxu0
  %v4643 = vadd.f32 0.0, %v4642
  %v4644 = vpop.f32.mrb[0].mxu0
  %v4645 = vadd.f32 0.0, %v4644
  %4646 = vmatprep.mubr.f32.mxu0 %v4049
  %4647 = vmatmul.mubr.f32.gmra.mrb[0].mxu0 %v2821
  %v4648 = vpop.f32.mrb[0].mxu0
  %v4649 = vadd.f32 0.0, %v4648
  %v4650 = vpop.f32.mrb[0].mxu0
  %v4651 = vadd.f32 0.0, %v4650
  %4652 = vmatprep.mubr.f32.mxu0 %v4431
  %4653 = vmatmul.mubr.f32.gmra.mrb[0].mxu0 %v2823
  %v4654 = vpop.f32.mrb[0].mxu0
  %v4655 = vadd.f32 0.0, %v4654
  %v4656 = vpop.f32.mrb[0].mxu0
  %v4657 = vadd.f32 0.0, %v4656
  %4658 = vdwg.mxu0
  %v4659 = vadd.f32 %v4277, %v4500
  %v4660 = vadd.f32 %v4278, %v4502
  %v4661 = vadd.f32 %v4279, %v4613
  %v4662 = vadd.f32 %v4280, %v4615
  %v4663 = vadd.f32 %v4281, %v4506
  %v4664 = vadd.f32 %v4282, %v4508
  %v4665 = vadd.f32 %v4283, %v4619
  %v4666 = vadd.f32 %v4284, %v4621
  %v4667 = vadd.f32 %v4285, %v4512
  %v4668 = vadd.f32 %v4286, %v4514
  %v4669 = vadd.f32 %v4287, %v4625
  %v4670 = vadd.f32 %v4288, %v4627
  %v4671 = vadd.f32 %v4289, %v4518
  %v4672 = vadd.f32 %v4290, %v4520
  %v4673 = vadd.f32 %v4291, %v4631
  %v4674 = vadd.f32 %v4292, %v4633
  %v4675 = vadd.f32 %v4293, %v4524
  %v4676 = vadd.f32 %v4294, %v4526
  %v4677 = vadd.f32 %v4295, %v4637
  %v4678 = vadd.f32 %v4296, %v4639
  %v4679 = vadd.f32 %v4297, %v4530
  %v4680 = vadd.f32 %v4298, %v4532
  %v4681 = vadd.f32 %v4299, %v4643
  %v4682 = vadd.f32 %v4300, %v4645
  %v4683 = vadd.f32 %v4301, %v4536
  %v4684 = vadd.f32 %v4302, %v4538
  %v4685 = vadd.f32 %v4303, %v4649
  %v4686 = vadd.f32 %v4304, %v4651
  %v4687 = vadd.f32 %v4305, %v4542
  %v4688 = vadd.f32 %v4306, %v4544
  %v4689 = vadd.f32 %v4307, %v4655
  %v4690 = vadd.f32 %v4308, %v4657
  %v4691 = vmax.f32 %v4659, %v4661
  %v4692 = vmax.f32 %v4660, %v4662
  %v4693 = vmax.f32 %v4663, %v4665
  %v4694 = vmax.f32 %v4664, %v4666
  %v4695 = vmax.f32 %v4667, %v4669
  %v4696 = vmax.f32 %v4668, %v4670
  %v4697 = vmax.f32 %v4671, %v4673
  %v4698 = vmax.f32 %v4672, %v4674
  %v4699 = vmax.f32 %v4675, %v4677
  %v4700 = vmax.f32 %v4676, %v4678
  %v4701 = vmax.f32 %v4679, %v4681
  %v4702 = vmax.f32 %v4680, %v4682
  %v4703 = vmax.f32 %v4683, %v4685
  %v4704 = vmax.f32 %v4684, %v4686
  %v4705 = vmax.f32 %v4687, %v4689
  %v4706 = vmax.f32 %v4688, %v4690
  %v4707 = vmax.f32 %v4691, %v4693
  %vm4708 = vcmask 588800
  %v4709 = vsel %vm4708, %v4692, -inf
  %v4710 = vsel %vm4708, %v4694, -inf
  %v4711 = vmax.f32 %v4709, %v4710
  %v4712 = vmax.f32 %v4695, %v4697
  %v4713 = vsel %vm4708, %v4696, -inf
  %v4714 = vsel %vm4708, %v4698, -inf
  %v4715 = vmax.f32 %v4713, %v4714
  %v4716 = vmax.f32 %v4699, %v4701
  %v4717 = vsel %vm4708, %v4700, -inf
  %v4718 = vsel %vm4708, %v4702, -inf
  %v4719 = vmax.f32 %v4717, %v4718
  %v4720 = vmax.f32 %v4703, %v4705
  %v4721 = vsel %vm4708, %v4704, -inf
  %v4722 = vsel %vm4708, %v4706, -inf
  %v4723 = vmax.f32 %v4721, %v4722
  %v4724 = vld [vmem:[%s4] sm:$0x3]
  %v4726 = vlaneseq
  %v4727 = vshrl.u32 %v4726, 7
  %v4728 = vsub.s32 0, %v4727
  %v4729 = vrot.slane %v4724, %v4728
  %v4730 = vlaneseq
  %v4731 = vshrl.u32 %v4730, 7
  %v4732 = vsub.s32 1, %v4731
  %v4733 = vrot.slane %v4724, %v4732
  %v4736 = vadd.f32 %v4707, %v4729
  %v4737 = vadd.f32 %v4711, %v4733
  %v4738 = vadd.f32 %v4712, %v4729
  %v4739 = vadd.f32 %v4715, %v4733
  %v4740 = vadd.f32 %v4716, %v4729
  %v4741 = vadd.f32 %v4719, %v4733
  %v4742 = vadd.f32 %v4720, %v4729
  %v4743 = vadd.f32 %v4723, %v4733
  %v4744 = vmax.f32 %v4736, 0.0
  %v4745 = vmax.f32 %v4737, 0.0
  %v4746 = vmax.f32 %v4738, 0.0
  %v4747 = vmax.f32 %v4739, 0.0
  %v4748 = vmax.f32 %v4740, 0.0
  %v4749 = vmax.f32 %v4741, 0.0
  %v4750 = vmax.f32 %v4742, 0.0
  %v4751 = vmax.f32 %v4743, 0.0
  %v4752 = vld [vmem:[%s5] sm:$0xff]
  %v4753 = vld [vmem:[%s5 + $0x8] sm:$0xff]
  %v4754 = vld [vmem:[%s5 + $0x10] sm:$0xff]
  %v4755 = vld [vmem:[%s5 + $0x18] sm:$0xff]
  %v4756 = vld [vmem:[%s5 + $0x20] sm:$0xff]
  %v4757 = vld [vmem:[%s5 + $0x28] sm:$0xff]
  %v4758 = vld [vmem:[%s5 + $0x30] sm:$0xff]
  %v4759 = vld [vmem:[%s5 + $0x38] sm:$0xff]
  %v4760 = vld [vmem:[%s5 + $0x40] sm:$0xff]
  %v4761 = vld [vmem:[%s5 + $0x48] sm:$0xff]
  %v4762 = vld [vmem:[%s5 + $0x50] sm:$0xff]
  %v4763 = vld [vmem:[%s5 + $0x58] sm:$0xff]
  %v4764 = vld [vmem:[%s5 + $0x60] sm:$0xff]
  %v4765 = vld [vmem:[%s5 + $0x68] sm:$0xff]
  %v4766 = vld [vmem:[%s5 + $0x70] sm:$0xff]
  %v4767 = vld [vmem:[%s5 + $0x78] sm:$0xff]
  %v4768 = vld [vmem:[%s5 + $0x80] sm:$0xff]
  %v4769 = vld [vmem:[%s5 + $0x88] sm:$0xff]
  %v4770 = vld [vmem:[%s5 + $0x90] sm:$0xff]
  %v4771 = vld [vmem:[%s5 + $0x98] sm:$0xff]
  %v4772 = vld [vmem:[%s5 + $0xa0] sm:$0xff]
  %v4773 = vld [vmem:[%s5 + $0xa8] sm:$0xff]
  %v4774 = vld [vmem:[%s5 + $0xb0] sm:$0xff]
  %v4775 = vld [vmem:[%s5 + $0xb8] sm:$0xff]
  %v4776 = vld [vmem:[%s5 + $0xc0] sm:$0xff]
  %v4777 = vld [vmem:[%s5 + $0xc8] sm:$0xff]
  %v4778 = vld [vmem:[%s5 + $0xd0] sm:$0xff]
  %v4779 = vld [vmem:[%s5 + $0xd8] sm:$0xff]
  %v4780 = vld [vmem:[%s5 + $0xe0] sm:$0xff]
  %v4781 = vld [vmem:[%s5 + $0xe8] sm:$0xff]
  %v4782 = vld [vmem:[%s5 + $0xf0] sm:$0xff]
  %v4783 = vld [vmem:[%s5 + $0xf8] sm:$0xff]
  %v4784 = vld [vmem:[%s5 + $0x100] sm:$0xff]
  %v4785 = vld [vmem:[%s5 + $0x108] sm:$0xff]
  %v4786 = vld [vmem:[%s5 + $0x110] sm:$0xff]
  %v4787 = vld [vmem:[%s5 + $0x118] sm:$0xff]
  %v4788 = vld [vmem:[%s5 + $0x120] sm:$0xff]
  %v4789 = vld [vmem:[%s5 + $0x128] sm:$0xff]
  %v4790 = vld [vmem:[%s5 + $0x130] sm:$0xff]
  %v4791 = vld [vmem:[%s5 + $0x138] sm:$0xff]
  %v4792 = vld [vmem:[%s5 + $0x140] sm:$0xff]
  %v4793 = vld [vmem:[%s5 + $0x148] sm:$0xff]
  %v4794 = vld [vmem:[%s5 + $0x150] sm:$0xff]
  %v4795 = vld [vmem:[%s5 + $0x158] sm:$0xff]
  %v4796 = vld [vmem:[%s5 + $0x160] sm:$0xff]
  %v4797 = vld [vmem:[%s5 + $0x168] sm:$0xff]
  %v4798 = vld [vmem:[%s5 + $0x170] sm:$0xff]
  %v4799 = vld [vmem:[%s5 + $0x178] sm:$0xff]
  %v4800 = vld [vmem:[%s5 + $0x180] sm:$0xff]
  %v4801 = vld [vmem:[%s5 + $0x188] sm:$0xff]
  %v4802 = vld [vmem:[%s5 + $0x190] sm:$0xff]
  %v4803 = vld [vmem:[%s5 + $0x198] sm:$0xff]
  %v4804 = vld [vmem:[%s5 + $0x1a0] sm:$0xff]
  %v4805 = vld [vmem:[%s5 + $0x1a8] sm:$0xff]
  %v4806 = vld [vmem:[%s5 + $0x1b0] sm:$0xff]
  %v4807 = vld [vmem:[%s5 + $0x1b8] sm:$0xff]
  %v4808 = vld [vmem:[%s5 + $0x1c0] sm:$0xff]
  %v4809 = vld [vmem:[%s5 + $0x1c8] sm:$0xff]
  %v4810 = vld [vmem:[%s5 + $0x1d0] sm:$0xff]
  %v4811 = vld [vmem:[%s5 + $0x1d8] sm:$0xff]
  %v4812 = vld [vmem:[%s5 + $0x1e0] sm:$0xff]
  %v4813 = vld [vmem:[%s5 + $0x1e8] sm:$0xff]
  %v4814 = vld [vmem:[%s5 + $0x1f0] sm:$0xff]
  %v4815 = vld [vmem:[%s5 + $0x1f8] sm:$0xff]
  %v4816 = vld [vmem:[%s5 + $0x200] sm:$0xff]
  %v4817 = vld [vmem:[%s5 + $0x208] sm:$0xff]
  %v4818 = vld [vmem:[%s5 + $0x210] sm:$0xff]
  %v4819 = vld [vmem:[%s5 + $0x218] sm:$0xff]
  %v4820 = vld [vmem:[%s5 + $0x220] sm:$0xff]
  %v4821 = vld [vmem:[%s5 + $0x228] sm:$0xff]
  %v4822 = vld [vmem:[%s5 + $0x230] sm:$0xff]
  %v4823 = vld [vmem:[%s5 + $0x238] sm:$0xff]
  %v4824 = vld [vmem:[%s5 + $0x240] sm:$0xff]
  %v4825 = vld [vmem:[%s5 + $0x248] sm:$0xff]
  %v4826 = vld [vmem:[%s5 + $0x250] sm:$0xff]
  %v4827 = vld [vmem:[%s5 + $0x258] sm:$0xff]
  %v4828 = vld [vmem:[%s5 + $0x260] sm:$0xff]
  %v4829 = vld [vmem:[%s5 + $0x268] sm:$0xff]
  %v4830 = vld [vmem:[%s5 + $0x270] sm:$0xff]
  %v4831 = vld [vmem:[%s5 + $0x278] sm:$0xff]
  %v4832 = vld [vmem:[%s5 + $0x280] sm:$0xff]
  %v4833 = vld [vmem:[%s5 + $0x288] sm:$0xff]
  %v4834 = vld [vmem:[%s5 + $0x290] sm:$0xff]
  %v4835 = vld [vmem:[%s5 + $0x298] sm:$0xff]
  %v4836 = vld [vmem:[%s5 + $0x2a0] sm:$0xff]
  %v4837 = vld [vmem:[%s5 + $0x2a8] sm:$0xff]
  %v4838 = vld [vmem:[%s5 + $0x2b0] sm:$0xff]
  %v4839 = vld [vmem:[%s5 + $0x2b8] sm:$0xff]
  %v4840 = vld [vmem:[%s5 + $0x2c0] sm:$0xff]
  %v4841 = vld [vmem:[%s5 + $0x2c8] sm:$0xff]
  %v4842 = vld [vmem:[%s5 + $0x2d0] sm:$0xff]
  %v4843 = vld [vmem:[%s5 + $0x2d8] sm:$0xff]
  %v4844 = vld [vmem:[%s5 + $0x2e0] sm:$0xff]
  %v4845 = vld [vmem:[%s5 + $0x2e8] sm:$0xff]
  %v4846 = vld [vmem:[%s5 + $0x2f0] sm:$0xff]
  %v4847 = vld [vmem:[%s5 + $0x2f8] sm:$0xff]
  %v4848 = vld [vmem:[%s5 + $0x300] sm:$0xff]
  %v4849 = vld [vmem:[%s5 + $0x308] sm:$0xff]
  %v4850 = vld [vmem:[%s5 + $0x310] sm:$0xff]
  %v4851 = vld [vmem:[%s5 + $0x318] sm:$0xff]
  %s4852 = scalar_lea.vmem %s5, 800
  %v4853 = vld [vmem:[%s4852] sm:$0xff]
  %v4854 = vld [vmem:[%s4852 + $0x8] sm:$0xff]
  %v4855 = vld [vmem:[%s4852 + $0x10] sm:$0xff]
  %v4856 = vld [vmem:[%s4852 + $0x18] sm:$0xff]
  %v4857 = vld [vmem:[%s4852 + $0x20] sm:$0xff]
  %v4858 = vld [vmem:[%s4852 + $0x28] sm:$0xff]
  %v4859 = vld [vmem:[%s4852 + $0x30] sm:$0xff]
  %v4860 = vld [vmem:[%s4852 + $0x38] sm:$0xff]
  %v4861 = vld [vmem:[%s4852 + $0x40] sm:$0xff]
  %v4862 = vld [vmem:[%s4852 + $0x48] sm:$0xff]
  %v4863 = vld [vmem:[%s4852 + $0x50] sm:$0xff]
  %v4864 = vld [vmem:[%s4852 + $0x58] sm:$0xff]
  %v4865 = vld [vmem:[%s4852 + $0x60] sm:$0xff]
  %v4866 = vld [vmem:[%s4852 + $0x68] sm:$0xff]
  %v4867 = vld [vmem:[%s4852 + $0x70] sm:$0xff]
  %v4868 = vld [vmem:[%s4852 + $0x78] sm:$0xff]
  %v4869 = vld [vmem:[%s4852 + $0x80] sm:$0xff]
  %v4870 = vld [vmem:[%s4852 + $0x88] sm:$0xff]
  %v4871 = vld [vmem:[%s4852 + $0x90] sm:$0xff]
  %v4872 = vld [vmem:[%s4852 + $0x98] sm:$0xff]
  %v4873 = vld [vmem:[%s4852 + $0xa0] sm:$0xff]
  %v4874 = vld [vmem:[%s4852 + $0xa8] sm:$0xff]
  %v4875 = vld [vmem:[%s4852 + $0xb0] sm:$0xff]
  %v4876 = vld [vmem:[%s4852 + $0xb8] sm:$0xff]
  %v4877 = vld [vmem:[%s4852 + $0xc0] sm:$0xff]
  %v4878 = vld [vmem:[%s4852 + $0xc8] sm:$0xff]
  %v4879 = vld [vmem:[%s4852 + $0xd0] sm:$0xff]
  %v4880 = vld [vmem:[%s4852 + $0xd8] sm:$0xff]
  %v4881 = vld [vmem:[%s4852 + $0xe0] sm:$0xff]
  %v4882 = vld [vmem:[%s4852 + $0xe8] sm:$0xff]
  %v4883 = vld [vmem:[%s4852 + $0xf0] sm:$0xff]
  %v4884 = vld [vmem:[%s4852 + $0xf8] sm:$0xff]
  %v4885 = vld [vmem:[%s4852 + $0x100] sm:$0xff]
  %v4886 = vld [vmem:[%s4852 + $0x108] sm:$0xff]
  %v4887 = vld [vmem:[%s4852 + $0x110] sm:$0xff]
  %v4888 = vld [vmem:[%s4852 + $0x118] sm:$0xff]
  %v4889 = vld [vmem:[%s4852 + $0x120] sm:$0xff]
  %v4890 = vld [vmem:[%s4852 + $0x128] sm:$0xff]
  %v4891 = vld [vmem:[%s4852 + $0x130] sm:$0xff]
  %v4892 = vld [vmem:[%s4852 + $0x138] sm:$0xff]
  %v4893 = vld [vmem:[%s4852 + $0x140] sm:$0xff]
  %v4894 = vld [vmem:[%s4852 + $0x148] sm:$0xff]
  %v4895 = vld [vmem:[%s4852 + $0x150] sm:$0xff]
  %v4896 = vld [vmem:[%s4852 + $0x158] sm:$0xff]
  %v4897 = vld [vmem:[%s4852 + $0x160] sm:$0xff]
  %v4898 = vld [vmem:[%s4852 + $0x168] sm:$0xff]
  %v4899 = vld [vmem:[%s4852 + $0x170] sm:$0xff]
  %v4900 = vld [vmem:[%s4852 + $0x178] sm:$0xff]
  %v4901 = vld [vmem:[%s4852 + $0x180] sm:$0xff]
  %v4902 = vld [vmem:[%s4852 + $0x188] sm:$0xff]
  %v4903 = vld [vmem:[%s4852 + $0x190] sm:$0xff]
  %v4904 = vld [vmem:[%s4852 + $0x198] sm:$0xff]
  %v4905 = vld [vmem:[%s4852 + $0x1a0] sm:$0xff]
  %v4906 = vld [vmem:[%s4852 + $0x1a8] sm:$0xff]
  %v4907 = vld [vmem:[%s4852 + $0x1b0] sm:$0xff]
  %v4908 = vld [vmem:[%s4852 + $0x1b8] sm:$0xff]
  %v4909 = vld [vmem:[%s4852 + $0x1c0] sm:$0xff]
  %v4910 = vld [vmem:[%s4852 + $0x1c8] sm:$0xff]
  %v4911 = vld [vmem:[%s4852 + $0x1d0] sm:$0xff]
  %v4912 = vld [vmem:[%s4852 + $0x1d8] sm:$0xff]
  %v4913 = vld [vmem:[%s4852 + $0x1e0] sm:$0xff]
  %v4914 = vld [vmem:[%s4852 + $0x1e8] sm:$0xff]
  %v4915 = vld [vmem:[%s4852 + $0x1f0] sm:$0xff]
  %v4916 = vld [vmem:[%s4852 + $0x1f8] sm:$0xff]
  %v4917 = vld [vmem:[%s4852 + $0x200] sm:$0xff]
  %v4918 = vld [vmem:[%s4852 + $0x208] sm:$0xff]
  %v4919 = vld [vmem:[%s4852 + $0x210] sm:$0xff]
  %v4920 = vld [vmem:[%s4852 + $0x218] sm:$0xff]
  %v4921 = vld [vmem:[%s4852 + $0x220] sm:$0xff]
  %v4922 = vld [vmem:[%s4852 + $0x228] sm:$0xff]
  %v4923 = vld [vmem:[%s4852 + $0x230] sm:$0xff]
  %v4924 = vld [vmem:[%s4852 + $0x238] sm:$0xff]
  %v4925 = vld [vmem:[%s4852 + $0x240] sm:$0xff]
  %v4926 = vld [vmem:[%s4852 + $0x248] sm:$0xff]
  %v4927 = vld [vmem:[%s4852 + $0x250] sm:$0xff]
  %v4928 = vld [vmem:[%s4852 + $0x258] sm:$0xff]
  %v4929 = vld [vmem:[%s4852 + $0x260] sm:$0xff]
  %v4930 = vld [vmem:[%s4852 + $0x268] sm:$0xff]
  %v4931 = vld [vmem:[%s4852 + $0x270] sm:$0xff]
  %v4932 = vld [vmem:[%s4852 + $0x278] sm:$0xff]
  %v4933 = vld [vmem:[%s4852 + $0x280] sm:$0xff]
  %v4934 = vld [vmem:[%s4852 + $0x288] sm:$0xff]
  %v4935 = vld [vmem:[%s4852 + $0x290] sm:$0xff]
  %v4936 = vld [vmem:[%s4852 + $0x298] sm:$0xff]
  %v4937 = vld [vmem:[%s4852 + $0x2a0] sm:$0xff]
  %v4938 = vld [vmem:[%s4852 + $0x2a8] sm:$0xff]
  %v4939 = vld [vmem:[%s4852 + $0x2b0] sm:$0xff]
  %v4940 = vld [vmem:[%s4852 + $0x2b8] sm:$0xff]
  %v4941 = vld [vmem:[%s4852 + $0x2c0] sm:$0xff]
  %v4942 = vld [vmem:[%s4852 + $0x2c8] sm:$0xff]
  %v4943 = vld [vmem:[%s4852 + $0x2d0] sm:$0xff]
  %v4944 = vld [vmem:[%s4852 + $0x2d8] sm:$0xff]
  %v4945 = vld [vmem:[%s4852 + $0x2e0] sm:$0xff]
  %v4946 = vld [vmem:[%s4852 + $0x2e8] sm:$0xff]
  %v4947 = vld [vmem:[%s4852 + $0x2f0] sm:$0xff]
  %v4948 = vld [vmem:[%s4852 + $0x2f8] sm:$0xff]
  %v4949 = vld [vmem:[%s4852 + $0x300] sm:$0xff]
  %v4950 = vld [vmem:[%s4852 + $0x308] sm:$0xff]
  %v4951 = vld [vmem:[%s4852 + $0x310] sm:$0xff]
  %v4952 = vld [vmem:[%s4852 + $0x318] sm:$0xff]
  %v4954 = vsel %vm4708, %v4747, 0
  %4956 = vmatprep.subr.mxu0 %v4854
  %4957 = vmatpush1.msra.mxu0 %v4853
  %4958 = vmatprep.subr.mxu0 %v4858
  %4959 = vmatpush1.msra.mxu0 %v4857
  %4960 = vmatprep.subr.mxu0 %v4862
  %4961 = vmatpush1.msra.mxu0 %v4861
  %4962 = vmatprep.subr.mxu0 %v4866
  %4963 = vmatpush1.msra.mxu0 %v4865
  %4964 = vmatprep.subr.mxu0 %v4870
  %4965 = vmatpush1.msra.mxu0 %v4869
  %4966 = vmatprep.subr.mxu0 %v4874
  %4967 = vmatpush1.msra.mxu0 %v4873
  %4968 = vmatprep.subr.mxu0 %v4878
  %4969 = vmatpush1.msra.mxu0 %v4877
  %4970 = vmatprep.subr.mxu0 %v4882
  %4971 = vmatpush1.msra.mxu0 %v4881
  %4972 = vmatprep.subr.mxu0 %v4886
  %4973 = vmatpush1.msra.mxu0 %v4885
  %4974 = vmatprep.subr.mxu0 %v4890
  %4975 = vmatpush1.msra.mxu0 %v4889
  %4976 = vmatprep.subr.mxu0 %v4894
  %4977 = vmatpush1.msra.mxu0 %v4893
  %4978 = vmatprep.subr.mxu0 %v4898
  %4979 = vmatpush1.msra.mxu0 %v4897
  %4980 = vmatprep.subr.mxu0 %v4902
  %4981 = vmatpush1.msra.mxu0 %v4901
  %4982 = vmatprep.subr.mxu0 %v4906
  %4983 = vmatpush1.msra.mxu0 %v4905
  %4984 = vmatprep.subr.mxu0 %v4910
  %4985 = vmatpush1.msra.mxu0 %v4909
  %4986 = vmatprep.subr.mxu0 %v4914
  %4987 = vmatpush1.msra.mxu0 %v4913
  %4988 = vmatprep.subr.mxu0 %v4918
  %4989 = vmatpush1.msra.mxu0 %v4917
  %4990 = vmatprep.subr.mxu0 %v4922
  %4991 = vmatpush1.msra.mxu0 %v4921
  %4992 = vmatprep.subr.mxu0 %v4926
  %4993 = vmatpush1.msra.mxu0 %v4925
  %4994 = vmatprep.subr.mxu0 %v4930
  %4995 = vmatpush1.msra.mxu0 %v4929
  %4996 = vmatprep.subr.mxu0 %v4934
  %4997 = vmatpush1.msra.mxu0 %v4933
  %4998 = vmatprep.subr.mxu0 %v4938
  %4999 = vmatpush1.msra.mxu0 %v4937
  %5000 = vmatprep.subr.mxu0 %v4942
  %5001 = vmatpush1.msra.mxu0 %v4941
  %5002 = vmatprep.subr.mxu0 %v4946
  %5003 = vmatpush1.msra.mxu0 %v4945
  %5004 = vmatprep.subr.mxu0 %v4950
  %5005 = vmatpush1.msra.mxu0 %v4949
  %5006 = vmatprep.subr.mxu0 0.0
  %5007 = vmatpush1.msra.mxu0 0.0
  %5008 = vmatprep.subr.mxu0 0.0
  %5009 = vmatpush1.msra.mxu0 0.0
  %5010 = vmatprep.subr.mxu0 0.0
  %5011 = vmatpush1.msra.mxu0 0.0
  %5012 = vmatprep.subr.mxu0 0.0
  %5013 = vmatpush1.msra.mxu0 0.0
  %5014 = vmatprep.subr.mxu0 0.0
  %5015 = vmatpush1.msra.mxu0 0.0
  %5016 = vmatprep.subr.mxu0 0.0
  %5017 = vmatpush1.msra.mxu0 0.0
  %5018 = vmatprep.subr.mxu0 0.0
  %5019 = vmatpush1.msra.mxu0 0.0
  %5020 = vmatprep.mubr.f32.mxu0 %v4954
  %5021 = vmatmul.mubr.f32.gmra.mrb[0].mxu0 %v4746
  %v5022 = vpop.f32.mrb[0].mxu0
  %v5023 = vadd.f32 0.0, %v5022
  %v5024 = vpop.f32.mrb[0].mxu0
  %v5025 = vadd.f32 0.0, %v5024
  %5026 = vdwg.mxu0
  %5027 = vmatprep.subr.mxu0 %v4856
  %5028 = vmatpush1.msra.mxu0 %v4855
  %5029 = vmatprep.subr.mxu0 %v4860
  %5030 = vmatpush1.msra.mxu0 %v4859
  %5031 = vmatprep.subr.mxu0 %v4864
  %5032 = vmatpush1.msra.mxu0 %v4863
  %5033 = vmatprep.subr.mxu0 %v4868
  %5034 = vmatpush1.msra.mxu0 %v4867
  %5035 = vmatprep.subr.mxu0 %v4872
  %5036 = vmatpush1.msra.mxu0 %v4871
  %5037 = vmatprep.subr.mxu0 %v4876
  %5038 = vmatpush1.msra.mxu0 %v4875
  %5039 = vmatprep.subr.mxu0 %v4880
  %5040 = vmatpush1.msra.mxu0 %v4879
  %5041 = vmatprep.subr.mxu0 %v4884
  %5042 = vmatpush1.msra.mxu0 %v4883
  %5043 = vmatprep.subr.mxu0 %v4888
  %5044 = vmatpush1.msra.mxu0 %v4887
  %5045 = vmatprep.subr.mxu0 %v4892
  %5046 = vmatpush1.msra.mxu0 %v4891
  %5047 = vmatprep.subr.mxu0 %v4896
  %5048 = vmatpush1.msra.mxu0 %v4895
  %5049 = vmatprep.subr.mxu0 %v4900
  %5050 = vmatpush1.msra.mxu0 %v4899
  %5051 = vmatprep.subr.mxu0 %v4904
  %5052 = vmatpush1.msra.mxu0 %v4903
  %5053 = vmatprep.subr.mxu0 %v4908
  %5054 = vmatpush1.msra.mxu0 %v4907
  %5055 = vmatprep.subr.mxu0 %v4912
  %5056 = vmatpush1.msra.mxu0 %v4911
  %5057 = vmatprep.subr.mxu0 %v4916
  %5058 = vmatpush1.msra.mxu0 %v4915
  %5059 = vmatprep.subr.mxu0 %v4920
  %5060 = vmatpush1.msra.mxu0 %v4919
  %5061 = vmatprep.subr.mxu0 %v4924
  %5062 = vmatpush1.msra.mxu0 %v4923
  %5063 = vmatprep.subr.mxu0 %v4928
  %5064 = vmatpush1.msra.mxu0 %v4927
  %5065 = vmatprep.subr.mxu0 %v4932
  %5066 = vmatpush1.msra.mxu0 %v4931
  %5067 = vmatprep.subr.mxu0 %v4936
  %5068 = vmatpush1.msra.mxu0 %v4935
  %5069 = vmatprep.subr.mxu0 %v4940
  %5070 = vmatpush1.msra.mxu0 %v4939
  %5071 = vmatprep.subr.mxu0 %v4944
  %5072 = vmatpush1.msra.mxu0 %v4943
  %5073 = vmatprep.subr.mxu0 %v4948
  %5074 = vmatpush1.msra.mxu0 %v4947
  %5075 = vmatprep.subr.mxu0 %v4952
  %5076 = vmatpush1.msra.mxu0 %v4951
  %5077 = vmatprep.subr.mxu0 0.0
  %5078 = vmatpush1.msra.mxu0 0.0
  %5079 = vmatprep.subr.mxu0 0.0
  %5080 = vmatpush1.msra.mxu0 0.0
  %5081 = vmatprep.subr.mxu0 0.0
  %5082 = vmatpush1.msra.mxu0 0.0
  %5083 = vmatprep.subr.mxu0 0.0
  %5084 = vmatpush1.msra.mxu0 0.0
  %5085 = vmatprep.subr.mxu0 0.0
  %5086 = vmatpush1.msra.mxu0 0.0
  %5087 = vmatprep.subr.mxu0 0.0
  %5088 = vmatpush1.msra.mxu0 0.0
  %5089 = vmatprep.subr.mxu0 0.0
  %5090 = vmatpush1.msra.mxu0 0.0
  %5091 = vmatprep.mubr.f32.mxu0 %v4954
  %5092 = vmatmul.mubr.f32.gmra.mrb[0].mxu0 %v4746
  %v5093 = vpop.f32.mrb[0].mxu0
  %v5094 = vadd.f32 0.0, %v5093
  %v5095 = vpop.f32.mrb[0].mxu0
  %v5096 = vadd.f32 0.0, %v5095
  %5097 = vdwg.mxu0
  %v5099 = vsel %vm4708, %v4745, 0
  %5101 = vmatprep.subr.mxu0 %v4753
  %5102 = vmatpush1.msra.mxu0 %v4752
  %5103 = vmatprep.subr.mxu0 %v4757
  %5104 = vmatpush1.msra.mxu0 %v4756
  %5105 = vmatprep.subr.mxu0 %v4761
  %5106 = vmatpush1.msra.mxu0 %v4760
  %5107 = vmatprep.subr.mxu0 %v4765
  %5108 = vmatpush1.msra.mxu0 %v4764
  %5109 = vmatprep.subr.mxu0 %v4769
  %5110 = vmatpush1.msra.mxu0 %v4768
  %5111 = vmatprep.subr.mxu0 %v4773
  %5112 = vmatpush1.msra.mxu0 %v4772
  %5113 = vmatprep.subr.mxu0 %v4777
  %5114 = vmatpush1.msra.mxu0 %v4776
  %5115 = vmatprep.subr.mxu0 %v4781
  %5116 = vmatpush1.msra.mxu0 %v4780
  %5117 = vmatprep.subr.mxu0 %v4785
  %5118 = vmatpush1.msra.mxu0 %v4784
  %5119 = vmatprep.subr.mxu0 %v4789
  %5120 = vmatpush1.msra.mxu0 %v4788
  %5121 = vmatprep.subr.mxu0 %v4793
  %5122 = vmatpush1.msra.mxu0 %v4792
  %5123 = vmatprep.subr.mxu0 %v4797
  %5124 = vmatpush1.msra.mxu0 %v4796
  %5125 = vmatprep.subr.mxu0 %v4801
  %5126 = vmatpush1.msra.mxu0 %v4800
  %5127 = vmatprep.subr.mxu0 %v4805
  %5128 = vmatpush1.msra.mxu0 %v4804
  %5129 = vmatprep.subr.mxu0 %v4809
  %5130 = vmatpush1.msra.mxu0 %v4808
  %5131 = vmatprep.subr.mxu0 %v4813
  %5132 = vmatpush1.msra.mxu0 %v4812
  %5133 = vmatprep.subr.mxu0 %v4817
  %5134 = vmatpush1.msra.mxu0 %v4816
  %5135 = vmatprep.subr.mxu0 %v4821
  %5136 = vmatpush1.msra.mxu0 %v4820
  %5137 = vmatprep.subr.mxu0 %v4825
  %5138 = vmatpush1.msra.mxu0 %v4824
  %5139 = vmatprep.subr.mxu0 %v4829
  %5140 = vmatpush1.msra.mxu0 %v4828
  %5141 = vmatprep.subr.mxu0 %v4833
  %5142 = vmatpush1.msra.mxu0 %v4832
  %5143 = vmatprep.subr.mxu0 %v4837
  %5144 = vmatpush1.msra.mxu0 %v4836
  %5145 = vmatprep.subr.mxu0 %v4841
  %5146 = vmatpush1.msra.mxu0 %v4840
  %5147 = vmatprep.subr.mxu0 %v4845
  %5148 = vmatpush1.msra.mxu0 %v4844
  %5149 = vmatprep.subr.mxu0 %v4849
  %5150 = vmatpush1.msra.mxu0 %v4848
  %5151 = vmatprep.subr.mxu0 0.0
  %5152 = vmatpush1.msra.mxu0 0.0
  %5153 = vmatprep.subr.mxu0 0.0
  %5154 = vmatpush1.msra.mxu0 0.0
  %5155 = vmatprep.subr.mxu0 0.0
  %5156 = vmatpush1.msra.mxu0 0.0
  %5157 = vmatprep.subr.mxu0 0.0
  %5158 = vmatpush1.msra.mxu0 0.0
  %5159 = vmatprep.subr.mxu0 0.0
  %5160 = vmatpush1.msra.mxu0 0.0
  %5161 = vmatprep.subr.mxu0 0.0
  %5162 = vmatpush1.msra.mxu0 0.0
  %5163 = vmatprep.subr.mxu0 0.0
  %5164 = vmatpush1.msra.mxu0 0.0
  %5165 = vmatprep.mubr.f32.mxu0 %v5099
  %5166 = vmatmul.mubr.f32.gmra.mrb[0].mxu0 %v4744
  %v5167 = vpop.f32.mrb[0].mxu0
  %v5168 = vadd.f32 %v5023, %v5167
  %v5169 = vpop.f32.mrb[0].mxu0
  %v5170 = vadd.f32 %v5025, %v5169
  %5171 = vdwg.mxu0
  %5172 = vmatprep.subr.mxu0 %v4755
  %5173 = vmatpush1.msra.mxu0 %v4754
  %5174 = vmatprep.subr.mxu0 %v4759
  %5175 = vmatpush1.msra.mxu0 %v4758
  %5176 = vmatprep.subr.mxu0 %v4763
  %5177 = vmatpush1.msra.mxu0 %v4762
  %5178 = vmatprep.subr.mxu0 %v4767
  %5179 = vmatpush1.msra.mxu0 %v4766
  %5180 = vmatprep.subr.mxu0 %v4771
  %5181 = vmatpush1.msra.mxu0 %v4770
  %5182 = vmatprep.subr.mxu0 %v4775
  %5183 = vmatpush1.msra.mxu0 %v4774
  %5184 = vmatprep.subr.mxu0 %v4779
  %5185 = vmatpush1.msra.mxu0 %v4778
  %5186 = vmatprep.subr.mxu0 %v4783
  %5187 = vmatpush1.msra.mxu0 %v4782
  %5188 = vmatprep.subr.mxu0 %v4787
  %5189 = vmatpush1.msra.mxu0 %v4786
  %5190 = vmatprep.subr.mxu0 %v4791
  %5191 = vmatpush1.msra.mxu0 %v4790
  %5192 = vmatprep.subr.mxu0 %v4795
  %5193 = vmatpush1.msra.mxu0 %v4794
  %5194 = vmatprep.subr.mxu0 %v4799
  %5195 = vmatpush1.msra.mxu0 %v4798
  %5196 = vmatprep.subr.mxu0 %v4803
  %5197 = vmatpush1.msra.mxu0 %v4802
  %5198 = vmatprep.subr.mxu0 %v4807
  %5199 = vmatpush1.msra.mxu0 %v4806
  %5200 = vmatprep.subr.mxu0 %v4811
  %5201 = vmatpush1.msra.mxu0 %v4810
  %5202 = vmatprep.subr.mxu0 %v4815
  %5203 = vmatpush1.msra.mxu0 %v4814
  %5204 = vmatprep.subr.mxu0 %v4819
  %5205 = vmatpush1.msra.mxu0 %v4818
  %5206 = vmatprep.subr.mxu0 %v4823
  %5207 = vmatpush1.msra.mxu0 %v4822
  %5208 = vmatprep.subr.mxu0 %v4827
  %5209 = vmatpush1.msra.mxu0 %v4826
  %5210 = vmatprep.subr.mxu0 %v4831
  %5211 = vmatpush1.msra.mxu0 %v4830
  %5212 = vmatprep.subr.mxu0 %v4835
  %5213 = vmatpush1.msra.mxu0 %v4834
  %5214 = vmatprep.subr.mxu0 %v4839
  %5215 = vmatpush1.msra.mxu0 %v4838
  %5216 = vmatprep.subr.mxu0 %v4843
  %5217 = vmatpush1.msra.mxu0 %v4842
  %5218 = vmatprep.subr.mxu0 %v4847
  %5219 = vmatpush1.msra.mxu0 %v4846
  %5220 = vmatprep.subr.mxu0 %v4851
  %5221 = vmatpush1.msra.mxu0 %v4850
  %5222 = vmatprep.subr.mxu0 0.0
  %5223 = vmatpush1.msra.mxu0 0.0
  %5224 = vmatprep.subr.mxu0 0.0
  %5225 = vmatpush1.msra.mxu0 0.0
  %5226 = vmatprep.subr.mxu0 0.0
  %5227 = vmatpush1.msra.mxu0 0.0
  %5228 = vmatprep.subr.mxu0 0.0
  %5229 = vmatpush1.msra.mxu0 0.0
  %5230 = vmatprep.subr.mxu0 0.0
  %5231 = vmatpush1.msra.mxu0 0.0
  %5232 = vmatprep.subr.mxu0 0.0
  %5233 = vmatpush1.msra.mxu0 0.0
  %5234 = vmatprep.subr.mxu0 0.0
  %5235 = vmatpush1.msra.mxu0 0.0
  %5236 = vmatprep.mubr.f32.mxu0 %v5099
  %5237 = vmatmul.mubr.f32.gmra.mrb[0].mxu0 %v4744
  %v5238 = vpop.f32.mrb[0].mxu0
  %v5239 = vadd.f32 %v5094, %v5238
  %v5240 = vpop.f32.mrb[0].mxu0
  %v5241 = vadd.f32 %v5096, %v5240
  %5242 = vdwg.mxu0
  %s5243 = scalar_lea.vmem %s5, 1600
  %v5244 = vld [vmem:[%s5243] sm:$0xff]
  %v5245 = vld [vmem:[%s5243 + $0x8] sm:$0xff]
  %v5246 = vld [vmem:[%s5243 + $0x10] sm:$0xff]
  %v5247 = vld [vmem:[%s5243 + $0x18] sm:$0xff]
  %v5248 = vld [vmem:[%s5243 + $0x20] sm:$0xff]
  %v5249 = vld [vmem:[%s5243 + $0x28] sm:$0xff]
  %v5250 = vld [vmem:[%s5243 + $0x30] sm:$0xff]
  %v5251 = vld [vmem:[%s5243 + $0x38] sm:$0xff]
  %v5252 = vld [vmem:[%s5243 + $0x40] sm:$0xff]
  %v5253 = vld [vmem:[%s5243 + $0x48] sm:$0xff]
  %v5254 = vld [vmem:[%s5243 + $0x50] sm:$0xff]
  %v5255 = vld [vmem:[%s5243 + $0x58] sm:$0xff]
  %v5256 = vld [vmem:[%s5243 + $0x60] sm:$0xff]
  %v5257 = vld [vmem:[%s5243 + $0x68] sm:$0xff]
  %v5258 = vld [vmem:[%s5243 + $0x70] sm:$0xff]
  %v5259 = vld [vmem:[%s5243 + $0x78] sm:$0xff]
  %v5260 = vld [vmem:[%s5243 + $0x80] sm:$0xff]
  %v5261 = vld [vmem:[%s5243 + $0x88] sm:$0xff]
  %v5262 = vld [vmem:[%s5243 + $0x90] sm:$0xff]
  %v5263 = vld [vmem:[%s5243 + $0x98] sm:$0xff]
  %v5264 = vld [vmem:[%s5243 + $0xa0] sm:$0xff]
  %v5265 = vld [vmem:[%s5243 + $0xa8] sm:$0xff]
  %v5266 = vld [vmem:[%s5243 + $0xb0] sm:$0xff]
  %v5267 = vld [vmem:[%s5243 + $0xb8] sm:$0xff]
  %v5268 = vld [vmem:[%s5243 + $0xc0] sm:$0xff]
  %v5269 = vld [vmem:[%s5243 + $0xc8] sm:$0xff]
  %v5270 = vld [vmem:[%s5243 + $0xd0] sm:$0xff]
  %v5271 = vld [vmem:[%s5243 + $0xd8] sm:$0xff]
  %v5272 = vld [vmem:[%s5243 + $0xe0] sm:$0xff]
  %v5273 = vld [vmem:[%s5243 + $0xe8] sm:$0xff]
  %v5274 = vld [vmem:[%s5243 + $0xf0] sm:$0xff]
  %v5275 = vld [vmem:[%s5243 + $0xf8] sm:$0xff]
  %v5276 = vld [vmem:[%s5243 + $0x100] sm:$0xff]
  %v5277 = vld [vmem:[%s5243 + $0x108] sm:$0xff]
  %v5278 = vld [vmem:[%s5243 + $0x110] sm:$0xff]
  %v5279 = vld [vmem:[%s5243 + $0x118] sm:$0xff]
  %v5280 = vld [vmem:[%s5243 + $0x120] sm:$0xff]
  %v5281 = vld [vmem:[%s5243 + $0x128] sm:$0xff]
  %v5282 = vld [vmem:[%s5243 + $0x130] sm:$0xff]
  %v5283 = vld [vmem:[%s5243 + $0x138] sm:$0xff]
  %v5284 = vld [vmem:[%s5243 + $0x140] sm:$0xff]
  %v5285 = vld [vmem:[%s5243 + $0x148] sm:$0xff]
  %v5286 = vld [vmem:[%s5243 + $0x150] sm:$0xff]
  %v5287 = vld [vmem:[%s5243 + $0x158] sm:$0xff]
  %v5288 = vld [vmem:[%s5243 + $0x160] sm:$0xff]
  %v5289 = vld [vmem:[%s5243 + $0x168] sm:$0xff]
  %v5290 = vld [vmem:[%s5243 + $0x170] sm:$0xff]
  %v5291 = vld [vmem:[%s5243 + $0x178] sm:$0xff]
  %v5292 = vld [vmem:[%s5243 + $0x180] sm:$0xff]
  %v5293 = vld [vmem:[%s5243 + $0x188] sm:$0xff]
  %v5294 = vld [vmem:[%s5243 + $0x190] sm:$0xff]
  %v5295 = vld [vmem:[%s5243 + $0x198] sm:$0xff]
  %v5296 = vld [vmem:[%s5243 + $0x1a0] sm:$0xff]
  %v5297 = vld [vmem:[%s5243 + $0x1a8] sm:$0xff]
  %v5298 = vld [vmem:[%s5243 + $0x1b0] sm:$0xff]
  %v5299 = vld [vmem:[%s5243 + $0x1b8] sm:$0xff]
  %v5300 = vld [vmem:[%s5243 + $0x1c0] sm:$0xff]
  %v5301 = vld [vmem:[%s5243 + $0x1c8] sm:$0xff]
  %v5302 = vld [vmem:[%s5243 + $0x1d0] sm:$0xff]
  %v5303 = vld [vmem:[%s5243 + $0x1d8] sm:$0xff]
  %v5304 = vld [vmem:[%s5243 + $0x1e0] sm:$0xff]
  %v5305 = vld [vmem:[%s5243 + $0x1e8] sm:$0xff]
  %v5306 = vld [vmem:[%s5243 + $0x1f0] sm:$0xff]
  %v5307 = vld [vmem:[%s5243 + $0x1f8] sm:$0xff]
  %v5308 = vld [vmem:[%s5243 + $0x200] sm:$0xff]
  %v5309 = vld [vmem:[%s5243 + $0x208] sm:$0xff]
  %v5310 = vld [vmem:[%s5243 + $0x210] sm:$0xff]
  %v5311 = vld [vmem:[%s5243 + $0x218] sm:$0xff]
  %v5312 = vld [vmem:[%s5243 + $0x220] sm:$0xff]
  %v5313 = vld [vmem:[%s5243 + $0x228] sm:$0xff]
  %v5314 = vld [vmem:[%s5243 + $0x230] sm:$0xff]
  %v5315 = vld [vmem:[%s5243 + $0x238] sm:$0xff]
  %v5316 = vld [vmem:[%s5243 + $0x240] sm:$0xff]
  %v5317 = vld [vmem:[%s5243 + $0x248] sm:$0xff]
  %v5318 = vld [vmem:[%s5243 + $0x250] sm:$0xff]
  %v5319 = vld [vmem:[%s5243 + $0x258] sm:$0xff]
  %v5320 = vld [vmem:[%s5243 + $0x260] sm:$0xff]
  %v5321 = vld [vmem:[%s5243 + $0x268] sm:$0xff]
  %v5322 = vld [vmem:[%s5243 + $0x270] sm:$0xff]
  %v5323 = vld [vmem:[%s5243 + $0x278] sm:$0xff]
  %v5324 = vld [vmem:[%s5243 + $0x280] sm:$0xff]
  %v5325 = vld [vmem:[%s5243 + $0x288] sm:$0xff]
  %v5326 = vld [vmem:[%s5243 + $0x290] sm:$0xff]
  %v5327 = vld [vmem:[%s5243 + $0x298] sm:$0xff]
  %v5328 = vld [vmem:[%s5243 + $0x2a0] sm:$0xff]
  %v5329 = vld [vmem:[%s5243 + $0x2a8] sm:$0xff]
  %v5330 = vld [vmem:[%s5243 + $0x2b0] sm:$0xff]
  %v5331 = vld [vmem:[%s5243 + $0x2b8] sm:$0xff]
  %v5332 = vld [vmem:[%s5243 + $0x2c0] sm:$0xff]
  %v5333 = vld [vmem:[%s5243 + $0x2c8] sm:$0xff]
  %v5334 = vld [vmem:[%s5243 + $0x2d0] sm:$0xff]
  %v5335 = vld [vmem:[%s5243 + $0x2d8] sm:$0xff]
  %v5336 = vld [vmem:[%s5243 + $0x2e0] sm:$0xff]
  %v5337 = vld [vmem:[%s5243 + $0x2e8] sm:$0xff]
  %v5338 = vld [vmem:[%s5243 + $0x2f0] sm:$0xff]
  %v5339 = vld [vmem:[%s5243 + $0x2f8] sm:$0xff]
  %v5340 = vld [vmem:[%s5243 + $0x300] sm:$0xff]
  %v5341 = vld [vmem:[%s5243 + $0x308] sm:$0xff]
  %v5342 = vld [vmem:[%s5243 + $0x310] sm:$0xff]
  %v5343 = vld [vmem:[%s5243 + $0x318] sm:$0xff]
  %v5345 = vsel %vm4708, %v4749, 0
  %5347 = vmatprep.subr.mxu0 %v5245
  %5348 = vmatpush1.msra.mxu0 %v5244
  %5349 = vmatprep.subr.mxu0 %v5249
  %5350 = vmatpush1.msra.mxu0 %v5248
  %5351 = vmatprep.subr.mxu0 %v5253
  %5352 = vmatpush1.msra.mxu0 %v5252
  %5353 = vmatprep.subr.mxu0 %v5257
  %5354 = vmatpush1.msra.mxu0 %v5256
  %5355 = vmatprep.subr.mxu0 %v5261
  %5356 = vmatpush1.msra.mxu0 %v5260
  %5357 = vmatprep.subr.mxu0 %v5265
  %5358 = vmatpush1.msra.mxu0 %v5264
  %5359 = vmatprep.subr.mxu0 %v5269
  %5360 = vmatpush1.msra.mxu0 %v5268
  %5361 = vmatprep.subr.mxu0 %v5273
  %5362 = vmatpush1.msra.mxu0 %v5272
  %5363 = vmatprep.subr.mxu0 %v5277
  %5364 = vmatpush1.msra.mxu0 %v5276
  %5365 = vmatprep.subr.mxu0 %v5281
  %5366 = vmatpush1.msra.mxu0 %v5280
  %5367 = vmatprep.subr.mxu0 %v5285
  %5368 = vmatpush1.msra.mxu0 %v5284
  %5369 = vmatprep.subr.mxu0 %v5289
  %5370 = vmatpush1.msra.mxu0 %v5288
  %5371 = vmatprep.subr.mxu0 %v5293
  %5372 = vmatpush1.msra.mxu0 %v5292
  %5373 = vmatprep.subr.mxu0 %v5297
  %5374 = vmatpush1.msra.mxu0 %v5296
  %5375 = vmatprep.subr.mxu0 %v5301
  %5376 = vmatpush1.msra.mxu0 %v5300
  %5377 = vmatprep.subr.mxu0 %v5305
  %5378 = vmatpush1.msra.mxu0 %v5304
  %5379 = vmatprep.subr.mxu0 %v5309
  %5380 = vmatpush1.msra.mxu0 %v5308
  %5381 = vmatprep.subr.mxu0 %v5313
  %5382 = vmatpush1.msra.mxu0 %v5312
  %5383 = vmatprep.subr.mxu0 %v5317
  %5384 = vmatpush1.msra.mxu0 %v5316
  %5385 = vmatprep.subr.mxu0 %v5321
  %5386 = vmatpush1.msra.mxu0 %v5320
  %5387 = vmatprep.subr.mxu0 %v5325
  %5388 = vmatpush1.msra.mxu0 %v5324
  %5389 = vmatprep.subr.mxu0 %v5329
  %5390 = vmatpush1.msra.mxu0 %v5328
  %5391 = vmatprep.subr.mxu0 %v5333
  %5392 = vmatpush1.msra.mxu0 %v5332
  %5393 = vmatprep.subr.mxu0 %v5337
  %5394 = vmatpush1.msra.mxu0 %v5336
  %5395 = vmatprep.subr.mxu0 %v5341
  %5396 = vmatpush1.msra.mxu0 %v5340
  %5397 = vmatprep.subr.mxu0 0.0
  %5398 = vmatpush1.msra.mxu0 0.0
  %5399 = vmatprep.subr.mxu0 0.0
  %5400 = vmatpush1.msra.mxu0 0.0
  %5401 = vmatprep.subr.mxu0 0.0
  %5402 = vmatpush1.msra.mxu0 0.0
  %5403 = vmatprep.subr.mxu0 0.0
  %5404 = vmatpush1.msra.mxu0 0.0
  %5405 = vmatprep.subr.mxu0 0.0
  %5406 = vmatpush1.msra.mxu0 0.0
  %5407 = vmatprep.subr.mxu0 0.0
  %5408 = vmatpush1.msra.mxu0 0.0
  %5409 = vmatprep.subr.mxu0 0.0
  %5410 = vmatpush1.msra.mxu0 0.0
  %5411 = vmatprep.mubr.f32.mxu0 %v5345
  %5412 = vmatmul.mubr.f32.gmra.mrb[0].mxu0 %v4748
  %v5413 = vpop.f32.mrb[0].mxu0
  %v5414 = vadd.f32 0.0, %v5413
  %v5415 = vpop.f32.mrb[0].mxu0
  %v5416 = vadd.f32 0.0, %v5415
  %5417 = vdwg.mxu0
  %5418 = vmatprep.subr.mxu0 %v5247
  %5419 = vmatpush1.msra.mxu0 %v5246
  %5420 = vmatprep.subr.mxu0 %v5251
  %5421 = vmatpush1.msra.mxu0 %v5250
  %5422 = vmatprep.subr.mxu0 %v5255
  %5423 = vmatpush1.msra.mxu0 %v5254
  %5424 = vmatprep.subr.mxu0 %v5259
  %5425 = vmatpush1.msra.mxu0 %v5258
  %5426 = vmatprep.subr.mxu0 %v5263
  %5427 = vmatpush1.msra.mxu0 %v5262
  %5428 = vmatprep.subr.mxu0 %v5267
  %5429 = vmatpush1.msra.mxu0 %v5266
  %5430 = vmatprep.subr.mxu0 %v5271
  %5431 = vmatpush1.msra.mxu0 %v5270
  %5432 = vmatprep.subr.mxu0 %v5275
  %5433 = vmatpush1.msra.mxu0 %v5274
  %5434 = vmatprep.subr.mxu0 %v5279
  %5435 = vmatpush1.msra.mxu0 %v5278
  %5436 = vmatprep.subr.mxu0 %v5283
  %5437 = vmatpush1.msra.mxu0 %v5282
  %5438 = vmatprep.subr.mxu0 %v5287
  %5439 = vmatpush1.msra.mxu0 %v5286
  %5440 = vmatprep.subr.mxu0 %v5291
  %5441 = vmatpush1.msra.mxu0 %v5290
  %5442 = vmatprep.subr.mxu0 %v5295
  %5443 = vmatpush1.msra.mxu0 %v5294
  %5444 = vmatprep.subr.mxu0 %v5299
  %5445 = vmatpush1.msra.mxu0 %v5298
  %5446 = vmatprep.subr.mxu0 %v5303
  %5447 = vmatpush1.msra.mxu0 %v5302
  %5448 = vmatprep.subr.mxu0 %v5307
  %5449 = vmatpush1.msra.mxu0 %v5306
  %5450 = vmatprep.subr.mxu0 %v5311
  %5451 = vmatpush1.msra.mxu0 %v5310
  %5452 = vmatprep.subr.mxu0 %v5315
  %5453 = vmatpush1.msra.mxu0 %v5314
  %5454 = vmatprep.subr.mxu0 %v5319
  %5455 = vmatpush1.msra.mxu0 %v5318
  %5456 = vmatprep.subr.mxu0 %v5323
  %5457 = vmatpush1.msra.mxu0 %v5322
  %5458 = vmatprep.subr.mxu0 %v5327
  %5459 = vmatpush1.msra.mxu0 %v5326
  %5460 = vmatprep.subr.mxu0 %v5331
  %5461 = vmatpush1.msra.mxu0 %v5330
  %5462 = vmatprep.subr.mxu0 %v5335
  %5463 = vmatpush1.msra.mxu0 %v5334
  %5464 = vmatprep.subr.mxu0 %v5339
  %5465 = vmatpush1.msra.mxu0 %v5338
  %5466 = vmatprep.subr.mxu0 %v5343
  %5467 = vmatpush1.msra.mxu0 %v5342
  %5468 = vmatprep.subr.mxu0 0.0
  %5469 = vmatpush1.msra.mxu0 0.0
  %5470 = vmatprep.subr.mxu0 0.0
  %5471 = vmatpush1.msra.mxu0 0.0
  %5472 = vmatprep.subr.mxu0 0.0
  %5473 = vmatpush1.msra.mxu0 0.0
  %5474 = vmatprep.subr.mxu0 0.0
  %5475 = vmatpush1.msra.mxu0 0.0
  %5476 = vmatprep.subr.mxu0 0.0
  %5477 = vmatpush1.msra.mxu0 0.0
  %5478 = vmatprep.subr.mxu0 0.0
  %5479 = vmatpush1.msra.mxu0 0.0
  %5480 = vmatprep.subr.mxu0 0.0
  %5481 = vmatpush1.msra.mxu0 0.0
  %5482 = vmatprep.mubr.f32.mxu0 %v5345
  %5483 = vmatmul.mubr.f32.gmra.mrb[0].mxu0 %v4748
  %v5484 = vpop.f32.mrb[0].mxu0
  %v5485 = vadd.f32 0.0, %v5484
  %v5486 = vpop.f32.mrb[0].mxu0
  %v5487 = vadd.f32 0.0, %v5486
  %5488 = vdwg.mxu0
  %v5489 = vadd.f32 %v5168, %v5414
  %v5490 = vadd.f32 %v5170, %v5416
  %v5491 = vadd.f32 %v5239, %v5485
  %v5492 = vadd.f32 %v5241, %v5487
  %s5493 = scalar_lea.vmem %s5, 2400
  %v5494 = vld [vmem:[%s5493] sm:$0xff]
  %v5495 = vld [vmem:[%s5493 + $0x8] sm:$0xff]
  %v5496 = vld [vmem:[%s5493 + $0x10] sm:$0xff]
  %v5497 = vld [vmem:[%s5493 + $0x18] sm:$0xff]
  %v5498 = vld [vmem:[%s5493 + $0x20] sm:$0xff]
  %v5499 = vld [vmem:[%s5493 + $0x28] sm:$0xff]
  %v5500 = vld [vmem:[%s5493 + $0x30] sm:$0xff]
  %v5501 = vld [vmem:[%s5493 + $0x38] sm:$0xff]
  %v5502 = vld [vmem:[%s5493 + $0x40] sm:$0xff]
  %v5503 = vld [vmem:[%s5493 + $0x48] sm:$0xff]
  %v5504 = vld [vmem:[%s5493 + $0x50] sm:$0xff]
  %v5505 = vld [vmem:[%s5493 + $0x58] sm:$0xff]
  %v5506 = vld [vmem:[%s5493 + $0x60] sm:$0xff]
  %v5507 = vld [vmem:[%s5493 + $0x68] sm:$0xff]
  %v5508 = vld [vmem:[%s5493 + $0x70] sm:$0xff]
  %v5509 = vld [vmem:[%s5493 + $0x78] sm:$0xff]
  %v5510 = vld [vmem:[%s5493 + $0x80] sm:$0xff]
  %v5511 = vld [vmem:[%s5493 + $0x88] sm:$0xff]
  %v5512 = vld [vmem:[%s5493 + $0x90] sm:$0xff]
  %v5513 = vld [vmem:[%s5493 + $0x98] sm:$0xff]
  %v5514 = vld [vmem:[%s5493 + $0xa0] sm:$0xff]
  %v5515 = vld [vmem:[%s5493 + $0xa8] sm:$0xff]
  %v5516 = vld [vmem:[%s5493 + $0xb0] sm:$0xff]
  %v5517 = vld [vmem:[%s5493 + $0xb8] sm:$0xff]
  %v5518 = vld [vmem:[%s5493 + $0xc0] sm:$0xff]
  %v5519 = vld [vmem:[%s5493 + $0xc8] sm:$0xff]
  %v5520 = vld [vmem:[%s5493 + $0xd0] sm:$0xff]
  %v5521 = vld [vmem:[%s5493 + $0xd8] sm:$0xff]
  %v5522 = vld [vmem:[%s5493 + $0xe0] sm:$0xff]
  %v5523 = vld [vmem:[%s5493 + $0xe8] sm:$0xff]
  %v5524 = vld [vmem:[%s5493 + $0xf0] sm:$0xff]
  %v5525 = vld [vmem:[%s5493 + $0xf8] sm:$0xff]
  %v5526 = vld [vmem:[%s5493 + $0x100] sm:$0xff]
  %v5527 = vld [vmem:[%s5493 + $0x108] sm:$0xff]
  %v5528 = vld [vmem:[%s5493 + $0x110] sm:$0xff]
  %v5529 = vld [vmem:[%s5493 + $0x118] sm:$0xff]
  %v5530 = vld [vmem:[%s5493 + $0x120] sm:$0xff]
  %v5531 = vld [vmem:[%s5493 + $0x128] sm:$0xff]
  %v5532 = vld [vmem:[%s5493 + $0x130] sm:$0xff]
  %v5533 = vld [vmem:[%s5493 + $0x138] sm:$0xff]
  %v5534 = vld [vmem:[%s5493 + $0x140] sm:$0xff]
  %v5535 = vld [vmem:[%s5493 + $0x148] sm:$0xff]
  %v5536 = vld [vmem:[%s5493 + $0x150] sm:$0xff]
  %v5537 = vld [vmem:[%s5493 + $0x158] sm:$0xff]
  %v5538 = vld [vmem:[%s5493 + $0x160] sm:$0xff]
  %v5539 = vld [vmem:[%s5493 + $0x168] sm:$0xff]
  %v5540 = vld [vmem:[%s5493 + $0x170] sm:$0xff]
  %v5541 = vld [vmem:[%s5493 + $0x178] sm:$0xff]
  %v5542 = vld [vmem:[%s5493 + $0x180] sm:$0xff]
  %v5543 = vld [vmem:[%s5493 + $0x188] sm:$0xff]
  %v5544 = vld [vmem:[%s5493 + $0x190] sm:$0xff]
  %v5545 = vld [vmem:[%s5493 + $0x198] sm:$0xff]
  %v5546 = vld [vmem:[%s5493 + $0x1a0] sm:$0xff]
  %v5547 = vld [vmem:[%s5493 + $0x1a8] sm:$0xff]
  %v5548 = vld [vmem:[%s5493 + $0x1b0] sm:$0xff]
  %v5549 = vld [vmem:[%s5493 + $0x1b8] sm:$0xff]
  %v5550 = vld [vmem:[%s5493 + $0x1c0] sm:$0xff]
  %v5551 = vld [vmem:[%s5493 + $0x1c8] sm:$0xff]
  %v5552 = vld [vmem:[%s5493 + $0x1d0] sm:$0xff]
  %v5553 = vld [vmem:[%s5493 + $0x1d8] sm:$0xff]
  %v5554 = vld [vmem:[%s5493 + $0x1e0] sm:$0xff]
  %v5555 = vld [vmem:[%s5493 + $0x1e8] sm:$0xff]
  %v5556 = vld [vmem:[%s5493 + $0x1f0] sm:$0xff]
  %v5557 = vld [vmem:[%s5493 + $0x1f8] sm:$0xff]
  %v5558 = vld [vmem:[%s5493 + $0x200] sm:$0xff]
  %v5559 = vld [vmem:[%s5493 + $0x208] sm:$0xff]
  %v5560 = vld [vmem:[%s5493 + $0x210] sm:$0xff]
  %v5561 = vld [vmem:[%s5493 + $0x218] sm:$0xff]
  %v5562 = vld [vmem:[%s5493 + $0x220] sm:$0xff]
  %v5563 = vld [vmem:[%s5493 + $0x228] sm:$0xff]
  %v5564 = vld [vmem:[%s5493 + $0x230] sm:$0xff]
  %v5565 = vld [vmem:[%s5493 + $0x238] sm:$0xff]
  %v5566 = vld [vmem:[%s5493 + $0x240] sm:$0xff]
  %v5567 = vld [vmem:[%s5493 + $0x248] sm:$0xff]
  %v5568 = vld [vmem:[%s5493 + $0x250] sm:$0xff]
  %v5569 = vld [vmem:[%s5493 + $0x258] sm:$0xff]
  %v5570 = vld [vmem:[%s5493 + $0x260] sm:$0xff]
  %v5571 = vld [vmem:[%s5493 + $0x268] sm:$0xff]
  %v5572 = vld [vmem:[%s5493 + $0x270] sm:$0xff]
  %v5573 = vld [vmem:[%s5493 + $0x278] sm:$0xff]
  %v5574 = vld [vmem:[%s5493 + $0x280] sm:$0xff]
  %v5575 = vld [vmem:[%s5493 + $0x288] sm:$0xff]
  %v5576 = vld [vmem:[%s5493 + $0x290] sm:$0xff]
  %v5577 = vld [vmem:[%s5493 + $0x298] sm:$0xff]
  %v5578 = vld [vmem:[%s5493 + $0x2a0] sm:$0xff]
  %v5579 = vld [vmem:[%s5493 + $0x2a8] sm:$0xff]
  %v5580 = vld [vmem:[%s5493 + $0x2b0] sm:$0xff]
  %v5581 = vld [vmem:[%s5493 + $0x2b8] sm:$0xff]
  %v5582 = vld [vmem:[%s5493 + $0x2c0] sm:$0xff]
  %v5583 = vld [vmem:[%s5493 + $0x2c8] sm:$0xff]
  %v5584 = vld [vmem:[%s5493 + $0x2d0] sm:$0xff]
  %v5585 = vld [vmem:[%s5493 + $0x2d8] sm:$0xff]
  %v5586 = vld [vmem:[%s5493 + $0x2e0] sm:$0xff]
  %v5587 = vld [vmem:[%s5493 + $0x2e8] sm:$0xff]
  %v5588 = vld [vmem:[%s5493 + $0x2f0] sm:$0xff]
  %v5589 = vld [vmem:[%s5493 + $0x2f8] sm:$0xff]
  %v5590 = vld [vmem:[%s5493 + $0x300] sm:$0xff]
  %v5591 = vld [vmem:[%s5493 + $0x308] sm:$0xff]
  %v5592 = vld [vmem:[%s5493 + $0x310] sm:$0xff]
  %v5593 = vld [vmem:[%s5493 + $0x318] sm:$0xff]
  %v5595 = vsel %vm4708, %v4751, 0
  %5597 = vmatprep.subr.mxu0 %v5495
  %5598 = vmatpush1.msra.mxu0 %v5494
  %5599 = vmatprep.subr.mxu0 %v5499
  %5600 = vmatpush1.msra.mxu0 %v5498
  %5601 = vmatprep.subr.mxu0 %v5503
  %5602 = vmatpush1.msra.mxu0 %v5502
  %5603 = vmatprep.subr.mxu0 %v5507
  %5604 = vmatpush1.msra.mxu0 %v5506
  %5605 = vmatprep.subr.mxu0 %v5511
  %5606 = vmatpush1.msra.mxu0 %v5510
  %5607 = vmatprep.subr.mxu0 %v5515
  %5608 = vmatpush1.msra.mxu0 %v5514
  %5609 = vmatprep.subr.mxu0 %v5519
  %5610 = vmatpush1.msra.mxu0 %v5518
  %5611 = vmatprep.subr.mxu0 %v5523
  %5612 = vmatpush1.msra.mxu0 %v5522
  %5613 = vmatprep.subr.mxu0 %v5527
  %5614 = vmatpush1.msra.mxu0 %v5526
  %5615 = vmatprep.subr.mxu0 %v5531
  %5616 = vmatpush1.msra.mxu0 %v5530
  %5617 = vmatprep.subr.mxu0 %v5535
  %5618 = vmatpush1.msra.mxu0 %v5534
  %5619 = vmatprep.subr.mxu0 %v5539
  %5620 = vmatpush1.msra.mxu0 %v5538
  %5621 = vmatprep.subr.mxu0 %v5543
  %5622 = vmatpush1.msra.mxu0 %v5542
  %5623 = vmatprep.subr.mxu0 %v5547
  %5624 = vmatpush1.msra.mxu0 %v5546
  %5625 = vmatprep.subr.mxu0 %v5551
  %5626 = vmatpush1.msra.mxu0 %v5550
  %5627 = vmatprep.subr.mxu0 %v5555
  %5628 = vmatpush1.msra.mxu0 %v5554
  %5629 = vmatprep.subr.mxu0 %v5559
  %5630 = vmatpush1.msra.mxu0 %v5558
  %5631 = vmatprep.subr.mxu0 %v5563
  %5632 = vmatpush1.msra.mxu0 %v5562
  %5633 = vmatprep.subr.mxu0 %v5567
  %5634 = vmatpush1.msra.mxu0 %v5566
  %5635 = vmatprep.subr.mxu0 %v5571
  %5636 = vmatpush1.msra.mxu0 %v5570
  %5637 = vmatprep.subr.mxu0 %v5575
  %5638 = vmatpush1.msra.mxu0 %v5574
  %5639 = vmatprep.subr.mxu0 %v5579
  %5640 = vmatpush1.msra.mxu0 %v5578
  %5641 = vmatprep.subr.mxu0 %v5583
  %5642 = vmatpush1.msra.mxu0 %v5582
  %5643 = vmatprep.subr.mxu0 %v5587
  %5644 = vmatpush1.msra.mxu0 %v5586
  %5645 = vmatprep.subr.mxu0 %v5591
  %5646 = vmatpush1.msra.mxu0 %v5590
  %5647 = vmatprep.subr.mxu0 0.0
  %5648 = vmatpush1.msra.mxu0 0.0
  %5649 = vmatprep.subr.mxu0 0.0
  %5650 = vmatpush1.msra.mxu0 0.0
  %5651 = vmatprep.subr.mxu0 0.0
  %5652 = vmatpush1.msra.mxu0 0.0
  %5653 = vmatprep.subr.mxu0 0.0
  %5654 = vmatpush1.msra.mxu0 0.0
  %5655 = vmatprep.subr.mxu0 0.0
  %5656 = vmatpush1.msra.mxu0 0.0
  %5657 = vmatprep.subr.mxu0 0.0
  %5658 = vmatpush1.msra.mxu0 0.0
  %5659 = vmatprep.subr.mxu0 0.0
  %5660 = vmatpush1.msra.mxu0 0.0
  %5661 = vmatprep.mubr.f32.mxu0 %v5595
  %5662 = vmatmul.mubr.f32.gmra.mrb[0].mxu0 %v4750
  %v5663 = vpop.f32.mrb[0].mxu0
  %v5664 = vadd.f32 0.0, %v5663
  %v5665 = vpop.f32.mrb[0].mxu0
  %v5666 = vadd.f32 0.0, %v5665
  %5667 = vdwg.mxu0
  %5668 = vmatprep.subr.mxu0 %v5497
  %5669 = vmatpush1.msra.mxu0 %v5496
  %5670 = vmatprep.subr.mxu0 %v5501
  %5671 = vmatpush1.msra.mxu0 %v5500
  %5672 = vmatprep.subr.mxu0 %v5505
  %5673 = vmatpush1.msra.mxu0 %v5504
  %5674 = vmatprep.subr.mxu0 %v5509
  %5675 = vmatpush1.msra.mxu0 %v5508
  %5676 = vmatprep.subr.mxu0 %v5513
  %5677 = vmatpush1.msra.mxu0 %v5512
  %5678 = vmatprep.subr.mxu0 %v5517
  %5679 = vmatpush1.msra.mxu0 %v5516
  %5680 = vmatprep.subr.mxu0 %v5521
  %5681 = vmatpush1.msra.mxu0 %v5520
  %5682 = vmatprep.subr.mxu0 %v5525
  %5683 = vmatpush1.msra.mxu0 %v5524
  %5684 = vmatprep.subr.mxu0 %v5529
  %5685 = vmatpush1.msra.mxu0 %v5528
  %5686 = vmatprep.subr.mxu0 %v5533
  %5687 = vmatpush1.msra.mxu0 %v5532
  %5688 = vmatprep.subr.mxu0 %v5537
  %5689 = vmatpush1.msra.mxu0 %v5536
  %5690 = vmatprep.subr.mxu0 %v5541
  %5691 = vmatpush1.msra.mxu0 %v5540
  %5692 = vmatprep.subr.mxu0 %v5545
  %5693 = vmatpush1.msra.mxu0 %v5544
  %5694 = vmatprep.subr.mxu0 %v5549
  %5695 = vmatpush1.msra.mxu0 %v5548
  %5696 = vmatprep.subr.mxu0 %v5553
  %5697 = vmatpush1.msra.mxu0 %v5552
  %5698 = vmatprep.subr.mxu0 %v5557
  %5699 = vmatpush1.msra.mxu0 %v5556
  %5700 = vmatprep.subr.mxu0 %v5561
  %5701 = vmatpush1.msra.mxu0 %v5560
  %5702 = vmatprep.subr.mxu0 %v5565
  %5703 = vmatpush1.msra.mxu0 %v5564
  %5704 = vmatprep.subr.mxu0 %v5569
  %5705 = vmatpush1.msra.mxu0 %v5568
  %5706 = vmatprep.subr.mxu0 %v5573
  %5707 = vmatpush1.msra.mxu0 %v5572
  %5708 = vmatprep.subr.mxu0 %v5577
  %5709 = vmatpush1.msra.mxu0 %v5576
  %5710 = vmatprep.subr.mxu0 %v5581
  %5711 = vmatpush1.msra.mxu0 %v5580
  %5712 = vmatprep.subr.mxu0 %v5585
  %5713 = vmatpush1.msra.mxu0 %v5584
  %5714 = vmatprep.subr.mxu0 %v5589
  %5715 = vmatpush1.msra.mxu0 %v5588
  %5716 = vmatprep.subr.mxu0 %v5593
  %5717 = vmatpush1.msra.mxu0 %v5592
  %5718 = vmatprep.subr.mxu0 0.0
  %5719 = vmatpush1.msra.mxu0 0.0
  %5720 = vmatprep.subr.mxu0 0.0
  %5721 = vmatpush1.msra.mxu0 0.0
  %5722 = vmatprep.subr.mxu0 0.0
  %5723 = vmatpush1.msra.mxu0 0.0
  %5724 = vmatprep.subr.mxu0 0.0
  %5725 = vmatpush1.msra.mxu0 0.0
  %5726 = vmatprep.subr.mxu0 0.0
  %5727 = vmatpush1.msra.mxu0 0.0
  %5728 = vmatprep.subr.mxu0 0.0
  %5729 = vmatpush1.msra.mxu0 0.0
  %5730 = vmatprep.subr.mxu0 0.0
  %5731 = vmatpush1.msra.mxu0 0.0
  %5732 = vmatprep.mubr.f32.mxu0 %v5595
  %5733 = vmatmul.mubr.f32.gmra.mrb[0].mxu0 %v4750
  %v5734 = vpop.f32.mrb[0].mxu0
  %v5735 = vadd.f32 0.0, %v5734
  %v5736 = vpop.f32.mrb[0].mxu0
  %v5737 = vadd.f32 0.0, %v5736
  %5738 = vdwg.mxu0
  %v5739 = vadd.f32 %v5489, %v5664
  %v5740 = vadd.f32 %v5490, %v5666
  %v5741 = vadd.f32 %v5491, %v5735
  %v5742 = vadd.f32 %v5492, %v5737
  %v5743 = vld [vmem:[%s6] sm:$0xf]
  %v5745 = vlaneseq
  %v5746 = vshrl.u32 %v5745, 7
  %v5747 = vsub.s32 0, %v5746
  %v5748 = vrot.slane %v5743, %v5747
  %v5749 = vlaneseq
  %v5750 = vshrl.u32 %v5749, 7
  %v5751 = vsub.s32 1, %v5750
  %v5752 = vrot.slane %v5743, %v5751
  %v5753 = vlaneseq
  %v5754 = vshrl.u32 %v5753, 7
  %v5755 = vsub.s32 2, %v5754
  %v5756 = vrot.slane %v5743, %v5755
  %v5757 = vlaneseq
  %v5758 = vshrl.u32 %v5757, 7
  %v5759 = vsub.s32 3, %v5758
  %v5760 = vrot.slane %v5743, %v5759
  %v5765 = vadd.f32 %v5739, %v5748
  %v5766 = vadd.f32 %v5740, %v5752
  %v5767 = vadd.f32 %v5741, %v5756
  %v5768 = vadd.f32 %v5742, %v5760
  %v5769 = vmax.f32 %v5765, 0.0
  %v5770 = vmax.f32 %v5766, 0.0
  %v5771 = vmax.f32 %v5767, 0.0
  %v5772 = vmax.f32 %v5768, 0.0
  %v5773 = vld [vmem:[%s7] sm:$0xff]
  %v5774 = vld [vmem:[%s7 + $0x8] sm:$0xff]
  %v5775 = vld [vmem:[%s7 + $0x10] sm:$0xff]
  %v5776 = vld [vmem:[%s7 + $0x18] sm:$0xff]
  %v5777 = vld [vmem:[%s7 + $0x20] sm:$0xff]
  %v5778 = vld [vmem:[%s7 + $0x28] sm:$0xff]
  %v5779 = vld [vmem:[%s7 + $0x30] sm:$0xff]
  %v5780 = vld [vmem:[%s7 + $0x38] sm:$0xff]
  %v5781 = vld [vmem:[%s7 + $0x40] sm:$0xff]
  %v5782 = vld [vmem:[%s7 + $0x48] sm:$0xff]
  %v5783 = vld [vmem:[%s7 + $0x50] sm:$0xff]
  %v5784 = vld [vmem:[%s7 + $0x58] sm:$0xff]
  %v5785 = vld [vmem:[%s7 + $0x60] sm:$0xff]
  %v5786 = vld [vmem:[%s7 + $0x68] sm:$0xff]
  %v5787 = vld [vmem:[%s7 + $0x70] sm:$0xff]
  %v5788 = vld [vmem:[%s7 + $0x78] sm:$0xff]
  %v5789 = vld [vmem:[%s7 + $0x80] sm:$0xff]
  %v5790 = vld [vmem:[%s7 + $0x88] sm:$0xff]
  %v5791 = vld [vmem:[%s7 + $0x90] sm:$0xff]
  %v5792 = vld [vmem:[%s7 + $0x98] sm:$0xff]
  %v5793 = vld [vmem:[%s7 + $0xa0] sm:$0xff]
  %v5794 = vld [vmem:[%s7 + $0xa8] sm:$0xff]
  %v5795 = vld [vmem:[%s7 + $0xb0] sm:$0xff]
  %v5796 = vld [vmem:[%s7 + $0xb8] sm:$0xff]
  %v5797 = vld [vmem:[%s7 + $0xc0] sm:$0xff]
  %v5798 = vld [vmem:[%s7 + $0xc8] sm:$0xff]
  %v5799 = vld [vmem:[%s7 + $0xd0] sm:$0xff]
  %v5800 = vld [vmem:[%s7 + $0xd8] sm:$0xff]
  %v5801 = vld [vmem:[%s7 + $0xe0] sm:$0xff]
  %v5802 = vld [vmem:[%s7 + $0xe8] sm:$0xff]
  %v5803 = vld [vmem:[%s7 + $0xf0] sm:$0xff]
  %v5804 = vld [vmem:[%s7 + $0xf8] sm:$0xff]
  %v5805 = vld [vmem:[%s7 + $0x100] sm:$0xff]
  %v5806 = vld [vmem:[%s7 + $0x108] sm:$0xff]
  %v5807 = vld [vmem:[%s7 + $0x110] sm:$0xff]
  %v5808 = vld [vmem:[%s7 + $0x118] sm:$0xff]
  %v5809 = vld [vmem:[%s7 + $0x120] sm:$0xff]
  %v5810 = vld [vmem:[%s7 + $0x128] sm:$0xff]
  %v5811 = vld [vmem:[%s7 + $0x130] sm:$0xff]
  %v5812 = vld [vmem:[%s7 + $0x138] sm:$0xff]
  %v5813 = vld [vmem:[%s7 + $0x140] sm:$0xff]
  %v5814 = vld [vmem:[%s7 + $0x148] sm:$0xff]
  %v5815 = vld [vmem:[%s7 + $0x150] sm:$0xff]
  %v5816 = vld [vmem:[%s7 + $0x158] sm:$0xff]
  %v5817 = vld [vmem:[%s7 + $0x160] sm:$0xff]
  %v5818 = vld [vmem:[%s7 + $0x168] sm:$0xff]
  %v5819 = vld [vmem:[%s7 + $0x170] sm:$0xff]
  %v5820 = vld [vmem:[%s7 + $0x178] sm:$0xff]
  %v5821 = vld [vmem:[%s7 + $0x180] sm:$0xff]
  %v5822 = vld [vmem:[%s7 + $0x188] sm:$0xff]
  %v5823 = vld [vmem:[%s7 + $0x190] sm:$0xff]
  %v5824 = vld [vmem:[%s7 + $0x198] sm:$0xff]
  %v5825 = vld [vmem:[%s7 + $0x1a0] sm:$0xff]
  %v5826 = vld [vmem:[%s7 + $0x1a8] sm:$0xff]
  %v5827 = vld [vmem:[%s7 + $0x1b0] sm:$0xff]
  %v5828 = vld [vmem:[%s7 + $0x1b8] sm:$0xff]
  %v5829 = vld [vmem:[%s7 + $0x1c0] sm:$0xff]
  %v5830 = vld [vmem:[%s7 + $0x1c8] sm:$0xff]
  %v5831 = vld [vmem:[%s7 + $0x1d0] sm:$0xff]
  %v5832 = vld [vmem:[%s7 + $0x1d8] sm:$0xff]
  %v5833 = vld [vmem:[%s7 + $0x1e0] sm:$0xff]
  %v5834 = vld [vmem:[%s7 + $0x1e8] sm:$0xff]
  %v5835 = vld [vmem:[%s7 + $0x1f0] sm:$0xf]
  %v5836 = vld [vmem:[%s8] sm:$0x1]
  %v5838 = vlaneseq
  %v5839 = vshrl.u32 %v5838, 7
  %v5840 = vsub.s32 0, %v5839
  %v5841 = vrot.slane %v5836, %v5840
  %vm5843 = vcmask 949248
  %v5845 = vsel %vm5843, %v5772, 0
  %v5848 = vsel %vm166, %v5835, 0
  %5850 = vmatprep.subr.mxu0 0.0
  %5851 = vmatpush1.msra.mxu0 %v5773
  %5852 = vmatprep.subr.mxu0 0.0
  %5853 = vmatpush1.msra.mxu0 %v5774
  %5854 = vmatprep.subr.mxu0 0.0
  %5855 = vmatpush1.msra.mxu0 %v5775
  %5856 = vmatprep.subr.mxu0 0.0
  %5857 = vmatpush1.msra.mxu0 %v5776
  %5858 = vmatprep.subr.mxu0 0.0
  %5859 = vmatpush1.msra.mxu0 %v5777
  %5860 = vmatprep.subr.mxu0 0.0
  %5861 = vmatpush1.msra.mxu0 %v5778
  %5862 = vmatprep.subr.mxu0 0.0
  %5863 = vmatpush1.msra.mxu0 %v5779
  %5864 = vmatprep.subr.mxu0 0.0
  %5865 = vmatpush1.msra.mxu0 %v5780
  %5866 = vmatprep.subr.mxu0 0.0
  %5867 = vmatpush1.msra.mxu0 %v5781
  %5868 = vmatprep.subr.mxu0 0.0
  %5869 = vmatpush1.msra.mxu0 %v5782
  %5870 = vmatprep.subr.mxu0 0.0
  %5871 = vmatpush1.msra.mxu0 %v5783
  %5872 = vmatprep.subr.mxu0 0.0
  %5873 = vmatpush1.msra.mxu0 %v5784
  %5874 = vmatprep.subr.mxu0 0.0
  %5875 = vmatpush1.msra.mxu0 %v5785
  %5876 = vmatprep.subr.mxu0 0.0
  %5877 = vmatpush1.msra.mxu0 %v5786
  %5878 = vmatprep.subr.mxu0 0.0
  %5879 = vmatpush1.msra.mxu0 %v5787
  %5880 = vmatprep.subr.mxu0 0.0
  %5881 = vmatpush1.msra.mxu0 %v5788
  %5882 = vmatprep.subr.mxu0 0.0
  %5883 = vmatpush1.msra.mxu0 %v5789
  %5884 = vmatprep.subr.mxu0 0.0
  %5885 = vmatpush1.msra.mxu0 %v5790
  %5886 = vmatprep.subr.mxu0 0.0
  %5887 = vmatpush1.msra.mxu0 %v5791
  %5888 = vmatprep.subr.mxu0 0.0
  %5889 = vmatpush1.msra.mxu0 %v5792
  %5890 = vmatprep.subr.mxu0 0.0
  %5891 = vmatpush1.msra.mxu0 %v5793
  %5892 = vmatprep.subr.mxu0 0.0
  %5893 = vmatpush1.msra.mxu0 %v5794
  %5894 = vmatprep.subr.mxu0 0.0
  %5895 = vmatpush1.msra.mxu0 %v5795
  %5896 = vmatprep.subr.mxu0 0.0
  %5897 = vmatpush1.msra.mxu0 %v5796
  %5898 = vmatprep.subr.mxu0 0.0
  %5899 = vmatpush1.msra.mxu0 %v5797
  %5900 = vmatprep.subr.mxu0 0.0
  %5901 = vmatpush1.msra.mxu0 %v5798
  %5902 = vmatprep.subr.mxu0 0.0
  %5903 = vmatpush1.msra.mxu0 %v5799
  %5904 = vmatprep.subr.mxu0 0.0
  %5905 = vmatpush1.msra.mxu0 %v5800
  %5906 = vmatprep.subr.mxu0 0.0
  %5907 = vmatpush1.msra.mxu0 %v5801
  %5908 = vmatprep.subr.mxu0 0.0
  %5909 = vmatpush1.msra.mxu0 %v5802
  %5910 = vmatprep.subr.mxu0 0.0
  %5911 = vmatpush1.msra.mxu0 %v5803
  %5912 = vmatprep.subr.mxu0 0.0
  %5913 = vmatpush1.msra.mxu0 %v5804
  %5914 = vmatprep.mubr.f32.mxu0 %v5770
  %5915 = vmatmul.mubr.f32.gmra.mrb[0].mxu0 %v5769
  %v5916 = vpop.f32.mrb[0].mxu0
  %v5917 = vadd.f32 %v5841, %v5916
  %v5918 = vpop.f32.mrb[0].mxu0
  %5919 = vdwg.mxu0
  %5920 = vmatprep.subr.mxu0 0.0
  %5921 = vmatpush1.msra.mxu0 %v5805
  %5922 = vmatprep.subr.mxu0 0.0
  %5923 = vmatpush1.msra.mxu0 %v5806
  %5924 = vmatprep.subr.mxu0 0.0
  %5925 = vmatpush1.msra.mxu0 %v5807
  %5926 = vmatprep.subr.mxu0 0.0
  %5927 = vmatpush1.msra.mxu0 %v5808
  %5928 = vmatprep.subr.mxu0 0.0
  %5929 = vmatpush1.msra.mxu0 %v5809
  %5930 = vmatprep.subr.mxu0 0.0
  %5931 = vmatpush1.msra.mxu0 %v5810
  %5932 = vmatprep.subr.mxu0 0.0
  %5933 = vmatpush1.msra.mxu0 %v5811
  %5934 = vmatprep.subr.mxu0 0.0
  %5935 = vmatpush1.msra.mxu0 %v5812
  %5936 = vmatprep.subr.mxu0 0.0
  %5937 = vmatpush1.msra.mxu0 %v5813
  %5938 = vmatprep.subr.mxu0 0.0
  %5939 = vmatpush1.msra.mxu0 %v5814
  %5940 = vmatprep.subr.mxu0 0.0
  %5941 = vmatpush1.msra.mxu0 %v5815
  %5942 = vmatprep.subr.mxu0 0.0
  %5943 = vmatpush1.msra.mxu0 %v5816
  %5944 = vmatprep.subr.mxu0 0.0
  %5945 = vmatpush1.msra.mxu0 %v5817
  %5946 = vmatprep.subr.mxu0 0.0
  %5947 = vmatpush1.msra.mxu0 %v5818
  %5948 = vmatprep.subr.mxu0 0.0
  %5949 = vmatpush1.msra.mxu0 %v5819
  %5950 = vmatprep.subr.mxu0 0.0
  %5951 = vmatpush1.msra.mxu0 %v5820
  %5952 = vmatprep.subr.mxu0 0.0
  %5953 = vmatpush1.msra.mxu0 %v5821
  %5954 = vmatprep.subr.mxu0 0.0
  %5955 = vmatpush1.msra.mxu0 %v5822
  %5956 = vmatprep.subr.mxu0 0.0
  %5957 = vmatpush1.msra.mxu0 %v5823
  %5958 = vmatprep.subr.mxu0 0.0
  %5959 = vmatpush1.msra.mxu0 %v5824
  %5960 = vmatprep.subr.mxu0 0.0
  %5961 = vmatpush1.msra.mxu0 %v5825
  %5962 = vmatprep.subr.mxu0 0.0
  %5963 = vmatpush1.msra.mxu0 %v5826
  %5964 = vmatprep.subr.mxu0 0.0
  %5965 = vmatpush1.msra.mxu0 %v5827
  %5966 = vmatprep.subr.mxu0 0.0
  %5967 = vmatpush1.msra.mxu0 %v5828
  %5968 = vmatprep.subr.mxu0 0.0
  %5969 = vmatpush1.msra.mxu0 %v5829
  %5970 = vmatprep.subr.mxu0 0.0
  %5971 = vmatpush1.msra.mxu0 %v5830
  %5972 = vmatprep.subr.mxu0 0.0
  %5973 = vmatpush1.msra.mxu0 %v5831
  %5974 = vmatprep.subr.mxu0 0.0
  %5975 = vmatpush1.msra.mxu0 %v5832
  %5976 = vmatprep.subr.mxu0 0.0
  %5977 = vmatpush1.msra.mxu0 %v5833
  %5978 = vmatprep.subr.mxu0 0.0
  %5979 = vmatpush1.msra.mxu0 %v5834
  %5980 = vmatprep.subr.mxu0 0.0
  %5981 = vmatpush1.msra.mxu0 %v5848
  %5982 = vmatprep.subr.mxu0 0.0
  %5983 = vmatpush1.msra.mxu0 0.0
  %5984 = vmatprep.mubr.f32.mxu0 %v5845
  %5985 = vmatmul.mubr.f32.gmra.mrb[0].mxu0 %v5771
  %v5986 = vpop.f32.mrb[0].mxu0
  %v5987 = vadd.f32 %v5917, %v5986
  %v5988 = vpop.f32.mrb[0].mxu0
  %5989 = vdwg.mxu0
  %5990 = vst [vmem:[%s9] sm:$0xff] %v5987
  // Predicated region
  $region38: #{net_forward.1} parent=0 // pred_check
    _
  $region39: #{net_forward.1} parent=0 // pred_check_branch
    %5992 = sbr.rel (0) target = $region41
  $region40: #{net_forward.1} parent=0 // pred_region
    _
  $region41: #{net_forward.1} parent=0 // pred_fallthru
    _
  // Predicated region
  $region42: #{net_forward.1} parent=0 // pred_check
    _
  $region43: #{net_forward.1} parent=0 // pred_check_branch
    %5994 = sbr.rel (0) target = $region45
  $region44: #{net_forward.1} parent=0 // pred_region
    _
  $region45: #{net_forward.1} parent=0 // pred_fallthru
    _

</llo_original>
